<compile_context>
chip_gen: v7x
topology: tpu7x:2x2x1
jax: 0.10.0
libtpu: 0.0.40
codegen_flags: <defaults>
</compile_context>

<pallas_src>
import jax
import jax.numpy as jnp
import numpy as np
from jax import lax
from jax.experimental import pallas as pl
from jax.experimental.pallas import tpu as pltpu

_EPS = 1e-5


def _vmem_limit_bytes():
    """~60% of physical VMEM (v7x: ~38 MiB of 64; v5e/v6e: ~76 of 128)."""
    cap = 128 * 1024 * 1024
    try:
        cap = int(pltpu.get_tpu_info().vmem_capacity_bytes)
    except Exception:
        pass
    return max(32 * 1024 * 1024, int(cap * 0.6))


# ---------------------------------------------------------------------------
# In-kernel helpers
# ---------------------------------------------------------------------------
def _conv_taps(pad_ref, Ho, Wo, stride):
    """Nine 3x3-conv taps, each (Ho*Wo, C), in (ky, kx) row-major order.

    Reads from the zero-padded bf16 VMEM scratch.  Stride > 1 is handled with
    reshape + static slicing (no strided loads).
    """
    C = pad_ref.shape[-1]
    taps = []
    for ky in range(3):
        for kx in range(3):
            if stride == 1:
                t = pad_ref[:, ky:ky + Ho, kx:kx + Wo, :]          # (1,Ho,Wo,C)
            else:
                s = stride
                t = pad_ref[:, ky:ky + s * Ho, kx:kx + s * Wo, :]  # (1,sHo,sWo,C)
                t = t.reshape(Ho, s, s * Wo, C)[:, 0]              # rows ky+s*oy
                t = t.reshape(Ho, Wo, s, C)[:, :, 0]               # cols kx+s*ox
            taps.append(t.reshape(Ho * Wo, C))
    return taps


def _conv3x3(taps, w_ref, Cout):
    """sum_k taps[k] @ w_ref[k]  (bf16 operands, f32 accumulation)."""
    acc = jnp.zeros((taps[0].shape[0], Cout), jnp.float32)
    for k in range(9):
        acc = acc + jnp.dot(taps[k], w_ref[k],
                            preferred_element_type=jnp.float32)
    return acc


def _accum_stats(st_ref, row, v):
    """Accumulate per-channel sum / sum-of-squares of v (rows = pixels)."""
    st_ref[:, row:row + 1, :] += (
        jnp.sum(v, axis=0, keepdims=True).reshape(1, 1, -1))
    st_ref[:, row + 1:row + 2, :] += (
        jnp.sum(v * v, axis=0, keepdims=True).reshape(1, 1, -1))


# ---------------------------------------------------------------------------
# Kernels
# ---------------------------------------------------------------------------
def _make_stage1_kernel(H, W, Ho, Wo, stride, Cp, has_proj):
    """conv1 (3x3, stride) [+ 1x1 projection shortcut] + BN statistics."""

    def _body(x_ref, w1_ref, wsc_ref, h1_ref, sc_ref, st_ref, pad_ref):
        b = pl.program_id(1)

        @pl.when(b == 0)
        def _init():
            # Zero once per core: the halo must stay zero; the interior
            # [1:H+1, 1:W+1, :] is overwritten on every grid step.
            pad_ref[...] = jnp.zeros_like(pad_ref)
            st_ref[...] = jnp.zeros_like(st_ref)

        pad_ref[:, 1:H + 1, 1:W + 1, :] = x_ref[...]
        taps = _conv_taps(pad_ref, Ho, Wo, stride)
        h1 = _conv3x3(taps, w1_ref, Cp)                        # (Mb, Cp) f32
        h1_ref[...] = h1.reshape(1, Ho, Wo, Cp).astype(h1_ref.dtype)
        _accum_stats(st_ref, 0, h1)

        if has_proj:
            # 1x1 strided shortcut conv == centre tap of the 3x3 patch set,
            # so it shares the x tile DMA and the padded scratch.
            sc = jnp.dot(taps[4], wsc_ref[...],
                         preferred_element_type=jnp.float32)   # (Mb, Cp)
            sc_ref[...] = sc.reshape(1, Ho, Wo, Cp).astype(sc_ref.dtype)
            _accum_stats(st_ref, 2, sc)

    if has_proj:
        def kernel(x_ref, w1_ref, wsc_ref, h1_ref, sc_ref, st_ref, pad_ref):
            _body(x_ref, w1_ref, wsc_ref, h1_ref, sc_ref, st_ref, pad_ref)
    else:
        def kernel(x_ref, w1_ref, h1_ref, st_ref, pad_ref):
            _body(x_ref, w1_ref, None, h1_ref, None, st_ref, pad_ref)
    return kernel


def _make_stage2_kernel(Ho, Wo, Cp):
    """bn1 (precomputed scale/shift, f32) + relu, conv2 (3x3, s=1), BN2 stats."""

    def kernel(h1_ref, s1_ref, t1_ref, w2_ref, h2_ref, st_ref, pad_ref):
        b = pl.program_id(1)

        @pl.when(b == 0)
        def _init():
            pad_ref[...] = jnp.zeros_like(pad_ref)
            st_ref[...] = jnp.zeros_like(st_ref)

        s1 = s1_ref[...].reshape(1, 1, 1, Cp)
        t1 = t1_ref[...].reshape(1, 1, 1, Cp)
        h1 = jnp.maximum(h1_ref[...].astype(jnp.float32) * s1 + t1, 0.0)
        pad_ref[:, 1:Ho + 1, 1:Wo + 1, :] = h1.astype(pad_ref.dtype)
        taps = _conv_taps(pad_ref, Ho, Wo, 1)
        h2 = _conv3x3(taps, w2_ref, Cp)                        # (Mb, Cp) f32
        h2_ref[...] = h2.reshape(1, Ho, Wo, Cp).astype(h2_ref.dtype)
        _accum_stats(st_ref, 0, h2)

    return kernel


def _make_stage3_kernel(has_proj, Cp):
    """bn2 + shortcut (projection-bn or identity) + residual add + relu."""
    # TODO(synk): when this block is part of a ResNet stack, fuse this
    # elementwise stage into the next block's stage 1 and drop it entirely.

    if has_proj:
        def kernel(h2_ref, sc_ref, s2_ref, t2_ref, ssc_ref, tsc_ref, out_ref):
            s2 = s2_ref[...].reshape(1, 1, 1, Cp)
            t2 = t2_ref[...].reshape(1, 1, 1, Cp)
            ssc = ssc_ref[...].reshape(1, 1, 1, Cp)
            tsc = tsc_ref[...].reshape(1, 1, 1, Cp)
            h2 = h2_ref[...].astype(jnp.float32) * s2 + t2
            sc = sc_ref[...].astype(jnp.float32) * ssc + tsc
            out_ref[...] = jnp.maximum(h2 + sc, 0.0).astype(out_ref.dtype)
    else:
        def kernel(h2_ref, x_ref, s2_ref, t2_ref, out_ref):
            s2 = s2_ref[...].reshape(1, 1, 1, Cp)
            t2 = t2_ref[...].reshape(1, 1, 1, Cp)
            h2 = h2_ref[...].astype(jnp.float32) * s2 + t2
            out_ref[...] = jnp.maximum(
                h2 + x_ref[...].astype(jnp.float32), 0.0).astype(out_ref.dtype)
    return kernel


# ---------------------------------------------------------------------------
# Wrapper
# ---------------------------------------------------------------------------
def _bn_scale_shift(sum_row, sq_row, count, gamma, beta):
    """Fold training-mode BN stats into per-channel y = x*scale + shift."""
    mean = sum_row / count
    var = jnp.maximum(sq_row / count - mean * mean, 0.0)   # clamp E[x^2]-m^2
    scale = gamma.astype(jnp.float32) * lax.rsqrt(var + _EPS)
    shift = beta.astype(jnp.float32) - mean * scale
    return scale.reshape(1, -1), shift.reshape(1, -1)


def basic_block_forward_nhwc(x_nhwc, params, stride):
    """NHWC Pallas BasicBlock forward: (N, H, W, Cin) -> (N, Ho, Wo, Cp) f32."""
    N, H, W, Cin = x_nhwc.shape
    Cp = params['w1'].shape[-1]
    stride = int(stride)
    Ho = (H - 1) // stride + 1
    Wo = (W - 1) // stride + 1
    M = N * Ho * Wo
    has_proj = (stride != 1) or (Cin != Cp)

    f32, bf16 = jnp.float32, jnp.bfloat16
    vmem_limit = _vmem_limit_bytes()

    # bf16 at the MXU / HBM boundary; f32 everywhere else.
    x = x_nhwc.astype(bf16)
    w1 = params['w1'].reshape(9, Cin, Cp).astype(bf16)     # (ky*kx, Cin, Cp)
    w2 = params['w2'].reshape(9, Cp, Cp).astype(bf16)

    # Megacore: leading "parallel" grid axis over batch halves; per-half BN
    # partial stats are reduced in the wrapper (keeps both v7x TCs busy).
    nsplit = 2 if (N % 2 == 0 and N >= 2) else 1
    nb = N // nsplit

    act_bf16 = jax.ShapeDtypeStruct((N, Ho, Wo, Cp), bf16)
    act_spec = pl.BlockSpec((1, Ho, Wo, Cp), lambda c, b: (c * nb + b, 0, 0, 0))
    row_spec = pl.BlockSpec((1, Cp), lambda c, b: (0, 0))

    def full_spec(shape):
        return pl.BlockSpec(shape, lambda c, b: (0,) * len(shape))

    # ------------- stage 1: conv1 (+ projection shortcut) + BN stats --------
    nstats = 4 if has_proj else 2
    st_spec1 = pl.BlockSpec((1, nstats, Cp), lambda c, b: (c, 0, 0))

    in_specs1 = [pl.BlockSpec((1, H, W, Cin), lambda c, b: (c * nb + b, 0, 0, 0)),
                 full_spec((9, Cin, Cp))]
    inputs1 = [x, w1]
    out_shapes1 = [act_bf16]
    out_specs1 = [act_spec]
    if has_proj:
        wsc = params['wsc'].reshape(Cin, Cp).astype(bf16)
        in_specs1.append(full_spec((Cin, Cp)))
        inputs1.append(wsc)
        out_shapes1.append(act_bf16)
        out_specs1.append(act_spec)
    out_shapes1.append(jax.ShapeDtypeStruct((nsplit, nstats, Cp), f32))
    out_specs1.append(st_spec1)

    flops1 = 2 * M * 9 * Cin * Cp + (2 * M * Cin * Cp if has_proj else 0)
    bytes1 = (2 * N * H * W * Cin + 2 * 9 * Cin * Cp
              + 2 * (2 if has_proj else 1) * M * Cp + 4 * nsplit * nstats * Cp)
    stage1_out = pl.pallas_call(
        _make_stage1_kernel(H, W, Ho, Wo, stride, Cp, has_proj),
        grid=(nsplit, nb),
        in_specs=in_specs1,
        out_specs=tuple(out_specs1),
        out_shape=tuple(out_shapes1),
        scratch_shapes=[pltpu.VMEM(
            (1, stride * Ho + 2, stride * Wo + 2, Cin), bf16)],
        compiler_params=pltpu.CompilerParams(
            dimension_semantics=("parallel", "arbitrary"),
            vmem_limit_bytes=vmem_limit),
        cost_estimate=pl.CostEstimate(flops=flops1, transcendentals=0,
                                      bytes_accessed=bytes1),
    )(*inputs1)

    if has_proj:
        h1_raw, sc_raw, stats1 = stage1_out
    else:
        h1_raw, stats1 = stage1_out
        sc_raw = None
    stats1 = jnp.sum(stats1, axis=0)                       # reduce partials
    s1, t1 = _bn_scale_shift(stats1[0], stats1[1], float(M),
                             params['g1'], params['b1'])

    # ------------- stage 2: bn1 + relu, conv2, BN2 stats ---------------------
    flops2 = 2 * M * 9 * Cp * Cp + 8 * M * Cp
    bytes2 = 2 * 2 * M * Cp + 2 * 9 * Cp * Cp + 4 * (2 + 2 * nsplit) * Cp
    h2_raw, stats2 = pl.pallas_call(
        _make_stage2_kernel(Ho, Wo, Cp),
        grid=(nsplit, nb),
        in_specs=[act_spec, row_spec, row_spec, full_spec((9, Cp, Cp))],
        out_specs=(act_spec, pl.BlockSpec((1, 2, Cp), lambda c, b: (c, 0, 0))),
        out_shape=(act_bf16, jax.ShapeDtypeStruct((nsplit, 2, Cp), f32)),
        scratch_shapes=[pltpu.VMEM((1, Ho + 2, Wo + 2, Cp), bf16)],
        compiler_params=pltpu.CompilerParams(
            dimension_semantics=("parallel", "arbitrary"),
            vmem_limit_bytes=vmem_limit),
        cost_estimate=pl.CostEstimate(flops=flops2, transcendentals=0,
                                      bytes_accessed=bytes2),
    )(h1_raw, s1, t1, w2)

    stats2 = jnp.sum(stats2, axis=0)
    s2, t2 = _bn_scale_shift(stats2[0], stats2[1], float(M),
                             params['g2'], params['b2'])

    # ------------- stage 3: bn2 + shortcut + residual + relu -----------------
    act3_spec = pl.BlockSpec((1, Ho, Wo, Cp), lambda b: (b, 0, 0, 0))
    row3_spec = pl.BlockSpec((1, Cp), lambda b: (0, 0))

    if has_proj:
        ssc, tsc = _bn_scale_shift(stats1[2], stats1[3], float(M),
                                   params['gsc'], params['bsc'])
        in_specs3 = [act3_spec, act3_spec, row3_spec, row3_spec,
                     row3_spec, row3_spec]
        inputs3 = (h2_raw, sc_raw, s2, t2, ssc, tsc)
    else:
        # Identity shortcut: x (bf16) already has shape (N, Ho, Wo, Cp).
        in_specs3 = [act3_spec, act3_spec, row3_spec, row3_spec]
        inputs3 = (h2_raw, x, s2, t2)

    out_nhwc = pl.pallas_call(
        _make_stage3_kernel(has_proj, Cp),
        grid=(N,),
        in_specs=in_specs3,
        out_specs=act3_spec,
        out_shape=jax.ShapeDtypeStruct((N, Ho, Wo, Cp), f32),
        compiler_params=pltpu.CompilerParams(
            dimension_semantics=("parallel",),
            vmem_limit_bytes=vmem_limit),
        cost_estimate=pl.CostEstimate(flops=8 * M * Cp, transcendentals=0,
                                      bytes_accessed=8 * M * Cp),
    )(*inputs3)
    return out_nhwc


def basic_block_forward(x_nchw, params, stride):
    """PyTorch-layout shim: (N, Cin, H, W) f32 -> (N, Cp, Ho, Wo) f32.

    TODO(synk): in a full ResNet keep the whole network NHWC and call
    basic_block_forward_nhwc directly to avoid these two layout transposes.
    """
    x = jnp.transpose(x_nchw, (0, 2, 3, 1))
    out = basic_block_forward_nhwc(x, params, stride)
    return jnp.transpose(out, (0, 3, 1, 2))


# ---------------------------------------------------------------------------
# Pure-JAX reference (matches PyTorch forward with training-mode BN)
# ---------------------------------------------------------------------------
def basic_block_reference(x_nchw, params, stride):
    x = jnp.transpose(x_nchw, (0, 2, 3, 1)).astype(jnp.float32)
    Cin = x.shape[-1]
    Cp = params['w1'].shape[-1]
    dn = ('NHWC', 'HWIO', 'NHWC')

    def bn(h, g, b):
        mean = jnp.mean(h, axis=(0, 1, 2), keepdims=True)
        var = jnp.mean(jnp.square(h - mean), axis=(0, 1, 2), keepdims=True)
        return (h - mean) * lax.rsqrt(var + _EPS) * g + b

    h = lax.conv_general_dilated(x, params['w1'], (stride, stride),
                                 ((1, 1), (1, 1)), dimension_numbers=dn)
    h = jax.nn.relu(bn(h, params['g1'], params['b1']))
    h = lax.conv_general_dilated(h, params['w2'], (1, 1),
                                 ((1, 1), (1, 1)), dimension_numbers=dn)
    h = bn(h, params['g2'], params['b2'])
    if stride != 1 or Cin != Cp:
        sc = lax.conv_general_dilated(x, params['wsc'], (stride, stride),
                                      ((0, 0), (0, 0)), dimension_numbers=dn)
        sc = bn(sc, params['gsc'], params['bsc'])
    else:
        sc = x
    out = jax.nn.relu(h + sc)
    return jnp.transpose(out, (0, 3, 1, 2))


def init_params(key, in_planes, planes, stride):
    """Deterministic synthetic parameters (shapes from BasicBlock.__init__)."""
    ks = jax.random.split(key, 8)
    p = {
        'w1': 0.1 * jax.random.normal(ks[0], (3, 3, in_planes, planes), jnp.float32),
        'w2': 0.1 * jax.random.normal(ks[1], (3, 3, planes, planes), jnp.float32),
        'g1': 1.0 + 0.1 * jax.random.normal(ks[2], (planes,), jnp.float32),
        'b1': 0.1 * jax.random.normal(ks[3], (planes,), jnp.float32),
        'g2': 1.0 + 0.1 * jax.random.normal(ks[4], (planes,), jnp.float32),
        'b2': 0.1 * jax.random.normal(ks[5], (planes,), jnp.float32),
    }
    if stride != 1 or in_planes != planes:
        p['wsc'] = 0.1 * jax.random.normal(ks[6], (1, 1, in_planes, planes), jnp.float32)
        p['gsc'] = 1.0 + 0.05 * jax.random.normal(ks[7], (planes,), jnp.float32)
        p['bsc'] = jnp.zeros((planes,), jnp.float32)
    return p


if __name__ == "__main__":
    key = jax.random.PRNGKey(0)
    kx, kp1, kp2 = jax.random.split(key, 3)
    x = jax.random.normal(kx, (2, 4, 16, 16), jnp.float32)   # NCHW, like PyTorch

    fwd = jax.jit(basic_block_forward, static_argnums=2)

    # Config 1: identity shortcut (in_planes == planes == 4, stride == 1)
    p_id = init_params(kp1, 4, 4, 1)
    y = jax.block_until_ready(fwd(x, p_id, 1))
    y_ref = basic_block_reference(x, p_id, 1)
    np.testing.assert_allclose(np.asarray(y), np.asarray(y_ref),
                               atol=5e-2, rtol=5e-2)   # bf16 matmul/activations

    # Config 2: projection shortcut (4 -> 8 planes, stride 2)
    p_pr = init_params(kp2, 4, 8, 2)
    y2 = jax.block_until_ready(fwd(x, p_pr, 2))
    y2_ref = basic_block_reference(x, p_pr, 2)
    np.testing.assert_allclose(np.asarray(y2), np.asarray(y2_ref),
                               atol=5e-2, rtol=5e-2)

    print("KERNEL_OK")
</pallas_src>

<mosaic_0001>
module attributes {stable_mosaic.version = 11 : i64} {
  func.func @kernel(%arg0: i32, %arg1: i32, %arg2: memref<1x16x16x4xbf16, #tpu.memory_space<vmem>>, %arg3: memref<1x4xf32, #tpu.memory_space<vmem>>, %arg4: memref<1x4xf32, #tpu.memory_space<vmem>>, %arg5: memref<9x4x4xbf16, #tpu.memory_space<vmem>>, %arg6: memref<1x16x16x4xbf16, #tpu.memory_space<vmem>>, %arg7: memref<1x2x4xf32, #tpu.memory_space<vmem>>, %arg8: memref<1x18x18x4xbf16, #tpu.memory_space<vmem>>) attributes {dimension_semantics = [#tpu.dimension_semantics<parallel>, #tpu.dimension_semantics<arbitrary>], iteration_bounds = array<i64: 2, 1>, scalar_prefetch = 0 : i64, scratch_operands = 1 : i64, tpu.core_type = #tpu.core_type<tc>, window_params = [{transform_indices = @transform_0, window_bounds = array<i64: 1, 16, 16, 4>}, {pipeline_mode = #tpu.pipeline_mode<synchronous>, transform_indices = @transform_1, window_bounds = array<i64: 1, 4>}, {pipeline_mode = #tpu.pipeline_mode<synchronous>, transform_indices = @transform_2, window_bounds = array<i64: 1, 4>}, {pipeline_mode = #tpu.pipeline_mode<synchronous>, transform_indices = @transform_3, window_bounds = array<i64: 9, 4, 4>}, {transform_indices = @transform_4, window_bounds = array<i64: 1, 16, 16, 4>}, {transform_indices = @transform_5, window_bounds = array<i64: 1, 2, 4>}]} {
    %c0_i32 = arith.constant 0 : i32
    %0 = arith.cmpi eq, %arg1, %c0_i32 : i32
    %1 = arith.extui %0 : i1 to i32
    %c0_i32_0 = arith.constant 0 : i32
    %2 = arith.cmpi ne, %1, %c0_i32_0 : i32
    scf.if %2 {
      %cst_95 = arith.constant 0.000000e+00 : bf16
      %88 = vector.broadcast %cst_95 : bf16 to vector<1x18x18x4xbf16>
      %c0_96 = arith.constant 0 : index
      %c0_97 = arith.constant 0 : index
      %c0_98 = arith.constant 0 : index
      %c0_99 = arith.constant 0 : index
      %89 = vector.load %arg8[%c0_96, %c0_97, %c0_98, %c0_99] : memref<1x18x18x4xbf16, #tpu.memory_space<vmem>>, vector<1x18x18x4xbf16>
      tpu.vector_store %arg8[%c0_96, %c0_97, %c0_98, %c0_99], %88 {strides = array<i32>} : memref<1x18x18x4xbf16, #tpu.memory_space<vmem>>, vector<1x18x18x4xbf16>,
      %cst_100 = arith.constant 0.000000e+00 : f32
      %90 = vector.broadcast %cst_100 : f32 to vector<1x2x4xf32>
      %c0_101 = arith.constant 0 : index
      %c0_102 = arith.constant 0 : index
      %c0_103 = arith.constant 0 : index
      %91 = vector.load %arg7[%c0_101, %c0_102, %c0_103] : memref<1x2x4xf32, #tpu.memory_space<vmem>>, vector<1x2x4xf32>
      tpu.vector_store %arg7[%c0_101, %c0_102, %c0_103], %90 {strides = array<i32>} : memref<1x2x4xf32, #tpu.memory_space<vmem>>, vector<1x2x4xf32>,
    } else {
    }
    %c0 = arith.constant 0 : index
    %c0_1 = arith.constant 0 : index
    %3 = vector.load %arg3[%c0, %c0_1] : memref<1x4xf32, #tpu.memory_space<vmem>>, vector<1x4xf32>
    %4 = vector.shape_cast %3 : vector<1x4xf32> to vector<1x1x1x4xf32>
    %c0_2 = arith.constant 0 : index
    %c0_3 = arith.constant 0 : index
    %5 = vector.load %arg4[%c0_2, %c0_3] : memref<1x4xf32, #tpu.memory_space<vmem>>, vector<1x4xf32>
    %6 = vector.shape_cast %5 : vector<1x4xf32> to vector<1x1x1x4xf32>
    %c0_4 = arith.constant 0 : index
    %c0_5 = arith.constant 0 : index
    %c0_6 = arith.constant 0 : index
    %c0_7 = arith.constant 0 : index
    %7 = vector.load %arg2[%c0_4, %c0_5, %c0_6, %c0_7] : memref<1x16x16x4xbf16, #tpu.memory_space<vmem>>, vector<1x16x16x4xbf16>
    %8 = arith.extf %7 : vector<1x16x16x4xbf16> to vector<1x16x16x4xf32>
    %9 = vector.broadcast %4 : vector<1x1x1x4xf32> to vector<1x16x16x4xf32>
    %10 = arith.mulf %8, %9 : vector<1x16x16x4xf32>
    %11 = vector.broadcast %6 : vector<1x1x1x4xf32> to vector<1x16x16x4xf32>
    %12 = arith.addf %10, %11 : vector<1x16x16x4xf32>
    %cst = arith.constant 0.000000e+00 : f32
    %13 = vector.broadcast %cst : f32 to vector<1x16x16x4xf32>
    %14 = arith.maximumf %12, %13 : vector<1x16x16x4xf32>
    %15 = arith.truncf %14 : vector<1x16x16x4xf32> to vector<1x16x16x4xbf16>
    %c0_8 = arith.constant 0 : index
    %c1 = arith.constant 1 : index
    %c1_9 = arith.constant 1 : index
    %c0_10 = arith.constant 0 : index
    %16 = vector.load %arg8[%c0_8, %c1, %c1_9, %c0_10] : memref<1x18x18x4xbf16, #tpu.memory_space<vmem>>, vector<1x16x16x4xbf16>
    tpu.vector_store %arg8[%c0_8, %c1, %c1_9, %c0_10], %15 {strides = array<i32>} : memref<1x18x18x4xbf16, #tpu.memory_space<vmem>>, vector<1x16x16x4xbf16>,
    %c0_11 = arith.constant 0 : index
    %c0_12 = arith.constant 0 : index
    %c0_13 = arith.constant 0 : index
    %c0_14 = arith.constant 0 : index
    %17 = vector.load %arg8[%c0_11, %c0_12, %c0_13, %c0_14] : memref<1x18x18x4xbf16, #tpu.memory_space<vmem>>, vector<1x16x16x4xbf16>
    %18 = vector.shape_cast %17 : vector<1x16x16x4xbf16> to vector<256x4xbf16>
    %c0_15 = arith.constant 0 : index
    %c0_16 = arith.constant 0 : index
    %c1_17 = arith.constant 1 : index
    %c0_18 = arith.constant 0 : index
    %19 = vector.load %arg8[%c0_15, %c0_16, %c1_17, %c0_18] : memref<1x18x18x4xbf16, #tpu.memory_space<vmem>>, vector<1x16x16x4xbf16>
    %20 = vector.shape_cast %19 : vector<1x16x16x4xbf16> to vector<256x4xbf16>
    %c0_19 = arith.constant 0 : index
    %c0_20 = arith.constant 0 : index
    %c2 = arith.constant 2 : index
    %c0_21 = arith.constant 0 : index
    %21 = vector.load %arg8[%c0_19, %c0_20, %c2, %c0_21] : memref<1x18x18x4xbf16, #tpu.memory_space<vmem>>, vector<1x16x16x4xbf16>
    %22 = vector.shape_cast %21 : vector<1x16x16x4xbf16> to vector<256x4xbf16>
    %c0_22 = arith.constant 0 : index
    %c1_23 = arith.constant 1 : index
    %c0_24 = arith.constant 0 : index
    %c0_25 = arith.constant 0 : index
    %23 = vector.load %arg8[%c0_22, %c1_23, %c0_24, %c0_25] : memref<1x18x18x4xbf16, #tpu.memory_space<vmem>>, vector<1x16x16x4xbf16>
    %24 = vector.shape_cast %23 : vector<1x16x16x4xbf16> to vector<256x4xbf16>
    %c0_26 = arith.constant 0 : index
    %c1_27 = arith.constant 1 : index
    %c1_28 = arith.constant 1 : index
    %c0_29 = arith.constant 0 : index
    %25 = vector.load %arg8[%c0_26, %c1_27, %c1_28, %c0_29] : memref<1x18x18x4xbf16, #tpu.memory_space<vmem>>, vector<1x16x16x4xbf16>
    %26 = vector.shape_cast %25 : vector<1x16x16x4xbf16> to vector<256x4xbf16>
    %c0_30 = arith.constant 0 : index
    %c1_31 = arith.constant 1 : index
    %c2_32 = arith.constant 2 : index
    %c0_33 = arith.constant 0 : index
    %27 = vector.load %arg8[%c0_30, %c1_31, %c2_32, %c0_33] : memref<1x18x18x4xbf16, #tpu.memory_space<vmem>>, vector<1x16x16x4xbf16>
    %28 = vector.shape_cast %27 : vector<1x16x16x4xbf16> to vector<256x4xbf16>
    %c0_34 = arith.constant 0 : index
    %c2_35 = arith.constant 2 : index
    %c0_36 = arith.constant 0 : index
    %c0_37 = arith.constant 0 : index
    %29 = vector.load %arg8[%c0_34, %c2_35, %c0_36, %c0_37] : memref<1x18x18x4xbf16, #tpu.memory_space<vmem>>, vector<1x16x16x4xbf16>
    %30 = vector.shape_cast %29 : vector<1x16x16x4xbf16> to vector<256x4xbf16>
    %c0_38 = arith.constant 0 : index
    %c2_39 = arith.constant 2 : index
    %c1_40 = arith.constant 1 : index
    %c0_41 = arith.constant 0 : index
    %31 = vector.load %arg8[%c0_38, %c2_39, %c1_40, %c0_41] : memref<1x18x18x4xbf16, #tpu.memory_space<vmem>>, vector<1x16x16x4xbf16>
    %32 = vector.shape_cast %31 : vector<1x16x16x4xbf16> to vector<256x4xbf16>
    %c0_42 = arith.constant 0 : index
    %c2_43 = arith.constant 2 : index
    %c2_44 = arith.constant 2 : index
    %c0_45 = arith.constant 0 : index
    %33 = vector.load %arg8[%c0_42, %c2_43, %c2_44, %c0_45] : memref<1x18x18x4xbf16, #tpu.memory_space<vmem>>, vector<1x16x16x4xbf16>
    %34 = vector.shape_cast %33 : vector<1x16x16x4xbf16> to vector<256x4xbf16>
    %cst_46 = arith.constant 0.000000e+00 : f32
    %35 = vector.broadcast %cst_46 : f32 to vector<256x4xf32>
    %c0_47 = arith.constant 0 : index
    %c0_48 = arith.constant 0 : index
    %c0_49 = arith.constant 0 : index
    %36 = vector.load %arg5[%c0_47, %c0_48, %c0_49] : memref<9x4x4xbf16, #tpu.memory_space<vmem>>, vector<1x4x4xbf16>
    %37 = vector.shape_cast %36 : vector<1x4x4xbf16> to vector<4x4xbf16>
    %cst_50 = arith.constant dense<0.000000e+00> : vector<256x4xf32>
    %38 = tpu.matmul %18, %37, %cst_50 {dimension_numbers = #tpu.dot_dimension_numbers<[1], [0], [0], [1], [0, 0, 1, 1], [], []>} : vector<256x4xbf16>, vector<4x4xbf16>, vector<256x4xf32> -> vector<256x4xf32>
    %39 = arith.addf %35, %38 : vector<256x4xf32>
    %c1_51 = arith.constant 1 : index
    %c0_52 = arith.constant 0 : index
    %c0_53 = arith.constant 0 : index
    %40 = vector.load %arg5[%c1_51, %c0_52, %c0_53] : memref<9x4x4xbf16, #tpu.memory_space<vmem>>, vector<1x4x4xbf16>
    %41 = vector.shape_cast %40 : vector<1x4x4xbf16> to vector<4x4xbf16>
    %cst_54 = arith.constant dense<0.000000e+00> : vector<256x4xf32>
    %42 = tpu.matmul %20, %41, %cst_54 {dimension_numbers = #tpu.dot_dimension_numbers<[1], [0], [0], [1], [0, 0, 1, 1], [], []>} : vector<256x4xbf16>, vector<4x4xbf16>, vector<256x4xf32> -> vector<256x4xf32>
    %43 = arith.addf %39, %42 : vector<256x4xf32>
    %c2_55 = arith.constant 2 : index
    %c0_56 = arith.constant 0 : index
    %c0_57 = arith.constant 0 : index
    %44 = vector.load %arg5[%c2_55, %c0_56, %c0_57] : memref<9x4x4xbf16, #tpu.memory_space<vmem>>, vector<1x4x4xbf16>
    %45 = vector.shape_cast %44 : vector<1x4x4xbf16> to vector<4x4xbf16>
    %cst_58 = arith.constant dense<0.000000e+00> : vector<256x4xf32>
    %46 = tpu.matmul %22, %45, %cst_58 {dimension_numbers = #tpu.dot_dimension_numbers<[1], [0], [0], [1], [0, 0, 1, 1], [], []>} : vector<256x4xbf16>, vector<4x4xbf16>, vector<256x4xf32> -> vector<256x4xf32>
    %47 = arith.addf %43, %46 : vector<256x4xf32>
    %c3 = arith.constant 3 : index
    %c0_59 = arith.constant 0 : index
    %c0_60 = arith.constant 0 : index
    %48 = vector.load %arg5[%c3, %c0_59, %c0_60] : memref<9x4x4xbf16, #tpu.memory_space<vmem>>, vector<1x4x4xbf16>
    %49 = vector.shape_cast %48 : vector<1x4x4xbf16> to vector<4x4xbf16>
    %cst_61 = arith.constant dense<0.000000e+00> : vector<256x4xf32>
    %50 = tpu.matmul %24, %49, %cst_61 {dimension_numbers = #tpu.dot_dimension_numbers<[1], [0], [0], [1], [0, 0, 1, 1], [], []>} : vector<256x4xbf16>, vector<4x4xbf16>, vector<256x4xf32> -> vector<256x4xf32>
    %51 = arith.addf %47, %50 : vector<256x4xf32>
    %c4 = arith.constant 4 : index
    %c0_62 = arith.constant 0 : index
    %c0_63 = arith.constant 0 : index
    %52 = vector.load %arg5[%c4, %c0_62, %c0_63] : memref<9x4x4xbf16, #tpu.memory_space<vmem>>, vector<1x4x4xbf16>
    %53 = vector.shape_cast %52 : vector<1x4x4xbf16> to vector<4x4xbf16>
    %cst_64 = arith.constant dense<0.000000e+00> : vector<256x4xf32>
    %54 = tpu.matmul %26, %53, %cst_64 {dimension_numbers = #tpu.dot_dimension_numbers<[1], [0], [0], [1], [0, 0, 1, 1], [], []>} : vector<256x4xbf16>, vector<4x4xbf16>, vector<256x4xf32> -> vector<256x4xf32>
    %55 = arith.addf %51, %54 : vector<256x4xf32>
    %c5 = arith.constant 5 : index
    %c0_65 = arith.constant 0 : index
    %c0_66 = arith.constant 0 : index
    %56 = vector.load %arg5[%c5, %c0_65, %c0_66] : memref<9x4x4xbf16, #tpu.memory_space<vmem>>, vector<1x4x4xbf16>
    %57 = vector.shape_cast %56 : vector<1x4x4xbf16> to vector<4x4xbf16>
    %cst_67 = arith.constant dense<0.000000e+00> : vector<256x4xf32>
    %58 = tpu.matmul %28, %57, %cst_67 {dimension_numbers = #tpu.dot_dimension_numbers<[1], [0], [0], [1], [0, 0, 1, 1], [], []>} : vector<256x4xbf16>, vector<4x4xbf16>, vector<256x4xf32> -> vector<256x4xf32>
    %59 = arith.addf %55, %58 : vector<256x4xf32>
    %c6 = arith.constant 6 : index
    %c0_68 = arith.constant 0 : index
    %c0_69 = arith.constant 0 : index
    %60 = vector.load %arg5[%c6, %c0_68, %c0_69] : memref<9x4x4xbf16, #tpu.memory_space<vmem>>, vector<1x4x4xbf16>
    %61 = vector.shape_cast %60 : vector<1x4x4xbf16> to vector<4x4xbf16>
    %cst_70 = arith.constant dense<0.000000e+00> : vector<256x4xf32>
    %62 = tpu.matmul %30, %61, %cst_70 {dimension_numbers = #tpu.dot_dimension_numbers<[1], [0], [0], [1], [0, 0, 1, 1], [], []>} : vector<256x4xbf16>, vector<4x4xbf16>, vector<256x4xf32> -> vector<256x4xf32>
    %63 = arith.addf %59, %62 : vector<256x4xf32>
    %c7 = arith.constant 7 : index
    %c0_71 = arith.constant 0 : index
    %c0_72 = arith.constant 0 : index
    %64 = vector.load %arg5[%c7, %c0_71, %c0_72] : memref<9x4x4xbf16, #tpu.memory_space<vmem>>, vector<1x4x4xbf16>
    %65 = vector.shape_cast %64 : vector<1x4x4xbf16> to vector<4x4xbf16>
    %cst_73 = arith.constant dense<0.000000e+00> : vector<256x4xf32>
    %66 = tpu.matmul %32, %65, %cst_73 {dimension_numbers = #tpu.dot_dimension_numbers<[1], [0], [0], [1], [0, 0, 1, 1], [], []>} : vector<256x4xbf16>, vector<4x4xbf16>, vector<256x4xf32> -> vector<256x4xf32>
    %67 = arith.addf %63, %66 : vector<256x4xf32>
    %c8 = arith.constant 8 : index
    %c0_74 = arith.constant 0 : index
    %c0_75 = arith.constant 0 : index
    %68 = vector.load %arg5[%c8, %c0_74, %c0_75] : memref<9x4x4xbf16, #tpu.memory_space<vmem>>, vector<1x4x4xbf16>
    %69 = vector.shape_cast %68 : vector<1x4x4xbf16> to vector<4x4xbf16>
    %cst_76 = arith.constant dense<0.000000e+00> : vector<256x4xf32>
    %70 = tpu.matmul %34, %69, %cst_76 {dimension_numbers = #tpu.dot_dimension_numbers<[1], [0], [0], [1], [0, 0, 1, 1], [], []>} : vector<256x4xbf16>, vector<4x4xbf16>, vector<256x4xf32> -> vector<256x4xf32>
    %71 = arith.addf %67, %70 : vector<256x4xf32>
    %72 = vector.shape_cast %71 : vector<256x4xf32> to vector<1x16x16x4xf32>
    %73 = arith.truncf %72 : vector<1x16x16x4xf32> to vector<1x16x16x4xbf16>
    %c0_77 = arith.constant 0 : index
    %c0_78 = arith.constant 0 : index
    %c0_79 = arith.constant 0 : index
    %c0_80 = arith.constant 0 : index
    %74 = vector.load %arg6[%c0_77, %c0_78, %c0_79, %c0_80] : memref<1x16x16x4xbf16, #tpu.memory_space<vmem>>, vector<1x16x16x4xbf16>
    tpu.vector_store %arg6[%c0_77, %c0_78, %c0_79, %c0_80], %73 {strides = array<i32>} : memref<1x16x16x4xbf16, #tpu.memory_space<vmem>>, vector<1x16x16x4xbf16>,
    %c0_81 = arith.constant 0 : index
    %c0_82 = arith.constant 0 : index
    %c0_83 = arith.constant 0 : index
    %75 = vector.load %arg7[%c0_81, %c0_82, %c0_83] : memref<1x2x4xf32, #tpu.memory_space<vmem>>, vector<1x1x4xf32>
    %cst_84 = arith.constant dense<0.000000e+00> : vector<4xf32>
    %76 = vector.multi_reduction <add>, %71, %cst_84 [0] : vector<256x4xf32> to vector<4xf32>
    %77 = vector.shape_cast %76 : vector<4xf32> to vector<1x4xf32>
    %78 = vector.shape_cast %77 : vector<1x4xf32> to vector<1x1x4xf32>
    %79 = arith.addf %75, %78 : vector<1x1x4xf32>
    %c0_85 = arith.constant 0 : index
    %c0_86 = arith.constant 0 : index
    %c0_87 = arith.constant 0 : index
    %80 = vector.load %arg7[%c0_85, %c0_86, %c0_87] : memref<1x2x4xf32, #tpu.memory_space<vmem>>, vector<1x1x4xf32>
    tpu.vector_store %arg7[%c0_85, %c0_86, %c0_87], %79 {strides = array<i32>} : memref<1x2x4xf32, #tpu.memory_space<vmem>>, vector<1x1x4xf32>,
    %c0_88 = arith.constant 0 : index
    %c1_89 = arith.constant 1 : index
    %c0_90 = arith.constant 0 : index
    %81 = vector.load %arg7[%c0_88, %c1_89, %c0_90] : memref<1x2x4xf32, #tpu.memory_space<vmem>>, vector<1x1x4xf32>
    %82 = arith.mulf %71, %71 : vector<256x4xf32>
    %cst_91 = arith.constant dense<0.000000e+00> : vector<4xf32>
    %83 = vector.multi_reduction <add>, %82, %cst_91 [0] : vector<256x4xf32> to vector<4xf32>
    %84 = vector.shape_cast %83 : vector<4xf32> to vector<1x4xf32>
    %85 = vector.shape_cast %84 : vector<1x4xf32> to vector<1x1x4xf32>
    %86 = arith.addf %81, %85 : vector<1x1x4xf32>
    %c0_92 = arith.constant 0 : index
    %c1_93 = arith.constant 1 : index
    %c0_94 = arith.constant 0 : index
    %87 = vector.load %arg7[%c0_92, %c1_93, %c0_94] : memref<1x2x4xf32, #tpu.memory_space<vmem>>, vector<1x1x4xf32>
    tpu.vector_store %arg7[%c0_92, %c1_93, %c0_94], %86 {strides = array<i32>} : memref<1x2x4xf32, #tpu.memory_space<vmem>>, vector<1x1x4xf32>,
    return
  }
  func.func @transform_0(%arg0: i32, %arg1: i32) -> (i32, i32, i32, i32) {
    %c1_i32 = arith.constant 1 : i32
    %0 = arith.muli %arg0, %c1_i32 : i32
    %1 = arith.addi %0, %arg1 : i32
    %c0_i32 = arith.constant 0 : i32
    %c0_i32_0 = arith.constant 0 : i32
    %c0_i32_1 = arith.constant 0 : i32
    %c0_i32_2 = arith.constant 0 : i32
    return %1, %c0_i32, %c0_i32_0, %c0_i32_1 : i32, i32, i32, i32
  }
  func.func @transform_1(%arg0: i32, %arg1: i32) -> (i32, i32) {
    %c0_i32 = arith.constant 0 : i32
    %c0_i32_0 = arith.constant 0 : i32
    %c0_i32_1 = arith.constant 0 : i32
    return %c0_i32, %c0_i32_0 : i32, i32
  }
  func.func @transform_2(%arg0: i32, %arg1: i32) -> (i32, i32) {
    %c0_i32 = arith.constant 0 : i32
    %c0_i32_0 = arith.constant 0 : i32
    %c0_i32_1 = arith.constant 0 : i32
    return %c0_i32, %c0_i32_0 : i32, i32
  }
  func.func @transform_3(%arg0: i32, %arg1: i32) -> (i32, i32, i32) {
    %c0_i32 = arith.constant 0 : i32
    %c0_i32_0 = arith.constant 0 : i32
    %c0_i32_1 = arith.constant 0 : i32
    %c0_i32_2 = arith.constant 0 : i32
    return %c0_i32, %c0_i32_0, %c0_i32_1 : i32, i32, i32
  }
  func.func @transform_4(%arg0: i32, %arg1: i32) -> (i32, i32, i32, i32) {
    %c1_i32 = arith.constant 1 : i32
    %0 = arith.muli %arg0, %c1_i32 : i32
    %1 = arith.addi %0, %arg1 : i32
    %c0_i32 = arith.constant 0 : i32
    %c0_i32_0 = arith.constant 0 : i32
    %c0_i32_1 = arith.constant 0 : i32
    %c0_i32_2 = arith.constant 0 : i32
    return %1, %c0_i32, %c0_i32_0, %c0_i32_1 : i32, i32, i32, i32
  }
  func.func @transform_5(%arg0: i32, %arg1: i32) -> (i32, i32, i32) {
    %c0_i32 = arith.constant 0 : i32
    %c0_i32_0 = arith.constant 0 : i32
    %c0_i32_1 = arith.constant 0 : i32
    return %arg0, %c0_i32, %c0_i32_0 : i32, i32, i32
  }
}

module attributes {stable_mosaic.version = 11 : i64} {
  func.func @kernel(%arg0: i32, %arg1: i32, %arg2: memref<1x16x16x4xbf16, #tpu.memory_space<vmem>>, %arg3: memref<9x4x4xbf16, #tpu.memory_space<vmem>>, %arg4: memref<1x16x16x4xbf16, #tpu.memory_space<vmem>>, %arg5: memref<1x2x4xf32, #tpu.memory_space<vmem>>, %arg6: memref<1x18x18x4xbf16, #tpu.memory_space<vmem>>) attributes {dimension_semantics = [#tpu.dimension_semantics<parallel>, #tpu.dimension_semantics<arbitrary>], iteration_bounds = array<i64: 2, 1>, scalar_prefetch = 0 : i64, scratch_operands = 1 : i64, tpu.core_type = #tpu.core_type<tc>, window_params = [{transform_indices = @transform_0, window_bounds = array<i64: 1, 16, 16, 4>}, {pipeline_mode = #tpu.pipeline_mode<synchronous>, transform_indices = @transform_1, window_bounds = array<i64: 9, 4, 4>}, {transform_indices = @transform_2, window_bounds = array<i64: 1, 16, 16, 4>}, {transform_indices = @transform_3, window_bounds = array<i64: 1, 2, 4>}]} {
    %c0_i32 = arith.constant 0 : i32
    %0 = arith.cmpi eq, %arg1, %c0_i32 : i32
    %1 = arith.extui %0 : i1 to i32
    %c0_i32_0 = arith.constant 0 : i32
    %2 = arith.cmpi ne, %1, %c0_i32_0 : i32
    scf.if %2 {
      %cst_90 = arith.constant 0.000000e+00 : bf16
      %76 = vector.broadcast %cst_90 : bf16 to vector<1x18x18x4xbf16>
      %c0_91 = arith.constant 0 : index
      %c0_92 = arith.constant 0 : index
      %c0_93 = arith.constant 0 : index
      %c0_94 = arith.constant 0 : index
      %77 = vector.load %arg6[%c0_91, %c0_92, %c0_93, %c0_94] : memref<1x18x18x4xbf16, #tpu.memory_space<vmem>>, vector<1x18x18x4xbf16>
      tpu.vector_store %arg6[%c0_91, %c0_92, %c0_93, %c0_94], %76 {strides = array<i32>} : memref<1x18x18x4xbf16, #tpu.memory_space<vmem>>, vector<1x18x18x4xbf16>,
      %cst_95 = arith.constant 0.000000e+00 : f32
      %78 = vector.broadcast %cst_95 : f32 to vector<1x2x4xf32>
      %c0_96 = arith.constant 0 : index
      %c0_97 = arith.constant 0 : index
      %c0_98 = arith.constant 0 : index
      %79 = vector.load %arg5[%c0_96, %c0_97, %c0_98] : memref<1x2x4xf32, #tpu.memory_space<vmem>>, vector<1x2x4xf32>
      tpu.vector_store %arg5[%c0_96, %c0_97, %c0_98], %78 {strides = array<i32>} : memref<1x2x4xf32, #tpu.memory_space<vmem>>, vector<1x2x4xf32>,
    } else {
    }
    %c0 = arith.constant 0 : index
    %c0_1 = arith.constant 0 : index
    %c0_2 = arith.constant 0 : index
    %c0_3 = arith.constant 0 : index
    %3 = vector.load %arg2[%c0, %c0_1, %c0_2, %c0_3] : memref<1x16x16x4xbf16, #tpu.memory_space<vmem>>, vector<1x16x16x4xbf16>
    %c0_4 = arith.constant 0 : index
    %c1 = arith.constant 1 : index
    %c1_5 = arith.constant 1 : index
    %c0_6 = arith.constant 0 : index
    %4 = vector.load %arg6[%c0_4, %c1, %c1_5, %c0_6] : memref<1x18x18x4xbf16, #tpu.memory_space<vmem>>, vector<1x16x16x4xbf16>
    tpu.vector_store %arg6[%c0_4, %c1, %c1_5, %c0_6], %3 {strides = array<i32>} : memref<1x18x18x4xbf16, #tpu.memory_space<vmem>>, vector<1x16x16x4xbf16>,
    %c0_7 = arith.constant 0 : index
    %c0_8 = arith.constant 0 : index
    %c0_9 = arith.constant 0 : index
    %c0_10 = arith.constant 0 : index
    %5 = vector.load %arg6[%c0_7, %c0_8, %c0_9, %c0_10] : memref<1x18x18x4xbf16, #tpu.memory_space<vmem>>, vector<1x16x16x4xbf16>
    %6 = vector.shape_cast %5 : vector<1x16x16x4xbf16> to vector<256x4xbf16>
    %c0_11 = arith.constant 0 : index
    %c0_12 = arith.constant 0 : index
    %c1_13 = arith.constant 1 : index
    %c0_14 = arith.constant 0 : index
    %7 = vector.load %arg6[%c0_11, %c0_12, %c1_13, %c0_14] : memref<1x18x18x4xbf16, #tpu.memory_space<vmem>>, vector<1x16x16x4xbf16>
    %8 = vector.shape_cast %7 : vector<1x16x16x4xbf16> to vector<256x4xbf16>
    %c0_15 = arith.constant 0 : index
    %c0_16 = arith.constant 0 : index
    %c2 = arith.constant 2 : index
    %c0_17 = arith.constant 0 : index
    %9 = vector.load %arg6[%c0_15, %c0_16, %c2, %c0_17] : memref<1x18x18x4xbf16, #tpu.memory_space<vmem>>, vector<1x16x16x4xbf16>
    %10 = vector.shape_cast %9 : vector<1x16x16x4xbf16> to vector<256x4xbf16>
    %c0_18 = arith.constant 0 : index
    %c1_19 = arith.constant 1 : index
    %c0_20 = arith.constant 0 : index
    %c0_21 = arith.constant 0 : index
    %11 = vector.load %arg6[%c0_18, %c1_19, %c0_20, %c0_21] : memref<1x18x18x4xbf16, #tpu.memory_space<vmem>>, vector<1x16x16x4xbf16>
    %12 = vector.shape_cast %11 : vector<1x16x16x4xbf16> to vector<256x4xbf16>
    %c0_22 = arith.constant 0 : index
    %c1_23 = arith.constant 1 : index
    %c1_24 = arith.constant 1 : index
    %c0_25 = arith.constant 0 : index
    %13 = vector.load %arg6[%c0_22, %c1_23, %c1_24, %c0_25] : memref<1x18x18x4xbf16, #tpu.memory_space<vmem>>, vector<1x16x16x4xbf16>
    %14 = vector.shape_cast %13 : vector<1x16x16x4xbf16> to vector<256x4xbf16>
    %c0_26 = arith.constant 0 : index
    %c1_27 = arith.constant 1 : index
    %c2_28 = arith.constant 2 : index
    %c0_29 = arith.constant 0 : index
    %15 = vector.load %arg6[%c0_26, %c1_27, %c2_28, %c0_29] : memref<1x18x18x4xbf16, #tpu.memory_space<vmem>>, vector<1x16x16x4xbf16>
    %16 = vector.shape_cast %15 : vector<1x16x16x4xbf16> to vector<256x4xbf16>
    %c0_30 = arith.constant 0 : index
    %c2_31 = arith.constant 2 : index
    %c0_32 = arith.constant 0 : index
    %c0_33 = arith.constant 0 : index
    %17 = vector.load %arg6[%c0_30, %c2_31, %c0_32, %c0_33] : memref<1x18x18x4xbf16, #tpu.memory_space<vmem>>, vector<1x16x16x4xbf16>
    %18 = vector.shape_cast %17 : vector<1x16x16x4xbf16> to vector<256x4xbf16>
    %c0_34 = arith.constant 0 : index
    %c2_35 = arith.constant 2 : index
    %c1_36 = arith.constant 1 : index
    %c0_37 = arith.constant 0 : index
    %19 = vector.load %arg6[%c0_34, %c2_35, %c1_36, %c0_37] : memref<1x18x18x4xbf16, #tpu.memory_space<vmem>>, vector<1x16x16x4xbf16>
    %20 = vector.shape_cast %19 : vector<1x16x16x4xbf16> to vector<256x4xbf16>
    %c0_38 = arith.constant 0 : index
    %c2_39 = arith.constant 2 : index
    %c2_40 = arith.constant 2 : index
    %c0_41 = arith.constant 0 : index
    %21 = vector.load %arg6[%c0_38, %c2_39, %c2_40, %c0_41] : memref<1x18x18x4xbf16, #tpu.memory_space<vmem>>, vector<1x16x16x4xbf16>
    %22 = vector.shape_cast %21 : vector<1x16x16x4xbf16> to vector<256x4xbf16>
    %cst = arith.constant 0.000000e+00 : f32
    %23 = vector.broadcast %cst : f32 to vector<256x4xf32>
    %c0_42 = arith.constant 0 : index
    %c0_43 = arith.constant 0 : index
    %c0_44 = arith.constant 0 : index
    %24 = vector.load %arg3[%c0_42, %c0_43, %c0_44] : memref<9x4x4xbf16, #tpu.memory_space<vmem>>, vector<1x4x4xbf16>
    %25 = vector.shape_cast %24 : vector<1x4x4xbf16> to vector<4x4xbf16>
    %cst_45 = arith.constant dense<0.000000e+00> : vector<256x4xf32>
    %26 = tpu.matmul %6, %25, %cst_45 {dimension_numbers = #tpu.dot_dimension_numbers<[1], [0], [0], [1], [0, 0, 1, 1], [], []>} : vector<256x4xbf16>, vector<4x4xbf16>, vector<256x4xf32> -> vector<256x4xf32>
    %27 = arith.addf %23, %26 : vector<256x4xf32>
    %c1_46 = arith.constant 1 : index
    %c0_47 = arith.constant 0 : index
    %c0_48 = arith.constant 0 : index
    %28 = vector.load %arg3[%c1_46, %c0_47, %c0_48] : memref<9x4x4xbf16, #tpu.memory_space<vmem>>, vector<1x4x4xbf16>
    %29 = vector.shape_cast %28 : vector<1x4x4xbf16> to vector<4x4xbf16>
    %cst_49 = arith.constant dense<0.000000e+00> : vector<256x4xf32>
    %30 = tpu.matmul %8, %29, %cst_49 {dimension_numbers = #tpu.dot_dimension_numbers<[1], [0], [0], [1], [0, 0, 1, 1], [], []>} : vector<256x4xbf16>, vector<4x4xbf16>, vector<256x4xf32> -> vector<256x4xf32>
    %31 = arith.addf %27, %30 : vector<256x4xf32>
    %c2_50 = arith.constant 2 : index
    %c0_51 = arith.constant 0 : index
    %c0_52 = arith.constant 0 : index
    %32 = vector.load %arg3[%c2_50, %c0_51, %c0_52] : memref<9x4x4xbf16, #tpu.memory_space<vmem>>, vector<1x4x4xbf16>
    %33 = vector.shape_cast %32 : vector<1x4x4xbf16> to vector<4x4xbf16>
    %cst_53 = arith.constant dense<0.000000e+00> : vector<256x4xf32>
    %34 = tpu.matmul %10, %33, %cst_53 {dimension_numbers = #tpu.dot_dimension_numbers<[1], [0], [0], [1], [0, 0, 1, 1], [], []>} : vector<256x4xbf16>, vector<4x4xbf16>, vector<256x4xf32> -> vector<256x4xf32>
    %35 = arith.addf %31, %34 : vector<256x4xf32>
    %c3 = arith.constant 3 : index
    %c0_54 = arith.constant 0 : index
    %c0_55 = arith.constant 0 : index
    %36 = vector.load %arg3[%c3, %c0_54, %c0_55] : memref<9x4x4xbf16, #tpu.memory_space<vmem>>, vector<1x4x4xbf16>
    %37 = vector.shape_cast %36 : vector<1x4x4xbf16> to vector<4x4xbf16>
    %cst_56 = arith.constant dense<0.000000e+00> : vector<256x4xf32>
    %38 = tpu.matmul %12, %37, %cst_56 {dimension_numbers = #tpu.dot_dimension_numbers<[1], [0], [0], [1], [0, 0, 1, 1], [], []>} : vector<256x4xbf16>, vector<4x4xbf16>, vector<256x4xf32> -> vector<256x4xf32>
    %39 = arith.addf %35, %38 : vector<256x4xf32>
    %c4 = arith.constant 4 : index
    %c0_57 = arith.constant 0 : index
    %c0_58 = arith.constant 0 : index
    %40 = vector.load %arg3[%c4, %c0_57, %c0_58] : memref<9x4x4xbf16, #tpu.memory_space<vmem>>, vector<1x4x4xbf16>
    %41 = vector.shape_cast %40 : vector<1x4x4xbf16> to vector<4x4xbf16>
    %cst_59 = arith.constant dense<0.000000e+00> : vector<256x4xf32>
    %42 = tpu.matmul %14, %41, %cst_59 {dimension_numbers = #tpu.dot_dimension_numbers<[1], [0], [0], [1], [0, 0, 1, 1], [], []>} : vector<256x4xbf16>, vector<4x4xbf16>, vector<256x4xf32> -> vector<256x4xf32>
    %43 = arith.addf %39, %42 : vector<256x4xf32>
    %c5 = arith.constant 5 : index
    %c0_60 = arith.constant 0 : index
    %c0_61 = arith.constant 0 : index
    %44 = vector.load %arg3[%c5, %c0_60, %c0_61] : memref<9x4x4xbf16, #tpu.memory_space<vmem>>, vector<1x4x4xbf16>
    %45 = vector.shape_cast %44 : vector<1x4x4xbf16> to vector<4x4xbf16>
    %cst_62 = arith.constant dense<0.000000e+00> : vector<256x4xf32>
    %46 = tpu.matmul %16, %45, %cst_62 {dimension_numbers = #tpu.dot_dimension_numbers<[1], [0], [0], [1], [0, 0, 1, 1], [], []>} : vector<256x4xbf16>, vector<4x4xbf16>, vector<256x4xf32> -> vector<256x4xf32>
    %47 = arith.addf %43, %46 : vector<256x4xf32>
    %c6 = arith.constant 6 : index
    %c0_63 = arith.constant 0 : index
    %c0_64 = arith.constant 0 : index
    %48 = vector.load %arg3[%c6, %c0_63, %c0_64] : memref<9x4x4xbf16, #tpu.memory_space<vmem>>, vector<1x4x4xbf16>
    %49 = vector.shape_cast %48 : vector<1x4x4xbf16> to vector<4x4xbf16>
    %cst_65 = arith.constant dense<0.000000e+00> : vector<256x4xf32>
    %50 = tpu.matmul %18, %49, %cst_65 {dimension_numbers = #tpu.dot_dimension_numbers<[1], [0], [0], [1], [0, 0, 1, 1], [], []>} : vector<256x4xbf16>, vector<4x4xbf16>, vector<256x4xf32> -> vector<256x4xf32>
    %51 = arith.addf %47, %50 : vector<256x4xf32>
    %c7 = arith.constant 7 : index
    %c0_66 = arith.constant 0 : index
    %c0_67 = arith.constant 0 : index
    %52 = vector.load %arg3[%c7, %c0_66, %c0_67] : memref<9x4x4xbf16, #tpu.memory_space<vmem>>, vector<1x4x4xbf16>
    %53 = vector.shape_cast %52 : vector<1x4x4xbf16> to vector<4x4xbf16>
    %cst_68 = arith.constant dense<0.000000e+00> : vector<256x4xf32>
    %54 = tpu.matmul %20, %53, %cst_68 {dimension_numbers = #tpu.dot_dimension_numbers<[1], [0], [0], [1], [0, 0, 1, 1], [], []>} : vector<256x4xbf16>, vector<4x4xbf16>, vector<256x4xf32> -> vector<256x4xf32>
    %55 = arith.addf %51, %54 : vector<256x4xf32>
    %c8 = arith.constant 8 : index
    %c0_69 = arith.constant 0 : index
    %c0_70 = arith.constant 0 : index
    %56 = vector.load %arg3[%c8, %c0_69, %c0_70] : memref<9x4x4xbf16, #tpu.memory_space<vmem>>, vector<1x4x4xbf16>
    %57 = vector.shape_cast %56 : vector<1x4x4xbf16> to vector<4x4xbf16>
    %cst_71 = arith.constant dense<0.000000e+00> : vector<256x4xf32>
    %58 = tpu.matmul %22, %57, %cst_71 {dimension_numbers = #tpu.dot_dimension_numbers<[1], [0], [0], [1], [0, 0, 1, 1], [], []>} : vector<256x4xbf16>, vector<4x4xbf16>, vector<256x4xf32> -> vector<256x4xf32>
    %59 = arith.addf %55, %58 : vector<256x4xf32>
    %60 = vector.shape_cast %59 : vector<256x4xf32> to vector<1x16x16x4xf32>
    %61 = arith.truncf %60 : vector<1x16x16x4xf32> to vector<1x16x16x4xbf16>
    %c0_72 = arith.constant 0 : index
    %c0_73 = arith.constant 0 : index
    %c0_74 = arith.constant 0 : index
    %c0_75 = arith.constant 0 : index
    %62 = vector.load %arg4[%c0_72, %c0_73, %c0_74, %c0_75] : memref<1x16x16x4xbf16, #tpu.memory_space<vmem>>, vector<1x16x16x4xbf16>
    tpu.vector_store %arg4[%c0_72, %c0_73, %c0_74, %c0_75], %61 {strides = array<i32>} : memref<1x16x16x4xbf16, #tpu.memory_space<vmem>>, vector<1x16x16x4xbf16>,
    %c0_76 = arith.constant 0 : index
    %c0_77 = arith.constant 0 : index
    %c0_78 = arith.constant 0 : index
    %63 = vector.load %arg5[%c0_76, %c0_77, %c0_78] : memref<1x2x4xf32, #tpu.memory_space<vmem>>, vector<1x1x4xf32>
    %cst_79 = arith.constant dense<0.000000e+00> : vector<4xf32>
    %64 = vector.multi_reduction <add>, %59, %cst_79 [0] : vector<256x4xf32> to vector<4xf32>
    %65 = vector.shape_cast %64 : vector<4xf32> to vector<1x4xf32>
    %66 = vector.shape_cast %65 : vector<1x4xf32> to vector<1x1x4xf32>
    %67 = arith.addf %63, %66 : vector<1x1x4xf32>
    %c0_80 = arith.constant 0 : index
    %c0_81 = arith.constant 0 : index
    %c0_82 = arith.constant 0 : index
    %68 = vector.load %arg5[%c0_80, %c0_81, %c0_82] : memref<1x2x4xf32, #tpu.memory_space<vmem>>, vector<1x1x4xf32>
    tpu.vector_store %arg5[%c0_80, %c0_81, %c0_82], %67 {strides = array<i32>} : memref<1x2x4xf32, #tpu.memory_space<vmem>>, vector<1x1x4xf32>,
    %c0_83 = arith.constant 0 : index
    %c1_84 = arith.constant 1 : index
    %c0_85 = arith.constant 0 : index
    %69 = vector.load %arg5[%c0_83, %c1_84, %c0_85] : memref<1x2x4xf32, #tpu.memory_space<vmem>>, vector<1x1x4xf32>
    %70 = arith.mulf %59, %59 : vector<256x4xf32>
    %cst_86 = arith.constant dense<0.000000e+00> : vector<4xf32>
    %71 = vector.multi_reduction <add>, %70, %cst_86 [0] : vector<256x4xf32> to vector<4xf32>
    %72 = vector.shape_cast %71 : vector<4xf32> to vector<1x4xf32>
    %73 = vector.shape_cast %72 : vector<1x4xf32> to vector<1x1x4xf32>
    %74 = arith.addf %69, %73 : vector<1x1x4xf32>
    %c0_87 = arith.constant 0 : index
    %c1_88 = arith.constant 1 : index
    %c0_89 = arith.constant 0 : index
    %75 = vector.load %arg5[%c0_87, %c1_88, %c0_89] : memref<1x2x4xf32, #tpu.memory_space<vmem>>, vector<1x1x4xf32>
    tpu.vector_store %arg5[%c0_87, %c1_88, %c0_89], %74 {strides = array<i32>} : memref<1x2x4xf32, #tpu.memory_space<vmem>>, vector<1x1x4xf32>,
    return
  }
  func.func @transform_0(%arg0: i32, %arg1: i32) -> (i32, i32, i32, i32) {
    %c1_i32 = arith.constant 1 : i32
    %0 = arith.muli %arg0, %c1_i32 : i32
    %1 = arith.addi %0, %arg1 : i32
    %c0_i32 = arith.constant 0 : i32
    %c0_i32_0 = arith.constant 0 : i32
    %c0_i32_1 = arith.constant 0 : i32
    %c0_i32_2 = arith.constant 0 : i32
    return %1, %c0_i32, %c0_i32_0, %c0_i32_1 : i32, i32, i32, i32
  }
  func.func @transform_1(%arg0: i32, %arg1: i32) -> (i32, i32, i32) {
    %c0_i32 = arith.constant 0 : i32
    %c0_i32_0 = arith.constant 0 : i32
    %c0_i32_1 = arith.constant 0 : i32
    %c0_i32_2 = arith.constant 0 : i32
    return %c0_i32, %c0_i32_0, %c0_i32_1 : i32, i32, i32
  }
  func.func @transform_2(%arg0: i32, %arg1: i32) -> (i32, i32, i32, i32) {
    %c1_i32 = arith.constant 1 : i32
    %0 = arith.muli %arg0, %c1_i32 : i32
    %1 = arith.addi %0, %arg1 : i32
    %c0_i32 = arith.constant 0 : i32
    %c0_i32_0 = arith.constant 0 : i32
    %c0_i32_1 = arith.constant 0 : i32
    %c0_i32_2 = arith.constant 0 : i32
    return %1, %c0_i32, %c0_i32_0, %c0_i32_1 : i32, i32, i32, i32
  }
  func.func @transform_3(%arg0: i32, %arg1: i32) -> (i32, i32, i32) {
    %c0_i32 = arith.constant 0 : i32
    %c0_i32_0 = arith.constant 0 : i32
    %c0_i32_1 = arith.constant 0 : i32
    return %arg0, %c0_i32, %c0_i32_0 : i32, i32, i32
  }
}

module attributes {stable_mosaic.version = 11 : i64} {
  func.func @kernel(%arg0: i32, %arg1: memref<1x16x16x4xbf16, #tpu.memory_space<vmem>>, %arg2: memref<1x16x16x4xbf16, #tpu.memory_space<vmem>>, %arg3: memref<1x4xf32, #tpu.memory_space<vmem>>, %arg4: memref<1x4xf32, #tpu.memory_space<vmem>>, %arg5: memref<1x16x16x4xf32, #tpu.memory_space<vmem>>) attributes {dimension_semantics = [#tpu.dimension_semantics<parallel>], iteration_bounds = array<i64: 2>, scalar_prefetch = 0 : i64, scratch_operands = 0 : i64, tpu.core_type = #tpu.core_type<tc>, window_params = [{transform_indices = @transform_0, window_bounds = array<i64: 1, 16, 16, 4>}, {transform_indices = @transform_1, window_bounds = array<i64: 1, 16, 16, 4>}, {pipeline_mode = #tpu.pipeline_mode<synchronous>, transform_indices = @transform_2, window_bounds = array<i64: 1, 4>}, {pipeline_mode = #tpu.pipeline_mode<synchronous>, transform_indices = @transform_3, window_bounds = array<i64: 1, 4>}, {transform_indices = @transform_4, window_bounds = array<i64: 1, 16, 16, 4>}]} {
    %c0 = arith.constant 0 : index
    %c0_0 = arith.constant 0 : index
    %0 = vector.load %arg3[%c0, %c0_0] : memref<1x4xf32, #tpu.memory_space<vmem>>, vector<1x4xf32>
    %1 = vector.shape_cast %0 : vector<1x4xf32> to vector<1x1x1x4xf32>
    %c0_1 = arith.constant 0 : index
    %c0_2 = arith.constant 0 : index
    %2 = vector.load %arg4[%c0_1, %c0_2] : memref<1x4xf32, #tpu.memory_space<vmem>>, vector<1x4xf32>
    %3 = vector.shape_cast %2 : vector<1x4xf32> to vector<1x1x1x4xf32>
    %c0_3 = arith.constant 0 : index
    %c0_4 = arith.constant 0 : index
    %c0_5 = arith.constant 0 : index
    %c0_6 = arith.constant 0 : index
    %4 = vector.load %arg1[%c0_3, %c0_4, %c0_5, %c0_6] : memref<1x16x16x4xbf16, #tpu.memory_space<vmem>>, vector<1x16x16x4xbf16>
    %5 = arith.extf %4 : vector<1x16x16x4xbf16> to vector<1x16x16x4xf32>
    %6 = vector.broadcast %1 : vector<1x1x1x4xf32> to vector<1x16x16x4xf32>
    %7 = arith.mulf %5, %6 : vector<1x16x16x4xf32>
    %8 = vector.broadcast %3 : vector<1x1x1x4xf32> to vector<1x16x16x4xf32>
    %9 = arith.addf %7, %8 : vector<1x16x16x4xf32>
    %c0_7 = arith.constant 0 : index
    %c0_8 = arith.constant 0 : index
    %c0_9 = arith.constant 0 : index
    %c0_10 = arith.constant 0 : index
    %10 = vector.load %arg2[%c0_7, %c0_8, %c0_9, %c0_10] : memref<1x16x16x4xbf16, #tpu.memory_space<vmem>>, vector<1x16x16x4xbf16>
    %11 = arith.extf %10 : vector<1x16x16x4xbf16> to vector<1x16x16x4xf32>
    %12 = arith.addf %9, %11 : vector<1x16x16x4xf32>
    %cst = arith.constant 0.000000e+00 : f32
    %13 = vector.broadcast %cst : f32 to vector<1x16x16x4xf32>
    %14 = arith.maximumf %12, %13 : vector<1x16x16x4xf32>
    %c0_11 = arith.constant 0 : index
    %c0_12 = arith.constant 0 : index
    %c0_13 = arith.constant 0 : index
    %c0_14 = arith.constant 0 : index
    %15 = vector.load %arg5[%c0_11, %c0_12, %c0_13, %c0_14] : memref<1x16x16x4xf32, #tpu.memory_space<vmem>>, vector<1x16x16x4xf32>
    tpu.vector_store %arg5[%c0_11, %c0_12, %c0_13, %c0_14], %14 {strides = array<i32>} : memref<1x16x16x4xf32, #tpu.memory_space<vmem>>, vector<1x16x16x4xf32>,
    return
  }
  func.func @transform_0(%arg0: i32) -> (i32, i32, i32, i32) {
    %c0_i32 = arith.constant 0 : i32
    %c0_i32_0 = arith.constant 0 : i32
    %c0_i32_1 = arith.constant 0 : i32
    %c0_i32_2 = arith.constant 0 : i32
    return %arg0, %c0_i32, %c0_i32_0, %c0_i32_1 : i32, i32, i32, i32
  }
  func.func @transform_1(%arg0: i32) -> (i32, i32, i32, i32) {
    %c0_i32 = arith.constant 0 : i32
    %c0_i32_0 = arith.constant 0 : i32
    %c0_i32_1 = arith.constant 0 : i32
    %c0_i32_2 = arith.constant 0 : i32
    return %arg0, %c0_i32, %c0_i32_0, %c0_i32_1 : i32, i32, i32, i32
  }
  func.func @transform_2(%arg0: i32) -> (i32, i32) {
    %c0_i32 = arith.constant 0 : i32
    %c0_i32_0 = arith.constant 0 : i32
    %c0_i32_1 = arith.constant 0 : i32
    return %c0_i32, %c0_i32_0 : i32, i32
  }
  func.func @transform_3(%arg0: i32) -> (i32, i32) {
    %c0_i32 = arith.constant 0 : i32
    %c0_i32_0 = arith.constant 0 : i32
    %c0_i32_1 = arith.constant 0 : i32
    return %c0_i32, %c0_i32_0 : i32, i32
  }
  func.func @transform_4(%arg0: i32) -> (i32, i32, i32, i32) {
    %c0_i32 = arith.constant 0 : i32
    %c0_i32_0 = arith.constant 0 : i32
    %c0_i32_1 = arith.constant 0 : i32
    %c0_i32_2 = arith.constant 0 : i32
    return %arg0, %c0_i32, %c0_i32_0, %c0_i32_1 : i32, i32, i32, i32
  }
}

</mosaic_0001>

<llo_original>
// kernel: basic_block_forward.5
$region0: #{basic_block_forward.5}
  #allocation0 [shape = 'u32[]', space=smem, size = 0x4, offset = 0x4, fixed_abs, tag = 'smem constant byte address 0x4 - core index']
  #allocation1 [shape = 'u32[144,128]{1,0:T(1,128)}', space=vmem, size = 0x12000, scoped, tag = 'internal scratch']
  %s0 = inlined_call_operand.hbm [shape: bf16[2,16,16,4], index: 0, kind: input, shape index: {}]
  %s1 = inlined_call_operand.hbm [shape: bf16[2,16,16,4], index: 1, kind: input, shape index: {}]
  %s2 = inlined_call_operand.hbm [shape: f32[1,4], index: 2, kind: input, shape index: {}]
  %s3 = inlined_call_operand.hbm [shape: f32[1,4], index: 3, kind: input, shape index: {}]
  %s4 = inlined_call_operand.hbm [shape: f32[2,16,16,4], index: 4, kind: output, shape index: {}]
  %s5 = sld [smem:[#allocation0]]
  $region65: #{basic_block_forward.5} parent=0
    _
  %s7 = ssub.s32 1, %s5
  %s8 = scalar_select 0, %s7, %s5
  $region1: #{basic_block_forward.5} parent=0
    #allocation2 [shape = 'u8[131072]{0}', space=vmem, size = 0x20000, scoped, tag = 'input window, operand 0']
    #allocation3 [shape = 's32[2]{0}', space=sflag, size = 0x8, scoped, tag = 'scoped memory for basic_block_forward.5']
    #allocation4 [shape = 's32[2]{0}', space=sflag, size = 0x8, scoped, tag = 'scoped memory for basic_block_forward.5']
    #allocation5 [shape = 'u8[131072]{0}', space=vmem, size = 0x20000, scoped, tag = 'input window, operand 1']
    #allocation6 [shape = 's32[2]{0}', space=sflag, size = 0x8, scoped, tag = 'scoped memory for basic_block_forward.5']
    #allocation7 [shape = 'u8[512]{0}', space=vmem, size = 0x400, scoped, tag = 'input window, operand 2, single buffered']
    #allocation8 [shape = 'u8[512]{0}', space=vmem, size = 0x400, scoped, tag = 'input window, operand 3, single buffered']
    #allocation9 [shape = 's32[1]{0}', space=sflag, size = 0x4, scoped, tag = 'scoped memory for basic_block_forward.5']
    #allocation10 [shape = 'u8[262144]{0}', space=vmem, size = 0x40000, scoped, tag = 'output window, operand 0']
    %9 = vsyncpa [#allocation3], 0
    %s10 = scalar_lea.sflag [#allocation3], 1
    %11 = vsyncpa %s10, 0
    %12 = vsyncpa [#allocation6], 0
    %s13 = scalar_lea.sflag [#allocation6], 1
    %14 = vsyncpa %s13, 0
    %15 = vsyncpa [#allocation9], 0
    %16 = vsyncpa [#allocation4], 0
    %s17 = scalar_lea.sflag [#allocation4], 1
    %18 = vsyncpa %s17, 0
    loop: start=0, step=1, limit=4
    $region2: #{basic_block_forward.5} parent=1 // loop_pre_header
      _
    $region3: #{basic_block_forward.5} parent=1 // loop_header
      %s20 = sphi 0, %s24
      %p21 = scmp.ge.s32.totalorder %s20, 4
      %s30 = sphi 0, %s32
      %s33 = sphi 0, %s30
      %s34 = sphi 0, %s33
      %s50 = sphi 0, %s34
      %s56 = sphi 0, %s58
      %s59 = sphi 0, %s56
      %s60 = sphi 0, %s59
      %s76 = sphi 0, %s60
      %s80 = sphi 0, %s80
      %s82 = sphi 0, %s80
      %s83 = sphi 0, %s82
      %s97 = sphi 0, %s83
      %s101 = sphi 0, %s101
      %s103 = sphi 0, %s101
      %s104 = sphi 0, %s103
      %s118 = sphi 0, %s104
      %s124 = sphi 0, %s126
      %s127 = sphi 0, %s124
      %s128 = sphi 0, %s127
      %s144 = sphi 0, %s128
    $region4: #{basic_block_forward.5} parent=1 // loop_header_branch
      %23 = sbr.rel (%p21) target = $region8
    $region5: #{basic_block_forward.5} parent=1 // loop_body
      %s25 = ssub.s32 %s20, 1
      %s26 = ssub.s32 %s20, 2
      %s27 = sadd.s32 %s20, 1
      %s28 = ssub.s32 %s20, %s27
      %p29 = scmp.eq.s32.totalorder %s28, 0
      %s31 = sadd.s32 %s30, 1
      %s32 = scalar_select %p29, %s30, %s31
      %p35 = pneg %p29
      %p36 = scmp.eq.s32.totalorder %s20, 1
      %p37 = por %p35, %p36
      %p38 = scmp.ne.s32.totalorder %s30, %s33
      %p39 = scmp.eq.s32.totalorder %s20, 0
      %p40 = por %p38, %p39
      %p41 = scmp.ne.s32.totalorder %s30, %s33
      %p42 = scmp.eq.s32.totalorder %s25, 1
      %p43 = por %p41, %p42
      %p44 = scmp.ne.s32.totalorder %s33, %s34
      %p45 = scmp.eq.s32.totalorder %s25, 0
      %p46 = por %p44, %p45
      %p47 = scmp.ne.s32.totalorder %s33, %s34
      %p48 = scmp.eq.s32.totalorder %s26, 1
      %p49 = por %p47, %p48
      %p51 = scmp.ne.s32.totalorder %s34, %s50
      %p52 = scmp.eq.s32.totalorder %s26, 0
      %p53 = por %p51, %p52
      %s54 = ssub.s32 %s20, %s27
      %p55 = scmp.eq.s32.totalorder %s54, 0
      %s57 = sadd.s32 %s56, 1
      %s58 = scalar_select %p55, %s56, %s57
      %p61 = pneg %p55
      %p62 = scmp.eq.s32.totalorder %s20, 1
      %p63 = por %p61, %p62
      %p64 = scmp.ne.s32.totalorder %s56, %s59
      %p65 = scmp.eq.s32.totalorder %s20, 0
      %p66 = por %p64, %p65
      %p67 = scmp.ne.s32.totalorder %s56, %s59
      %p68 = scmp.eq.s32.totalorder %s25, 1
      %p69 = por %p67, %p68
      %p70 = scmp.ne.s32.totalorder %s59, %s60
      %p71 = scmp.eq.s32.totalorder %s25, 0
      %p72 = por %p70, %p71
      %p73 = scmp.ne.s32.totalorder %s59, %s60
      %p74 = scmp.eq.s32.totalorder %s26, 1
      %p75 = por %p73, %p74
      %p77 = scmp.ne.s32.totalorder %s60, %s76
      %p78 = scmp.eq.s32.totalorder %s26, 0
      %p79 = por %p77, %p78
      %s81 = sadd.s32 %s80, 1
      %p84 = scmp.eq.s32.totalorder %s20, 1
      %p85 = scmp.ne.s32.totalorder %s80, %s82
      %p86 = scmp.eq.s32.totalorder %s20, 0
      %p87 = por %p85, %p86
      %p88 = scmp.ne.s32.totalorder %s80, %s82
      %p89 = scmp.eq.s32.totalorder %s25, 1
      %p90 = por %p88, %p89
      %p91 = scmp.ne.s32.totalorder %s82, %s83
      %p92 = scmp.eq.s32.totalorder %s25, 0
      %p93 = por %p91, %p92
      %p94 = scmp.ne.s32.totalorder %s82, %s83
      %p95 = scmp.eq.s32.totalorder %s26, 1
      %p96 = por %p94, %p95
      %p98 = scmp.ne.s32.totalorder %s83, %s97
      %p99 = scmp.eq.s32.totalorder %s26, 0
      %p100 = por %p98, %p99
      %s102 = sadd.s32 %s101, 1
      %p105 = scmp.eq.s32.totalorder %s20, 1
      %p106 = scmp.ne.s32.totalorder %s101, %s103
      %p107 = scmp.eq.s32.totalorder %s20, 0
      %p108 = por %p106, %p107
      %p109 = scmp.ne.s32.totalorder %s101, %s103
      %p110 = scmp.eq.s32.totalorder %s25, 1
      %p111 = por %p109, %p110
      %p112 = scmp.ne.s32.totalorder %s103, %s104
      %p113 = scmp.eq.s32.totalorder %s25, 0
      %p114 = por %p112, %p113
      %p115 = scmp.ne.s32.totalorder %s103, %s104
      %p116 = scmp.eq.s32.totalorder %s26, 1
      %p117 = por %p115, %p116
      %p119 = scmp.ne.s32.totalorder %s104, %s118
      %p120 = scmp.eq.s32.totalorder %s26, 0
      %p121 = por %p119, %p120
      %s122 = ssub.s32 %s20, %s27
      %p123 = scmp.eq.s32.totalorder %s122, 0
      %s125 = sadd.s32 %s124, 1
      %s126 = scalar_select %p123, %s124, %s125
      %p129 = pneg %p123
      %p130 = scmp.eq.s32.totalorder %s20, 1
      %p131 = por %p129, %p130
      %p132 = scmp.ne.s32.totalorder %s124, %s127
      %p133 = scmp.eq.s32.totalorder %s20, 0
      %p134 = por %p132, %p133
      %p135 = scmp.ne.s32.totalorder %s124, %s127
      %p136 = scmp.eq.s32.totalorder %s25, 1
      %p137 = por %p135, %p136
      %p138 = scmp.ne.s32.totalorder %s127, %s128
      %p139 = scmp.eq.s32.totalorder %s25, 0
      %p140 = por %p138, %p139
      %p141 = scmp.ne.s32.totalorder %s127, %s128
      %p142 = scmp.eq.s32.totalorder %s26, 1
      %p143 = por %p141, %p142
      %p145 = scmp.ne.s32.totalorder %s128, %s144
      %p146 = scmp.eq.s32.totalorder %s26, 0
      %p147 = por %p145, %p146
      %p148 = scmp.le.s32.totalorder 1, %s20
      %p149 = scmp.lt.s32.totalorder %s20, 3
      %p150 = pnand %p148, %p149
      %p151 = pneg %p150
      // Predicated region
      $region9: #{basic_block_forward.5} parent=5 // pred_check
        _
      $region10: #{basic_block_forward.5} parent=5 // pred_check_branch
        %153 = sbr.rel (%p150) target = $region12
      $region11: #{basic_block_forward.5} parent=5 // pred_region
        %s154 = ssub.s32 %s20, 1
        // Predicated region
        $region13: #{basic_block_forward.5} parent=11 // pred_check
          %p155 = pneg %p93
        $region14: #{basic_block_forward.5} parent=11 // pred_check_branch
          %157 = sbr.rel (%p155) target = $region16
        $region15: #{basic_block_forward.5} parent=11 // pred_region
          %s159 = ssub.s32 16, 16
          %160 = vsyncadd [#allocation6], %s159
          %s162 = sshll.u32 [#allocation7], 4
          %s163 = int_to_ptr.vmem [resolvable:$true] %s162
          %165 = dma.hbm_to_vmem [thread:$0]  %s2, 16, %s163, [#allocation6]
        $region16: #{basic_block_forward.5} parent=11 // pred_fallthru
          _
        // Predicated region
        $region17: #{basic_block_forward.5} parent=11 // pred_check
          %p166 = pneg %p114
        $region18: #{basic_block_forward.5} parent=11 // pred_check_branch
          %168 = sbr.rel (%p166) target = $region20
        $region19: #{basic_block_forward.5} parent=11 // pred_region
          %s170 = ssub.s32 16, 16
          %171 = vsyncadd [#allocation9], %s170
          %s173 = sshll.u32 [#allocation8], 4
          %s174 = int_to_ptr.vmem [resolvable:$true] %s173
          %176 = dma.hbm_to_vmem [thread:$0]  %s3, 16, %s174, [#allocation9]
        $region20: #{basic_block_forward.5} parent=11 // pred_fallthru
          _
      $region12: #{basic_block_forward.5} parent=5 // pred_fallthru
        _
      %p177 = scmp.lt.s32.totalorder %s20, 2
      // Predicated region
      $region21: #{basic_block_forward.5} parent=5 // pred_check
        %p178 = pneg %p177
      $region22: #{basic_block_forward.5} parent=5 // pred_check_branch
        %180 = sbr.rel (%p178) target = $region24
      $region23: #{basic_block_forward.5} parent=5 // pred_region
        // Predicated region
        $region25: #{basic_block_forward.5} parent=23 // pred_check
          %p181 = pneg %p40
        $region26: #{basic_block_forward.5} parent=23 // pred_check_branch
          %183 = sbr.rel (%p181) target = $region28
        $region27: #{basic_block_forward.5} parent=23 // pred_region
          %s184 = sand.u32 %s30, 1
          %s185 = scalar_lea.sflag [#allocation3], %s184
          %s186 = sand.u32 %s30, 1
          %s187 = smul.addr %s186, 128
          %s188 = scalar_lea.vmem [#allocation2], %s187
          %s190 = ssub.s32 2048, 2048
          %191 = vsyncadd %s185, %s190
          %s192 = smul.addr %s20, 32
          %s193 = smul.addr %s192, 64
          %s194 = scalar_lea.hbm %s0, %s193
          %s195 = sshll.u32 %s188, 4
          %s196 = int_to_ptr.vmem [resolvable:$true] %s195
          %201 = dma.hbm_to_vmem [thread:$0]  %s194, 2048, %s196, %s185, 64, 64, 4
        $region28: #{basic_block_forward.5} parent=23 // pred_fallthru
          _
        // Predicated region
        $region29: #{basic_block_forward.5} parent=23 // pred_check
          %p202 = pneg %p66
        $region30: #{basic_block_forward.5} parent=23 // pred_check_branch
          %204 = sbr.rel (%p202) target = $region32
        $region31: #{basic_block_forward.5} parent=23 // pred_region
          %s205 = sand.u32 %s20, 1
          %s206 = scalar_lea.sflag [#allocation6], %s205
          %s207 = sand.u32 %s56, 1
          %s208 = smul.addr %s207, 128
          %s209 = scalar_lea.vmem [#allocation5], %s208
          %s211 = ssub.s32 2048, 2048
          %212 = vsyncadd %s206, %s211
          %s213 = smul.addr %s20, 32
          %s214 = smul.addr %s213, 64
          %s215 = scalar_lea.hbm %s1, %s214
          %s216 = sshll.u32 %s209, 4
          %s217 = int_to_ptr.vmem [resolvable:$true] %s216
          %222 = dma.hbm_to_vmem [thread:$0]  %s215, 2048, %s217, %s206, 64, 64, 4
        $region32: #{basic_block_forward.5} parent=23 // pred_fallthru
          _
      $region24: #{basic_block_forward.5} parent=5 // pred_fallthru
        _
      %p223 = scmp.le.s32.totalorder 1, %s20
      %p224 = scmp.lt.s32.totalorder %s20, 3
      %p225 = pnand %p223, %p224
      %p226 = pneg %p225
      // Predicated region
      $region33: #{basic_block_forward.5} parent=5 // pred_check
        _
      $region34: #{basic_block_forward.5} parent=5 // pred_check_branch
        %228 = sbr.rel (%p225) target = $region36
      $region35: #{basic_block_forward.5} parent=5 // pred_region
        %s229 = ssub.s32 %s20, 1
        %s230 = sand.u32 %s33, 1
        %s231 = scalar_lea.sflag [#allocation3], %s230
        %s232 = sand.u32 %s33, 1
        %s233 = smul.addr %s232, 128
        %s234 = scalar_lea.vmem [#allocation2], %s233
        // Predicated region
        $region37: #{basic_block_forward.5} parent=35 // pred_check
          %p235 = pneg %p46
        $region38: #{basic_block_forward.5} parent=35 // pred_check_branch
          %237 = sbr.rel (%p235) target = $region40
        $region39: #{basic_block_forward.5} parent=35 // pred_region
          %238 = dma.done %s231, 2048
        $region40: #{basic_block_forward.5} parent=35 // pred_fallthru
          _
        %s239 = sand.u32 %s25, 1
        %s240 = scalar_lea.sflag [#allocation6], %s239
        %s241 = sand.u32 %s59, 1
        %s242 = smul.addr %s241, 128
        %s243 = scalar_lea.vmem [#allocation5], %s242
        // Predicated region
        $region41: #{basic_block_forward.5} parent=35 // pred_check
          %p244 = pneg %p72
        $region42: #{basic_block_forward.5} parent=35 // pred_check_branch
          %246 = sbr.rel (%p244) target = $region44
        $region43: #{basic_block_forward.5} parent=35 // pred_region
          %247 = dma.done %s240, 2048
        $region44: #{basic_block_forward.5} parent=35 // pred_fallthru
          _
        // Predicated region
        $region45: #{basic_block_forward.5} parent=35 // pred_check
          %p248 = pneg %p93
        $region46: #{basic_block_forward.5} parent=35 // pred_check_branch
          %250 = sbr.rel (%p248) target = $region48
        $region47: #{basic_block_forward.5} parent=35 // pred_region
          %251 = dma.done [#allocation6], 16
        $region48: #{basic_block_forward.5} parent=35 // pred_fallthru
          _
        // Predicated region
        $region49: #{basic_block_forward.5} parent=35 // pred_check
          %p252 = pneg %p114
        $region50: #{basic_block_forward.5} parent=35 // pred_check_branch
          %254 = sbr.rel (%p252) target = $region52
        $region51: #{basic_block_forward.5} parent=35 // pred_region
          %255 = dma.done [#allocation9], 16
        $region52: #{basic_block_forward.5} parent=35 // pred_fallthru
          _
        %s256 = sand.u32 %s33, 1
        %s257 = scalar_lea.sflag [#allocation3], %s256
        %s258 = sand.u32 %s33, 1
        %s259 = smul.addr %s258, 128
        %s260 = scalar_lea.vmem [#allocation2], %s259
        %p261 = pneg %p46
        %p262 = pneg %p43
        %s263 = sand.u32 %s25, 1
        %s264 = scalar_lea.sflag [#allocation6], %s263
        %s265 = sand.u32 %s59, 1
        %s266 = smul.addr %s265, 128
        %s267 = scalar_lea.vmem [#allocation5], %s266
        %p268 = pneg %p72
        %p269 = pneg %p69
        %p270 = pneg %p93
        %p271 = pneg %p90
        %p272 = pneg %p114
        %p273 = pneg %p111
        %p274 = pneg %p140
        %p275 = pneg %p137
        %s276 = sand.u32 %s127, 1
        %s277 = scalar_lea.sflag [#allocation4], %s276
        %s278 = sand.u32 %s127, 1
        %s279 = smul.addr %s278, 256
        %s280 = scalar_lea.vmem [#allocation10], %s279
        %v281 = vld [vmem:[#allocation7] sm:$0x1]
        %v282 = vld [vmem:[#allocation8] sm:$0x1]
        %v283 = vld [vmem:[%s234] sm:$0xf]
        %v284 = vld [vmem:[%s234 + $0x4] sm:$0xf]
        %v285 = vld [vmem:[%s234 + $0x8] sm:$0xf]
        %v286 = vld [vmem:[%s234 + $0xc] sm:$0xf]
        %v287 = vld [vmem:[%s234 + $0x10] sm:$0xf]
        %v288 = vld [vmem:[%s234 + $0x14] sm:$0xf]
        %v289 = vld [vmem:[%s234 + $0x18] sm:$0xf]
        %v290 = vld [vmem:[%s234 + $0x1c] sm:$0xf]
        %v291 = vld [vmem:[%s234 + $0x20] sm:$0xf]
        %v292 = vld [vmem:[%s234 + $0x24] sm:$0xf]
        %v293 = vld [vmem:[%s234 + $0x28] sm:$0xf]
        %v294 = vld [vmem:[%s234 + $0x2c] sm:$0xf]
        %v295 = vld [vmem:[%s234 + $0x30] sm:$0xf]
        %v296 = vld [vmem:[%s234 + $0x34] sm:$0xf]
        %v297 = vld [vmem:[%s234 + $0x38] sm:$0xf]
        %v298 = vld [vmem:[%s234 + $0x3c] sm:$0xf]
        %v299 = vld [vmem:[%s234 + $0x40] sm:$0xf]
        %v300 = vld [vmem:[%s234 + $0x44] sm:$0xf]
        %v301 = vld [vmem:[%s234 + $0x48] sm:$0xf]
        %v302 = vld [vmem:[%s234 + $0x4c] sm:$0xf]
        %v303 = vld [vmem:[%s234 + $0x50] sm:$0xf]
        %v304 = vld [vmem:[%s234 + $0x54] sm:$0xf]
        %v305 = vld [vmem:[%s234 + $0x58] sm:$0xf]
        %v306 = vld [vmem:[%s234 + $0x5c] sm:$0xf]
        %v307 = vld [vmem:[%s234 + $0x60] sm:$0xf]
        %v308 = vld [vmem:[%s234 + $0x64] sm:$0xf]
        %v309 = vld [vmem:[%s234 + $0x68] sm:$0xf]
        %v310 = vld [vmem:[%s234 + $0x6c] sm:$0xf]
        %v311 = vld [vmem:[%s234 + $0x70] sm:$0xf]
        %v312 = vld [vmem:[%s234 + $0x74] sm:$0xf]
        %v313 = vld [vmem:[%s234 + $0x78] sm:$0xf]
        %v314 = vld [vmem:[%s234 + $0x7c] sm:$0xf]
        %v315 = vunpack.c.l.bf16 %v283
        %v316 = vunpack.c.l.bf16 %v284
        %v317 = vunpack.c.l.bf16 %v285
        %v318 = vunpack.c.l.bf16 %v286
        %v319 = vunpack.c.l.bf16 %v287
        %v320 = vunpack.c.l.bf16 %v288
        %v321 = vunpack.c.l.bf16 %v289
        %v322 = vunpack.c.l.bf16 %v290
        %v323 = vunpack.c.l.bf16 %v291
        %v324 = vunpack.c.l.bf16 %v292
        %v325 = vunpack.c.l.bf16 %v293
        %v326 = vunpack.c.l.bf16 %v294
        %v327 = vunpack.c.l.bf16 %v295
        %v328 = vunpack.c.l.bf16 %v296
        %v329 = vunpack.c.l.bf16 %v297
        %v330 = vunpack.c.l.bf16 %v298
        %v331 = vunpack.c.l.bf16 %v299
        %v332 = vunpack.c.l.bf16 %v300
        %v333 = vunpack.c.l.bf16 %v301
        %v334 = vunpack.c.l.bf16 %v302
        %v335 = vunpack.c.l.bf16 %v303
        %v336 = vunpack.c.l.bf16 %v304
        %v337 = vunpack.c.l.bf16 %v305
        %v338 = vunpack.c.l.bf16 %v306
        %v339 = vunpack.c.l.bf16 %v307
        %v340 = vunpack.c.l.bf16 %v308
        %v341 = vunpack.c.l.bf16 %v309
        %v342 = vunpack.c.l.bf16 %v310
        %v343 = vunpack.c.l.bf16 %v311
        %v344 = vunpack.c.l.bf16 %v312
        %v345 = vunpack.c.l.bf16 %v313
        %v346 = vunpack.c.l.bf16 %v314
        %v348 = vlaneseq
        %v349 = vshrl.u32 %v348, 7
        %v350 = vsub.s32 0, %v349
        %v351 = vrot.slane %v281, %v350
        %v353 = vmul.f32 %v315, %v351
        %v354 = vmul.f32 %v316, %v351
        %v355 = vmul.f32 %v317, %v351
        %v356 = vmul.f32 %v318, %v351
        %v357 = vmul.f32 %v319, %v351
        %v358 = vmul.f32 %v320, %v351
        %v359 = vmul.f32 %v321, %v351
        %v360 = vmul.f32 %v322, %v351
        %v361 = vmul.f32 %v323, %v351
        %v362 = vmul.f32 %v324, %v351
        %v363 = vmul.f32 %v325, %v351
        %v364 = vmul.f32 %v326, %v351
        %v365 = vmul.f32 %v327, %v351
        %v366 = vmul.f32 %v328, %v351
        %v367 = vmul.f32 %v329, %v351
        %v368 = vmul.f32 %v330, %v351
        %v369 = vmul.f32 %v331, %v351
        %v370 = vmul.f32 %v332, %v351
        %v371 = vmul.f32 %v333, %v351
        %v372 = vmul.f32 %v334, %v351
        %v373 = vmul.f32 %v335, %v351
        %v374 = vmul.f32 %v336, %v351
        %v375 = vmul.f32 %v337, %v351
        %v376 = vmul.f32 %v338, %v351
        %v377 = vmul.f32 %v339, %v351
        %v378 = vmul.f32 %v340, %v351
        %v379 = vmul.f32 %v341, %v351
        %v380 = vmul.f32 %v342, %v351
        %v381 = vmul.f32 %v343, %v351
        %v382 = vmul.f32 %v344, %v351
        %v383 = vmul.f32 %v345, %v351
        %v384 = vmul.f32 %v346, %v351
        %v386 = vlaneseq
        %v387 = vshrl.u32 %v386, 7
        %v388 = vsub.s32 0, %v387
        %v389 = vrot.slane %v282, %v388
        %v391 = vadd.f32 %v353, %v389
        %v392 = vadd.f32 %v354, %v389
        %v393 = vadd.f32 %v355, %v389
        %v394 = vadd.f32 %v356, %v389
        %v395 = vadd.f32 %v357, %v389
        %v396 = vadd.f32 %v358, %v389
        %v397 = vadd.f32 %v359, %v389
        %v398 = vadd.f32 %v360, %v389
        %v399 = vadd.f32 %v361, %v389
        %v400 = vadd.f32 %v362, %v389
        %v401 = vadd.f32 %v363, %v389
        %v402 = vadd.f32 %v364, %v389
        %v403 = vadd.f32 %v365, %v389
        %v404 = vadd.f32 %v366, %v389
        %v405 = vadd.f32 %v367, %v389
        %v406 = vadd.f32 %v368, %v389
        %v407 = vadd.f32 %v369, %v389
        %v408 = vadd.f32 %v370, %v389
        %v409 = vadd.f32 %v371, %v389
        %v410 = vadd.f32 %v372, %v389
        %v411 = vadd.f32 %v373, %v389
        %v412 = vadd.f32 %v374, %v389
        %v413 = vadd.f32 %v375, %v389
        %v414 = vadd.f32 %v376, %v389
        %v415 = vadd.f32 %v377, %v389
        %v416 = vadd.f32 %v378, %v389
        %v417 = vadd.f32 %v379, %v389
        %v418 = vadd.f32 %v380, %v389
        %v419 = vadd.f32 %v381, %v389
        %v420 = vadd.f32 %v382, %v389
        %v421 = vadd.f32 %v383, %v389
        %v422 = vadd.f32 %v384, %v389
        %v423 = vld [vmem:[%s243] sm:$0xf]
        %v424 = vld [vmem:[%s243 + $0x4] sm:$0xf]
        %v425 = vld [vmem:[%s243 + $0x8] sm:$0xf]
        %v426 = vld [vmem:[%s243 + $0xc] sm:$0xf]
        %v427 = vld [vmem:[%s243 + $0x10] sm:$0xf]
        %v428 = vld [vmem:[%s243 + $0x14] sm:$0xf]
        %v429 = vld [vmem:[%s243 + $0x18] sm:$0xf]
        %v430 = vld [vmem:[%s243 + $0x1c] sm:$0xf]
        %v431 = vld [vmem:[%s243 + $0x20] sm:$0xf]
        %v432 = vld [vmem:[%s243 + $0x24] sm:$0xf]
        %v433 = vld [vmem:[%s243 + $0x28] sm:$0xf]
        %v434 = vld [vmem:[%s243 + $0x2c] sm:$0xf]
        %v435 = vld [vmem:[%s243 + $0x30] sm:$0xf]
        %v436 = vld [vmem:[%s243 + $0x34] sm:$0xf]
        %v437 = vld [vmem:[%s243 + $0x38] sm:$0xf]
        %v438 = vld [vmem:[%s243 + $0x3c] sm:$0xf]
        %v439 = vld [vmem:[%s243 + $0x40] sm:$0xf]
        %v440 = vld [vmem:[%s243 + $0x44] sm:$0xf]
        %v441 = vld [vmem:[%s243 + $0x48] sm:$0xf]
        %v442 = vld [vmem:[%s243 + $0x4c] sm:$0xf]
        %v443 = vld [vmem:[%s243 + $0x50] sm:$0xf]
        %v444 = vld [vmem:[%s243 + $0x54] sm:$0xf]
        %v445 = vld [vmem:[%s243 + $0x58] sm:$0xf]
        %v446 = vld [vmem:[%s243 + $0x5c] sm:$0xf]
        %v447 = vld [vmem:[%s243 + $0x60] sm:$0xf]
        %v448 = vld [vmem:[%s243 + $0x64] sm:$0xf]
        %v449 = vld [vmem:[%s243 + $0x68] sm:$0xf]
        %v450 = vld [vmem:[%s243 + $0x6c] sm:$0xf]
        %v451 = vld [vmem:[%s243 + $0x70] sm:$0xf]
        %v452 = vld [vmem:[%s243 + $0x74] sm:$0xf]
        %v453 = vld [vmem:[%s243 + $0x78] sm:$0xf]
        %v454 = vld [vmem:[%s243 + $0x7c] sm:$0xf]
        %v455 = vunpack.c.l.bf16 %v423
        %v456 = vunpack.c.l.bf16 %v424
        %v457 = vunpack.c.l.bf16 %v425
        %v458 = vunpack.c.l.bf16 %v426
        %v459 = vunpack.c.l.bf16 %v427
        %v460 = vunpack.c.l.bf16 %v428
        %v461 = vunpack.c.l.bf16 %v429
        %v462 = vunpack.c.l.bf16 %v430
        %v463 = vunpack.c.l.bf16 %v431
        %v464 = vunpack.c.l.bf16 %v432
        %v465 = vunpack.c.l.bf16 %v433
        %v466 = vunpack.c.l.bf16 %v434
        %v467 = vunpack.c.l.bf16 %v435
        %v468 = vunpack.c.l.bf16 %v436
        %v469 = vunpack.c.l.bf16 %v437
        %v470 = vunpack.c.l.bf16 %v438
        %v471 = vunpack.c.l.bf16 %v439
        %v472 = vunpack.c.l.bf16 %v440
        %v473 = vunpack.c.l.bf16 %v441
        %v474 = vunpack.c.l.bf16 %v442
        %v475 = vunpack.c.l.bf16 %v443
        %v476 = vunpack.c.l.bf16 %v444
        %v477 = vunpack.c.l.bf16 %v445
        %v478 = vunpack.c.l.bf16 %v446
        %v479 = vunpack.c.l.bf16 %v447
        %v480 = vunpack.c.l.bf16 %v448
        %v481 = vunpack.c.l.bf16 %v449
        %v482 = vunpack.c.l.bf16 %v450
        %v483 = vunpack.c.l.bf16 %v451
        %v484 = vunpack.c.l.bf16 %v452
        %v485 = vunpack.c.l.bf16 %v453
        %v486 = vunpack.c.l.bf16 %v454
        %v487 = vadd.f32 %v391, %v455
        %v488 = vadd.f32 %v392, %v456
        %v489 = vadd.f32 %v393, %v457
        %v490 = vadd.f32 %v394, %v458
        %v491 = vadd.f32 %v395, %v459
        %v492 = vadd.f32 %v396, %v460
        %v493 = vadd.f32 %v397, %v461
        %v494 = vadd.f32 %v398, %v462
        %v495 = vadd.f32 %v399, %v463
        %v496 = vadd.f32 %v400, %v464
        %v497 = vadd.f32 %v401, %v465
        %v498 = vadd.f32 %v402, %v466
        %v499 = vadd.f32 %v403, %v467
        %v500 = vadd.f32 %v404, %v468
        %v501 = vadd.f32 %v405, %v469
        %v502 = vadd.f32 %v406, %v470
        %v503 = vadd.f32 %v407, %v471
        %v504 = vadd.f32 %v408, %v472
        %v505 = vadd.f32 %v409, %v473
        %v506 = vadd.f32 %v410, %v474
        %v507 = vadd.f32 %v411, %v475
        %v508 = vadd.f32 %v412, %v476
        %v509 = vadd.f32 %v413, %v477
        %v510 = vadd.f32 %v414, %v478
        %v511 = vadd.f32 %v415, %v479
        %v512 = vadd.f32 %v416, %v480
        %v513 = vadd.f32 %v417, %v481
        %v514 = vadd.f32 %v418, %v482
        %v515 = vadd.f32 %v419, %v483
        %v516 = vadd.f32 %v420, %v484
        %v517 = vadd.f32 %v421, %v485
        %v518 = vadd.f32 %v422, %v486
        %v519 = vmax.f32 %v487, 0.0
        %v520 = vmax.f32 %v488, 0.0
        %v521 = vmax.f32 %v489, 0.0
        %v522 = vmax.f32 %v490, 0.0
        %v523 = vmax.f32 %v491, 0.0
        %v524 = vmax.f32 %v492, 0.0
        %v525 = vmax.f32 %v493, 0.0
        %v526 = vmax.f32 %v494, 0.0
        %v527 = vmax.f32 %v495, 0.0
        %v528 = vmax.f32 %v496, 0.0
        %v529 = vmax.f32 %v497, 0.0
        %v530 = vmax.f32 %v498, 0.0
        %v531 = vmax.f32 %v499, 0.0
        %v532 = vmax.f32 %v500, 0.0
        %v533 = vmax.f32 %v501, 0.0
        %v534 = vmax.f32 %v502, 0.0
        %v535 = vmax.f32 %v503, 0.0
        %v536 = vmax.f32 %v504, 0.0
        %v537 = vmax.f32 %v505, 0.0
        %v538 = vmax.f32 %v506, 0.0
        %v539 = vmax.f32 %v507, 0.0
        %v540 = vmax.f32 %v508, 0.0
        %v541 = vmax.f32 %v509, 0.0
        %v542 = vmax.f32 %v510, 0.0
        %v543 = vmax.f32 %v511, 0.0
        %v544 = vmax.f32 %v512, 0.0
        %v545 = vmax.f32 %v513, 0.0
        %v546 = vmax.f32 %v514, 0.0
        %v547 = vmax.f32 %v515, 0.0
        %v548 = vmax.f32 %v516, 0.0
        %v549 = vmax.f32 %v517, 0.0
        %v550 = vmax.f32 %v518, 0.0
        %vm551 = vcmask 31744
        %552 = vst.msk [vmem:[%s280] sm:$0xff] %vm551, %v519
        %553 = vst.msk [vmem:[%s280 + $0x8] sm:$0xff] %vm551, %v520
        %554 = vst.msk [vmem:[%s280 + $0x10] sm:$0xff] %vm551, %v521
        %555 = vst.msk [vmem:[%s280 + $0x18] sm:$0xff] %vm551, %v522
        %556 = vst.msk [vmem:[%s280 + $0x20] sm:$0xff] %vm551, %v523
        %557 = vst.msk [vmem:[%s280 + $0x28] sm:$0xff] %vm551, %v524
        %558 = vst.msk [vmem:[%s280 + $0x30] sm:$0xff] %vm551, %v525
        %559 = vst.msk [vmem:[%s280 + $0x38] sm:$0xff] %vm551, %v526
        %560 = vst.msk [vmem:[%s280 + $0x40] sm:$0xff] %vm551, %v527
        %561 = vst.msk [vmem:[%s280 + $0x48] sm:$0xff] %vm551, %v528
        %562 = vst.msk [vmem:[%s280 + $0x50] sm:$0xff] %vm551, %v529
        %563 = vst.msk [vmem:[%s280 + $0x58] sm:$0xff] %vm551, %v530
        %564 = vst.msk [vmem:[%s280 + $0x60] sm:$0xff] %vm551, %v531
        %565 = vst.msk [vmem:[%s280 + $0x68] sm:$0xff] %vm551, %v532
        %566 = vst.msk [vmem:[%s280 + $0x70] sm:$0xff] %vm551, %v533
        %567 = vst.msk [vmem:[%s280 + $0x78] sm:$0xff] %vm551, %v534
        %568 = vst.msk [vmem:[%s280 + $0x80] sm:$0xff] %vm551, %v535
        %569 = vst.msk [vmem:[%s280 + $0x88] sm:$0xff] %vm551, %v536
        %570 = vst.msk [vmem:[%s280 + $0x90] sm:$0xff] %vm551, %v537
        %571 = vst.msk [vmem:[%s280 + $0x98] sm:$0xff] %vm551, %v538
        %572 = vst.msk [vmem:[%s280 + $0xa0] sm:$0xff] %vm551, %v539
        %573 = vst.msk [vmem:[%s280 + $0xa8] sm:$0xff] %vm551, %v540
        %574 = vst.msk [vmem:[%s280 + $0xb0] sm:$0xff] %vm551, %v541
        %575 = vst.msk [vmem:[%s280 + $0xb8] sm:$0xff] %vm551, %v542
        %576 = vst.msk [vmem:[%s280 + $0xc0] sm:$0xff] %vm551, %v543
        %577 = vst.msk [vmem:[%s280 + $0xc8] sm:$0xff] %vm551, %v544
        %578 = vst.msk [vmem:[%s280 + $0xd0] sm:$0xff] %vm551, %v545
        %579 = vst.msk [vmem:[%s280 + $0xd8] sm:$0xff] %vm551, %v546
        %580 = vst.msk [vmem:[%s280 + $0xe0] sm:$0xff] %vm551, %v547
        %581 = vst.msk [vmem:[%s280 + $0xe8] sm:$0xff] %vm551, %v548
        %582 = vst.msk [vmem:[%s280 + $0xf0] sm:$0xff] %vm551, %v549
        %583 = vst.msk [vmem:[%s280 + $0xf8] sm:$0xff] %vm551, %v550
        %s584 = sand.u32 %s127, 1
        %s585 = scalar_lea.sflag [#allocation4], %s584
        %s586 = sand.u32 %s127, 1
        %s587 = smul.addr %s586, 256
        %s588 = scalar_lea.vmem [#allocation10], %s587
        // Predicated region
        $region53: #{basic_block_forward.5} parent=35 // pred_check
          %p589 = pneg %p137
        $region54: #{basic_block_forward.5} parent=35 // pred_check_branch
          %591 = sbr.rel (%p589) target = $region56
        $region55: #{basic_block_forward.5} parent=35 // pred_region
          %s593 = ssub.s32 4096, 4096
          %594 = vsyncadd %s585, %s593
          %s595 = smul.addr %s25, 32
          %s596 = smul.addr %s595, 128
          %s597 = scalar_lea.hbm %s4, %s596
          %s598 = sshll.u32 %s588, 4
          %s599 = int_to_ptr.vmem [resolvable:$true] %s598
          %604 = dma.vmem_to_hbm [thread:$0]  %s599, 4096, %s597, %s585, 128, 128, 8
        $region56: #{basic_block_forward.5} parent=35 // pred_fallthru
          _
      $region36: #{basic_block_forward.5} parent=5 // pred_fallthru
        _
      %p605 = scmp.le.s32.totalorder 2, %s20
      // Predicated region
      $region57: #{basic_block_forward.5} parent=5 // pred_check
        %p606 = pneg %p605
      $region58: #{basic_block_forward.5} parent=5 // pred_check_branch
        %608 = sbr.rel (%p606) target = $region60
      $region59: #{basic_block_forward.5} parent=5 // pred_region
        %s609 = ssub.s32 %s20, 2
        // Predicated region
        $region61: #{basic_block_forward.5} parent=59 // pred_check
          %p610 = pneg %p143
        $region62: #{basic_block_forward.5} parent=59 // pred_check_branch
          %612 = sbr.rel (%p610) target = $region64
        $region63: #{basic_block_forward.5} parent=59 // pred_region
          %s613 = sand.u32 %s128, 1
          %s614 = scalar_lea.sflag [#allocation4], %s613
          %s615 = sand.u32 %s128, 1
          %s616 = smul.addr %s615, 256
          %s617 = scalar_lea.vmem [#allocation10], %s616
          %618 = dma.done %s614, 4096
        $region64: #{basic_block_forward.5} parent=59 // pred_fallthru
          _
      $region60: #{basic_block_forward.5} parent=5 // pred_fallthru
        _
    $region6: #{basic_block_forward.5} parent=1 // loop_footer
      %s24 = sadd.s32 1, %s20
    $region7: #{basic_block_forward.5} parent=1 // loop_footer_branch
      %19 = sbr.rel target = $region3
    $region8: #{basic_block_forward.5} parent=1 // loop_exit
      _
    %619 = vsyncpa [#allocation3], 1
    %s620 = scalar_lea.sflag [#allocation3], 1
    %621 = vsyncpa %s620, 1
    %622 = vsyncpa [#allocation6], 1
    %s623 = scalar_lea.sflag [#allocation6], 1
    %624 = vsyncpa %s623, 1
    %625 = vsyncpa [#allocation9], 1
    %626 = vsyncpa [#allocation4], 1
    %s627 = scalar_lea.sflag [#allocation4], 1
    %628 = vsyncpa %s627, 1

// kernel: basic_block_forward.4
$region0: #{basic_block_forward.4}
  #allocation0 [shape = 'u32[]', space=smem, size = 0x4, offset = 0x4, fixed_abs, tag = 'smem constant byte address 0x4 - core index']
  #allocation1 [shape = 'u32[144,128]{1,0:T(1,128)}', space=vmem, size = 0x12000, scoped, tag = 'internal scratch']
  #allocation2 [shape = 'bf16[1,18,18,4]{3,2,1,0:T(8,128)(2,1)}', space=vmem, size = 0x1b000, scoped, tag = 'scratch operand']
  %s0 = inlined_call_operand.hbm [shape: bf16[2,16,16,4], index: 0, kind: input, shape index: {}]
  %s1 = inlined_call_operand.hbm [shape: f32[1,4], index: 1, kind: input, shape index: {}]
  %s2 = inlined_call_operand.hbm [shape: f32[1,4], index: 2, kind: input, shape index: {}]
  %s3 = inlined_call_operand.hbm [shape: bf16[9,4,4], index: 3, kind: input, shape index: {}]
  %s4 = inlined_call_operand.hbm [shape: bf16[2,16,16,4], index: 4, kind: output, shape index: {0}]
  %s5 = inlined_call_operand.hbm [shape: f32[2,2,4], index: 5, kind: output, shape index: {1}]
  %6 = xla_tuple %s4, %s5
  %s7 = sld [smem:[#allocation0]]
  $region77: #{basic_block_forward.4} parent=0
    _
  %s9 = ssub.s32 1, %s7
  %s10 = scalar_select 0, %s9, %s7
  $region1: #{basic_block_forward.4} parent=0
    #allocation3 [shape = 'u8[131072]{0}', space=vmem, size = 0x20000, scoped, tag = 'input window, operand 0']
    #allocation4 [shape = 's32[2]{0}', space=sflag, size = 0x8, scoped, tag = 'scoped memory for basic_block_forward.4']
    #allocation5 [shape = 's32[2]{0}', space=sflag, size = 0x8, scoped, tag = 'scoped memory for basic_block_forward.4']
    #allocation6 [shape = 'u8[512]{0}', space=vmem, size = 0x400, scoped, tag = 'input window, operand 1, single buffered']
    #allocation7 [shape = 's32[1]{0}', space=sflag, size = 0x4, scoped, tag = 'scoped memory for basic_block_forward.4']
    #allocation8 [shape = 'u8[512]{0}', space=vmem, size = 0x400, scoped, tag = 'input window, operand 2, single buffered']
    #allocation9 [shape = 'u8[9216]{0}', space=vmem, size = 0x2400, scoped, tag = 'input window, operand 3, single buffered']
    #allocation10 [shape = 's32[1]{0}', space=sflag, size = 0x4, scoped, tag = 'scoped memory for basic_block_forward.4']
    #allocation11 [shape = 'u8[131072]{0}', space=vmem, size = 0x20000, scoped, tag = 'output window, operand 0']
    #allocation12 [shape = 'u8[2048]{0}', space=vmem, size = 0x800, scoped, tag = 'output window, operand 1']
    #allocation13 [shape = 's32[2]{0}', space=sflag, size = 0x8, scoped, tag = 'scoped memory for basic_block_forward.4']
    %11 = vsyncpa [#allocation4], 0
    %s12 = scalar_lea.sflag [#allocation4], 1
    %13 = vsyncpa %s12, 0
    %14 = vsyncpa [#allocation7], 0
    %15 = vsyncpa [#allocation10], 0
    %16 = vsyncpa [#allocation5], 0
    %s17 = scalar_lea.sflag [#allocation5], 1
    %18 = vsyncpa %s17, 0
    %19 = vsyncpa [#allocation13], 0
    %s20 = scalar_lea.sflag [#allocation13], 1
    %21 = vsyncpa %s20, 0
    loop: start=0, step=1, limit=4
    $region2: #{basic_block_forward.4} parent=1 // loop_pre_header
      _
    $region3: #{basic_block_forward.4} parent=1 // loop_header
      %s23 = sphi 0, %s27
      %p24 = scmp.ge.s32.totalorder %s23, 4
      %s30 = sphi 0, %s42
      %s31 = sphi 0, %s38
      %s32 = sphi 0, %s30
      %s33 = sphi 0, %s31
      %s34 = sphi 0, %s32
      %s35 = sphi 0, %s33
      %s47 = sphi 0, %s49
      %s50 = sphi 0, %s47
      %s51 = sphi 0, %s50
      %s67 = sphi 0, %s51
      %s71 = sphi 0, %s71
      %s73 = sphi 0, %s71
      %s74 = sphi 0, %s73
      %s88 = sphi 0, %s74
      %s92 = sphi 0, %s92
      %s94 = sphi 0, %s92
      %s95 = sphi 0, %s94
      %s109 = sphi 0, %s95
      %s113 = sphi 0, %s113
      %s115 = sphi 0, %s113
      %s116 = sphi 0, %s115
      %s130 = sphi 0, %s116
      %s138 = sphi 0, %s140
      %s141 = sphi 0, %s138
      %s142 = sphi 0, %s141
      %s158 = sphi 0, %s142
      %s164 = sphi 0, %s166
      %s167 = sphi 0, %s164
      %s168 = sphi 0, %s167
      %s184 = sphi 0, %s168
    $region4: #{basic_block_forward.4} parent=1 // loop_header_branch
      %26 = sbr.rel (%p24) target = $region8
    $region5: #{basic_block_forward.4} parent=1 // loop_body
      %s28 = ssub.s32 %s23, 1
      %s29 = ssub.s32 %s23, 2
      %s36 = sadd.s32 1, %s31
      %p37 = scmp.ge.s32.totalorder %s36, 1
      %s38 = scalar_select %p37, 0, %s36
      %s39 = sadd.s32 1, %s30
      %s40 = scalar_select %p37, %s39, %s30
      %p41 = scmp.ge.s32.totalorder %s40, 2
      %s42 = scalar_select %p41, 0, %s40
      %s43 = sadd.s32 %s30, %s31
      %s44 = sadd.s32 %s42, %s38
      %s45 = ssub.s32 %s43, %s44
      %p46 = scmp.eq.s32.totalorder %s45, 0
      %s48 = sadd.s32 %s47, 1
      %s49 = scalar_select %p46, %s47, %s48
      %p52 = pneg %p46
      %p53 = scmp.eq.s32.totalorder %s23, 1
      %p54 = por %p52, %p53
      %p55 = scmp.ne.s32.totalorder %s47, %s50
      %p56 = scmp.eq.s32.totalorder %s23, 0
      %p57 = por %p55, %p56
      %p58 = scmp.ne.s32.totalorder %s47, %s50
      %p59 = scmp.eq.s32.totalorder %s28, 1
      %p60 = por %p58, %p59
      %p61 = scmp.ne.s32.totalorder %s50, %s51
      %p62 = scmp.eq.s32.totalorder %s28, 0
      %p63 = por %p61, %p62
      %p64 = scmp.ne.s32.totalorder %s50, %s51
      %p65 = scmp.eq.s32.totalorder %s29, 1
      %p66 = por %p64, %p65
      %p68 = scmp.ne.s32.totalorder %s51, %s67
      %p69 = scmp.eq.s32.totalorder %s29, 0
      %p70 = por %p68, %p69
      %s72 = sadd.s32 %s71, 1
      %p75 = scmp.eq.s32.totalorder %s23, 1
      %p76 = scmp.ne.s32.totalorder %s71, %s73
      %p77 = scmp.eq.s32.totalorder %s23, 0
      %p78 = por %p76, %p77
      %p79 = scmp.ne.s32.totalorder %s71, %s73
      %p80 = scmp.eq.s32.totalorder %s28, 1
      %p81 = por %p79, %p80
      %p82 = scmp.ne.s32.totalorder %s73, %s74
      %p83 = scmp.eq.s32.totalorder %s28, 0
      %p84 = por %p82, %p83
      %p85 = scmp.ne.s32.totalorder %s73, %s74
      %p86 = scmp.eq.s32.totalorder %s29, 1
      %p87 = por %p85, %p86
      %p89 = scmp.ne.s32.totalorder %s74, %s88
      %p90 = scmp.eq.s32.totalorder %s29, 0
      %p91 = por %p89, %p90
      %s93 = sadd.s32 %s92, 1
      %p96 = scmp.eq.s32.totalorder %s23, 1
      %p97 = scmp.ne.s32.totalorder %s92, %s94
      %p98 = scmp.eq.s32.totalorder %s23, 0
      %p99 = por %p97, %p98
      %p100 = scmp.ne.s32.totalorder %s92, %s94
      %p101 = scmp.eq.s32.totalorder %s28, 1
      %p102 = por %p100, %p101
      %p103 = scmp.ne.s32.totalorder %s94, %s95
      %p104 = scmp.eq.s32.totalorder %s28, 0
      %p105 = por %p103, %p104
      %p106 = scmp.ne.s32.totalorder %s94, %s95
      %p107 = scmp.eq.s32.totalorder %s29, 1
      %p108 = por %p106, %p107
      %p110 = scmp.ne.s32.totalorder %s95, %s109
      %p111 = scmp.eq.s32.totalorder %s29, 0
      %p112 = por %p110, %p111
      %s114 = sadd.s32 %s113, 1
      %p117 = scmp.eq.s32.totalorder %s23, 1
      %p118 = scmp.ne.s32.totalorder %s113, %s115
      %p119 = scmp.eq.s32.totalorder %s23, 0
      %p120 = por %p118, %p119
      %p121 = scmp.ne.s32.totalorder %s113, %s115
      %p122 = scmp.eq.s32.totalorder %s28, 1
      %p123 = por %p121, %p122
      %p124 = scmp.ne.s32.totalorder %s115, %s116
      %p125 = scmp.eq.s32.totalorder %s28, 0
      %p126 = por %p124, %p125
      %p127 = scmp.ne.s32.totalorder %s115, %s116
      %p128 = scmp.eq.s32.totalorder %s29, 1
      %p129 = por %p127, %p128
      %p131 = scmp.ne.s32.totalorder %s116, %s130
      %p132 = scmp.eq.s32.totalorder %s29, 0
      %p133 = por %p131, %p132
      %s134 = sadd.s32 %s30, %s31
      %s135 = sadd.s32 %s42, %s38
      %s136 = ssub.s32 %s134, %s135
      %p137 = scmp.eq.s32.totalorder %s136, 0
      %s139 = sadd.s32 %s138, 1
      %s140 = scalar_select %p137, %s138, %s139
      %p143 = pneg %p137
      %p144 = scmp.eq.s32.totalorder %s23, 1
      %p145 = por %p143, %p144
      %p146 = scmp.ne.s32.totalorder %s138, %s141
      %p147 = scmp.eq.s32.totalorder %s23, 0
      %p148 = por %p146, %p147
      %p149 = scmp.ne.s32.totalorder %s138, %s141
      %p150 = scmp.eq.s32.totalorder %s28, 1
      %p151 = por %p149, %p150
      %p152 = scmp.ne.s32.totalorder %s141, %s142
      %p153 = scmp.eq.s32.totalorder %s28, 0
      %p154 = por %p152, %p153
      %p155 = scmp.ne.s32.totalorder %s141, %s142
      %p156 = scmp.eq.s32.totalorder %s29, 1
      %p157 = por %p155, %p156
      %p159 = scmp.ne.s32.totalorder %s142, %s158
      %p160 = scmp.eq.s32.totalorder %s29, 0
      %p161 = por %p159, %p160
      %s162 = ssub.s32 %s30, %s42
      %p163 = scmp.eq.s32.totalorder %s162, 0
      %s165 = sadd.s32 %s164, 1
      %s166 = scalar_select %p163, %s164, %s165
      %p169 = pneg %p163
      %p170 = scmp.eq.s32.totalorder %s23, 1
      %p171 = por %p169, %p170
      %p172 = scmp.ne.s32.totalorder %s164, %s167
      %p173 = scmp.eq.s32.totalorder %s23, 0
      %p174 = por %p172, %p173
      %p175 = scmp.ne.s32.totalorder %s164, %s167
      %p176 = scmp.eq.s32.totalorder %s28, 1
      %p177 = por %p175, %p176
      %p178 = scmp.ne.s32.totalorder %s167, %s168
      %p179 = scmp.eq.s32.totalorder %s28, 0
      %p180 = por %p178, %p179
      %p181 = scmp.ne.s32.totalorder %s167, %s168
      %p182 = scmp.eq.s32.totalorder %s29, 1
      %p183 = por %p181, %p182
      %p185 = scmp.ne.s32.totalorder %s168, %s184
      %p186 = scmp.eq.s32.totalorder %s29, 0
      %p187 = por %p185, %p186
      %p188 = scmp.le.s32.totalorder 1, %s23
      %p189 = scmp.lt.s32.totalorder %s23, 3
      %p190 = pnand %p188, %p189
      %p191 = pneg %p190
      // Predicated region
      $region9: #{basic_block_forward.4} parent=5 // pred_check
        _
      $region10: #{basic_block_forward.4} parent=5 // pred_check_branch
        %193 = sbr.rel (%p190) target = $region12
      $region11: #{basic_block_forward.4} parent=5 // pred_region
        %s194 = ssub.s32 %s23, 1
        // Predicated region
        $region13: #{basic_block_forward.4} parent=11 // pred_check
          %p195 = pneg %p84
        $region14: #{basic_block_forward.4} parent=11 // pred_check_branch
          %197 = sbr.rel (%p195) target = $region16
        $region15: #{basic_block_forward.4} parent=11 // pred_region
          %s199 = ssub.s32 16, 16
          %200 = vsyncadd [#allocation7], %s199
          %s202 = sshll.u32 [#allocation6], 4
          %s203 = int_to_ptr.vmem [resolvable:$true] %s202
          %205 = dma.hbm_to_vmem [thread:$0]  %s1, 16, %s203, [#allocation7]
        $region16: #{basic_block_forward.4} parent=11 // pred_fallthru
          _
        // Predicated region
        $region17: #{basic_block_forward.4} parent=11 // pred_check
          %p206 = pneg %p105
        $region18: #{basic_block_forward.4} parent=11 // pred_check_branch
          %208 = sbr.rel (%p206) target = $region20
        $region19: #{basic_block_forward.4} parent=11 // pred_region
          %s210 = ssub.s32 16, 16
          %211 = vsyncadd [#allocation7], %s210
          %s213 = sshll.u32 [#allocation8], 4
          %s214 = int_to_ptr.vmem [resolvable:$true] %s213
          %216 = dma.hbm_to_vmem [thread:$0]  %s2, 16, %s214, [#allocation7]
        $region20: #{basic_block_forward.4} parent=11 // pred_fallthru
          _
        // Predicated region
        $region21: #{basic_block_forward.4} parent=11 // pred_check
          %p217 = pneg %p126
        $region22: #{basic_block_forward.4} parent=11 // pred_check_branch
          %219 = sbr.rel (%p217) target = $region24
        $region23: #{basic_block_forward.4} parent=11 // pred_region
          %s221 = ssub.s32 288, 288
          %222 = vsyncadd [#allocation10], %s221
          %s223 = sshll.u32 [#allocation9], 4
          %s224 = int_to_ptr.vmem [resolvable:$true] %s223
          %229 = dma.hbm_to_vmem [thread:$0]  %s3, 288, %s224, [#allocation10], 32, 32, 2
        $region24: #{basic_block_forward.4} parent=11 // pred_fallthru
          _
      $region12: #{basic_block_forward.4} parent=5 // pred_fallthru
        _
      %p230 = scmp.lt.s32.totalorder %s23, 2
      // Predicated region
      $region25: #{basic_block_forward.4} parent=5 // pred_check
        %p231 = pneg %p230
      $region26: #{basic_block_forward.4} parent=5 // pred_check_branch
        %233 = sbr.rel (%p231) target = $region28
      $region27: #{basic_block_forward.4} parent=5 // pred_region
        // Predicated region
        $region29: #{basic_block_forward.4} parent=27 // pred_check
          %p234 = pneg %p57
        $region30: #{basic_block_forward.4} parent=27 // pred_check_branch
          %236 = sbr.rel (%p234) target = $region32
        $region31: #{basic_block_forward.4} parent=27 // pred_region
          %s237 = sand.u32 %s47, 1
          %s238 = scalar_lea.sflag [#allocation4], %s237
          %s239 = sand.u32 %s47, 1
          %s240 = smul.addr %s239, 128
          %s241 = scalar_lea.vmem [#allocation3], %s240
          %s242 = sadd.s32 %s30, %s31
          %s244 = ssub.s32 2048, 2048
          %245 = vsyncadd %s238, %s244
          %s246 = smul.addr %s242, 32
          %s247 = smul.addr %s246, 64
          %s248 = scalar_lea.hbm %s0, %s247
          %s249 = sshll.u32 %s241, 4
          %s250 = int_to_ptr.vmem [resolvable:$true] %s249
          %255 = dma.hbm_to_vmem [thread:$0]  %s248, 2048, %s250, %s238, 64, 64, 4
        $region32: #{basic_block_forward.4} parent=27 // pred_fallthru
          _
      $region28: #{basic_block_forward.4} parent=5 // pred_fallthru
        _
      %p256 = scmp.le.s32.totalorder 1, %s23
      %p257 = scmp.lt.s32.totalorder %s23, 3
      %p258 = pnand %p256, %p257
      %p259 = pneg %p258
      // Predicated region
      $region33: #{basic_block_forward.4} parent=5 // pred_check
        _
      $region34: #{basic_block_forward.4} parent=5 // pred_check_branch
        %261 = sbr.rel (%p258) target = $region36
      $region35: #{basic_block_forward.4} parent=5 // pred_region
        %s262 = ssub.s32 %s23, 1
        %s263 = sand.u32 %s50, 1
        %s264 = scalar_lea.sflag [#allocation4], %s263
        %s265 = sand.u32 %s50, 1
        %s266 = smul.addr %s265, 128
        %s267 = scalar_lea.vmem [#allocation3], %s266
        // Predicated region
        $region37: #{basic_block_forward.4} parent=35 // pred_check
          %p268 = pneg %p63
        $region38: #{basic_block_forward.4} parent=35 // pred_check_branch
          %270 = sbr.rel (%p268) target = $region40
        $region39: #{basic_block_forward.4} parent=35 // pred_region
          %271 = dma.done %s264, 2048
        $region40: #{basic_block_forward.4} parent=35 // pred_fallthru
          _
        // Predicated region
        $region41: #{basic_block_forward.4} parent=35 // pred_check
          %p272 = pneg %p84
        $region42: #{basic_block_forward.4} parent=35 // pred_check_branch
          %274 = sbr.rel (%p272) target = $region44
        $region43: #{basic_block_forward.4} parent=35 // pred_region
          %275 = dma.done [#allocation7], 16
        $region44: #{basic_block_forward.4} parent=35 // pred_fallthru
          _
        // Predicated region
        $region45: #{basic_block_forward.4} parent=35 // pred_check
          %p276 = pneg %p105
        $region46: #{basic_block_forward.4} parent=35 // pred_check_branch
          %278 = sbr.rel (%p276) target = $region48
        $region47: #{basic_block_forward.4} parent=35 // pred_region
          %279 = dma.done [#allocation7], 16
        $region48: #{basic_block_forward.4} parent=35 // pred_fallthru
          _
        // Predicated region
        $region49: #{basic_block_forward.4} parent=35 // pred_check
          %p280 = pneg %p126
        $region50: #{basic_block_forward.4} parent=35 // pred_check_branch
          %282 = sbr.rel (%p280) target = $region52
        $region51: #{basic_block_forward.4} parent=35 // pred_region
          %283 = dma.done [#allocation10], 288
        $region52: #{basic_block_forward.4} parent=35 // pred_fallthru
          _
        %s284 = sand.u32 %s50, 1
        %s285 = scalar_lea.sflag [#allocation4], %s284
        %s286 = sand.u32 %s50, 1
        %s287 = smul.addr %s286, 128
        %s288 = scalar_lea.vmem [#allocation3], %s287
        %p289 = pneg %p63
        %p290 = pneg %p60
        %p291 = pneg %p84
        %p292 = pneg %p81
        %p293 = pneg %p105
        %p294 = pneg %p102
        %p295 = pneg %p126
        %p296 = pneg %p123
        %p297 = pneg %p154
        %p298 = pneg %p151
        %s299 = sand.u32 %s141, 1
        %s300 = scalar_lea.sflag [#allocation5], %s299
        %s301 = sand.u32 %s141, 1
        %s302 = smul.addr %s301, 128
        %s303 = scalar_lea.vmem [#allocation11], %s302
        %p304 = pneg %p180
        %p305 = pneg %p177
        %s306 = sand.u32 %s167, 1
        %s307 = scalar_lea.sflag [#allocation13], %s306
        %s308 = sand.u32 %s167, 1
        %s309 = smul.addr %s308, 2
        %s310 = scalar_lea.vmem [#allocation12], %s309
        %s311 = sadd.s32 %s32, %s33
        %s312 = sadd.s32 %s32, %s33
        %p314 = scmp.eq.s32.totalorder %s33, 0
        // Predicated region
        $region53: #{basic_block_forward.4} parent=35 // pred_check
          %p315 = pneg %p314
        $region54: #{basic_block_forward.4} parent=35 // pred_check_branch
          %317 = sbr.rel (%p315) target = $region56
        $region55: #{basic_block_forward.4} parent=35 // pred_region
          %vm318 = vcmask 27648
          %319 = vst.msk [vmem:[#allocation2] sm:$0xf] %vm318, 0
          %320 = vst.msk [vmem:[#allocation2 + $0x4] sm:$0xf] %vm318, 0
          %vm321 = vcmask 24576
          %322 = vst.msk [vmem:[#allocation2 + $0x8] sm:$0x1] %vm321, 0
          %323 = vst.msk [vmem:[#allocation2 + $0xc] sm:$0xf] %vm318, 0
          %324 = vst.msk [vmem:[#allocation2 + $0x10] sm:$0xf] %vm318, 0
          %325 = vst.msk [vmem:[#allocation2 + $0x14] sm:$0x1] %vm321, 0
          %326 = vst.msk [vmem:[#allocation2 + $0x18] sm:$0xf] %vm318, 0
          %327 = vst.msk [vmem:[#allocation2 + $0x1c] sm:$0xf] %vm318, 0
          %328 = vst.msk [vmem:[#allocation2 + $0x20] sm:$0x1] %vm321, 0
          %329 = vst.msk [vmem:[#allocation2 + $0x24] sm:$0xf] %vm318, 0
          %330 = vst.msk [vmem:[#allocation2 + $0x28] sm:$0xf] %vm318, 0
          %331 = vst.msk [vmem:[#allocation2 + $0x2c] sm:$0x1] %vm321, 0
          %332 = vst.msk [vmem:[#allocation2 + $0x30] sm:$0xf] %vm318, 0
          %333 = vst.msk [vmem:[#allocation2 + $0x34] sm:$0xf] %vm318, 0
          %334 = vst.msk [vmem:[#allocation2 + $0x38] sm:$0x1] %vm321, 0
          %335 = vst.msk [vmem:[#allocation2 + $0x3c] sm:$0xf] %vm318, 0
          %336 = vst.msk [vmem:[#allocation2 + $0x40] sm:$0xf] %vm318, 0
          %337 = vst.msk [vmem:[#allocation2 + $0x44] sm:$0x1] %vm321, 0
          %338 = vst.msk [vmem:[#allocation2 + $0x48] sm:$0xf] %vm318, 0
          %339 = vst.msk [vmem:[#allocation2 + $0x4c] sm:$0xf] %vm318, 0
          %340 = vst.msk [vmem:[#allocation2 + $0x50] sm:$0x1] %vm321, 0
          %341 = vst.msk [vmem:[#allocation2 + $0x54] sm:$0xf] %vm318, 0
          %342 = vst.msk [vmem:[#allocation2 + $0x58] sm:$0xf] %vm318, 0
          %343 = vst.msk [vmem:[#allocation2 + $0x5c] sm:$0x1] %vm321, 0
          %344 = vst.msk [vmem:[#allocation2 + $0x60] sm:$0xf] %vm318, 0
          %345 = vst.msk [vmem:[#allocation2 + $0x64] sm:$0xf] %vm318, 0
          %346 = vst.msk [vmem:[#allocation2 + $0x68] sm:$0x1] %vm321, 0
          %347 = vst.msk [vmem:[#allocation2 + $0x6c] sm:$0xf] %vm318, 0
          %348 = vst.msk [vmem:[#allocation2 + $0x70] sm:$0xf] %vm318, 0
          %349 = vst.msk [vmem:[#allocation2 + $0x74] sm:$0x1] %vm321, 0
          %350 = vst.msk [vmem:[#allocation2 + $0x78] sm:$0xf] %vm318, 0
          %351 = vst.msk [vmem:[#allocation2 + $0x7c] sm:$0xf] %vm318, 0
          %352 = vst.msk [vmem:[#allocation2 + $0x80] sm:$0x1] %vm321, 0
          %353 = vst.msk [vmem:[#allocation2 + $0x84] sm:$0xf] %vm318, 0
          %354 = vst.msk [vmem:[#allocation2 + $0x88] sm:$0xf] %vm318, 0
          %355 = vst.msk [vmem:[#allocation2 + $0x8c] sm:$0x1] %vm321, 0
          %356 = vst.msk [vmem:[#allocation2 + $0x90] sm:$0xf] %vm318, 0
          %357 = vst.msk [vmem:[#allocation2 + $0x94] sm:$0xf] %vm318, 0
          %358 = vst.msk [vmem:[#allocation2 + $0x98] sm:$0x1] %vm321, 0
          %359 = vst.msk [vmem:[#allocation2 + $0x9c] sm:$0xf] %vm318, 0
          %360 = vst.msk [vmem:[#allocation2 + $0xa0] sm:$0xf] %vm318, 0
          %361 = vst.msk [vmem:[#allocation2 + $0xa4] sm:$0x1] %vm321, 0
          %362 = vst.msk [vmem:[#allocation2 + $0xa8] sm:$0xf] %vm318, 0
          %363 = vst.msk [vmem:[#allocation2 + $0xac] sm:$0xf] %vm318, 0
          %364 = vst.msk [vmem:[#allocation2 + $0xb0] sm:$0x1] %vm321, 0
          %365 = vst.msk [vmem:[#allocation2 + $0xb4] sm:$0xf] %vm318, 0
          %366 = vst.msk [vmem:[#allocation2 + $0xb8] sm:$0xf] %vm318, 0
          %367 = vst.msk [vmem:[#allocation2 + $0xbc] sm:$0x1] %vm321, 0
          %368 = vst.msk [vmem:[#allocation2 + $0xc0] sm:$0xf] %vm318, 0
          %369 = vst.msk [vmem:[#allocation2 + $0xc4] sm:$0xf] %vm318, 0
          %370 = vst.msk [vmem:[#allocation2 + $0xc8] sm:$0x1] %vm321, 0
          %371 = vst.msk [vmem:[#allocation2 + $0xcc] sm:$0xf] %vm318, 0
          %372 = vst.msk [vmem:[#allocation2 + $0xd0] sm:$0xf] %vm318, 0
          %373 = vst.msk [vmem:[#allocation2 + $0xd4] sm:$0x1] %vm321, 0
          %vm374 = vcmask 25600
          %375 = vst.msk [vmem:[%s310] sm:$0x3] %vm374, 0.0
        $region56: #{basic_block_forward.4} parent=35 // pred_fallthru
          _
        %v376 = vld [vmem:[#allocation6] sm:$0x1]
        %v377 = vld [vmem:[#allocation8] sm:$0x1]
        %v378 = vld [vmem:[%s267] sm:$0xf]
        %v379 = vld [vmem:[%s267 + $0x4] sm:$0xf]
        %v380 = vld [vmem:[%s267 + $0x8] sm:$0xf]
        %v381 = vld [vmem:[%s267 + $0xc] sm:$0xf]
        %v382 = vld [vmem:[%s267 + $0x10] sm:$0xf]
        %v383 = vld [vmem:[%s267 + $0x14] sm:$0xf]
        %v384 = vld [vmem:[%s267 + $0x18] sm:$0xf]
        %v385 = vld [vmem:[%s267 + $0x1c] sm:$0xf]
        %v386 = vld [vmem:[%s267 + $0x20] sm:$0xf]
        %v387 = vld [vmem:[%s267 + $0x24] sm:$0xf]
        %v388 = vld [vmem:[%s267 + $0x28] sm:$0xf]
        %v389 = vld [vmem:[%s267 + $0x2c] sm:$0xf]
        %v390 = vld [vmem:[%s267 + $0x30] sm:$0xf]
        %v391 = vld [vmem:[%s267 + $0x34] sm:$0xf]
        %v392 = vld [vmem:[%s267 + $0x38] sm:$0xf]
        %v393 = vld [vmem:[%s267 + $0x3c] sm:$0xf]
        %v394 = vld [vmem:[%s267 + $0x40] sm:$0xf]
        %v395 = vld [vmem:[%s267 + $0x44] sm:$0xf]
        %v396 = vld [vmem:[%s267 + $0x48] sm:$0xf]
        %v397 = vld [vmem:[%s267 + $0x4c] sm:$0xf]
        %v398 = vld [vmem:[%s267 + $0x50] sm:$0xf]
        %v399 = vld [vmem:[%s267 + $0x54] sm:$0xf]
        %v400 = vld [vmem:[%s267 + $0x58] sm:$0xf]
        %v401 = vld [vmem:[%s267 + $0x5c] sm:$0xf]
        %v402 = vld [vmem:[%s267 + $0x60] sm:$0xf]
        %v403 = vld [vmem:[%s267 + $0x64] sm:$0xf]
        %v404 = vld [vmem:[%s267 + $0x68] sm:$0xf]
        %v405 = vld [vmem:[%s267 + $0x6c] sm:$0xf]
        %v406 = vld [vmem:[%s267 + $0x70] sm:$0xf]
        %v407 = vld [vmem:[%s267 + $0x74] sm:$0xf]
        %v408 = vld [vmem:[%s267 + $0x78] sm:$0xf]
        %v409 = vld [vmem:[%s267 + $0x7c] sm:$0xf]
        %v410 = vunpack.c.l.bf16 %v378
        %v411 = vunpack.c.l.bf16 %v379
        %v412 = vunpack.c.l.bf16 %v380
        %v413 = vunpack.c.l.bf16 %v381
        %v414 = vunpack.c.l.bf16 %v382
        %v415 = vunpack.c.l.bf16 %v383
        %v416 = vunpack.c.l.bf16 %v384
        %v417 = vunpack.c.l.bf16 %v385
        %v418 = vunpack.c.l.bf16 %v386
        %v419 = vunpack.c.l.bf16 %v387
        %v420 = vunpack.c.l.bf16 %v388
        %v421 = vunpack.c.l.bf16 %v389
        %v422 = vunpack.c.l.bf16 %v390
        %v423 = vunpack.c.l.bf16 %v391
        %v424 = vunpack.c.l.bf16 %v392
        %v425 = vunpack.c.l.bf16 %v393
        %v426 = vunpack.c.l.bf16 %v394
        %v427 = vunpack.c.l.bf16 %v395
        %v428 = vunpack.c.l.bf16 %v396
        %v429 = vunpack.c.l.bf16 %v397
        %v430 = vunpack.c.l.bf16 %v398
        %v431 = vunpack.c.l.bf16 %v399
        %v432 = vunpack.c.l.bf16 %v400
        %v433 = vunpack.c.l.bf16 %v401
        %v434 = vunpack.c.l.bf16 %v402
        %v435 = vunpack.c.l.bf16 %v403
        %v436 = vunpack.c.l.bf16 %v404
        %v437 = vunpack.c.l.bf16 %v405
        %v438 = vunpack.c.l.bf16 %v406
        %v439 = vunpack.c.l.bf16 %v407
        %v440 = vunpack.c.l.bf16 %v408
        %v441 = vunpack.c.l.bf16 %v409
        %v443 = vlaneseq
        %v444 = vshrl.u32 %v443, 7
        %v445 = vsub.s32 0, %v444
        %v446 = vrot.slane %v376, %v445
        %v448 = vmul.f32 %v410, %v446
        %v449 = vmul.f32 %v411, %v446
        %v450 = vmul.f32 %v412, %v446
        %v451 = vmul.f32 %v413, %v446
        %v452 = vmul.f32 %v414, %v446
        %v453 = vmul.f32 %v415, %v446
        %v454 = vmul.f32 %v416, %v446
        %v455 = vmul.f32 %v417, %v446
        %v456 = vmul.f32 %v418, %v446
        %v457 = vmul.f32 %v419, %v446
        %v458 = vmul.f32 %v420, %v446
        %v459 = vmul.f32 %v421, %v446
        %v460 = vmul.f32 %v422, %v446
        %v461 = vmul.f32 %v423, %v446
        %v462 = vmul.f32 %v424, %v446
        %v463 = vmul.f32 %v425, %v446
        %v464 = vmul.f32 %v426, %v446
        %v465 = vmul.f32 %v427, %v446
        %v466 = vmul.f32 %v428, %v446
        %v467 = vmul.f32 %v429, %v446
        %v468 = vmul.f32 %v430, %v446
        %v469 = vmul.f32 %v431, %v446
        %v470 = vmul.f32 %v432, %v446
        %v471 = vmul.f32 %v433, %v446
        %v472 = vmul.f32 %v434, %v446
        %v473 = vmul.f32 %v435, %v446
        %v474 = vmul.f32 %v436, %v446
        %v475 = vmul.f32 %v437, %v446
        %v476 = vmul.f32 %v438, %v446
        %v477 = vmul.f32 %v439, %v446
        %v478 = vmul.f32 %v440, %v446
        %v479 = vmul.f32 %v441, %v446
        %v481 = vlaneseq
        %v482 = vshrl.u32 %v481, 7
        %v483 = vsub.s32 0, %v482
        %v484 = vrot.slane %v377, %v483
        %v486 = vadd.f32 %v448, %v484
        %v487 = vadd.f32 %v449, %v484
        %v488 = vadd.f32 %v450, %v484
        %v489 = vadd.f32 %v451, %v484
        %v490 = vadd.f32 %v452, %v484
        %v491 = vadd.f32 %v453, %v484
        %v492 = vadd.f32 %v454, %v484
        %v493 = vadd.f32 %v455, %v484
        %v494 = vadd.f32 %v456, %v484
        %v495 = vadd.f32 %v457, %v484
        %v496 = vadd.f32 %v458, %v484
        %v497 = vadd.f32 %v459, %v484
        %v498 = vadd.f32 %v460, %v484
        %v499 = vadd.f32 %v461, %v484
        %v500 = vadd.f32 %v462, %v484
        %v501 = vadd.f32 %v463, %v484
        %v502 = vadd.f32 %v464, %v484
        %v503 = vadd.f32 %v465, %v484
        %v504 = vadd.f32 %v466, %v484
        %v505 = vadd.f32 %v467, %v484
        %v506 = vadd.f32 %v468, %v484
        %v507 = vadd.f32 %v469, %v484
        %v508 = vadd.f32 %v470, %v484
        %v509 = vadd.f32 %v471, %v484
        %v510 = vadd.f32 %v472, %v484
        %v511 = vadd.f32 %v473, %v484
        %v512 = vadd.f32 %v474, %v484
        %v513 = vadd.f32 %v475, %v484
        %v514 = vadd.f32 %v476, %v484
        %v515 = vadd.f32 %v477, %v484
        %v516 = vadd.f32 %v478, %v484
        %v517 = vadd.f32 %v479, %v484
        %v518 = vmax.f32 %v486, 0.0
        %v519 = vmax.f32 %v487, 0.0
        %v520 = vmax.f32 %v488, 0.0
        %v521 = vmax.f32 %v489, 0.0
        %v522 = vmax.f32 %v490, 0.0
        %v523 = vmax.f32 %v491, 0.0
        %v524 = vmax.f32 %v492, 0.0
        %v525 = vmax.f32 %v493, 0.0
        %v526 = vmax.f32 %v494, 0.0
        %v527 = vmax.f32 %v495, 0.0
        %v528 = vmax.f32 %v496, 0.0
        %v529 = vmax.f32 %v497, 0.0
        %v530 = vmax.f32 %v498, 0.0
        %v531 = vmax.f32 %v499, 0.0
        %v532 = vmax.f32 %v500, 0.0
        %v533 = vmax.f32 %v501, 0.0
        %v534 = vmax.f32 %v502, 0.0
        %v535 = vmax.f32 %v503, 0.0
        %v536 = vmax.f32 %v504, 0.0
        %v537 = vmax.f32 %v505, 0.0
        %v538 = vmax.f32 %v506, 0.0
        %v539 = vmax.f32 %v507, 0.0
        %v540 = vmax.f32 %v508, 0.0
        %v541 = vmax.f32 %v509, 0.0
        %v542 = vmax.f32 %v510, 0.0
        %v543 = vmax.f32 %v511, 0.0
        %v544 = vmax.f32 %v512, 0.0
        %v545 = vmax.f32 %v513, 0.0
        %v546 = vmax.f32 %v514, 0.0
        %v547 = vmax.f32 %v515, 0.0
        %v548 = vmax.f32 %v516, 0.0
        %v549 = vmax.f32 %v517, 0.0
        %v550 = vpack.c.bf16 %v519, %v518
        %v551 = vpack.c.bf16 %v521, %v520
        %v552 = vpack.c.bf16 %v523, %v522
        %v553 = vpack.c.bf16 %v525, %v524
        %v554 = vpack.c.bf16 %v527, %v526
        %v555 = vpack.c.bf16 %v529, %v528
        %v556 = vpack.c.bf16 %v531, %v530
        %v557 = vpack.c.bf16 %v533, %v532
        %v558 = vpack.c.bf16 %v535, %v534
        %v559 = vpack.c.bf16 %v537, %v536
        %v560 = vpack.c.bf16 %v539, %v538
        %v561 = vpack.c.bf16 %v541, %v540
        %v562 = vpack.c.bf16 %v543, %v542
        %v563 = vpack.c.bf16 %v545, %v544
        %v564 = vpack.c.bf16 %v547, %v546
        %v565 = vpack.c.bf16 %v549, %v548
        %v582 = vunpack.c.l.b16 %v550
        %v583 = vunpack.c.h.b16 %v550
        %v584 = vunpack.c.l.b16 %v551
        %v585 = vunpack.c.h.b16 %v551
        %v586 = vunpack.c.l.b16 %v552
        %v587 = vunpack.c.h.b16 %v552
        %v588 = vunpack.c.l.b16 %v553
        %v589 = vunpack.c.h.b16 %v553
        %v590 = vunpack.c.l.b16 %v554
        %v591 = vunpack.c.h.b16 %v554
        %v592 = vunpack.c.l.b16 %v555
        %v593 = vunpack.c.h.b16 %v555
        %v594 = vunpack.c.l.b16 %v556
        %v595 = vunpack.c.h.b16 %v556
        %v596 = vunpack.c.l.b16 %v557
        %v597 = vunpack.c.h.b16 %v557
        %v598 = vunpack.c.l.b16 %v558
        %v599 = vunpack.c.h.b16 %v558
        %v600 = vunpack.c.l.b16 %v559
        %v601 = vunpack.c.h.b16 %v559
        %v602 = vunpack.c.l.b16 %v560
        %v603 = vunpack.c.h.b16 %v560
        %v604 = vunpack.c.l.b16 %v561
        %v605 = vunpack.c.h.b16 %v561
        %v606 = vunpack.c.l.b16 %v562
        %v607 = vunpack.c.h.b16 %v562
        %v608 = vunpack.c.l.b16 %v563
        %v609 = vunpack.c.h.b16 %v563
        %v610 = vunpack.c.l.b16 %v564
        %v611 = vunpack.c.h.b16 %v564
        %v612 = vunpack.c.l.b16 %v565
        %v613 = vunpack.c.h.b16 %v565
        %v614 = vpack.c.b16 %v582, %v582
        %v615 = vpack.c.b16 %v583, %v583
        %v616 = vpack.c.b16 %v584, %v584
        %v617 = vpack.c.b16 %v585, %v585
        %v618 = vpack.c.b16 %v586, %v586
        %v619 = vpack.c.b16 %v587, %v587
        %v620 = vpack.c.b16 %v588, %v588
        %v621 = vpack.c.b16 %v589, %v589
        %v622 = vpack.c.b16 %v590, %v590
        %v623 = vpack.c.b16 %v591, %v591
        %v624 = vpack.c.b16 %v592, %v592
        %v625 = vpack.c.b16 %v593, %v593
        %v626 = vpack.c.b16 %v594, %v594
        %v627 = vpack.c.b16 %v595, %v595
        %v628 = vpack.c.b16 %v596, %v596
        %v629 = vpack.c.b16 %v597, %v597
        %v630 = vpack.c.b16 %v598, %v598
        %v631 = vpack.c.b16 %v599, %v599
        %v632 = vpack.c.b16 %v600, %v600
        %v633 = vpack.c.b16 %v601, %v601
        %v634 = vpack.c.b16 %v602, %v602
        %v635 = vpack.c.b16 %v603, %v603
        %v636 = vpack.c.b16 %v604, %v604
        %v637 = vpack.c.b16 %v605, %v605
        %v638 = vpack.c.b16 %v606, %v606
        %v639 = vpack.c.b16 %v607, %v607
        %v640 = vpack.c.b16 %v608, %v608
        %v641 = vpack.c.b16 %v609, %v609
        %v642 = vpack.c.b16 %v610, %v610
        %v643 = vpack.c.b16 %v611, %v611
        %v644 = vpack.c.b16 %v612, %v612
        %v645 = vpack.c.b16 %v613, %v613
        %vm646 = vsmask.f32 256
        %vm647 = vsmask.f32 4368
        %vm648 = vmor %vm646, %vm647
        %v650 = vshrl.u32 %v614, 16
        %v652 = vrot.slane %v650, 7
        %v653 = vshll.u32 %v614, 16
        %v655 = vor.u32 %v652, %v653
        %v656 = vrot.slane %v652, 4
        %v658 = vshrl.u32 %v615, 16
        %v660 = vrot.slane %v658, 7
        %v661 = vshll.u32 %v615, 16
        %v663 = vor.u32 %v660, %v661
        %v664 = vsel %vm648, %v656, %v663
        %v665 = vrot.slane %v660, 4
        %v667 = vshrl.u32 %v616, 16
        %v669 = vrot.slane %v667, 7
        %v670 = vshll.u32 %v616, 16
        %v672 = vor.u32 %v669, %v670
        %v673 = vrot.slane %v669, 4
        %v675 = vshrl.u32 %v617, 16
        %v677 = vrot.slane %v675, 7
        %v678 = vshll.u32 %v617, 16
        %v680 = vor.u32 %v677, %v678
        %v681 = vsel %vm648, %v673, %v680
        %v682 = vrot.slane %v677, 4
        %v684 = vshrl.u32 %v618, 16
        %v686 = vrot.slane %v684, 7
        %v687 = vshll.u32 %v618, 16
        %v689 = vor.u32 %v686, %v687
        %v690 = vrot.slane %v686, 4
        %v692 = vshrl.u32 %v619, 16
        %v694 = vrot.slane %v692, 7
        %v695 = vshll.u32 %v619, 16
        %v697 = vor.u32 %v694, %v695
        %v698 = vsel %vm648, %v690, %v697
        %v699 = vrot.slane %v694, 4
        %v701 = vshrl.u32 %v620, 16
        %v703 = vrot.slane %v701, 7
        %v704 = vshll.u32 %v620, 16
        %v706 = vor.u32 %v703, %v704
        %v707 = vrot.slane %v703, 4
        %v709 = vshrl.u32 %v621, 16
        %v711 = vrot.slane %v709, 7
        %v712 = vshll.u32 %v621, 16
        %v714 = vor.u32 %v711, %v712
        %v715 = vsel %vm648, %v707, %v714
        %v716 = vrot.slane %v711, 4
        %v718 = vshrl.u32 %v622, 16
        %v720 = vrot.slane %v718, 7
        %v721 = vshll.u32 %v622, 16
        %v723 = vor.u32 %v720, %v721
        %v724 = vrot.slane %v720, 4
        %v726 = vshrl.u32 %v623, 16
        %v728 = vrot.slane %v726, 7
        %v729 = vshll.u32 %v623, 16
        %v731 = vor.u32 %v728, %v729
        %v732 = vsel %vm648, %v724, %v731
        %v733 = vrot.slane %v728, 4
        %v735 = vshrl.u32 %v624, 16
        %v737 = vrot.slane %v735, 7
        %v738 = vshll.u32 %v624, 16
        %v740 = vor.u32 %v737, %v738
        %v741 = vrot.slane %v737, 4
        %v743 = vshrl.u32 %v625, 16
        %v745 = vrot.slane %v743, 7
        %v746 = vshll.u32 %v625, 16
        %v748 = vor.u32 %v745, %v746
        %v749 = vsel %vm648, %v741, %v748
        %v750 = vrot.slane %v745, 4
        %v752 = vshrl.u32 %v626, 16
        %v754 = vrot.slane %v752, 7
        %v755 = vshll.u32 %v626, 16
        %v757 = vor.u32 %v754, %v755
        %v758 = vrot.slane %v754, 4
        %v760 = vshrl.u32 %v627, 16
        %v762 = vrot.slane %v760, 7
        %v763 = vshll.u32 %v627, 16
        %v765 = vor.u32 %v762, %v763
        %v766 = vsel %vm648, %v758, %v765
        %v767 = vrot.slane %v762, 4
        %v769 = vshrl.u32 %v628, 16
        %v771 = vrot.slane %v769, 7
        %v772 = vshll.u32 %v628, 16
        %v774 = vor.u32 %v771, %v772
        %v775 = vrot.slane %v771, 4
        %v777 = vshrl.u32 %v629, 16
        %v779 = vrot.slane %v777, 7
        %v780 = vshll.u32 %v629, 16
        %v782 = vor.u32 %v779, %v780
        %v783 = vsel %vm648, %v775, %v782
        %v784 = vrot.slane %v779, 4
        %v786 = vshrl.u32 %v630, 16
        %v788 = vrot.slane %v786, 7
        %v789 = vshll.u32 %v630, 16
        %v791 = vor.u32 %v788, %v789
        %v792 = vrot.slane %v788, 4
        %v794 = vshrl.u32 %v631, 16
        %v796 = vrot.slane %v794, 7
        %v797 = vshll.u32 %v631, 16
        %v799 = vor.u32 %v796, %v797
        %v800 = vsel %vm648, %v792, %v799
        %v801 = vrot.slane %v796, 4
        %v803 = vshrl.u32 %v632, 16
        %v805 = vrot.slane %v803, 7
        %v806 = vshll.u32 %v632, 16
        %v808 = vor.u32 %v805, %v806
        %v809 = vrot.slane %v805, 4
        %v811 = vshrl.u32 %v633, 16
        %v813 = vrot.slane %v811, 7
        %v814 = vshll.u32 %v633, 16
        %v816 = vor.u32 %v813, %v814
        %v817 = vsel %vm648, %v809, %v816
        %v818 = vrot.slane %v813, 4
        %v820 = vshrl.u32 %v634, 16
        %v822 = vrot.slane %v820, 7
        %v823 = vshll.u32 %v634, 16
        %v825 = vor.u32 %v822, %v823
        %v826 = vrot.slane %v822, 4
        %v828 = vshrl.u32 %v635, 16
        %v830 = vrot.slane %v828, 7
        %v831 = vshll.u32 %v635, 16
        %v833 = vor.u32 %v830, %v831
        %v834 = vsel %vm648, %v826, %v833
        %v835 = vrot.slane %v830, 4
        %v837 = vshrl.u32 %v636, 16
        %v839 = vrot.slane %v837, 7
        %v840 = vshll.u32 %v636, 16
        %v842 = vor.u32 %v839, %v840
        %v843 = vrot.slane %v839, 4
        %v845 = vshrl.u32 %v637, 16
        %v847 = vrot.slane %v845, 7
        %v848 = vshll.u32 %v637, 16
        %v850 = vor.u32 %v847, %v848
        %v851 = vsel %vm648, %v843, %v850
        %v852 = vrot.slane %v847, 4
        %v854 = vshrl.u32 %v638, 16
        %v856 = vrot.slane %v854, 7
        %v857 = vshll.u32 %v638, 16
        %v859 = vor.u32 %v856, %v857
        %v860 = vrot.slane %v856, 4
        %v862 = vshrl.u32 %v639, 16
        %v864 = vrot.slane %v862, 7
        %v865 = vshll.u32 %v639, 16
        %v867 = vor.u32 %v864, %v865
        %v868 = vsel %vm648, %v860, %v867
        %v869 = vrot.slane %v864, 4
        %v871 = vshrl.u32 %v640, 16
        %v873 = vrot.slane %v871, 7
        %v874 = vshll.u32 %v640, 16
        %v876 = vor.u32 %v873, %v874
        %v877 = vrot.slane %v873, 4
        %v879 = vshrl.u32 %v641, 16
        %v881 = vrot.slane %v879, 7
        %v882 = vshll.u32 %v641, 16
        %v884 = vor.u32 %v881, %v882
        %v885 = vsel %vm648, %v877, %v884
        %v886 = vrot.slane %v881, 4
        %v888 = vshrl.u32 %v642, 16
        %v890 = vrot.slane %v888, 7
        %v891 = vshll.u32 %v642, 16
        %v893 = vor.u32 %v890, %v891
        %v894 = vrot.slane %v890, 4
        %v896 = vshrl.u32 %v643, 16
        %v898 = vrot.slane %v896, 7
        %v899 = vshll.u32 %v643, 16
        %v901 = vor.u32 %v898, %v899
        %v902 = vsel %vm648, %v894, %v901
        %v903 = vrot.slane %v898, 4
        %v905 = vshrl.u32 %v644, 16
        %v907 = vrot.slane %v905, 7
        %v908 = vshll.u32 %v644, 16
        %v910 = vor.u32 %v907, %v908
        %v911 = vrot.slane %v907, 4
        %v913 = vshrl.u32 %v645, 16
        %v915 = vrot.slane %v913, 7
        %v916 = vshll.u32 %v645, 16
        %v918 = vor.u32 %v915, %v916
        %v919 = vsel %vm648, %v911, %v918
        %v920 = vrot.slane %v915, 4
        %s969 = scalar_lea.vmem [#allocation2], 12
        %vm970 = vcmask 27648
        %vm971 = vsmask.f32 7938
        %vm972 = vmand %vm970, %vm971
        %v973 = vld [vmem:[%s969] sm:$0xf]
        %v974 = vsel %vm972, %v655, %v973
        %975 = vst [vmem:[%s969] sm:$0xf] %v974
        %vm976 = vcmask 27648
        %977 = vst.msk [vmem:[%s969 + $0x4] sm:$0xf] %vm976, %v664
        %vm978 = vcmask 24576
        %vm979 = vmand %vm978, %vm646
        %v980 = vld [vmem:[%s969 + $0x8] sm:$0x1]
        %v981 = vsel %vm979, %v665, %v980
        %982 = vst [vmem:[%s969 + $0x8] sm:$0x1] %v981
        %v983 = vld [vmem:[%s969 + $0xc] sm:$0xf]
        %v984 = vsel %vm972, %v672, %v983
        %985 = vst [vmem:[%s969 + $0xc] sm:$0xf] %v984
        %986 = vst.msk [vmem:[%s969 + $0x10] sm:$0xf] %vm976, %v681
        %v987 = vld [vmem:[%s969 + $0x14] sm:$0x1]
        %v988 = vsel %vm979, %v682, %v987
        %989 = vst [vmem:[%s969 + $0x14] sm:$0x1] %v988
        %v990 = vld [vmem:[%s969 + $0x18] sm:$0xf]
        %v991 = vsel %vm972, %v689, %v990
        %992 = vst [vmem:[%s969 + $0x18] sm:$0xf] %v991
        %993 = vst.msk [vmem:[%s969 + $0x1c] sm:$0xf] %vm976, %v698
        %v994 = vld [vmem:[%s969 + $0x20] sm:$0x1]
        %v995 = vsel %vm979, %v699, %v994
        %996 = vst [vmem:[%s969 + $0x20] sm:$0x1] %v995
        %v997 = vld [vmem:[%s969 + $0x24] sm:$0xf]
        %v998 = vsel %vm972, %v706, %v997
        %999 = vst [vmem:[%s969 + $0x24] sm:$0xf] %v998
        %1000 = vst.msk [vmem:[%s969 + $0x28] sm:$0xf] %vm976, %v715
        %v1001 = vld [vmem:[%s969 + $0x2c] sm:$0x1]
        %v1002 = vsel %vm979, %v716, %v1001
        %1003 = vst [vmem:[%s969 + $0x2c] sm:$0x1] %v1002
        %v1004 = vld [vmem:[%s969 + $0x30] sm:$0xf]
        %v1005 = vsel %vm972, %v723, %v1004
        %1006 = vst [vmem:[%s969 + $0x30] sm:$0xf] %v1005
        %1007 = vst.msk [vmem:[%s969 + $0x34] sm:$0xf] %vm976, %v732
        %v1008 = vld [vmem:[%s969 + $0x38] sm:$0x1]
        %v1009 = vsel %vm979, %v733, %v1008
        %1010 = vst [vmem:[%s969 + $0x38] sm:$0x1] %v1009
        %v1011 = vld [vmem:[%s969 + $0x3c] sm:$0xf]
        %v1012 = vsel %vm972, %v740, %v1011
        %1013 = vst [vmem:[%s969 + $0x3c] sm:$0xf] %v1012
        %1014 = vst.msk [vmem:[%s969 + $0x40] sm:$0xf] %vm976, %v749
        %v1015 = vld [vmem:[%s969 + $0x44] sm:$0x1]
        %v1016 = vsel %vm979, %v750, %v1015
        %1017 = vst [vmem:[%s969 + $0x44] sm:$0x1] %v1016
        %v1018 = vld [vmem:[%s969 + $0x48] sm:$0xf]
        %v1019 = vsel %vm972, %v757, %v1018
        %1020 = vst [vmem:[%s969 + $0x48] sm:$0xf] %v1019
        %1021 = vst.msk [vmem:[%s969 + $0x4c] sm:$0xf] %vm976, %v766
        %v1022 = vld [vmem:[%s969 + $0x50] sm:$0x1]
        %v1023 = vsel %vm979, %v767, %v1022
        %1024 = vst [vmem:[%s969 + $0x50] sm:$0x1] %v1023
        %v1025 = vld [vmem:[%s969 + $0x54] sm:$0xf]
        %v1026 = vsel %vm972, %v774, %v1025
        %1027 = vst [vmem:[%s969 + $0x54] sm:$0xf] %v1026
        %1028 = vst.msk [vmem:[%s969 + $0x58] sm:$0xf] %vm976, %v783
        %v1029 = vld [vmem:[%s969 + $0x5c] sm:$0x1]
        %v1030 = vsel %vm979, %v784, %v1029
        %1031 = vst [vmem:[%s969 + $0x5c] sm:$0x1] %v1030
        %v1032 = vld [vmem:[%s969 + $0x60] sm:$0xf]
        %v1033 = vsel %vm972, %v791, %v1032
        %1034 = vst [vmem:[%s969 + $0x60] sm:$0xf] %v1033
        %1035 = vst.msk [vmem:[%s969 + $0x64] sm:$0xf] %vm976, %v800
        %v1036 = vld [vmem:[%s969 + $0x68] sm:$0x1]
        %v1037 = vsel %vm979, %v801, %v1036
        %1038 = vst [vmem:[%s969 + $0x68] sm:$0x1] %v1037
        %v1039 = vld [vmem:[%s969 + $0x6c] sm:$0xf]
        %v1040 = vsel %vm972, %v808, %v1039
        %1041 = vst [vmem:[%s969 + $0x6c] sm:$0xf] %v1040
        %1042 = vst.msk [vmem:[%s969 + $0x70] sm:$0xf] %vm976, %v817
        %v1043 = vld [vmem:[%s969 + $0x74] sm:$0x1]
        %v1044 = vsel %vm979, %v818, %v1043
        %1045 = vst [vmem:[%s969 + $0x74] sm:$0x1] %v1044
        %v1046 = vld [vmem:[%s969 + $0x78] sm:$0xf]
        %v1047 = vsel %vm972, %v825, %v1046
        %1048 = vst [vmem:[%s969 + $0x78] sm:$0xf] %v1047
        %1049 = vst.msk [vmem:[%s969 + $0x7c] sm:$0xf] %vm976, %v834
        %v1050 = vld [vmem:[%s969 + $0x80] sm:$0x1]
        %v1051 = vsel %vm979, %v835, %v1050
        %1052 = vst [vmem:[%s969 + $0x80] sm:$0x1] %v1051
        %v1053 = vld [vmem:[%s969 + $0x84] sm:$0xf]
        %v1054 = vsel %vm972, %v842, %v1053
        %1055 = vst [vmem:[%s969 + $0x84] sm:$0xf] %v1054
        %1056 = vst.msk [vmem:[%s969 + $0x88] sm:$0xf] %vm976, %v851
        %v1057 = vld [vmem:[%s969 + $0x8c] sm:$0x1]
        %v1058 = vsel %vm979, %v852, %v1057
        %1059 = vst [vmem:[%s969 + $0x8c] sm:$0x1] %v1058
        %v1060 = vld [vmem:[%s969 + $0x90] sm:$0xf]
        %v1061 = vsel %vm972, %v859, %v1060
        %1062 = vst [vmem:[%s969 + $0x90] sm:$0xf] %v1061
        %1063 = vst.msk [vmem:[%s969 + $0x94] sm:$0xf] %vm976, %v868
        %v1064 = vld [vmem:[%s969 + $0x98] sm:$0x1]
        %v1065 = vsel %vm979, %v869, %v1064
        %1066 = vst [vmem:[%s969 + $0x98] sm:$0x1] %v1065
        %v1067 = vld [vmem:[%s969 + $0x9c] sm:$0xf]
        %v1068 = vsel %vm972, %v876, %v1067
        %1069 = vst [vmem:[%s969 + $0x9c] sm:$0xf] %v1068
        %1070 = vst.msk [vmem:[%s969 + $0xa0] sm:$0xf] %vm976, %v885
        %v1071 = vld [vmem:[%s969 + $0xa4] sm:$0x1]
        %v1072 = vsel %vm979, %v886, %v1071
        %1073 = vst [vmem:[%s969 + $0xa4] sm:$0x1] %v1072
        %v1074 = vld [vmem:[%s969 + $0xa8] sm:$0xf]
        %v1075 = vsel %vm972, %v893, %v1074
        %1076 = vst [vmem:[%s969 + $0xa8] sm:$0xf] %v1075
        %1077 = vst.msk [vmem:[%s969 + $0xac] sm:$0xf] %vm976, %v902
        %v1078 = vld [vmem:[%s969 + $0xb0] sm:$0x1]
        %v1079 = vsel %vm979, %v903, %v1078
        %1080 = vst [vmem:[%s969 + $0xb0] sm:$0x1] %v1079
        %v1081 = vld [vmem:[%s969 + $0xb4] sm:$0xf]
        %v1082 = vsel %vm972, %v910, %v1081
        %1083 = vst [vmem:[%s969 + $0xb4] sm:$0xf] %v1082
        %1084 = vst.msk [vmem:[%s969 + $0xb8] sm:$0xf] %vm976, %v919
        %v1085 = vld [vmem:[%s969 + $0xbc] sm:$0x1]
        %v1086 = vsel %vm979, %v920, %v1085
        %1087 = vst [vmem:[%s969 + $0xbc] sm:$0x1] %v1086
        %v1088 = vld [vmem:[#allocation2] sm:$0xf]
        %v1089 = vld [vmem:[#allocation2 + $0x4] sm:$0xf]
        %v1090 = vld [vmem:[#allocation2 + $0xc] sm:$0xf]
        %v1091 = vld [vmem:[#allocation2 + $0x10] sm:$0xf]
        %v1092 = vld [vmem:[#allocation2 + $0x18] sm:$0xf]
        %v1093 = vld [vmem:[#allocation2 + $0x1c] sm:$0xf]
        %v1094 = vld [vmem:[#allocation2 + $0x24] sm:$0xf]
        %v1095 = vld [vmem:[#allocation2 + $0x28] sm:$0xf]
        %v1096 = vld [vmem:[#allocation2 + $0x30] sm:$0xf]
        %v1097 = vld [vmem:[#allocation2 + $0x34] sm:$0xf]
        %v1098 = vld [vmem:[#allocation2 + $0x3c] sm:$0xf]
        %v1099 = vld [vmem:[#allocation2 + $0x40] sm:$0xf]
        %v1100 = vld [vmem:[#allocation2 + $0x48] sm:$0xf]
        %v1101 = vld [vmem:[#allocation2 + $0x4c] sm:$0xf]
        %v1102 = vld [vmem:[#allocation2 + $0x54] sm:$0xf]
        %v1103 = vld [vmem:[#allocation2 + $0x58] sm:$0xf]
        %v1104 = vld [vmem:[#allocation2 + $0x60] sm:$0xf]
        %v1105 = vld [vmem:[#allocation2 + $0x64] sm:$0xf]
        %v1106 = vld [vmem:[#allocation2 + $0x6c] sm:$0xf]
        %v1107 = vld [vmem:[#allocation2 + $0x70] sm:$0xf]
        %v1108 = vld [vmem:[#allocation2 + $0x78] sm:$0xf]
        %v1109 = vld [vmem:[#allocation2 + $0x7c] sm:$0xf]
        %v1110 = vld [vmem:[#allocation2 + $0x84] sm:$0xf]
        %v1111 = vld [vmem:[#allocation2 + $0x88] sm:$0xf]
        %v1112 = vld [vmem:[#allocation2 + $0x90] sm:$0xf]
        %v1113 = vld [vmem:[#allocation2 + $0x94] sm:$0xf]
        %v1114 = vld [vmem:[#allocation2 + $0x9c] sm:$0xf]
        %v1115 = vld [vmem:[#allocation2 + $0xa0] sm:$0xf]
        %v1116 = vld [vmem:[#allocation2 + $0xa8] sm:$0xf]
        %v1117 = vld [vmem:[#allocation2 + $0xac] sm:$0xf]
        %v1118 = vld [vmem:[#allocation2 + $0xb4] sm:$0xf]
        %v1119 = vld [vmem:[#allocation2 + $0xb8] sm:$0xf]
        %v1120 = vld [vmem:[#allocation2 + $0x8] sm:$0x1]
        %v1121 = vld [vmem:[#allocation2 + $0x14] sm:$0x1]
        %v1122 = vld [vmem:[#allocation2 + $0x20] sm:$0x1]
        %v1123 = vld [vmem:[#allocation2 + $0x2c] sm:$0x1]
        %v1124 = vld [vmem:[#allocation2 + $0x38] sm:$0x1]
        %v1125 = vld [vmem:[#allocation2 + $0x44] sm:$0x1]
        %v1126 = vld [vmem:[#allocation2 + $0x50] sm:$0x1]
        %v1127 = vld [vmem:[#allocation2 + $0x5c] sm:$0x1]
        %v1128 = vld [vmem:[#allocation2 + $0x68] sm:$0x1]
        %v1129 = vld [vmem:[#allocation2 + $0x74] sm:$0x1]
        %v1130 = vld [vmem:[#allocation2 + $0x80] sm:$0x1]
        %v1131 = vld [vmem:[#allocation2 + $0x8c] sm:$0x1]
        %v1132 = vld [vmem:[#allocation2 + $0x98] sm:$0x1]
        %v1133 = vld [vmem:[#allocation2 + $0xa4] sm:$0x1]
        %v1134 = vld [vmem:[#allocation2 + $0xb0] sm:$0x1]
        %v1135 = vld [vmem:[#allocation2 + $0xbc] sm:$0x1]
        %vm1136 = vsmask.f32 3328
        %vm1137 = vsmask.f32 7440
        %vm1138 = vmor %vm1136, %vm1137
        %v1140 = vshrl.u32 %v1088, 16
        %v1142 = vrot.slane %v1140, 4
        %v1143 = vshll.u32 %v1088, 16
        %v1145 = vrot.slane %v1143, 5
        %v1146 = vor.u32 %v1142, %v1145
        %v1147 = vrot.slane %v1146, 4
        %v1149 = vshll.u32 %v1089, 16
        %v1151 = vrot.slane %v1149, 5
        %v1152 = vsel %vm1138, %v1147, %v1151
        %v1153 = vshrl.u32 %v1089, 16
        %v1155 = vrot.slane %v1153, 4
        %v1156 = vor.u32 %v1155, %v1151
        %v1157 = vrot.slane %v1156, 4
        %v1159 = vshll.u32 %v1120, 16
        %v1161 = vrot.slane %v1159, 5
        %v1162 = vsel %vm1138, %v1157, %v1161
        %v1164 = vshrl.u32 %v1090, 16
        %v1166 = vrot.slane %v1164, 4
        %v1167 = vshll.u32 %v1090, 16
        %v1169 = vrot.slane %v1167, 5
        %v1170 = vor.u32 %v1166, %v1169
        %v1171 = vrot.slane %v1170, 4
        %v1173 = vshll.u32 %v1091, 16
        %v1175 = vrot.slane %v1173, 5
        %v1176 = vsel %vm1138, %v1171, %v1175
        %v1177 = vshrl.u32 %v1091, 16
        %v1179 = vrot.slane %v1177, 4
        %v1180 = vor.u32 %v1179, %v1175
        %v1181 = vrot.slane %v1180, 4
        %v1183 = vshll.u32 %v1121, 16
        %v1185 = vrot.slane %v1183, 5
        %v1186 = vsel %vm1138, %v1181, %v1185
        %v1188 = vshrl.u32 %v1092, 16
        %v1190 = vrot.slane %v1188, 4
        %v1191 = vshll.u32 %v1092, 16
        %v1193 = vrot.slane %v1191, 5
        %v1194 = vor.u32 %v1190, %v1193
        %v1195 = vrot.slane %v1194, 4
        %v1197 = vshll.u32 %v1093, 16
        %v1199 = vrot.slane %v1197, 5
        %v1200 = vsel %vm1138, %v1195, %v1199
        %v1201 = vshrl.u32 %v1093, 16
        %v1203 = vrot.slane %v1201, 4
        %v1204 = vor.u32 %v1203, %v1199
        %v1205 = vrot.slane %v1204, 4
        %v1207 = vshll.u32 %v1122, 16
        %v1209 = vrot.slane %v1207, 5
        %v1210 = vsel %vm1138, %v1205, %v1209
        %v1212 = vshrl.u32 %v1094, 16
        %v1214 = vrot.slane %v1212, 4
        %v1215 = vshll.u32 %v1094, 16
        %v1217 = vrot.slane %v1215, 5
        %v1218 = vor.u32 %v1214, %v1217
        %v1219 = vrot.slane %v1218, 4
        %v1221 = vshll.u32 %v1095, 16
        %v1223 = vrot.slane %v1221, 5
        %v1224 = vsel %vm1138, %v1219, %v1223
        %v1225 = vshrl.u32 %v1095, 16
        %v1227 = vrot.slane %v1225, 4
        %v1228 = vor.u32 %v1227, %v1223
        %v1229 = vrot.slane %v1228, 4
        %v1231 = vshll.u32 %v1123, 16
        %v1233 = vrot.slane %v1231, 5
        %v1234 = vsel %vm1138, %v1229, %v1233
        %v1236 = vshrl.u32 %v1096, 16
        %v1238 = vrot.slane %v1236, 4
        %v1239 = vshll.u32 %v1096, 16
        %v1241 = vrot.slane %v1239, 5
        %v1242 = vor.u32 %v1238, %v1241
        %v1243 = vrot.slane %v1242, 4
        %v1245 = vshll.u32 %v1097, 16
        %v1247 = vrot.slane %v1245, 5
        %v1248 = vsel %vm1138, %v1243, %v1247
        %v1249 = vshrl.u32 %v1097, 16
        %v1251 = vrot.slane %v1249, 4
        %v1252 = vor.u32 %v1251, %v1247
        %v1253 = vrot.slane %v1252, 4
        %v1255 = vshll.u32 %v1124, 16
        %v1257 = vrot.slane %v1255, 5
        %v1258 = vsel %vm1138, %v1253, %v1257
        %v1260 = vshrl.u32 %v1098, 16
        %v1262 = vrot.slane %v1260, 4
        %v1263 = vshll.u32 %v1098, 16
        %v1265 = vrot.slane %v1263, 5
        %v1266 = vor.u32 %v1262, %v1265
        %v1267 = vrot.slane %v1266, 4
        %v1269 = vshll.u32 %v1099, 16
        %v1271 = vrot.slane %v1269, 5
        %v1272 = vsel %vm1138, %v1267, %v1271
        %v1273 = vshrl.u32 %v1099, 16
        %v1275 = vrot.slane %v1273, 4
        %v1276 = vor.u32 %v1275, %v1271
        %v1277 = vrot.slane %v1276, 4
        %v1279 = vshll.u32 %v1125, 16
        %v1281 = vrot.slane %v1279, 5
        %v1282 = vsel %vm1138, %v1277, %v1281
        %v1284 = vshrl.u32 %v1100, 16
        %v1286 = vrot.slane %v1284, 4
        %v1287 = vshll.u32 %v1100, 16
        %v1289 = vrot.slane %v1287, 5
        %v1290 = vor.u32 %v1286, %v1289
        %v1291 = vrot.slane %v1290, 4
        %v1293 = vshll.u32 %v1101, 16
        %v1295 = vrot.slane %v1293, 5
        %v1296 = vsel %vm1138, %v1291, %v1295
        %v1297 = vshrl.u32 %v1101, 16
        %v1299 = vrot.slane %v1297, 4
        %v1300 = vor.u32 %v1299, %v1295
        %v1301 = vrot.slane %v1300, 4
        %v1303 = vshll.u32 %v1126, 16
        %v1305 = vrot.slane %v1303, 5
        %v1306 = vsel %vm1138, %v1301, %v1305
        %v1308 = vshrl.u32 %v1102, 16
        %v1310 = vrot.slane %v1308, 4
        %v1311 = vshll.u32 %v1102, 16
        %v1313 = vrot.slane %v1311, 5
        %v1314 = vor.u32 %v1310, %v1313
        %v1315 = vrot.slane %v1314, 4
        %v1317 = vshll.u32 %v1103, 16
        %v1319 = vrot.slane %v1317, 5
        %v1320 = vsel %vm1138, %v1315, %v1319
        %v1321 = vshrl.u32 %v1103, 16
        %v1323 = vrot.slane %v1321, 4
        %v1324 = vor.u32 %v1323, %v1319
        %v1325 = vrot.slane %v1324, 4
        %v1327 = vshll.u32 %v1127, 16
        %v1329 = vrot.slane %v1327, 5
        %v1330 = vsel %vm1138, %v1325, %v1329
        %v1332 = vshrl.u32 %v1104, 16
        %v1334 = vrot.slane %v1332, 4
        %v1335 = vshll.u32 %v1104, 16
        %v1337 = vrot.slane %v1335, 5
        %v1338 = vor.u32 %v1334, %v1337
        %v1339 = vrot.slane %v1338, 4
        %v1341 = vshll.u32 %v1105, 16
        %v1343 = vrot.slane %v1341, 5
        %v1344 = vsel %vm1138, %v1339, %v1343
        %v1345 = vshrl.u32 %v1105, 16
        %v1347 = vrot.slane %v1345, 4
        %v1348 = vor.u32 %v1347, %v1343
        %v1349 = vrot.slane %v1348, 4
        %v1351 = vshll.u32 %v1128, 16
        %v1353 = vrot.slane %v1351, 5
        %v1354 = vsel %vm1138, %v1349, %v1353
        %v1356 = vshrl.u32 %v1106, 16
        %v1358 = vrot.slane %v1356, 4
        %v1359 = vshll.u32 %v1106, 16
        %v1361 = vrot.slane %v1359, 5
        %v1362 = vor.u32 %v1358, %v1361
        %v1363 = vrot.slane %v1362, 4
        %v1365 = vshll.u32 %v1107, 16
        %v1367 = vrot.slane %v1365, 5
        %v1368 = vsel %vm1138, %v1363, %v1367
        %v1369 = vshrl.u32 %v1107, 16
        %v1371 = vrot.slane %v1369, 4
        %v1372 = vor.u32 %v1371, %v1367
        %v1373 = vrot.slane %v1372, 4
        %v1375 = vshll.u32 %v1129, 16
        %v1377 = vrot.slane %v1375, 5
        %v1378 = vsel %vm1138, %v1373, %v1377
        %v1380 = vshrl.u32 %v1108, 16
        %v1382 = vrot.slane %v1380, 4
        %v1383 = vshll.u32 %v1108, 16
        %v1385 = vrot.slane %v1383, 5
        %v1386 = vor.u32 %v1382, %v1385
        %v1387 = vrot.slane %v1386, 4
        %v1389 = vshll.u32 %v1109, 16
        %v1391 = vrot.slane %v1389, 5
        %v1392 = vsel %vm1138, %v1387, %v1391
        %v1393 = vshrl.u32 %v1109, 16
        %v1395 = vrot.slane %v1393, 4
        %v1396 = vor.u32 %v1395, %v1391
        %v1397 = vrot.slane %v1396, 4
        %v1399 = vshll.u32 %v1130, 16
        %v1401 = vrot.slane %v1399, 5
        %v1402 = vsel %vm1138, %v1397, %v1401
        %v1404 = vshrl.u32 %v1110, 16
        %v1406 = vrot.slane %v1404, 4
        %v1407 = vshll.u32 %v1110, 16
        %v1409 = vrot.slane %v1407, 5
        %v1410 = vor.u32 %v1406, %v1409
        %v1411 = vrot.slane %v1410, 4
        %v1413 = vshll.u32 %v1111, 16
        %v1415 = vrot.slane %v1413, 5
        %v1416 = vsel %vm1138, %v1411, %v1415
        %v1417 = vshrl.u32 %v1111, 16
        %v1419 = vrot.slane %v1417, 4
        %v1420 = vor.u32 %v1419, %v1415
        %v1421 = vrot.slane %v1420, 4
        %v1423 = vshll.u32 %v1131, 16
        %v1425 = vrot.slane %v1423, 5
        %v1426 = vsel %vm1138, %v1421, %v1425
        %v1428 = vshrl.u32 %v1112, 16
        %v1430 = vrot.slane %v1428, 4
        %v1431 = vshll.u32 %v1112, 16
        %v1433 = vrot.slane %v1431, 5
        %v1434 = vor.u32 %v1430, %v1433
        %v1435 = vrot.slane %v1434, 4
        %v1437 = vshll.u32 %v1113, 16
        %v1439 = vrot.slane %v1437, 5
        %v1440 = vsel %vm1138, %v1435, %v1439
        %v1441 = vshrl.u32 %v1113, 16
        %v1443 = vrot.slane %v1441, 4
        %v1444 = vor.u32 %v1443, %v1439
        %v1445 = vrot.slane %v1444, 4
        %v1447 = vshll.u32 %v1132, 16
        %v1449 = vrot.slane %v1447, 5
        %v1450 = vsel %vm1138, %v1445, %v1449
        %v1452 = vshrl.u32 %v1114, 16
        %v1454 = vrot.slane %v1452, 4
        %v1455 = vshll.u32 %v1114, 16
        %v1457 = vrot.slane %v1455, 5
        %v1458 = vor.u32 %v1454, %v1457
        %v1459 = vrot.slane %v1458, 4
        %v1461 = vshll.u32 %v1115, 16
        %v1463 = vrot.slane %v1461, 5
        %v1464 = vsel %vm1138, %v1459, %v1463
        %v1465 = vshrl.u32 %v1115, 16
        %v1467 = vrot.slane %v1465, 4
        %v1468 = vor.u32 %v1467, %v1463
        %v1469 = vrot.slane %v1468, 4
        %v1471 = vshll.u32 %v1133, 16
        %v1473 = vrot.slane %v1471, 5
        %v1474 = vsel %vm1138, %v1469, %v1473
        %v1476 = vshrl.u32 %v1116, 16
        %v1478 = vrot.slane %v1476, 4
        %v1479 = vshll.u32 %v1116, 16
        %v1481 = vrot.slane %v1479, 5
        %v1482 = vor.u32 %v1478, %v1481
        %v1483 = vrot.slane %v1482, 4
        %v1485 = vshll.u32 %v1117, 16
        %v1487 = vrot.slane %v1485, 5
        %v1488 = vsel %vm1138, %v1483, %v1487
        %v1489 = vshrl.u32 %v1117, 16
        %v1491 = vrot.slane %v1489, 4
        %v1492 = vor.u32 %v1491, %v1487
        %v1493 = vrot.slane %v1492, 4
        %v1495 = vshll.u32 %v1134, 16
        %v1497 = vrot.slane %v1495, 5
        %v1498 = vsel %vm1138, %v1493, %v1497
        %v1500 = vshrl.u32 %v1118, 16
        %v1502 = vrot.slane %v1500, 4
        %v1503 = vshll.u32 %v1118, 16
        %v1505 = vrot.slane %v1503, 5
        %v1506 = vor.u32 %v1502, %v1505
        %v1507 = vrot.slane %v1506, 4
        %v1509 = vshll.u32 %v1119, 16
        %v1511 = vrot.slane %v1509, 5
        %v1512 = vsel %vm1138, %v1507, %v1511
        %v1513 = vshrl.u32 %v1119, 16
        %v1515 = vrot.slane %v1513, 4
        %v1516 = vor.u32 %v1515, %v1511
        %v1517 = vrot.slane %v1516, 4
        %v1519 = vshll.u32 %v1135, 16
        %v1521 = vrot.slane %v1519, 5
        %v1522 = vsel %vm1138, %v1517, %v1521
        %v1523 = vld [vmem:[#allocation2] sm:$0xe]
        %v1524 = vld [vmem:[#allocation2 + $0xc] sm:$0xe]
        %v1525 = vld [vmem:[#allocation2 + $0x18] sm:$0xe]
        %v1526 = vld [vmem:[#allocation2 + $0x24] sm:$0xe]
        %v1527 = vld [vmem:[#allocation2 + $0x30] sm:$0xe]
        %v1528 = vld [vmem:[#allocation2 + $0x3c] sm:$0xe]
        %v1529 = vld [vmem:[#allocation2 + $0x48] sm:$0xe]
        %v1530 = vld [vmem:[#allocation2 + $0x54] sm:$0xe]
        %v1531 = vld [vmem:[#allocation2 + $0x60] sm:$0xe]
        %v1532 = vld [vmem:[#allocation2 + $0x6c] sm:$0xe]
        %v1533 = vld [vmem:[#allocation2 + $0x78] sm:$0xe]
        %v1534 = vld [vmem:[#allocation2 + $0x84] sm:$0xe]
        %v1535 = vld [vmem:[#allocation2 + $0x90] sm:$0xe]
        %v1536 = vld [vmem:[#allocation2 + $0x9c] sm:$0xe]
        %v1537 = vld [vmem:[#allocation2 + $0xa8] sm:$0xe]
        %v1538 = vld [vmem:[#allocation2 + $0xb4] sm:$0xe]
        %vm1587 = vcmask 1042432
        %vm1588 = vcmask 1046532
        %vm1589 = vmor %vm1587, %vm1588
        %v1590 = vrot.slane %v1523, 5
        %v1591 = vrot.slane %v1590, 4
        %v1592 = vrot.slane %v1089, 5
        %v1593 = vsel %vm1589, %v1591, %v1592
        %v1594 = vrot.slane %v1592, 4
        %v1595 = vrot.slane %v1120, 5
        %v1596 = vsel %vm1589, %v1594, %v1595
        %v1597 = vrot.slane %v1524, 5
        %v1598 = vrot.slane %v1597, 4
        %v1599 = vrot.slane %v1091, 5
        %v1600 = vsel %vm1589, %v1598, %v1599
        %v1601 = vrot.slane %v1599, 4
        %v1602 = vrot.slane %v1121, 5
        %v1603 = vsel %vm1589, %v1601, %v1602
        %v1604 = vrot.slane %v1525, 5
        %v1605 = vrot.slane %v1604, 4
        %v1606 = vrot.slane %v1093, 5
        %v1607 = vsel %vm1589, %v1605, %v1606
        %v1608 = vrot.slane %v1606, 4
        %v1609 = vrot.slane %v1122, 5
        %v1610 = vsel %vm1589, %v1608, %v1609
        %v1611 = vrot.slane %v1526, 5
        %v1612 = vrot.slane %v1611, 4
        %v1613 = vrot.slane %v1095, 5
        %v1614 = vsel %vm1589, %v1612, %v1613
        %v1615 = vrot.slane %v1613, 4
        %v1616 = vrot.slane %v1123, 5
        %v1617 = vsel %vm1589, %v1615, %v1616
        %v1618 = vrot.slane %v1527, 5
        %v1619 = vrot.slane %v1618, 4
        %v1620 = vrot.slane %v1097, 5
        %v1621 = vsel %vm1589, %v1619, %v1620
        %v1622 = vrot.slane %v1620, 4
        %v1623 = vrot.slane %v1124, 5
        %v1624 = vsel %vm1589, %v1622, %v1623
        %v1625 = vrot.slane %v1528, 5
        %v1626 = vrot.slane %v1625, 4
        %v1627 = vrot.slane %v1099, 5
        %v1628 = vsel %vm1589, %v1626, %v1627
        %v1629 = vrot.slane %v1627, 4
        %v1630 = vrot.slane %v1125, 5
        %v1631 = vsel %vm1589, %v1629, %v1630
        %v1632 = vrot.slane %v1529, 5
        %v1633 = vrot.slane %v1632, 4
        %v1634 = vrot.slane %v1101, 5
        %v1635 = vsel %vm1589, %v1633, %v1634
        %v1636 = vrot.slane %v1634, 4
        %v1637 = vrot.slane %v1126, 5
        %v1638 = vsel %vm1589, %v1636, %v1637
        %v1639 = vrot.slane %v1530, 5
        %v1640 = vrot.slane %v1639, 4
        %v1641 = vrot.slane %v1103, 5
        %v1642 = vsel %vm1589, %v1640, %v1641
        %v1643 = vrot.slane %v1641, 4
        %v1644 = vrot.slane %v1127, 5
        %v1645 = vsel %vm1589, %v1643, %v1644
        %v1646 = vrot.slane %v1531, 5
        %v1647 = vrot.slane %v1646, 4
        %v1648 = vrot.slane %v1105, 5
        %v1649 = vsel %vm1589, %v1647, %v1648
        %v1650 = vrot.slane %v1648, 4
        %v1651 = vrot.slane %v1128, 5
        %v1652 = vsel %vm1589, %v1650, %v1651
        %v1653 = vrot.slane %v1532, 5
        %v1654 = vrot.slane %v1653, 4
        %v1655 = vrot.slane %v1107, 5
        %v1656 = vsel %vm1589, %v1654, %v1655
        %v1657 = vrot.slane %v1655, 4
        %v1658 = vrot.slane %v1129, 5
        %v1659 = vsel %vm1589, %v1657, %v1658
        %v1660 = vrot.slane %v1533, 5
        %v1661 = vrot.slane %v1660, 4
        %v1662 = vrot.slane %v1109, 5
        %v1663 = vsel %vm1589, %v1661, %v1662
        %v1664 = vrot.slane %v1662, 4
        %v1665 = vrot.slane %v1130, 5
        %v1666 = vsel %vm1589, %v1664, %v1665
        %v1667 = vrot.slane %v1534, 5
        %v1668 = vrot.slane %v1667, 4
        %v1669 = vrot.slane %v1111, 5
        %v1670 = vsel %vm1589, %v1668, %v1669
        %v1671 = vrot.slane %v1669, 4
        %v1672 = vrot.slane %v1131, 5
        %v1673 = vsel %vm1589, %v1671, %v1672
        %v1674 = vrot.slane %v1535, 5
        %v1675 = vrot.slane %v1674, 4
        %v1676 = vrot.slane %v1113, 5
        %v1677 = vsel %vm1589, %v1675, %v1676
        %v1678 = vrot.slane %v1676, 4
        %v1679 = vrot.slane %v1132, 5
        %v1680 = vsel %vm1589, %v1678, %v1679
        %v1681 = vrot.slane %v1536, 5
        %v1682 = vrot.slane %v1681, 4
        %v1683 = vrot.slane %v1115, 5
        %v1684 = vsel %vm1589, %v1682, %v1683
        %v1685 = vrot.slane %v1683, 4
        %v1686 = vrot.slane %v1133, 5
        %v1687 = vsel %vm1589, %v1685, %v1686
        %v1688 = vrot.slane %v1537, 5
        %v1689 = vrot.slane %v1688, 4
        %v1690 = vrot.slane %v1117, 5
        %v1691 = vsel %vm1589, %v1689, %v1690
        %v1692 = vrot.slane %v1690, 4
        %v1693 = vrot.slane %v1134, 5
        %v1694 = vsel %vm1589, %v1692, %v1693
        %v1695 = vrot.slane %v1538, 5
        %v1696 = vrot.slane %v1695, 4
        %v1697 = vrot.slane %v1119, 5
        %v1698 = vsel %vm1589, %v1696, %v1697
        %v1699 = vrot.slane %v1697, 4
        %v1700 = vrot.slane %v1135, 5
        %v1701 = vsel %vm1589, %v1699, %v1700
        %v1702 = vld [vmem:[%s969] sm:$0xf]
        %v1703 = vld [vmem:[%s969 + $0x4] sm:$0xf]
        %v1704 = vld [vmem:[%s969 + $0xc] sm:$0xf]
        %v1705 = vld [vmem:[%s969 + $0x10] sm:$0xf]
        %v1706 = vld [vmem:[%s969 + $0x18] sm:$0xf]
        %v1707 = vld [vmem:[%s969 + $0x1c] sm:$0xf]
        %v1708 = vld [vmem:[%s969 + $0x24] sm:$0xf]
        %v1709 = vld [vmem:[%s969 + $0x28] sm:$0xf]
        %v1710 = vld [vmem:[%s969 + $0x30] sm:$0xf]
        %v1711 = vld [vmem:[%s969 + $0x34] sm:$0xf]
        %v1712 = vld [vmem:[%s969 + $0x3c] sm:$0xf]
        %v1713 = vld [vmem:[%s969 + $0x40] sm:$0xf]
        %v1714 = vld [vmem:[%s969 + $0x48] sm:$0xf]
        %v1715 = vld [vmem:[%s969 + $0x4c] sm:$0xf]
        %v1716 = vld [vmem:[%s969 + $0x54] sm:$0xf]
        %v1717 = vld [vmem:[%s969 + $0x58] sm:$0xf]
        %v1718 = vld [vmem:[%s969 + $0x60] sm:$0xf]
        %v1719 = vld [vmem:[%s969 + $0x64] sm:$0xf]
        %v1720 = vld [vmem:[%s969 + $0x6c] sm:$0xf]
        %v1721 = vld [vmem:[%s969 + $0x70] sm:$0xf]
        %v1722 = vld [vmem:[%s969 + $0x78] sm:$0xf]
        %v1723 = vld [vmem:[%s969 + $0x7c] sm:$0xf]
        %v1724 = vld [vmem:[%s969 + $0x84] sm:$0xf]
        %v1725 = vld [vmem:[%s969 + $0x88] sm:$0xf]
        %v1726 = vld [vmem:[%s969 + $0x90] sm:$0xf]
        %v1727 = vld [vmem:[%s969 + $0x94] sm:$0xf]
        %v1728 = vld [vmem:[%s969 + $0x9c] sm:$0xf]
        %v1729 = vld [vmem:[%s969 + $0xa0] sm:$0xf]
        %v1730 = vld [vmem:[%s969 + $0xa8] sm:$0xf]
        %v1731 = vld [vmem:[%s969 + $0xac] sm:$0xf]
        %v1732 = vld [vmem:[%s969 + $0xb4] sm:$0xf]
        %v1733 = vld [vmem:[%s969 + $0xb8] sm:$0xf]
        %v1734 = vld [vmem:[%s969 + $0x8] sm:$0x1]
        %v1735 = vld [vmem:[%s969 + $0x14] sm:$0x1]
        %v1736 = vld [vmem:[%s969 + $0x20] sm:$0x1]
        %v1737 = vld [vmem:[%s969 + $0x2c] sm:$0x1]
        %v1738 = vld [vmem:[%s969 + $0x38] sm:$0x1]
        %v1739 = vld [vmem:[%s969 + $0x44] sm:$0x1]
        %v1740 = vld [vmem:[%s969 + $0x50] sm:$0x1]
        %v1741 = vld [vmem:[%s969 + $0x5c] sm:$0x1]
        %v1742 = vld [vmem:[%s969 + $0x68] sm:$0x1]
        %v1743 = vld [vmem:[%s969 + $0x74] sm:$0x1]
        %v1744 = vld [vmem:[%s969 + $0x80] sm:$0x1]
        %v1745 = vld [vmem:[%s969 + $0x8c] sm:$0x1]
        %v1746 = vld [vmem:[%s969 + $0x98] sm:$0x1]
        %v1747 = vld [vmem:[%s969 + $0xa4] sm:$0x1]
        %v1748 = vld [vmem:[%s969 + $0xb0] sm:$0x1]
        %v1749 = vld [vmem:[%s969 + $0xbc] sm:$0x1]
        %v1751 = vshrl.u32 %v1702, 16
        %v1753 = vrot.slane %v1751, 4
        %v1754 = vshll.u32 %v1702, 16
        %v1756 = vrot.slane %v1754, 5
        %v1757 = vor.u32 %v1753, %v1756
        %v1758 = vrot.slane %v1757, 4
        %v1760 = vshll.u32 %v1703, 16
        %v1762 = vrot.slane %v1760, 5
        %v1763 = vsel %vm1138, %v1758, %v1762
        %v1764 = vshrl.u32 %v1703, 16
        %v1766 = vrot.slane %v1764, 4
        %v1767 = vor.u32 %v1766, %v1762
        %v1768 = vrot.slane %v1767, 4
        %v1770 = vshll.u32 %v1734, 16
        %v1772 = vrot.slane %v1770, 5
        %v1773 = vsel %vm1138, %v1768, %v1772
        %v1775 = vshrl.u32 %v1704, 16
        %v1777 = vrot.slane %v1775, 4
        %v1778 = vshll.u32 %v1704, 16
        %v1780 = vrot.slane %v1778, 5
        %v1781 = vor.u32 %v1777, %v1780
        %v1782 = vrot.slane %v1781, 4
        %v1784 = vshll.u32 %v1705, 16
        %v1786 = vrot.slane %v1784, 5
        %v1787 = vsel %vm1138, %v1782, %v1786
        %v1788 = vshrl.u32 %v1705, 16
        %v1790 = vrot.slane %v1788, 4
        %v1791 = vor.u32 %v1790, %v1786
        %v1792 = vrot.slane %v1791, 4
        %v1794 = vshll.u32 %v1735, 16
        %v1796 = vrot.slane %v1794, 5
        %v1797 = vsel %vm1138, %v1792, %v1796
        %v1799 = vshrl.u32 %v1706, 16
        %v1801 = vrot.slane %v1799, 4
        %v1802 = vshll.u32 %v1706, 16
        %v1804 = vrot.slane %v1802, 5
        %v1805 = vor.u32 %v1801, %v1804
        %v1806 = vrot.slane %v1805, 4
        %v1808 = vshll.u32 %v1707, 16
        %v1810 = vrot.slane %v1808, 5
        %v1811 = vsel %vm1138, %v1806, %v1810
        %v1812 = vshrl.u32 %v1707, 16
        %v1814 = vrot.slane %v1812, 4
        %v1815 = vor.u32 %v1814, %v1810
        %v1816 = vrot.slane %v1815, 4
        %v1818 = vshll.u32 %v1736, 16
        %v1820 = vrot.slane %v1818, 5
        %v1821 = vsel %vm1138, %v1816, %v1820
        %v1823 = vshrl.u32 %v1708, 16
        %v1825 = vrot.slane %v1823, 4
        %v1826 = vshll.u32 %v1708, 16
        %v1828 = vrot.slane %v1826, 5
        %v1829 = vor.u32 %v1825, %v1828
        %v1830 = vrot.slane %v1829, 4
        %v1832 = vshll.u32 %v1709, 16
        %v1834 = vrot.slane %v1832, 5
        %v1835 = vsel %vm1138, %v1830, %v1834
        %v1836 = vshrl.u32 %v1709, 16
        %v1838 = vrot.slane %v1836, 4
        %v1839 = vor.u32 %v1838, %v1834
        %v1840 = vrot.slane %v1839, 4
        %v1842 = vshll.u32 %v1737, 16
        %v1844 = vrot.slane %v1842, 5
        %v1845 = vsel %vm1138, %v1840, %v1844
        %v1847 = vshrl.u32 %v1710, 16
        %v1849 = vrot.slane %v1847, 4
        %v1850 = vshll.u32 %v1710, 16
        %v1852 = vrot.slane %v1850, 5
        %v1853 = vor.u32 %v1849, %v1852
        %v1854 = vrot.slane %v1853, 4
        %v1856 = vshll.u32 %v1711, 16
        %v1858 = vrot.slane %v1856, 5
        %v1859 = vsel %vm1138, %v1854, %v1858
        %v1860 = vshrl.u32 %v1711, 16
        %v1862 = vrot.slane %v1860, 4
        %v1863 = vor.u32 %v1862, %v1858
        %v1864 = vrot.slane %v1863, 4
        %v1866 = vshll.u32 %v1738, 16
        %v1868 = vrot.slane %v1866, 5
        %v1869 = vsel %vm1138, %v1864, %v1868
        %v1871 = vshrl.u32 %v1712, 16
        %v1873 = vrot.slane %v1871, 4
        %v1874 = vshll.u32 %v1712, 16
        %v1876 = vrot.slane %v1874, 5
        %v1877 = vor.u32 %v1873, %v1876
        %v1878 = vrot.slane %v1877, 4
        %v1880 = vshll.u32 %v1713, 16
        %v1882 = vrot.slane %v1880, 5
        %v1883 = vsel %vm1138, %v1878, %v1882
        %v1884 = vshrl.u32 %v1713, 16
        %v1886 = vrot.slane %v1884, 4
        %v1887 = vor.u32 %v1886, %v1882
        %v1888 = vrot.slane %v1887, 4
        %v1890 = vshll.u32 %v1739, 16
        %v1892 = vrot.slane %v1890, 5
        %v1893 = vsel %vm1138, %v1888, %v1892
        %v1895 = vshrl.u32 %v1714, 16
        %v1897 = vrot.slane %v1895, 4
        %v1898 = vshll.u32 %v1714, 16
        %v1900 = vrot.slane %v1898, 5
        %v1901 = vor.u32 %v1897, %v1900
        %v1902 = vrot.slane %v1901, 4
        %v1904 = vshll.u32 %v1715, 16
        %v1906 = vrot.slane %v1904, 5
        %v1907 = vsel %vm1138, %v1902, %v1906
        %v1908 = vshrl.u32 %v1715, 16
        %v1910 = vrot.slane %v1908, 4
        %v1911 = vor.u32 %v1910, %v1906
        %v1912 = vrot.slane %v1911, 4
        %v1914 = vshll.u32 %v1740, 16
        %v1916 = vrot.slane %v1914, 5
        %v1917 = vsel %vm1138, %v1912, %v1916
        %v1919 = vshrl.u32 %v1716, 16
        %v1921 = vrot.slane %v1919, 4
        %v1922 = vshll.u32 %v1716, 16
        %v1924 = vrot.slane %v1922, 5
        %v1925 = vor.u32 %v1921, %v1924
        %v1926 = vrot.slane %v1925, 4
        %v1928 = vshll.u32 %v1717, 16
        %v1930 = vrot.slane %v1928, 5
        %v1931 = vsel %vm1138, %v1926, %v1930
        %v1932 = vshrl.u32 %v1717, 16
        %v1934 = vrot.slane %v1932, 4
        %v1935 = vor.u32 %v1934, %v1930
        %v1936 = vrot.slane %v1935, 4
        %v1938 = vshll.u32 %v1741, 16
        %v1940 = vrot.slane %v1938, 5
        %v1941 = vsel %vm1138, %v1936, %v1940
        %v1943 = vshrl.u32 %v1718, 16
        %v1945 = vrot.slane %v1943, 4
        %v1946 = vshll.u32 %v1718, 16
        %v1948 = vrot.slane %v1946, 5
        %v1949 = vor.u32 %v1945, %v1948
        %v1950 = vrot.slane %v1949, 4
        %v1952 = vshll.u32 %v1719, 16
        %v1954 = vrot.slane %v1952, 5
        %v1955 = vsel %vm1138, %v1950, %v1954
        %v1956 = vshrl.u32 %v1719, 16
        %v1958 = vrot.slane %v1956, 4
        %v1959 = vor.u32 %v1958, %v1954
        %v1960 = vrot.slane %v1959, 4
        %v1962 = vshll.u32 %v1742, 16
        %v1964 = vrot.slane %v1962, 5
        %v1965 = vsel %vm1138, %v1960, %v1964
        %v1967 = vshrl.u32 %v1720, 16
        %v1969 = vrot.slane %v1967, 4
        %v1970 = vshll.u32 %v1720, 16
        %v1972 = vrot.slane %v1970, 5
        %v1973 = vor.u32 %v1969, %v1972
        %v1974 = vrot.slane %v1973, 4
        %v1976 = vshll.u32 %v1721, 16
        %v1978 = vrot.slane %v1976, 5
        %v1979 = vsel %vm1138, %v1974, %v1978
        %v1980 = vshrl.u32 %v1721, 16
        %v1982 = vrot.slane %v1980, 4
        %v1983 = vor.u32 %v1982, %v1978
        %v1984 = vrot.slane %v1983, 4
        %v1986 = vshll.u32 %v1743, 16
        %v1988 = vrot.slane %v1986, 5
        %v1989 = vsel %vm1138, %v1984, %v1988
        %v1991 = vshrl.u32 %v1722, 16
        %v1993 = vrot.slane %v1991, 4
        %v1994 = vshll.u32 %v1722, 16
        %v1996 = vrot.slane %v1994, 5
        %v1997 = vor.u32 %v1993, %v1996
        %v1998 = vrot.slane %v1997, 4
        %v2000 = vshll.u32 %v1723, 16
        %v2002 = vrot.slane %v2000, 5
        %v2003 = vsel %vm1138, %v1998, %v2002
        %v2004 = vshrl.u32 %v1723, 16
        %v2006 = vrot.slane %v2004, 4
        %v2007 = vor.u32 %v2006, %v2002
        %v2008 = vrot.slane %v2007, 4
        %v2010 = vshll.u32 %v1744, 16
        %v2012 = vrot.slane %v2010, 5
        %v2013 = vsel %vm1138, %v2008, %v2012
        %v2015 = vshrl.u32 %v1724, 16
        %v2017 = vrot.slane %v2015, 4
        %v2018 = vshll.u32 %v1724, 16
        %v2020 = vrot.slane %v2018, 5
        %v2021 = vor.u32 %v2017, %v2020
        %v2022 = vrot.slane %v2021, 4
        %v2024 = vshll.u32 %v1725, 16
        %v2026 = vrot.slane %v2024, 5
        %v2027 = vsel %vm1138, %v2022, %v2026
        %v2028 = vshrl.u32 %v1725, 16
        %v2030 = vrot.slane %v2028, 4
        %v2031 = vor.u32 %v2030, %v2026
        %v2032 = vrot.slane %v2031, 4
        %v2034 = vshll.u32 %v1745, 16
        %v2036 = vrot.slane %v2034, 5
        %v2037 = vsel %vm1138, %v2032, %v2036
        %v2039 = vshrl.u32 %v1726, 16
        %v2041 = vrot.slane %v2039, 4
        %v2042 = vshll.u32 %v1726, 16
        %v2044 = vrot.slane %v2042, 5
        %v2045 = vor.u32 %v2041, %v2044
        %v2046 = vrot.slane %v2045, 4
        %v2048 = vshll.u32 %v1727, 16
        %v2050 = vrot.slane %v2048, 5
        %v2051 = vsel %vm1138, %v2046, %v2050
        %v2052 = vshrl.u32 %v1727, 16
        %v2054 = vrot.slane %v2052, 4
        %v2055 = vor.u32 %v2054, %v2050
        %v2056 = vrot.slane %v2055, 4
        %v2058 = vshll.u32 %v1746, 16
        %v2060 = vrot.slane %v2058, 5
        %v2061 = vsel %vm1138, %v2056, %v2060
        %v2063 = vshrl.u32 %v1728, 16
        %v2065 = vrot.slane %v2063, 4
        %v2066 = vshll.u32 %v1728, 16
        %v2068 = vrot.slane %v2066, 5
        %v2069 = vor.u32 %v2065, %v2068
        %v2070 = vrot.slane %v2069, 4
        %v2072 = vshll.u32 %v1729, 16
        %v2074 = vrot.slane %v2072, 5
        %v2075 = vsel %vm1138, %v2070, %v2074
        %v2076 = vshrl.u32 %v1729, 16
        %v2078 = vrot.slane %v2076, 4
        %v2079 = vor.u32 %v2078, %v2074
        %v2080 = vrot.slane %v2079, 4
        %v2082 = vshll.u32 %v1747, 16
        %v2084 = vrot.slane %v2082, 5
        %v2085 = vsel %vm1138, %v2080, %v2084
        %v2087 = vshrl.u32 %v1730, 16
        %v2089 = vrot.slane %v2087, 4
        %v2090 = vshll.u32 %v1730, 16
        %v2092 = vrot.slane %v2090, 5
        %v2093 = vor.u32 %v2089, %v2092
        %v2094 = vrot.slane %v2093, 4
        %v2096 = vshll.u32 %v1731, 16
        %v2098 = vrot.slane %v2096, 5
        %v2099 = vsel %vm1138, %v2094, %v2098
        %v2100 = vshrl.u32 %v1731, 16
        %v2102 = vrot.slane %v2100, 4
        %v2103 = vor.u32 %v2102, %v2098
        %v2104 = vrot.slane %v2103, 4
        %v2106 = vshll.u32 %v1748, 16
        %v2108 = vrot.slane %v2106, 5
        %v2109 = vsel %vm1138, %v2104, %v2108
        %v2111 = vshrl.u32 %v1732, 16
        %v2113 = vrot.slane %v2111, 4
        %v2114 = vshll.u32 %v1732, 16
        %v2116 = vrot.slane %v2114, 5
        %v2117 = vor.u32 %v2113, %v2116
        %v2118 = vrot.slane %v2117, 4
        %v2120 = vshll.u32 %v1733, 16
        %v2122 = vrot.slane %v2120, 5
        %v2123 = vsel %vm1138, %v2118, %v2122
        %v2124 = vshrl.u32 %v1733, 16
        %v2126 = vrot.slane %v2124, 4
        %v2127 = vor.u32 %v2126, %v2122
        %v2128 = vrot.slane %v2127, 4
        %v2130 = vshll.u32 %v1749, 16
        %v2132 = vrot.slane %v2130, 5
        %v2133 = vsel %vm1138, %v2128, %v2132
        %v2134 = vld [vmem:[%s969] sm:$0xe]
        %v2135 = vld [vmem:[%s969 + $0xc] sm:$0xe]
        %v2136 = vld [vmem:[%s969 + $0x18] sm:$0xe]
        %v2137 = vld [vmem:[%s969 + $0x24] sm:$0xe]
        %v2138 = vld [vmem:[%s969 + $0x30] sm:$0xe]
        %v2139 = vld [vmem:[%s969 + $0x3c] sm:$0xe]
        %v2140 = vld [vmem:[%s969 + $0x48] sm:$0xe]
        %v2141 = vld [vmem:[%s969 + $0x54] sm:$0xe]
        %v2142 = vld [vmem:[%s969 + $0x60] sm:$0xe]
        %v2143 = vld [vmem:[%s969 + $0x6c] sm:$0xe]
        %v2144 = vld [vmem:[%s969 + $0x78] sm:$0xe]
        %v2145 = vld [vmem:[%s969 + $0x84] sm:$0xe]
        %v2146 = vld [vmem:[%s969 + $0x90] sm:$0xe]
        %v2147 = vld [vmem:[%s969 + $0x9c] sm:$0xe]
        %v2148 = vld [vmem:[%s969 + $0xa8] sm:$0xe]
        %v2149 = vld [vmem:[%s969 + $0xb4] sm:$0xe]
        %v2198 = vrot.slane %v2134, 5
        %v2199 = vrot.slane %v2198, 4
        %v2200 = vrot.slane %v1703, 5
        %v2201 = vsel %vm1589, %v2199, %v2200
        %v2202 = vrot.slane %v2200, 4
        %v2203 = vrot.slane %v1734, 5
        %v2204 = vsel %vm1589, %v2202, %v2203
        %v2205 = vrot.slane %v2135, 5
        %v2206 = vrot.slane %v2205, 4
        %v2207 = vrot.slane %v1705, 5
        %v2208 = vsel %vm1589, %v2206, %v2207
        %v2209 = vrot.slane %v2207, 4
        %v2210 = vrot.slane %v1735, 5
        %v2211 = vsel %vm1589, %v2209, %v2210
        %v2212 = vrot.slane %v2136, 5
        %v2213 = vrot.slane %v2212, 4
        %v2214 = vrot.slane %v1707, 5
        %v2215 = vsel %vm1589, %v2213, %v2214
        %v2216 = vrot.slane %v2214, 4
        %v2217 = vrot.slane %v1736, 5
        %v2218 = vsel %vm1589, %v2216, %v2217
        %v2219 = vrot.slane %v2137, 5
        %v2220 = vrot.slane %v2219, 4
        %v2221 = vrot.slane %v1709, 5
        %v2222 = vsel %vm1589, %v2220, %v2221
        %v2223 = vrot.slane %v2221, 4
        %v2224 = vrot.slane %v1737, 5
        %v2225 = vsel %vm1589, %v2223, %v2224
        %v2226 = vrot.slane %v2138, 5
        %v2227 = vrot.slane %v2226, 4
        %v2228 = vrot.slane %v1711, 5
        %v2229 = vsel %vm1589, %v2227, %v2228
        %v2230 = vrot.slane %v2228, 4
        %v2231 = vrot.slane %v1738, 5
        %v2232 = vsel %vm1589, %v2230, %v2231
        %v2233 = vrot.slane %v2139, 5
        %v2234 = vrot.slane %v2233, 4
        %v2235 = vrot.slane %v1713, 5
        %v2236 = vsel %vm1589, %v2234, %v2235
        %v2237 = vrot.slane %v2235, 4
        %v2238 = vrot.slane %v1739, 5
        %v2239 = vsel %vm1589, %v2237, %v2238
        %v2240 = vrot.slane %v2140, 5
        %v2241 = vrot.slane %v2240, 4
        %v2242 = vrot.slane %v1715, 5
        %v2243 = vsel %vm1589, %v2241, %v2242
        %v2244 = vrot.slane %v2242, 4
        %v2245 = vrot.slane %v1740, 5
        %v2246 = vsel %vm1589, %v2244, %v2245
        %v2247 = vrot.slane %v2141, 5
        %v2248 = vrot.slane %v2247, 4
        %v2249 = vrot.slane %v1717, 5
        %v2250 = vsel %vm1589, %v2248, %v2249
        %v2251 = vrot.slane %v2249, 4
        %v2252 = vrot.slane %v1741, 5
        %v2253 = vsel %vm1589, %v2251, %v2252
        %v2254 = vrot.slane %v2142, 5
        %v2255 = vrot.slane %v2254, 4
        %v2256 = vrot.slane %v1719, 5
        %v2257 = vsel %vm1589, %v2255, %v2256
        %v2258 = vrot.slane %v2256, 4
        %v2259 = vrot.slane %v1742, 5
        %v2260 = vsel %vm1589, %v2258, %v2259
        %v2261 = vrot.slane %v2143, 5
        %v2262 = vrot.slane %v2261, 4
        %v2263 = vrot.slane %v1721, 5
        %v2264 = vsel %vm1589, %v2262, %v2263
        %v2265 = vrot.slane %v2263, 4
        %v2266 = vrot.slane %v1743, 5
        %v2267 = vsel %vm1589, %v2265, %v2266
        %v2268 = vrot.slane %v2144, 5
        %v2269 = vrot.slane %v2268, 4
        %v2270 = vrot.slane %v1723, 5
        %v2271 = vsel %vm1589, %v2269, %v2270
        %v2272 = vrot.slane %v2270, 4
        %v2273 = vrot.slane %v1744, 5
        %v2274 = vsel %vm1589, %v2272, %v2273
        %v2275 = vrot.slane %v2145, 5
        %v2276 = vrot.slane %v2275, 4
        %v2277 = vrot.slane %v1725, 5
        %v2278 = vsel %vm1589, %v2276, %v2277
        %v2279 = vrot.slane %v2277, 4
        %v2280 = vrot.slane %v1745, 5
        %v2281 = vsel %vm1589, %v2279, %v2280
        %v2282 = vrot.slane %v2146, 5
        %v2283 = vrot.slane %v2282, 4
        %v2284 = vrot.slane %v1727, 5
        %v2285 = vsel %vm1589, %v2283, %v2284
        %v2286 = vrot.slane %v2284, 4
        %v2287 = vrot.slane %v1746, 5
        %v2288 = vsel %vm1589, %v2286, %v2287
        %v2289 = vrot.slane %v2147, 5
        %v2290 = vrot.slane %v2289, 4
        %v2291 = vrot.slane %v1729, 5
        %v2292 = vsel %vm1589, %v2290, %v2291
        %v2293 = vrot.slane %v2291, 4
        %v2294 = vrot.slane %v1747, 5
        %v2295 = vsel %vm1589, %v2293, %v2294
        %v2296 = vrot.slane %v2148, 5
        %v2297 = vrot.slane %v2296, 4
        %v2298 = vrot.slane %v1731, 5
        %v2299 = vsel %vm1589, %v2297, %v2298
        %v2300 = vrot.slane %v2298, 4
        %v2301 = vrot.slane %v1748, 5
        %v2302 = vsel %vm1589, %v2300, %v2301
        %v2303 = vrot.slane %v2149, 5
        %v2304 = vrot.slane %v2303, 4
        %v2305 = vrot.slane %v1733, 5
        %v2306 = vsel %vm1589, %v2304, %v2305
        %v2307 = vrot.slane %v2305, 4
        %v2308 = vrot.slane %v1749, 5
        %v2309 = vsel %vm1589, %v2307, %v2308
        %s2310 = scalar_lea.vmem [#allocation2], 24
        %v2311 = vld [vmem:[%s2310] sm:$0xf]
        %v2312 = vld [vmem:[%s2310 + $0x4] sm:$0xf]
        %v2313 = vld [vmem:[%s2310 + $0xc] sm:$0xf]
        %v2314 = vld [vmem:[%s2310 + $0x10] sm:$0xf]
        %v2315 = vld [vmem:[%s2310 + $0x18] sm:$0xf]
        %v2316 = vld [vmem:[%s2310 + $0x1c] sm:$0xf]
        %v2317 = vld [vmem:[%s2310 + $0x24] sm:$0xf]
        %v2318 = vld [vmem:[%s2310 + $0x28] sm:$0xf]
        %v2319 = vld [vmem:[%s2310 + $0x30] sm:$0xf]
        %v2320 = vld [vmem:[%s2310 + $0x34] sm:$0xf]
        %v2321 = vld [vmem:[%s2310 + $0x3c] sm:$0xf]
        %v2322 = vld [vmem:[%s2310 + $0x40] sm:$0xf]
        %v2323 = vld [vmem:[%s2310 + $0x48] sm:$0xf]
        %v2324 = vld [vmem:[%s2310 + $0x4c] sm:$0xf]
        %v2325 = vld [vmem:[%s2310 + $0x54] sm:$0xf]
        %v2326 = vld [vmem:[%s2310 + $0x58] sm:$0xf]
        %v2327 = vld [vmem:[%s2310 + $0x60] sm:$0xf]
        %v2328 = vld [vmem:[%s2310 + $0x64] sm:$0xf]
        %v2329 = vld [vmem:[%s2310 + $0x6c] sm:$0xf]
        %v2330 = vld [vmem:[%s2310 + $0x70] sm:$0xf]
        %v2331 = vld [vmem:[%s2310 + $0x78] sm:$0xf]
        %v2332 = vld [vmem:[%s2310 + $0x7c] sm:$0xf]
        %v2333 = vld [vmem:[%s2310 + $0x84] sm:$0xf]
        %v2334 = vld [vmem:[%s2310 + $0x88] sm:$0xf]
        %v2335 = vld [vmem:[%s2310 + $0x90] sm:$0xf]
        %v2336 = vld [vmem:[%s2310 + $0x94] sm:$0xf]
        %v2337 = vld [vmem:[%s2310 + $0x9c] sm:$0xf]
        %v2338 = vld [vmem:[%s2310 + $0xa0] sm:$0xf]
        %v2339 = vld [vmem:[%s2310 + $0xa8] sm:$0xf]
        %v2340 = vld [vmem:[%s2310 + $0xac] sm:$0xf]
        %v2341 = vld [vmem:[%s2310 + $0xb4] sm:$0xf]
        %v2342 = vld [vmem:[%s2310 + $0xb8] sm:$0xf]
        %v2343 = vld [vmem:[%s2310 + $0x8] sm:$0x1]
        %v2344 = vld [vmem:[%s2310 + $0x14] sm:$0x1]
        %v2345 = vld [vmem:[%s2310 + $0x20] sm:$0x1]
        %v2346 = vld [vmem:[%s2310 + $0x2c] sm:$0x1]
        %v2347 = vld [vmem:[%s2310 + $0x38] sm:$0x1]
        %v2348 = vld [vmem:[%s2310 + $0x44] sm:$0x1]
        %v2349 = vld [vmem:[%s2310 + $0x50] sm:$0x1]
        %v2350 = vld [vmem:[%s2310 + $0x5c] sm:$0x1]
        %v2351 = vld [vmem:[%s2310 + $0x68] sm:$0x1]
        %v2352 = vld [vmem:[%s2310 + $0x74] sm:$0x1]
        %v2353 = vld [vmem:[%s2310 + $0x80] sm:$0x1]
        %v2354 = vld [vmem:[%s2310 + $0x8c] sm:$0x1]
        %v2355 = vld [vmem:[%s2310 + $0x98] sm:$0x1]
        %v2356 = vld [vmem:[%s2310 + $0xa4] sm:$0x1]
        %v2357 = vld [vmem:[%s2310 + $0xb0] sm:$0x1]
        %v2358 = vld [vmem:[%s2310 + $0xbc] sm:$0x1]
        %v2360 = vshrl.u32 %v2311, 16
        %v2362 = vrot.slane %v2360, 4
        %v2363 = vshll.u32 %v2311, 16
        %v2365 = vrot.slane %v2363, 5
        %v2366 = vor.u32 %v2362, %v2365
        %v2367 = vrot.slane %v2366, 4
        %v2369 = vshll.u32 %v2312, 16
        %v2371 = vrot.slane %v2369, 5
        %v2372 = vsel %vm1138, %v2367, %v2371
        %v2373 = vshrl.u32 %v2312, 16
        %v2375 = vrot.slane %v2373, 4
        %v2376 = vor.u32 %v2375, %v2371
        %v2377 = vrot.slane %v2376, 4
        %v2379 = vshll.u32 %v2343, 16
        %v2381 = vrot.slane %v2379, 5
        %v2382 = vsel %vm1138, %v2377, %v2381
        %v2384 = vshrl.u32 %v2313, 16
        %v2386 = vrot.slane %v2384, 4
        %v2387 = vshll.u32 %v2313, 16
        %v2389 = vrot.slane %v2387, 5
        %v2390 = vor.u32 %v2386, %v2389
        %v2391 = vrot.slane %v2390, 4
        %v2393 = vshll.u32 %v2314, 16
        %v2395 = vrot.slane %v2393, 5
        %v2396 = vsel %vm1138, %v2391, %v2395
        %v2397 = vshrl.u32 %v2314, 16
        %v2399 = vrot.slane %v2397, 4
        %v2400 = vor.u32 %v2399, %v2395
        %v2401 = vrot.slane %v2400, 4
        %v2403 = vshll.u32 %v2344, 16
        %v2405 = vrot.slane %v2403, 5
        %v2406 = vsel %vm1138, %v2401, %v2405
        %v2408 = vshrl.u32 %v2315, 16
        %v2410 = vrot.slane %v2408, 4
        %v2411 = vshll.u32 %v2315, 16
        %v2413 = vrot.slane %v2411, 5
        %v2414 = vor.u32 %v2410, %v2413
        %v2415 = vrot.slane %v2414, 4
        %v2417 = vshll.u32 %v2316, 16
        %v2419 = vrot.slane %v2417, 5
        %v2420 = vsel %vm1138, %v2415, %v2419
        %v2421 = vshrl.u32 %v2316, 16
        %v2423 = vrot.slane %v2421, 4
        %v2424 = vor.u32 %v2423, %v2419
        %v2425 = vrot.slane %v2424, 4
        %v2427 = vshll.u32 %v2345, 16
        %v2429 = vrot.slane %v2427, 5
        %v2430 = vsel %vm1138, %v2425, %v2429
        %v2432 = vshrl.u32 %v2317, 16
        %v2434 = vrot.slane %v2432, 4
        %v2435 = vshll.u32 %v2317, 16
        %v2437 = vrot.slane %v2435, 5
        %v2438 = vor.u32 %v2434, %v2437
        %v2439 = vrot.slane %v2438, 4
        %v2441 = vshll.u32 %v2318, 16
        %v2443 = vrot.slane %v2441, 5
        %v2444 = vsel %vm1138, %v2439, %v2443
        %v2445 = vshrl.u32 %v2318, 16
        %v2447 = vrot.slane %v2445, 4
        %v2448 = vor.u32 %v2447, %v2443
        %v2449 = vrot.slane %v2448, 4
        %v2451 = vshll.u32 %v2346, 16
        %v2453 = vrot.slane %v2451, 5
        %v2454 = vsel %vm1138, %v2449, %v2453
        %v2456 = vshrl.u32 %v2319, 16
        %v2458 = vrot.slane %v2456, 4
        %v2459 = vshll.u32 %v2319, 16
        %v2461 = vrot.slane %v2459, 5
        %v2462 = vor.u32 %v2458, %v2461
        %v2463 = vrot.slane %v2462, 4
        %v2465 = vshll.u32 %v2320, 16
        %v2467 = vrot.slane %v2465, 5
        %v2468 = vsel %vm1138, %v2463, %v2467
        %v2469 = vshrl.u32 %v2320, 16
        %v2471 = vrot.slane %v2469, 4
        %v2472 = vor.u32 %v2471, %v2467
        %v2473 = vrot.slane %v2472, 4
        %v2475 = vshll.u32 %v2347, 16
        %v2477 = vrot.slane %v2475, 5
        %v2478 = vsel %vm1138, %v2473, %v2477
        %v2480 = vshrl.u32 %v2321, 16
        %v2482 = vrot.slane %v2480, 4
        %v2483 = vshll.u32 %v2321, 16
        %v2485 = vrot.slane %v2483, 5
        %v2486 = vor.u32 %v2482, %v2485
        %v2487 = vrot.slane %v2486, 4
        %v2489 = vshll.u32 %v2322, 16
        %v2491 = vrot.slane %v2489, 5
        %v2492 = vsel %vm1138, %v2487, %v2491
        %v2493 = vshrl.u32 %v2322, 16
        %v2495 = vrot.slane %v2493, 4
        %v2496 = vor.u32 %v2495, %v2491
        %v2497 = vrot.slane %v2496, 4
        %v2499 = vshll.u32 %v2348, 16
        %v2501 = vrot.slane %v2499, 5
        %v2502 = vsel %vm1138, %v2497, %v2501
        %v2504 = vshrl.u32 %v2323, 16
        %v2506 = vrot.slane %v2504, 4
        %v2507 = vshll.u32 %v2323, 16
        %v2509 = vrot.slane %v2507, 5
        %v2510 = vor.u32 %v2506, %v2509
        %v2511 = vrot.slane %v2510, 4
        %v2513 = vshll.u32 %v2324, 16
        %v2515 = vrot.slane %v2513, 5
        %v2516 = vsel %vm1138, %v2511, %v2515
        %v2517 = vshrl.u32 %v2324, 16
        %v2519 = vrot.slane %v2517, 4
        %v2520 = vor.u32 %v2519, %v2515
        %v2521 = vrot.slane %v2520, 4
        %v2523 = vshll.u32 %v2349, 16
        %v2525 = vrot.slane %v2523, 5
        %v2526 = vsel %vm1138, %v2521, %v2525
        %v2528 = vshrl.u32 %v2325, 16
        %v2530 = vrot.slane %v2528, 4
        %v2531 = vshll.u32 %v2325, 16
        %v2533 = vrot.slane %v2531, 5
        %v2534 = vor.u32 %v2530, %v2533
        %v2535 = vrot.slane %v2534, 4
        %v2537 = vshll.u32 %v2326, 16
        %v2539 = vrot.slane %v2537, 5
        %v2540 = vsel %vm1138, %v2535, %v2539
        %v2541 = vshrl.u32 %v2326, 16
        %v2543 = vrot.slane %v2541, 4
        %v2544 = vor.u32 %v2543, %v2539
        %v2545 = vrot.slane %v2544, 4
        %v2547 = vshll.u32 %v2350, 16
        %v2549 = vrot.slane %v2547, 5
        %v2550 = vsel %vm1138, %v2545, %v2549
        %v2552 = vshrl.u32 %v2327, 16
        %v2554 = vrot.slane %v2552, 4
        %v2555 = vshll.u32 %v2327, 16
        %v2557 = vrot.slane %v2555, 5
        %v2558 = vor.u32 %v2554, %v2557
        %v2559 = vrot.slane %v2558, 4
        %v2561 = vshll.u32 %v2328, 16
        %v2563 = vrot.slane %v2561, 5
        %v2564 = vsel %vm1138, %v2559, %v2563
        %v2565 = vshrl.u32 %v2328, 16
        %v2567 = vrot.slane %v2565, 4
        %v2568 = vor.u32 %v2567, %v2563
        %v2569 = vrot.slane %v2568, 4
        %v2571 = vshll.u32 %v2351, 16
        %v2573 = vrot.slane %v2571, 5
        %v2574 = vsel %vm1138, %v2569, %v2573
        %v2576 = vshrl.u32 %v2329, 16
        %v2578 = vrot.slane %v2576, 4
        %v2579 = vshll.u32 %v2329, 16
        %v2581 = vrot.slane %v2579, 5
        %v2582 = vor.u32 %v2578, %v2581
        %v2583 = vrot.slane %v2582, 4
        %v2585 = vshll.u32 %v2330, 16
        %v2587 = vrot.slane %v2585, 5
        %v2588 = vsel %vm1138, %v2583, %v2587
        %v2589 = vshrl.u32 %v2330, 16
        %v2591 = vrot.slane %v2589, 4
        %v2592 = vor.u32 %v2591, %v2587
        %v2593 = vrot.slane %v2592, 4
        %v2595 = vshll.u32 %v2352, 16
        %v2597 = vrot.slane %v2595, 5
        %v2598 = vsel %vm1138, %v2593, %v2597
        %v2600 = vshrl.u32 %v2331, 16
        %v2602 = vrot.slane %v2600, 4
        %v2603 = vshll.u32 %v2331, 16
        %v2605 = vrot.slane %v2603, 5
        %v2606 = vor.u32 %v2602, %v2605
        %v2607 = vrot.slane %v2606, 4
        %v2609 = vshll.u32 %v2332, 16
        %v2611 = vrot.slane %v2609, 5
        %v2612 = vsel %vm1138, %v2607, %v2611
        %v2613 = vshrl.u32 %v2332, 16
        %v2615 = vrot.slane %v2613, 4
        %v2616 = vor.u32 %v2615, %v2611
        %v2617 = vrot.slane %v2616, 4
        %v2619 = vshll.u32 %v2353, 16
        %v2621 = vrot.slane %v2619, 5
        %v2622 = vsel %vm1138, %v2617, %v2621
        %v2624 = vshrl.u32 %v2333, 16
        %v2626 = vrot.slane %v2624, 4
        %v2627 = vshll.u32 %v2333, 16
        %v2629 = vrot.slane %v2627, 5
        %v2630 = vor.u32 %v2626, %v2629
        %v2631 = vrot.slane %v2630, 4
        %v2633 = vshll.u32 %v2334, 16
        %v2635 = vrot.slane %v2633, 5
        %v2636 = vsel %vm1138, %v2631, %v2635
        %v2637 = vshrl.u32 %v2334, 16
        %v2639 = vrot.slane %v2637, 4
        %v2640 = vor.u32 %v2639, %v2635
        %v2641 = vrot.slane %v2640, 4
        %v2643 = vshll.u32 %v2354, 16
        %v2645 = vrot.slane %v2643, 5
        %v2646 = vsel %vm1138, %v2641, %v2645
        %v2648 = vshrl.u32 %v2335, 16
        %v2650 = vrot.slane %v2648, 4
        %v2651 = vshll.u32 %v2335, 16
        %v2653 = vrot.slane %v2651, 5
        %v2654 = vor.u32 %v2650, %v2653
        %v2655 = vrot.slane %v2654, 4
        %v2657 = vshll.u32 %v2336, 16
        %v2659 = vrot.slane %v2657, 5
        %v2660 = vsel %vm1138, %v2655, %v2659
        %v2661 = vshrl.u32 %v2336, 16
        %v2663 = vrot.slane %v2661, 4
        %v2664 = vor.u32 %v2663, %v2659
        %v2665 = vrot.slane %v2664, 4
        %v2667 = vshll.u32 %v2355, 16
        %v2669 = vrot.slane %v2667, 5
        %v2670 = vsel %vm1138, %v2665, %v2669
        %v2672 = vshrl.u32 %v2337, 16
        %v2674 = vrot.slane %v2672, 4
        %v2675 = vshll.u32 %v2337, 16
        %v2677 = vrot.slane %v2675, 5
        %v2678 = vor.u32 %v2674, %v2677
        %v2679 = vrot.slane %v2678, 4
        %v2681 = vshll.u32 %v2338, 16
        %v2683 = vrot.slane %v2681, 5
        %v2684 = vsel %vm1138, %v2679, %v2683
        %v2685 = vshrl.u32 %v2338, 16
        %v2687 = vrot.slane %v2685, 4
        %v2688 = vor.u32 %v2687, %v2683
        %v2689 = vrot.slane %v2688, 4
        %v2691 = vshll.u32 %v2356, 16
        %v2693 = vrot.slane %v2691, 5
        %v2694 = vsel %vm1138, %v2689, %v2693
        %v2696 = vshrl.u32 %v2339, 16
        %v2698 = vrot.slane %v2696, 4
        %v2699 = vshll.u32 %v2339, 16
        %v2701 = vrot.slane %v2699, 5
        %v2702 = vor.u32 %v2698, %v2701
        %v2703 = vrot.slane %v2702, 4
        %v2705 = vshll.u32 %v2340, 16
        %v2707 = vrot.slane %v2705, 5
        %v2708 = vsel %vm1138, %v2703, %v2707
        %v2709 = vshrl.u32 %v2340, 16
        %v2711 = vrot.slane %v2709, 4
        %v2712 = vor.u32 %v2711, %v2707
        %v2713 = vrot.slane %v2712, 4
        %v2715 = vshll.u32 %v2357, 16
        %v2717 = vrot.slane %v2715, 5
        %v2718 = vsel %vm1138, %v2713, %v2717
        %v2720 = vshrl.u32 %v2341, 16
        %v2722 = vrot.slane %v2720, 4
        %v2723 = vshll.u32 %v2341, 16
        %v2725 = vrot.slane %v2723, 5
        %v2726 = vor.u32 %v2722, %v2725
        %v2727 = vrot.slane %v2726, 4
        %v2729 = vshll.u32 %v2342, 16
        %v2731 = vrot.slane %v2729, 5
        %v2732 = vsel %vm1138, %v2727, %v2731
        %v2733 = vshrl.u32 %v2342, 16
        %v2735 = vrot.slane %v2733, 4
        %v2736 = vor.u32 %v2735, %v2731
        %v2737 = vrot.slane %v2736, 4
        %v2739 = vshll.u32 %v2358, 16
        %v2741 = vrot.slane %v2739, 5
        %v2742 = vsel %vm1138, %v2737, %v2741
        %v2743 = vld [vmem:[%s2310] sm:$0xe]
        %v2744 = vld [vmem:[%s2310 + $0xc] sm:$0xe]
        %v2745 = vld [vmem:[%s2310 + $0x18] sm:$0xe]
        %v2746 = vld [vmem:[%s2310 + $0x24] sm:$0xe]
        %v2747 = vld [vmem:[%s2310 + $0x30] sm:$0xe]
        %v2748 = vld [vmem:[%s2310 + $0x3c] sm:$0xe]
        %v2749 = vld [vmem:[%s2310 + $0x48] sm:$0xe]
        %v2750 = vld [vmem:[%s2310 + $0x54] sm:$0xe]
        %v2751 = vld [vmem:[%s2310 + $0x60] sm:$0xe]
        %v2752 = vld [vmem:[%s2310 + $0x6c] sm:$0xe]
        %v2753 = vld [vmem:[%s2310 + $0x78] sm:$0xe]
        %v2754 = vld [vmem:[%s2310 + $0x84] sm:$0xe]
        %v2755 = vld [vmem:[%s2310 + $0x90] sm:$0xe]
        %v2756 = vld [vmem:[%s2310 + $0x9c] sm:$0xe]
        %v2757 = vld [vmem:[%s2310 + $0xa8] sm:$0xe]
        %v2758 = vld [vmem:[%s2310 + $0xb4] sm:$0xe]
        %v2807 = vrot.slane %v2743, 5
        %v2808 = vrot.slane %v2807, 4
        %v2809 = vrot.slane %v2312, 5
        %v2810 = vsel %vm1589, %v2808, %v2809
        %v2811 = vrot.slane %v2809, 4
        %v2812 = vrot.slane %v2343, 5
        %v2813 = vsel %vm1589, %v2811, %v2812
        %v2814 = vrot.slane %v2744, 5
        %v2815 = vrot.slane %v2814, 4
        %v2816 = vrot.slane %v2314, 5
        %v2817 = vsel %vm1589, %v2815, %v2816
        %v2818 = vrot.slane %v2816, 4
        %v2819 = vrot.slane %v2344, 5
        %v2820 = vsel %vm1589, %v2818, %v2819
        %v2821 = vrot.slane %v2745, 5
        %v2822 = vrot.slane %v2821, 4
        %v2823 = vrot.slane %v2316, 5
        %v2824 = vsel %vm1589, %v2822, %v2823
        %v2825 = vrot.slane %v2823, 4
        %v2826 = vrot.slane %v2345, 5
        %v2827 = vsel %vm1589, %v2825, %v2826
        %v2828 = vrot.slane %v2746, 5
        %v2829 = vrot.slane %v2828, 4
        %v2830 = vrot.slane %v2318, 5
        %v2831 = vsel %vm1589, %v2829, %v2830
        %v2832 = vrot.slane %v2830, 4
        %v2833 = vrot.slane %v2346, 5
        %v2834 = vsel %vm1589, %v2832, %v2833
        %v2835 = vrot.slane %v2747, 5
        %v2836 = vrot.slane %v2835, 4
        %v2837 = vrot.slane %v2320, 5
        %v2838 = vsel %vm1589, %v2836, %v2837
        %v2839 = vrot.slane %v2837, 4
        %v2840 = vrot.slane %v2347, 5
        %v2841 = vsel %vm1589, %v2839, %v2840
        %v2842 = vrot.slane %v2748, 5
        %v2843 = vrot.slane %v2842, 4
        %v2844 = vrot.slane %v2322, 5
        %v2845 = vsel %vm1589, %v2843, %v2844
        %v2846 = vrot.slane %v2844, 4
        %v2847 = vrot.slane %v2348, 5
        %v2848 = vsel %vm1589, %v2846, %v2847
        %v2849 = vrot.slane %v2749, 5
        %v2850 = vrot.slane %v2849, 4
        %v2851 = vrot.slane %v2324, 5
        %v2852 = vsel %vm1589, %v2850, %v2851
        %v2853 = vrot.slane %v2851, 4
        %v2854 = vrot.slane %v2349, 5
        %v2855 = vsel %vm1589, %v2853, %v2854
        %v2856 = vrot.slane %v2750, 5
        %v2857 = vrot.slane %v2856, 4
        %v2858 = vrot.slane %v2326, 5
        %v2859 = vsel %vm1589, %v2857, %v2858
        %v2860 = vrot.slane %v2858, 4
        %v2861 = vrot.slane %v2350, 5
        %v2862 = vsel %vm1589, %v2860, %v2861
        %v2863 = vrot.slane %v2751, 5
        %v2864 = vrot.slane %v2863, 4
        %v2865 = vrot.slane %v2328, 5
        %v2866 = vsel %vm1589, %v2864, %v2865
        %v2867 = vrot.slane %v2865, 4
        %v2868 = vrot.slane %v2351, 5
        %v2869 = vsel %vm1589, %v2867, %v2868
        %v2870 = vrot.slane %v2752, 5
        %v2871 = vrot.slane %v2870, 4
        %v2872 = vrot.slane %v2330, 5
        %v2873 = vsel %vm1589, %v2871, %v2872
        %v2874 = vrot.slane %v2872, 4
        %v2875 = vrot.slane %v2352, 5
        %v2876 = vsel %vm1589, %v2874, %v2875
        %v2877 = vrot.slane %v2753, 5
        %v2878 = vrot.slane %v2877, 4
        %v2879 = vrot.slane %v2332, 5
        %v2880 = vsel %vm1589, %v2878, %v2879
        %v2881 = vrot.slane %v2879, 4
        %v2882 = vrot.slane %v2353, 5
        %v2883 = vsel %vm1589, %v2881, %v2882
        %v2884 = vrot.slane %v2754, 5
        %v2885 = vrot.slane %v2884, 4
        %v2886 = vrot.slane %v2334, 5
        %v2887 = vsel %vm1589, %v2885, %v2886
        %v2888 = vrot.slane %v2886, 4
        %v2889 = vrot.slane %v2354, 5
        %v2890 = vsel %vm1589, %v2888, %v2889
        %v2891 = vrot.slane %v2755, 5
        %v2892 = vrot.slane %v2891, 4
        %v2893 = vrot.slane %v2336, 5
        %v2894 = vsel %vm1589, %v2892, %v2893
        %v2895 = vrot.slane %v2893, 4
        %v2896 = vrot.slane %v2355, 5
        %v2897 = vsel %vm1589, %v2895, %v2896
        %v2898 = vrot.slane %v2756, 5
        %v2899 = vrot.slane %v2898, 4
        %v2900 = vrot.slane %v2338, 5
        %v2901 = vsel %vm1589, %v2899, %v2900
        %v2902 = vrot.slane %v2900, 4
        %v2903 = vrot.slane %v2356, 5
        %v2904 = vsel %vm1589, %v2902, %v2903
        %v2905 = vrot.slane %v2757, 5
        %v2906 = vrot.slane %v2905, 4
        %v2907 = vrot.slane %v2340, 5
        %v2908 = vsel %vm1589, %v2906, %v2907
        %v2909 = vrot.slane %v2907, 4
        %v2910 = vrot.slane %v2357, 5
        %v2911 = vsel %vm1589, %v2909, %v2910
        %v2912 = vrot.slane %v2758, 5
        %v2913 = vrot.slane %v2912, 4
        %v2914 = vrot.slane %v2342, 5
        %v2915 = vsel %vm1589, %v2913, %v2914
        %v2916 = vrot.slane %v2914, 4
        %v2917 = vrot.slane %v2358, 5
        %v2918 = vsel %vm1589, %v2916, %v2917
        %v2919 = vld [vmem:[#allocation9] sm:$0x3]
        %s2920 = scalar_lea.vmem [#allocation9], 2
        %v2921 = vld [vmem:[%s2920] sm:$0x3]
        %v2922 = vunpack.c.l.b16 %v1152
        %v2923 = vunpack.c.l.b16 %v1162
        %v2924 = vunpack.c.l.b16 %v1176
        %v2925 = vunpack.c.l.b16 %v1186
        %v2926 = vunpack.c.l.b16 %v1200
        %v2927 = vunpack.c.l.b16 %v1210
        %v2928 = vunpack.c.l.b16 %v1224
        %v2929 = vunpack.c.l.b16 %v1234
        %v2930 = vunpack.c.l.b16 %v1248
        %v2931 = vunpack.c.l.b16 %v1258
        %v2932 = vunpack.c.l.b16 %v1272
        %v2933 = vunpack.c.l.b16 %v1282
        %v2934 = vunpack.c.l.b16 %v1296
        %v2935 = vunpack.c.l.b16 %v1306
        %v2936 = vunpack.c.l.b16 %v1320
        %v2937 = vunpack.c.l.b16 %v1330
        %v2938 = vunpack.c.l.b16 %v1344
        %v2939 = vunpack.c.l.b16 %v1354
        %v2940 = vunpack.c.l.b16 %v1368
        %v2941 = vunpack.c.l.b16 %v1378
        %v2942 = vunpack.c.l.b16 %v1392
        %v2943 = vunpack.c.l.b16 %v1402
        %v2944 = vunpack.c.l.b16 %v1416
        %v2945 = vunpack.c.l.b16 %v1426
        %v2946 = vunpack.c.l.b16 %v1440
        %v2947 = vunpack.c.l.b16 %v1450
        %v2948 = vunpack.c.l.b16 %v1464
        %v2949 = vunpack.c.l.b16 %v1474
        %v2950 = vunpack.c.l.b16 %v1488
        %v2951 = vunpack.c.l.b16 %v1498
        %v2952 = vunpack.c.l.b16 %v1512
        %v2953 = vunpack.c.l.b16 %v1522
        %v2954 = vpack.c.b16 %v2923, %v2922
        %v2955 = vpack.c.b16 %v2925, %v2924
        %v2956 = vpack.c.b16 %v2927, %v2926
        %v2957 = vpack.c.b16 %v2929, %v2928
        %v2958 = vpack.c.b16 %v2931, %v2930
        %v2959 = vpack.c.b16 %v2933, %v2932
        %v2960 = vpack.c.b16 %v2935, %v2934
        %v2961 = vpack.c.b16 %v2937, %v2936
        %v2962 = vpack.c.b16 %v2939, %v2938
        %v2963 = vpack.c.b16 %v2941, %v2940
        %v2964 = vpack.c.b16 %v2943, %v2942
        %v2965 = vpack.c.b16 %v2945, %v2944
        %v2966 = vpack.c.b16 %v2947, %v2946
        %v2967 = vpack.c.b16 %v2949, %v2948
        %v2968 = vpack.c.b16 %v2951, %v2950
        %v2969 = vpack.c.b16 %v2953, %v2952
        %vm2970 = vcmask 31744
        %v2972 = vsel %vm2970, %v2954, 0
        %v2975 = vsel %vm2970, %v2955, 0
        %v2978 = vsel %vm2970, %v2956, 0
        %v2981 = vsel %vm2970, %v2957, 0
        %v2984 = vsel %vm2970, %v2958, 0
        %v2987 = vsel %vm2970, %v2959, 0
        %v2990 = vsel %vm2970, %v2960, 0
        %v2993 = vsel %vm2970, %v2961, 0
        %v2996 = vsel %vm2970, %v2962, 0
        %v2999 = vsel %vm2970, %v2963, 0
        %v3002 = vsel %vm2970, %v2964, 0
        %v3005 = vsel %vm2970, %v2965, 0
        %v3008 = vsel %vm2970, %v2966, 0
        %v3011 = vsel %vm2970, %v2967, 0
        %v3014 = vsel %vm2970, %v2968, 0
        %v3017 = vsel %vm2970, %v2969, 0
        %vm3019 = vcmask 1041408
        %v3021 = vsel %vm3019, %v2921, 0
        %3023 = vmatprep.subr.bf16.mxu0 0
        %3024 = vmatpush1.bf16.msra.mxu0 %v3021
        %3025 = vmatprep.subr.bf16.mxu0 0
        %3026 = vmatpush1.bf16.msra.mxu0 0
        %3027 = vmatprep.subr.bf16.mxu0 0
        %3028 = vmatpush1.bf16.msra.mxu0 0
        %3029 = vmatprep.subr.bf16.mxu0 0
        %3030 = vmatpush1.bf16.msra.mxu0 0
        %3031 = vmatprep.subr.bf16.mxu0 0
        %3032 = vmatpush1.bf16.msra.mxu0 0
        %3033 = vmatprep.subr.bf16.mxu0 0
        %3034 = vmatpush1.bf16.msra.mxu0 0
        %3035 = vmatprep.subr.bf16.mxu0 0
        %3036 = vmatpush1.bf16.msra.mxu0 0
        %3037 = vmatprep.subr.bf16.mxu0 0
        %3038 = vmatpush1.bf16.msra.mxu0 0
        %3039 = vmatprep.subr.bf16.mxu0 0
        %3040 = vmatpush1.bf16.msra.mxu0 0
        %3041 = vmatprep.subr.bf16.mxu0 0
        %3042 = vmatpush1.bf16.msra.mxu0 0
        %3043 = vmatprep.subr.bf16.mxu0 0
        %3044 = vmatpush1.bf16.msra.mxu0 0
        %3045 = vmatprep.subr.bf16.mxu0 0
        %3046 = vmatpush1.bf16.msra.mxu0 0
        %3047 = vmatprep.subr.bf16.mxu0 0
        %3048 = vmatpush1.bf16.msra.mxu0 0
        %3049 = vmatprep.subr.bf16.mxu0 0
        %3050 = vmatpush1.bf16.msra.mxu0 0
        %3051 = vmatprep.subr.bf16.mxu0 0
        %3052 = vmatpush1.bf16.msra.mxu0 0
        %3053 = vmatprep.subr.bf16.mxu0 0
        %3054 = vmatpush1.bf16.msra.mxu0 0
        %3055 = vmatprep.mubr.bf16.mxu0 0
        %3056 = vmatmul.mubr.bf16.gmra.mrb[0].mxu0 %v2972
        %v3057 = vpop.f32.mrb[0].mxu0
        %v3058 = vadd.f32 0.0, %v3057
        %v3059 = vpop.f32.mrb[0].mxu0
        %v3060 = vpop.f32.mrb[0].mxu0
        %v3061 = vadd.f32 0.0, %v3060
        %v3062 = vpop.f32.mrb[0].mxu0
        %3063 = vmatprep.mubr.bf16.mxu0 0
        %3064 = vmatmul.mubr.bf16.gmra.mrb[0].mxu0 %v2975
        %v3065 = vpop.f32.mrb[0].mxu0
        %v3066 = vadd.f32 0.0, %v3065
        %v3067 = vpop.f32.mrb[0].mxu0
        %v3068 = vpop.f32.mrb[0].mxu0
        %v3069 = vadd.f32 0.0, %v3068
        %v3070 = vpop.f32.mrb[0].mxu0
        %3071 = vmatprep.mubr.bf16.mxu0 0
        %3072 = vmatmul.mubr.bf16.gmra.mrb[0].mxu0 %v2978
        %v3073 = vpop.f32.mrb[0].mxu0
        %v3074 = vadd.f32 0.0, %v3073
        %v3075 = vpop.f32.mrb[0].mxu0
        %v3076 = vpop.f32.mrb[0].mxu0
        %v3077 = vadd.f32 0.0, %v3076
        %v3078 = vpop.f32.mrb[0].mxu0
        %3079 = vmatprep.mubr.bf16.mxu0 0
        %3080 = vmatmul.mubr.bf16.gmra.mrb[0].mxu0 %v2981
        %v3081 = vpop.f32.mrb[0].mxu0
        %v3082 = vadd.f32 0.0, %v3081
        %v3083 = vpop.f32.mrb[0].mxu0
        %v3084 = vpop.f32.mrb[0].mxu0
        %v3085 = vadd.f32 0.0, %v3084
        %v3086 = vpop.f32.mrb[0].mxu0
        %3087 = vmatprep.mubr.bf16.mxu0 0
        %3088 = vmatmul.mubr.bf16.gmra.mrb[0].mxu0 %v2984
        %v3089 = vpop.f32.mrb[0].mxu0
        %v3090 = vadd.f32 0.0, %v3089
        %v3091 = vpop.f32.mrb[0].mxu0
        %v3092 = vpop.f32.mrb[0].mxu0
        %v3093 = vadd.f32 0.0, %v3092
        %v3094 = vpop.f32.mrb[0].mxu0
        %3095 = vmatprep.mubr.bf16.mxu0 0
        %3096 = vmatmul.mubr.bf16.gmra.mrb[0].mxu0 %v2987
        %v3097 = vpop.f32.mrb[0].mxu0
        %v3098 = vadd.f32 0.0, %v3097
        %v3099 = vpop.f32.mrb[0].mxu0
        %v3100 = vpop.f32.mrb[0].mxu0
        %v3101 = vadd.f32 0.0, %v3100
        %v3102 = vpop.f32.mrb[0].mxu0
        %3103 = vmatprep.mubr.bf16.mxu0 0
        %3104 = vmatmul.mubr.bf16.gmra.mrb[0].mxu0 %v2990
        %v3105 = vpop.f32.mrb[0].mxu0
        %v3106 = vadd.f32 0.0, %v3105
        %v3107 = vpop.f32.mrb[0].mxu0
        %v3108 = vpop.f32.mrb[0].mxu0
        %v3109 = vadd.f32 0.0, %v3108
        %v3110 = vpop.f32.mrb[0].mxu0
        %3111 = vmatprep.mubr.bf16.mxu0 0
        %3112 = vmatmul.mubr.bf16.gmra.mrb[0].mxu0 %v2993
        %v3113 = vpop.f32.mrb[0].mxu0
        %v3114 = vadd.f32 0.0, %v3113
        %v3115 = vpop.f32.mrb[0].mxu0
        %v3116 = vpop.f32.mrb[0].mxu0
        %v3117 = vadd.f32 0.0, %v3116
        %v3118 = vpop.f32.mrb[0].mxu0
        %3119 = vmatprep.mubr.bf16.mxu0 0
        %3120 = vmatmul.mubr.bf16.gmra.mrb[0].mxu0 %v2996
        %v3121 = vpop.f32.mrb[0].mxu0
        %v3122 = vadd.f32 0.0, %v3121
        %v3123 = vpop.f32.mrb[0].mxu0
        %v3124 = vpop.f32.mrb[0].mxu0
        %v3125 = vadd.f32 0.0, %v3124
        %v3126 = vpop.f32.mrb[0].mxu0
        %3127 = vmatprep.mubr.bf16.mxu0 0
        %3128 = vmatmul.mubr.bf16.gmra.mrb[0].mxu0 %v2999
        %v3129 = vpop.f32.mrb[0].mxu0
        %v3130 = vadd.f32 0.0, %v3129
        %v3131 = vpop.f32.mrb[0].mxu0
        %v3132 = vpop.f32.mrb[0].mxu0
        %v3133 = vadd.f32 0.0, %v3132
        %v3134 = vpop.f32.mrb[0].mxu0
        %3135 = vmatprep.mubr.bf16.mxu0 0
        %3136 = vmatmul.mubr.bf16.gmra.mrb[0].mxu0 %v3002
        %v3137 = vpop.f32.mrb[0].mxu0
        %v3138 = vadd.f32 0.0, %v3137
        %v3139 = vpop.f32.mrb[0].mxu0
        %v3140 = vpop.f32.mrb[0].mxu0
        %v3141 = vadd.f32 0.0, %v3140
        %v3142 = vpop.f32.mrb[0].mxu0
        %3143 = vmatprep.mubr.bf16.mxu0 0
        %3144 = vmatmul.mubr.bf16.gmra.mrb[0].mxu0 %v3005
        %v3145 = vpop.f32.mrb[0].mxu0
        %v3146 = vadd.f32 0.0, %v3145
        %v3147 = vpop.f32.mrb[0].mxu0
        %v3148 = vpop.f32.mrb[0].mxu0
        %v3149 = vadd.f32 0.0, %v3148
        %v3150 = vpop.f32.mrb[0].mxu0
        %3151 = vmatprep.mubr.bf16.mxu0 0
        %3152 = vmatmul.mubr.bf16.gmra.mrb[0].mxu0 %v3008
        %v3153 = vpop.f32.mrb[0].mxu0
        %v3154 = vadd.f32 0.0, %v3153
        %v3155 = vpop.f32.mrb[0].mxu0
        %v3156 = vpop.f32.mrb[0].mxu0
        %v3157 = vadd.f32 0.0, %v3156
        %v3158 = vpop.f32.mrb[0].mxu0
        %3159 = vmatprep.mubr.bf16.mxu0 0
        %3160 = vmatmul.mubr.bf16.gmra.mrb[0].mxu0 %v3011
        %v3161 = vpop.f32.mrb[0].mxu0
        %v3162 = vadd.f32 0.0, %v3161
        %v3163 = vpop.f32.mrb[0].mxu0
        %v3164 = vpop.f32.mrb[0].mxu0
        %v3165 = vadd.f32 0.0, %v3164
        %v3166 = vpop.f32.mrb[0].mxu0
        %3167 = vmatprep.mubr.bf16.mxu0 0
        %3168 = vmatmul.mubr.bf16.gmra.mrb[0].mxu0 %v3014
        %v3169 = vpop.f32.mrb[0].mxu0
        %v3170 = vadd.f32 0.0, %v3169
        %v3171 = vpop.f32.mrb[0].mxu0
        %v3172 = vpop.f32.mrb[0].mxu0
        %v3173 = vadd.f32 0.0, %v3172
        %v3174 = vpop.f32.mrb[0].mxu0
        %3175 = vmatprep.mubr.bf16.mxu0 0
        %3176 = vmatmul.mubr.bf16.gmra.mrb[0].mxu0 %v3017
        %v3177 = vpop.f32.mrb[0].mxu0
        %v3178 = vadd.f32 0.0, %v3177
        %v3179 = vpop.f32.mrb[0].mxu0
        %v3180 = vpop.f32.mrb[0].mxu0
        %v3181 = vadd.f32 0.0, %v3180
        %v3182 = vpop.f32.mrb[0].mxu0
        %3183 = vdwg.mxu0
        %v3200 = vunpack.c.l.b16 %v1088
        %v3201 = vunpack.c.l.b16 %v1089
        %v3202 = vunpack.c.l.b16 %v1090
        %v3203 = vunpack.c.l.b16 %v1091
        %v3204 = vunpack.c.l.b16 %v1092
        %v3205 = vunpack.c.l.b16 %v1093
        %v3206 = vunpack.c.l.b16 %v1094
        %v3207 = vunpack.c.l.b16 %v1095
        %v3208 = vunpack.c.l.b16 %v1096
        %v3209 = vunpack.c.l.b16 %v1097
        %v3210 = vunpack.c.l.b16 %v1098
        %v3211 = vunpack.c.l.b16 %v1099
        %v3212 = vunpack.c.l.b16 %v1100
        %v3213 = vunpack.c.l.b16 %v1101
        %v3214 = vunpack.c.l.b16 %v1102
        %v3215 = vunpack.c.l.b16 %v1103
        %v3216 = vunpack.c.l.b16 %v1104
        %v3217 = vunpack.c.l.b16 %v1105
        %v3218 = vunpack.c.l.b16 %v1106
        %v3219 = vunpack.c.l.b16 %v1107
        %v3220 = vunpack.c.l.b16 %v1108
        %v3221 = vunpack.c.l.b16 %v1109
        %v3222 = vunpack.c.l.b16 %v1110
        %v3223 = vunpack.c.l.b16 %v1111
        %v3224 = vunpack.c.l.b16 %v1112
        %v3225 = vunpack.c.l.b16 %v1113
        %v3226 = vunpack.c.l.b16 %v1114
        %v3227 = vunpack.c.l.b16 %v1115
        %v3228 = vunpack.c.l.b16 %v1116
        %v3229 = vunpack.c.l.b16 %v1117
        %v3230 = vunpack.c.l.b16 %v1118
        %v3231 = vunpack.c.l.b16 %v1119
        %v3232 = vpack.c.b16 %v3201, %v3200
        %v3233 = vpack.c.b16 %v3203, %v3202
        %v3234 = vpack.c.b16 %v3205, %v3204
        %v3235 = vpack.c.b16 %v3207, %v3206
        %v3236 = vpack.c.b16 %v3209, %v3208
        %v3237 = vpack.c.b16 %v3211, %v3210
        %v3238 = vpack.c.b16 %v3213, %v3212
        %v3239 = vpack.c.b16 %v3215, %v3214
        %v3240 = vpack.c.b16 %v3217, %v3216
        %v3241 = vpack.c.b16 %v3219, %v3218
        %v3242 = vpack.c.b16 %v3221, %v3220
        %v3243 = vpack.c.b16 %v3223, %v3222
        %v3244 = vpack.c.b16 %v3225, %v3224
        %v3245 = vpack.c.b16 %v3227, %v3226
        %v3246 = vpack.c.b16 %v3229, %v3228
        %v3247 = vpack.c.b16 %v3231, %v3230
        %v3249 = vsel %vm2970, %v3232, 0
        %v3252 = vsel %vm2970, %v3233, 0
        %v3255 = vsel %vm2970, %v3234, 0
        %v3258 = vsel %vm2970, %v3235, 0
        %v3261 = vsel %vm2970, %v3236, 0
        %v3264 = vsel %vm2970, %v3237, 0
        %v3267 = vsel %vm2970, %v3238, 0
        %v3270 = vsel %vm2970, %v3239, 0
        %v3273 = vsel %vm2970, %v3240, 0
        %v3276 = vsel %vm2970, %v3241, 0
        %v3279 = vsel %vm2970, %v3242, 0
        %v3282 = vsel %vm2970, %v3243, 0
        %v3285 = vsel %vm2970, %v3244, 0
        %v3288 = vsel %vm2970, %v3245, 0
        %v3291 = vsel %vm2970, %v3246, 0
        %v3294 = vsel %vm2970, %v3247, 0
        %v3297 = vsel %vm3019, %v2919, 0
        %3299 = vmatprep.subr.bf16.mxu0 0
        %3300 = vmatpush1.bf16.msra.mxu0 %v3297
        %3301 = vmatprep.subr.bf16.mxu0 0
        %3302 = vmatpush1.bf16.msra.mxu0 0
        %3303 = vmatprep.subr.bf16.mxu0 0
        %3304 = vmatpush1.bf16.msra.mxu0 0
        %3305 = vmatprep.subr.bf16.mxu0 0
        %3306 = vmatpush1.bf16.msra.mxu0 0
        %3307 = vmatprep.subr.bf16.mxu0 0
        %3308 = vmatpush1.bf16.msra.mxu0 0
        %3309 = vmatprep.subr.bf16.mxu0 0
        %3310 = vmatpush1.bf16.msra.mxu0 0
        %3311 = vmatprep.subr.bf16.mxu0 0
        %3312 = vmatpush1.bf16.msra.mxu0 0
        %3313 = vmatprep.subr.bf16.mxu0 0
        %3314 = vmatpush1.bf16.msra.mxu0 0
        %3315 = vmatprep.subr.bf16.mxu0 0
        %3316 = vmatpush1.bf16.msra.mxu0 0
        %3317 = vmatprep.subr.bf16.mxu0 0
        %3318 = vmatpush1.bf16.msra.mxu0 0
        %3319 = vmatprep.subr.bf16.mxu0 0
        %3320 = vmatpush1.bf16.msra.mxu0 0
        %3321 = vmatprep.subr.bf16.mxu0 0
        %3322 = vmatpush1.bf16.msra.mxu0 0
        %3323 = vmatprep.subr.bf16.mxu0 0
        %3324 = vmatpush1.bf16.msra.mxu0 0
        %3325 = vmatprep.subr.bf16.mxu0 0
        %3326 = vmatpush1.bf16.msra.mxu0 0
        %3327 = vmatprep.subr.bf16.mxu0 0
        %3328 = vmatpush1.bf16.msra.mxu0 0
        %3329 = vmatprep.subr.bf16.mxu0 0
        %3330 = vmatpush1.bf16.msra.mxu0 0
        %3331 = vmatprep.mubr.bf16.mxu0 0
        %3332 = vmatmul.mubr.bf16.gmra.mrb[0].mxu0 %v3249
        %v3333 = vpop.f32.mrb[0].mxu0
        %v3334 = vadd.f32 %v3058, %v3333
        %v3335 = vpop.f32.mrb[0].mxu0
        %v3336 = vpop.f32.mrb[0].mxu0
        %v3337 = vadd.f32 %v3061, %v3336
        %v3338 = vpop.f32.mrb[0].mxu0
        %3339 = vmatprep.mubr.bf16.mxu0 0
        %3340 = vmatmul.mubr.bf16.gmra.mrb[0].mxu0 %v3252
        %v3341 = vpop.f32.mrb[0].mxu0
        %v3342 = vadd.f32 %v3066, %v3341
        %v3343 = vpop.f32.mrb[0].mxu0
        %v3344 = vpop.f32.mrb[0].mxu0
        %v3345 = vadd.f32 %v3069, %v3344
        %v3346 = vpop.f32.mrb[0].mxu0
        %3347 = vmatprep.mubr.bf16.mxu0 0
        %3348 = vmatmul.mubr.bf16.gmra.mrb[0].mxu0 %v3255
        %v3349 = vpop.f32.mrb[0].mxu0
        %v3350 = vadd.f32 %v3074, %v3349
        %v3351 = vpop.f32.mrb[0].mxu0
        %v3352 = vpop.f32.mrb[0].mxu0
        %v3353 = vadd.f32 %v3077, %v3352
        %v3354 = vpop.f32.mrb[0].mxu0
        %3355 = vmatprep.mubr.bf16.mxu0 0
        %3356 = vmatmul.mubr.bf16.gmra.mrb[0].mxu0 %v3258
        %v3357 = vpop.f32.mrb[0].mxu0
        %v3358 = vadd.f32 %v3082, %v3357
        %v3359 = vpop.f32.mrb[0].mxu0
        %v3360 = vpop.f32.mrb[0].mxu0
        %v3361 = vadd.f32 %v3085, %v3360
        %v3362 = vpop.f32.mrb[0].mxu0
        %3363 = vmatprep.mubr.bf16.mxu0 0
        %3364 = vmatmul.mubr.bf16.gmra.mrb[0].mxu0 %v3261
        %v3365 = vpop.f32.mrb[0].mxu0
        %v3366 = vadd.f32 %v3090, %v3365
        %v3367 = vpop.f32.mrb[0].mxu0
        %v3368 = vpop.f32.mrb[0].mxu0
        %v3369 = vadd.f32 %v3093, %v3368
        %v3370 = vpop.f32.mrb[0].mxu0
        %3371 = vmatprep.mubr.bf16.mxu0 0
        %3372 = vmatmul.mubr.bf16.gmra.mrb[0].mxu0 %v3264
        %v3373 = vpop.f32.mrb[0].mxu0
        %v3374 = vadd.f32 %v3098, %v3373
        %v3375 = vpop.f32.mrb[0].mxu0
        %v3376 = vpop.f32.mrb[0].mxu0
        %v3377 = vadd.f32 %v3101, %v3376
        %v3378 = vpop.f32.mrb[0].mxu0
        %3379 = vmatprep.mubr.bf16.mxu0 0
        %3380 = vmatmul.mubr.bf16.gmra.mrb[0].mxu0 %v3267
        %v3381 = vpop.f32.mrb[0].mxu0
        %v3382 = vadd.f32 %v3106, %v3381
        %v3383 = vpop.f32.mrb[0].mxu0
        %v3384 = vpop.f32.mrb[0].mxu0
        %v3385 = vadd.f32 %v3109, %v3384
        %v3386 = vpop.f32.mrb[0].mxu0
        %3387 = vmatprep.mubr.bf16.mxu0 0
        %3388 = vmatmul.mubr.bf16.gmra.mrb[0].mxu0 %v3270
        %v3389 = vpop.f32.mrb[0].mxu0
        %v3390 = vadd.f32 %v3114, %v3389
        %v3391 = vpop.f32.mrb[0].mxu0
        %v3392 = vpop.f32.mrb[0].mxu0
        %v3393 = vadd.f32 %v3117, %v3392
        %v3394 = vpop.f32.mrb[0].mxu0
        %3395 = vmatprep.mubr.bf16.mxu0 0
        %3396 = vmatmul.mubr.bf16.gmra.mrb[0].mxu0 %v3273
        %v3397 = vpop.f32.mrb[0].mxu0
        %v3398 = vadd.f32 %v3122, %v3397
        %v3399 = vpop.f32.mrb[0].mxu0
        %v3400 = vpop.f32.mrb[0].mxu0
        %v3401 = vadd.f32 %v3125, %v3400
        %v3402 = vpop.f32.mrb[0].mxu0
        %3403 = vmatprep.mubr.bf16.mxu0 0
        %3404 = vmatmul.mubr.bf16.gmra.mrb[0].mxu0 %v3276
        %v3405 = vpop.f32.mrb[0].mxu0
        %v3406 = vadd.f32 %v3130, %v3405
        %v3407 = vpop.f32.mrb[0].mxu0
        %v3408 = vpop.f32.mrb[0].mxu0
        %v3409 = vadd.f32 %v3133, %v3408
        %v3410 = vpop.f32.mrb[0].mxu0
        %3411 = vmatprep.mubr.bf16.mxu0 0
        %3412 = vmatmul.mubr.bf16.gmra.mrb[0].mxu0 %v3279
        %v3413 = vpop.f32.mrb[0].mxu0
        %v3414 = vadd.f32 %v3138, %v3413
        %v3415 = vpop.f32.mrb[0].mxu0
        %v3416 = vpop.f32.mrb[0].mxu0
        %v3417 = vadd.f32 %v3141, %v3416
        %v3418 = vpop.f32.mrb[0].mxu0
        %3419 = vmatprep.mubr.bf16.mxu0 0
        %3420 = vmatmul.mubr.bf16.gmra.mrb[0].mxu0 %v3282
        %v3421 = vpop.f32.mrb[0].mxu0
        %v3422 = vadd.f32 %v3146, %v3421
        %v3423 = vpop.f32.mrb[0].mxu0
        %v3424 = vpop.f32.mrb[0].mxu0
        %v3425 = vadd.f32 %v3149, %v3424
        %v3426 = vpop.f32.mrb[0].mxu0
        %3427 = vmatprep.mubr.bf16.mxu0 0
        %3428 = vmatmul.mubr.bf16.gmra.mrb[0].mxu0 %v3285
        %v3429 = vpop.f32.mrb[0].mxu0
        %v3430 = vadd.f32 %v3154, %v3429
        %v3431 = vpop.f32.mrb[0].mxu0
        %v3432 = vpop.f32.mrb[0].mxu0
        %v3433 = vadd.f32 %v3157, %v3432
        %v3434 = vpop.f32.mrb[0].mxu0
        %3435 = vmatprep.mubr.bf16.mxu0 0
        %3436 = vmatmul.mubr.bf16.gmra.mrb[0].mxu0 %v3288
        %v3437 = vpop.f32.mrb[0].mxu0
        %v3438 = vadd.f32 %v3162, %v3437
        %v3439 = vpop.f32.mrb[0].mxu0
        %v3440 = vpop.f32.mrb[0].mxu0
        %v3441 = vadd.f32 %v3165, %v3440
        %v3442 = vpop.f32.mrb[0].mxu0
        %3443 = vmatprep.mubr.bf16.mxu0 0
        %3444 = vmatmul.mubr.bf16.gmra.mrb[0].mxu0 %v3291
        %v3445 = vpop.f32.mrb[0].mxu0
        %v3446 = vadd.f32 %v3170, %v3445
        %v3447 = vpop.f32.mrb[0].mxu0
        %v3448 = vpop.f32.mrb[0].mxu0
        %v3449 = vadd.f32 %v3173, %v3448
        %v3450 = vpop.f32.mrb[0].mxu0
        %3451 = vmatprep.mubr.bf16.mxu0 0
        %3452 = vmatmul.mubr.bf16.gmra.mrb[0].mxu0 %v3294
        %v3453 = vpop.f32.mrb[0].mxu0
        %v3454 = vadd.f32 %v3178, %v3453
        %v3455 = vpop.f32.mrb[0].mxu0
        %v3456 = vpop.f32.mrb[0].mxu0
        %v3457 = vadd.f32 %v3181, %v3456
        %v3458 = vpop.f32.mrb[0].mxu0
        %3459 = vdwg.mxu0
        %s3460 = scalar_lea.vmem [#allocation9], 4
        %v3461 = vld [vmem:[%s3460] sm:$0x3]
        %v3462 = vunpack.c.l.b16 %v1593
        %v3463 = vunpack.c.l.b16 %v1596
        %v3464 = vunpack.c.l.b16 %v1600
        %v3465 = vunpack.c.l.b16 %v1603
        %v3466 = vunpack.c.l.b16 %v1607
        %v3467 = vunpack.c.l.b16 %v1610
        %v3468 = vunpack.c.l.b16 %v1614
        %v3469 = vunpack.c.l.b16 %v1617
        %v3470 = vunpack.c.l.b16 %v1621
        %v3471 = vunpack.c.l.b16 %v1624
        %v3472 = vunpack.c.l.b16 %v1628
        %v3473 = vunpack.c.l.b16 %v1631
        %v3474 = vunpack.c.l.b16 %v1635
        %v3475 = vunpack.c.l.b16 %v1638
        %v3476 = vunpack.c.l.b16 %v1642
        %v3477 = vunpack.c.l.b16 %v1645
        %v3478 = vunpack.c.l.b16 %v1649
        %v3479 = vunpack.c.l.b16 %v1652
        %v3480 = vunpack.c.l.b16 %v1656
        %v3481 = vunpack.c.l.b16 %v1659
        %v3482 = vunpack.c.l.b16 %v1663
        %v3483 = vunpack.c.l.b16 %v1666
        %v3484 = vunpack.c.l.b16 %v1670
        %v3485 = vunpack.c.l.b16 %v1673
        %v3486 = vunpack.c.l.b16 %v1677
        %v3487 = vunpack.c.l.b16 %v1680
        %v3488 = vunpack.c.l.b16 %v1684
        %v3489 = vunpack.c.l.b16 %v1687
        %v3490 = vunpack.c.l.b16 %v1691
        %v3491 = vunpack.c.l.b16 %v1694
        %v3492 = vunpack.c.l.b16 %v1698
        %v3493 = vunpack.c.l.b16 %v1701
        %v3494 = vpack.c.b16 %v3463, %v3462
        %v3495 = vpack.c.b16 %v3465, %v3464
        %v3496 = vpack.c.b16 %v3467, %v3466
        %v3497 = vpack.c.b16 %v3469, %v3468
        %v3498 = vpack.c.b16 %v3471, %v3470
        %v3499 = vpack.c.b16 %v3473, %v3472
        %v3500 = vpack.c.b16 %v3475, %v3474
        %v3501 = vpack.c.b16 %v3477, %v3476
        %v3502 = vpack.c.b16 %v3479, %v3478
        %v3503 = vpack.c.b16 %v3481, %v3480
        %v3504 = vpack.c.b16 %v3483, %v3482
        %v3505 = vpack.c.b16 %v3485, %v3484
        %v3506 = vpack.c.b16 %v3487, %v3486
        %v3507 = vpack.c.b16 %v3489, %v3488
        %v3508 = vpack.c.b16 %v3491, %v3490
        %v3509 = vpack.c.b16 %v3493, %v3492
        %v3511 = vsel %vm2970, %v3494, 0
        %v3514 = vsel %vm2970, %v3495, 0
        %v3517 = vsel %vm2970, %v3496, 0
        %v3520 = vsel %vm2970, %v3497, 0
        %v3523 = vsel %vm2970, %v3498, 0
        %v3526 = vsel %vm2970, %v3499, 0
        %v3529 = vsel %vm2970, %v3500, 0
        %v3532 = vsel %vm2970, %v3501, 0
        %v3535 = vsel %vm2970, %v3502, 0
        %v3538 = vsel %vm2970, %v3503, 0
        %v3541 = vsel %vm2970, %v3504, 0
        %v3544 = vsel %vm2970, %v3505, 0
        %v3547 = vsel %vm2970, %v3506, 0
        %v3550 = vsel %vm2970, %v3507, 0
        %v3553 = vsel %vm2970, %v3508, 0
        %v3556 = vsel %vm2970, %v3509, 0
        %v3559 = vsel %vm3019, %v3461, 0
        %3561 = vmatprep.subr.bf16.mxu0 0
        %3562 = vmatpush1.bf16.msra.mxu0 %v3559
        %3563 = vmatprep.subr.bf16.mxu0 0
        %3564 = vmatpush1.bf16.msra.mxu0 0
        %3565 = vmatprep.subr.bf16.mxu0 0
        %3566 = vmatpush1.bf16.msra.mxu0 0
        %3567 = vmatprep.subr.bf16.mxu0 0
        %3568 = vmatpush1.bf16.msra.mxu0 0
        %3569 = vmatprep.subr.bf16.mxu0 0
        %3570 = vmatpush1.bf16.msra.mxu0 0
        %3571 = vmatprep.subr.bf16.mxu0 0
        %3572 = vmatpush1.bf16.msra.mxu0 0
        %3573 = vmatprep.subr.bf16.mxu0 0
        %3574 = vmatpush1.bf16.msra.mxu0 0
        %3575 = vmatprep.subr.bf16.mxu0 0
        %3576 = vmatpush1.bf16.msra.mxu0 0
        %3577 = vmatprep.subr.bf16.mxu0 0
        %3578 = vmatpush1.bf16.msra.mxu0 0
        %3579 = vmatprep.subr.bf16.mxu0 0
        %3580 = vmatpush1.bf16.msra.mxu0 0
        %3581 = vmatprep.subr.bf16.mxu0 0
        %3582 = vmatpush1.bf16.msra.mxu0 0
        %3583 = vmatprep.subr.bf16.mxu0 0
        %3584 = vmatpush1.bf16.msra.mxu0 0
        %3585 = vmatprep.subr.bf16.mxu0 0
        %3586 = vmatpush1.bf16.msra.mxu0 0
        %3587 = vmatprep.subr.bf16.mxu0 0
        %3588 = vmatpush1.bf16.msra.mxu0 0
        %3589 = vmatprep.subr.bf16.mxu0 0
        %3590 = vmatpush1.bf16.msra.mxu0 0
        %3591 = vmatprep.subr.bf16.mxu0 0
        %3592 = vmatpush1.bf16.msra.mxu0 0
        %3593 = vmatprep.mubr.bf16.mxu0 0
        %3594 = vmatmul.mubr.bf16.gmra.mrb[0].mxu0 %v3511
        %v3595 = vpop.f32.mrb[0].mxu0
        %v3596 = vadd.f32 0.0, %v3595
        %v3597 = vpop.f32.mrb[0].mxu0
        %v3598 = vpop.f32.mrb[0].mxu0
        %v3599 = vadd.f32 0.0, %v3598
        %v3600 = vpop.f32.mrb[0].mxu0
        %3601 = vmatprep.mubr.bf16.mxu0 0
        %3602 = vmatmul.mubr.bf16.gmra.mrb[0].mxu0 %v3514
        %v3603 = vpop.f32.mrb[0].mxu0
        %v3604 = vadd.f32 0.0, %v3603
        %v3605 = vpop.f32.mrb[0].mxu0
        %v3606 = vpop.f32.mrb[0].mxu0
        %v3607 = vadd.f32 0.0, %v3606
        %v3608 = vpop.f32.mrb[0].mxu0
        %3609 = vmatprep.mubr.bf16.mxu0 0
        %3610 = vmatmul.mubr.bf16.gmra.mrb[0].mxu0 %v3517
        %v3611 = vpop.f32.mrb[0].mxu0
        %v3612 = vadd.f32 0.0, %v3611
        %v3613 = vpop.f32.mrb[0].mxu0
        %v3614 = vpop.f32.mrb[0].mxu0
        %v3615 = vadd.f32 0.0, %v3614
        %v3616 = vpop.f32.mrb[0].mxu0
        %3617 = vmatprep.mubr.bf16.mxu0 0
        %3618 = vmatmul.mubr.bf16.gmra.mrb[0].mxu0 %v3520
        %v3619 = vpop.f32.mrb[0].mxu0
        %v3620 = vadd.f32 0.0, %v3619
        %v3621 = vpop.f32.mrb[0].mxu0
        %v3622 = vpop.f32.mrb[0].mxu0
        %v3623 = vadd.f32 0.0, %v3622
        %v3624 = vpop.f32.mrb[0].mxu0
        %3625 = vmatprep.mubr.bf16.mxu0 0
        %3626 = vmatmul.mubr.bf16.gmra.mrb[0].mxu0 %v3523
        %v3627 = vpop.f32.mrb[0].mxu0
        %v3628 = vadd.f32 0.0, %v3627
        %v3629 = vpop.f32.mrb[0].mxu0
        %v3630 = vpop.f32.mrb[0].mxu0
        %v3631 = vadd.f32 0.0, %v3630
        %v3632 = vpop.f32.mrb[0].mxu0
        %3633 = vmatprep.mubr.bf16.mxu0 0
        %3634 = vmatmul.mubr.bf16.gmra.mrb[0].mxu0 %v3526
        %v3635 = vpop.f32.mrb[0].mxu0
        %v3636 = vadd.f32 0.0, %v3635
        %v3637 = vpop.f32.mrb[0].mxu0
        %v3638 = vpop.f32.mrb[0].mxu0
        %v3639 = vadd.f32 0.0, %v3638
        %v3640 = vpop.f32.mrb[0].mxu0
        %3641 = vmatprep.mubr.bf16.mxu0 0
        %3642 = vmatmul.mubr.bf16.gmra.mrb[0].mxu0 %v3529
        %v3643 = vpop.f32.mrb[0].mxu0
        %v3644 = vadd.f32 0.0, %v3643
        %v3645 = vpop.f32.mrb[0].mxu0
        %v3646 = vpop.f32.mrb[0].mxu0
        %v3647 = vadd.f32 0.0, %v3646
        %v3648 = vpop.f32.mrb[0].mxu0
        %3649 = vmatprep.mubr.bf16.mxu0 0
        %3650 = vmatmul.mubr.bf16.gmra.mrb[0].mxu0 %v3532
        %v3651 = vpop.f32.mrb[0].mxu0
        %v3652 = vadd.f32 0.0, %v3651
        %v3653 = vpop.f32.mrb[0].mxu0
        %v3654 = vpop.f32.mrb[0].mxu0
        %v3655 = vadd.f32 0.0, %v3654
        %v3656 = vpop.f32.mrb[0].mxu0
        %3657 = vmatprep.mubr.bf16.mxu0 0
        %3658 = vmatmul.mubr.bf16.gmra.mrb[0].mxu0 %v3535
        %v3659 = vpop.f32.mrb[0].mxu0
        %v3660 = vadd.f32 0.0, %v3659
        %v3661 = vpop.f32.mrb[0].mxu0
        %v3662 = vpop.f32.mrb[0].mxu0
        %v3663 = vadd.f32 0.0, %v3662
        %v3664 = vpop.f32.mrb[0].mxu0
        %3665 = vmatprep.mubr.bf16.mxu0 0
        %3666 = vmatmul.mubr.bf16.gmra.mrb[0].mxu0 %v3538
        %v3667 = vpop.f32.mrb[0].mxu0
        %v3668 = vadd.f32 0.0, %v3667
        %v3669 = vpop.f32.mrb[0].mxu0
        %v3670 = vpop.f32.mrb[0].mxu0
        %v3671 = vadd.f32 0.0, %v3670
        %v3672 = vpop.f32.mrb[0].mxu0
        %3673 = vmatprep.mubr.bf16.mxu0 0
        %3674 = vmatmul.mubr.bf16.gmra.mrb[0].mxu0 %v3541
        %v3675 = vpop.f32.mrb[0].mxu0
        %v3676 = vadd.f32 0.0, %v3675
        %v3677 = vpop.f32.mrb[0].mxu0
        %v3678 = vpop.f32.mrb[0].mxu0
        %v3679 = vadd.f32 0.0, %v3678
        %v3680 = vpop.f32.mrb[0].mxu0
        %3681 = vmatprep.mubr.bf16.mxu0 0
        %3682 = vmatmul.mubr.bf16.gmra.mrb[0].mxu0 %v3544
        %v3683 = vpop.f32.mrb[0].mxu0
        %v3684 = vadd.f32 0.0, %v3683
        %v3685 = vpop.f32.mrb[0].mxu0
        %v3686 = vpop.f32.mrb[0].mxu0
        %v3687 = vadd.f32 0.0, %v3686
        %v3688 = vpop.f32.mrb[0].mxu0
        %3689 = vmatprep.mubr.bf16.mxu0 0
        %3690 = vmatmul.mubr.bf16.gmra.mrb[0].mxu0 %v3547
        %v3691 = vpop.f32.mrb[0].mxu0
        %v3692 = vadd.f32 0.0, %v3691
        %v3693 = vpop.f32.mrb[0].mxu0
        %v3694 = vpop.f32.mrb[0].mxu0
        %v3695 = vadd.f32 0.0, %v3694
        %v3696 = vpop.f32.mrb[0].mxu0
        %3697 = vmatprep.mubr.bf16.mxu0 0
        %3698 = vmatmul.mubr.bf16.gmra.mrb[0].mxu0 %v3550
        %v3699 = vpop.f32.mrb[0].mxu0
        %v3700 = vadd.f32 0.0, %v3699
        %v3701 = vpop.f32.mrb[0].mxu0
        %v3702 = vpop.f32.mrb[0].mxu0
        %v3703 = vadd.f32 0.0, %v3702
        %v3704 = vpop.f32.mrb[0].mxu0
        %3705 = vmatprep.mubr.bf16.mxu0 0
        %3706 = vmatmul.mubr.bf16.gmra.mrb[0].mxu0 %v3553
        %v3707 = vpop.f32.mrb[0].mxu0
        %v3708 = vadd.f32 0.0, %v3707
        %v3709 = vpop.f32.mrb[0].mxu0
        %v3710 = vpop.f32.mrb[0].mxu0
        %v3711 = vadd.f32 0.0, %v3710
        %v3712 = vpop.f32.mrb[0].mxu0
        %3713 = vmatprep.mubr.bf16.mxu0 0
        %3714 = vmatmul.mubr.bf16.gmra.mrb[0].mxu0 %v3556
        %v3715 = vpop.f32.mrb[0].mxu0
        %v3716 = vadd.f32 0.0, %v3715
        %v3717 = vpop.f32.mrb[0].mxu0
        %v3718 = vpop.f32.mrb[0].mxu0
        %v3719 = vadd.f32 0.0, %v3718
        %v3720 = vpop.f32.mrb[0].mxu0
        %3721 = vdwg.mxu0
        %v3722 = vadd.f32 %v3334, %v3596
        %v3723 = vadd.f32 %v3337, %v3599
        %v3724 = vadd.f32 %v3342, %v3604
        %v3725 = vadd.f32 %v3345, %v3607
        %v3726 = vadd.f32 %v3350, %v3612
        %v3727 = vadd.f32 %v3353, %v3615
        %v3728 = vadd.f32 %v3358, %v3620
        %v3729 = vadd.f32 %v3361, %v3623
        %v3730 = vadd.f32 %v3366, %v3628
        %v3731 = vadd.f32 %v3369, %v3631
        %v3732 = vadd.f32 %v3374, %v3636
        %v3733 = vadd.f32 %v3377, %v3639
        %v3734 = vadd.f32 %v3382, %v3644
        %v3735 = vadd.f32 %v3385, %v3647
        %v3736 = vadd.f32 %v3390, %v3652
        %v3737 = vadd.f32 %v3393, %v3655
        %v3738 = vadd.f32 %v3398, %v3660
        %v3739 = vadd.f32 %v3401, %v3663
        %v3740 = vadd.f32 %v3406, %v3668
        %v3741 = vadd.f32 %v3409, %v3671
        %v3742 = vadd.f32 %v3414, %v3676
        %v3743 = vadd.f32 %v3417, %v3679
        %v3744 = vadd.f32 %v3422, %v3684
        %v3745 = vadd.f32 %v3425, %v3687
        %v3746 = vadd.f32 %v3430, %v3692
        %v3747 = vadd.f32 %v3433, %v3695
        %v3748 = vadd.f32 %v3438, %v3700
        %v3749 = vadd.f32 %v3441, %v3703
        %v3750 = vadd.f32 %v3446, %v3708
        %v3751 = vadd.f32 %v3449, %v3711
        %v3752 = vadd.f32 %v3454, %v3716
        %v3753 = vadd.f32 %v3457, %v3719
        %s3754 = scalar_lea.vmem [#allocation9], 6
        %v3755 = vld [vmem:[%s3754] sm:$0x3]
        %v3772 = vunpack.c.l.b16 %v1702
        %v3773 = vunpack.c.l.b16 %v1703
        %v3774 = vunpack.c.l.b16 %v1704
        %v3775 = vunpack.c.l.b16 %v1705
        %v3776 = vunpack.c.l.b16 %v1706
        %v3777 = vunpack.c.l.b16 %v1707
        %v3778 = vunpack.c.l.b16 %v1708
        %v3779 = vunpack.c.l.b16 %v1709
        %v3780 = vunpack.c.l.b16 %v1710
        %v3781 = vunpack.c.l.b16 %v1711
        %v3782 = vunpack.c.l.b16 %v1712
        %v3783 = vunpack.c.l.b16 %v1713
        %v3784 = vunpack.c.l.b16 %v1714
        %v3785 = vunpack.c.l.b16 %v1715
        %v3786 = vunpack.c.l.b16 %v1716
        %v3787 = vunpack.c.l.b16 %v1717
        %v3788 = vunpack.c.l.b16 %v1718
        %v3789 = vunpack.c.l.b16 %v1719
        %v3790 = vunpack.c.l.b16 %v1720
        %v3791 = vunpack.c.l.b16 %v1721
        %v3792 = vunpack.c.l.b16 %v1722
        %v3793 = vunpack.c.l.b16 %v1723
        %v3794 = vunpack.c.l.b16 %v1724
        %v3795 = vunpack.c.l.b16 %v1725
        %v3796 = vunpack.c.l.b16 %v1726
        %v3797 = vunpack.c.l.b16 %v1727
        %v3798 = vunpack.c.l.b16 %v1728
        %v3799 = vunpack.c.l.b16 %v1729
        %v3800 = vunpack.c.l.b16 %v1730
        %v3801 = vunpack.c.l.b16 %v1731
        %v3802 = vunpack.c.l.b16 %v1732
        %v3803 = vunpack.c.l.b16 %v1733
        %v3804 = vpack.c.b16 %v3773, %v3772
        %v3805 = vpack.c.b16 %v3775, %v3774
        %v3806 = vpack.c.b16 %v3777, %v3776
        %v3807 = vpack.c.b16 %v3779, %v3778
        %v3808 = vpack.c.b16 %v3781, %v3780
        %v3809 = vpack.c.b16 %v3783, %v3782
        %v3810 = vpack.c.b16 %v3785, %v3784
        %v3811 = vpack.c.b16 %v3787, %v3786
        %v3812 = vpack.c.b16 %v3789, %v3788
        %v3813 = vpack.c.b16 %v3791, %v3790
        %v3814 = vpack.c.b16 %v3793, %v3792
        %v3815 = vpack.c.b16 %v3795, %v3794
        %v3816 = vpack.c.b16 %v3797, %v3796
        %v3817 = vpack.c.b16 %v3799, %v3798
        %v3818 = vpack.c.b16 %v3801, %v3800
        %v3819 = vpack.c.b16 %v3803, %v3802
        %v3821 = vsel %vm2970, %v3804, 0
        %v3824 = vsel %vm2970, %v3805, 0
        %v3827 = vsel %vm2970, %v3806, 0
        %v3830 = vsel %vm2970, %v3807, 0
        %v3833 = vsel %vm2970, %v3808, 0
        %v3836 = vsel %vm2970, %v3809, 0
        %v3839 = vsel %vm2970, %v3810, 0
        %v3842 = vsel %vm2970, %v3811, 0
        %v3845 = vsel %vm2970, %v3812, 0
        %v3848 = vsel %vm2970, %v3813, 0
        %v3851 = vsel %vm2970, %v3814, 0
        %v3854 = vsel %vm2970, %v3815, 0
        %v3857 = vsel %vm2970, %v3816, 0
        %v3860 = vsel %vm2970, %v3817, 0
        %v3863 = vsel %vm2970, %v3818, 0
        %v3866 = vsel %vm2970, %v3819, 0
        %v3869 = vsel %vm3019, %v3755, 0
        %3871 = vmatprep.subr.bf16.mxu0 0
        %3872 = vmatpush1.bf16.msra.mxu0 %v3869
        %3873 = vmatprep.subr.bf16.mxu0 0
        %3874 = vmatpush1.bf16.msra.mxu0 0
        %3875 = vmatprep.subr.bf16.mxu0 0
        %3876 = vmatpush1.bf16.msra.mxu0 0
        %3877 = vmatprep.subr.bf16.mxu0 0
        %3878 = vmatpush1.bf16.msra.mxu0 0
        %3879 = vmatprep.subr.bf16.mxu0 0
        %3880 = vmatpush1.bf16.msra.mxu0 0
        %3881 = vmatprep.subr.bf16.mxu0 0
        %3882 = vmatpush1.bf16.msra.mxu0 0
        %3883 = vmatprep.subr.bf16.mxu0 0
        %3884 = vmatpush1.bf16.msra.mxu0 0
        %3885 = vmatprep.subr.bf16.mxu0 0
        %3886 = vmatpush1.bf16.msra.mxu0 0
        %3887 = vmatprep.subr.bf16.mxu0 0
        %3888 = vmatpush1.bf16.msra.mxu0 0
        %3889 = vmatprep.subr.bf16.mxu0 0
        %3890 = vmatpush1.bf16.msra.mxu0 0
        %3891 = vmatprep.subr.bf16.mxu0 0
        %3892 = vmatpush1.bf16.msra.mxu0 0
        %3893 = vmatprep.subr.bf16.mxu0 0
        %3894 = vmatpush1.bf16.msra.mxu0 0
        %3895 = vmatprep.subr.bf16.mxu0 0
        %3896 = vmatpush1.bf16.msra.mxu0 0
        %3897 = vmatprep.subr.bf16.mxu0 0
        %3898 = vmatpush1.bf16.msra.mxu0 0
        %3899 = vmatprep.subr.bf16.mxu0 0
        %3900 = vmatpush1.bf16.msra.mxu0 0
        %3901 = vmatprep.subr.bf16.mxu0 0
        %3902 = vmatpush1.bf16.msra.mxu0 0
        %3903 = vmatprep.mubr.bf16.mxu0 0
        %3904 = vmatmul.mubr.bf16.gmra.mrb[0].mxu0 %v3821
        %v3905 = vpop.f32.mrb[0].mxu0
        %v3906 = vadd.f32 0.0, %v3905
        %v3907 = vpop.f32.mrb[0].mxu0
        %v3908 = vpop.f32.mrb[0].mxu0
        %v3909 = vadd.f32 0.0, %v3908
        %v3910 = vpop.f32.mrb[0].mxu0
        %3911 = vmatprep.mubr.bf16.mxu0 0
        %3912 = vmatmul.mubr.bf16.gmra.mrb[0].mxu0 %v3824
        %v3913 = vpop.f32.mrb[0].mxu0
        %v3914 = vadd.f32 0.0, %v3913
        %v3915 = vpop.f32.mrb[0].mxu0
        %v3916 = vpop.f32.mrb[0].mxu0
        %v3917 = vadd.f32 0.0, %v3916
        %v3918 = vpop.f32.mrb[0].mxu0
        %3919 = vmatprep.mubr.bf16.mxu0 0
        %3920 = vmatmul.mubr.bf16.gmra.mrb[0].mxu0 %v3827
        %v3921 = vpop.f32.mrb[0].mxu0
        %v3922 = vadd.f32 0.0, %v3921
        %v3923 = vpop.f32.mrb[0].mxu0
        %v3924 = vpop.f32.mrb[0].mxu0
        %v3925 = vadd.f32 0.0, %v3924
        %v3926 = vpop.f32.mrb[0].mxu0
        %3927 = vmatprep.mubr.bf16.mxu0 0
        %3928 = vmatmul.mubr.bf16.gmra.mrb[0].mxu0 %v3830
        %v3929 = vpop.f32.mrb[0].mxu0
        %v3930 = vadd.f32 0.0, %v3929
        %v3931 = vpop.f32.mrb[0].mxu0
        %v3932 = vpop.f32.mrb[0].mxu0
        %v3933 = vadd.f32 0.0, %v3932
        %v3934 = vpop.f32.mrb[0].mxu0
        %3935 = vmatprep.mubr.bf16.mxu0 0
        %3936 = vmatmul.mubr.bf16.gmra.mrb[0].mxu0 %v3833
        %v3937 = vpop.f32.mrb[0].mxu0
        %v3938 = vadd.f32 0.0, %v3937
        %v3939 = vpop.f32.mrb[0].mxu0
        %v3940 = vpop.f32.mrb[0].mxu0
        %v3941 = vadd.f32 0.0, %v3940
        %v3942 = vpop.f32.mrb[0].mxu0
        %3943 = vmatprep.mubr.bf16.mxu0 0
        %3944 = vmatmul.mubr.bf16.gmra.mrb[0].mxu0 %v3836
        %v3945 = vpop.f32.mrb[0].mxu0
        %v3946 = vadd.f32 0.0, %v3945
        %v3947 = vpop.f32.mrb[0].mxu0
        %v3948 = vpop.f32.mrb[0].mxu0
        %v3949 = vadd.f32 0.0, %v3948
        %v3950 = vpop.f32.mrb[0].mxu0
        %3951 = vmatprep.mubr.bf16.mxu0 0
        %3952 = vmatmul.mubr.bf16.gmra.mrb[0].mxu0 %v3839
        %v3953 = vpop.f32.mrb[0].mxu0
        %v3954 = vadd.f32 0.0, %v3953
        %v3955 = vpop.f32.mrb[0].mxu0
        %v3956 = vpop.f32.mrb[0].mxu0
        %v3957 = vadd.f32 0.0, %v3956
        %v3958 = vpop.f32.mrb[0].mxu0
        %3959 = vmatprep.mubr.bf16.mxu0 0
        %3960 = vmatmul.mubr.bf16.gmra.mrb[0].mxu0 %v3842
        %v3961 = vpop.f32.mrb[0].mxu0
        %v3962 = vadd.f32 0.0, %v3961
        %v3963 = vpop.f32.mrb[0].mxu0
        %v3964 = vpop.f32.mrb[0].mxu0
        %v3965 = vadd.f32 0.0, %v3964
        %v3966 = vpop.f32.mrb[0].mxu0
        %3967 = vmatprep.mubr.bf16.mxu0 0
        %3968 = vmatmul.mubr.bf16.gmra.mrb[0].mxu0 %v3845
        %v3969 = vpop.f32.mrb[0].mxu0
        %v3970 = vadd.f32 0.0, %v3969
        %v3971 = vpop.f32.mrb[0].mxu0
        %v3972 = vpop.f32.mrb[0].mxu0
        %v3973 = vadd.f32 0.0, %v3972
        %v3974 = vpop.f32.mrb[0].mxu0
        %3975 = vmatprep.mubr.bf16.mxu0 0
        %3976 = vmatmul.mubr.bf16.gmra.mrb[0].mxu0 %v3848
        %v3977 = vpop.f32.mrb[0].mxu0
        %v3978 = vadd.f32 0.0, %v3977
        %v3979 = vpop.f32.mrb[0].mxu0
        %v3980 = vpop.f32.mrb[0].mxu0
        %v3981 = vadd.f32 0.0, %v3980
        %v3982 = vpop.f32.mrb[0].mxu0
        %3983 = vmatprep.mubr.bf16.mxu0 0
        %3984 = vmatmul.mubr.bf16.gmra.mrb[0].mxu0 %v3851
        %v3985 = vpop.f32.mrb[0].mxu0
        %v3986 = vadd.f32 0.0, %v3985
        %v3987 = vpop.f32.mrb[0].mxu0
        %v3988 = vpop.f32.mrb[0].mxu0
        %v3989 = vadd.f32 0.0, %v3988
        %v3990 = vpop.f32.mrb[0].mxu0
        %3991 = vmatprep.mubr.bf16.mxu0 0
        %3992 = vmatmul.mubr.bf16.gmra.mrb[0].mxu0 %v3854
        %v3993 = vpop.f32.mrb[0].mxu0
        %v3994 = vadd.f32 0.0, %v3993
        %v3995 = vpop.f32.mrb[0].mxu0
        %v3996 = vpop.f32.mrb[0].mxu0
        %v3997 = vadd.f32 0.0, %v3996
        %v3998 = vpop.f32.mrb[0].mxu0
        %3999 = vmatprep.mubr.bf16.mxu0 0
        %4000 = vmatmul.mubr.bf16.gmra.mrb[0].mxu0 %v3857
        %v4001 = vpop.f32.mrb[0].mxu0
        %v4002 = vadd.f32 0.0, %v4001
        %v4003 = vpop.f32.mrb[0].mxu0
        %v4004 = vpop.f32.mrb[0].mxu0
        %v4005 = vadd.f32 0.0, %v4004
        %v4006 = vpop.f32.mrb[0].mxu0
        %4007 = vmatprep.mubr.bf16.mxu0 0
        %4008 = vmatmul.mubr.bf16.gmra.mrb[0].mxu0 %v3860
        %v4009 = vpop.f32.mrb[0].mxu0
        %v4010 = vadd.f32 0.0, %v4009
        %v4011 = vpop.f32.mrb[0].mxu0
        %v4012 = vpop.f32.mrb[0].mxu0
        %v4013 = vadd.f32 0.0, %v4012
        %v4014 = vpop.f32.mrb[0].mxu0
        %4015 = vmatprep.mubr.bf16.mxu0 0
        %4016 = vmatmul.mubr.bf16.gmra.mrb[0].mxu0 %v3863
        %v4017 = vpop.f32.mrb[0].mxu0
        %v4018 = vadd.f32 0.0, %v4017
        %v4019 = vpop.f32.mrb[0].mxu0
        %v4020 = vpop.f32.mrb[0].mxu0
        %v4021 = vadd.f32 0.0, %v4020
        %v4022 = vpop.f32.mrb[0].mxu0
        %4023 = vmatprep.mubr.bf16.mxu0 0
        %4024 = vmatmul.mubr.bf16.gmra.mrb[0].mxu0 %v3866
        %v4025 = vpop.f32.mrb[0].mxu0
        %v4026 = vadd.f32 0.0, %v4025
        %v4027 = vpop.f32.mrb[0].mxu0
        %v4028 = vpop.f32.mrb[0].mxu0
        %v4029 = vadd.f32 0.0, %v4028
        %v4030 = vpop.f32.mrb[0].mxu0
        %4031 = vdwg.mxu0
        %v4032 = vadd.f32 %v3722, %v3906
        %v4033 = vadd.f32 %v3723, %v3909
        %v4034 = vadd.f32 %v3724, %v3914
        %v4035 = vadd.f32 %v3725, %v3917
        %v4036 = vadd.f32 %v3726, %v3922
        %v4037 = vadd.f32 %v3727, %v3925
        %v4038 = vadd.f32 %v3728, %v3930
        %v4039 = vadd.f32 %v3729, %v3933
        %v4040 = vadd.f32 %v3730, %v3938
        %v4041 = vadd.f32 %v3731, %v3941
        %v4042 = vadd.f32 %v3732, %v3946
        %v4043 = vadd.f32 %v3733, %v3949
        %v4044 = vadd.f32 %v3734, %v3954
        %v4045 = vadd.f32 %v3735, %v3957
        %v4046 = vadd.f32 %v3736, %v3962
        %v4047 = vadd.f32 %v3737, %v3965
        %v4048 = vadd.f32 %v3738, %v3970
        %v4049 = vadd.f32 %v3739, %v3973
        %v4050 = vadd.f32 %v3740, %v3978
        %v4051 = vadd.f32 %v3741, %v3981
        %v4052 = vadd.f32 %v3742, %v3986
        %v4053 = vadd.f32 %v3743, %v3989
        %v4054 = vadd.f32 %v3744, %v3994
        %v4055 = vadd.f32 %v3745, %v3997
        %v4056 = vadd.f32 %v3746, %v4002
        %v4057 = vadd.f32 %v3747, %v4005
        %v4058 = vadd.f32 %v3748, %v4010
        %v4059 = vadd.f32 %v3749, %v4013
        %v4060 = vadd.f32 %v3750, %v4018
        %v4061 = vadd.f32 %v3751, %v4021
        %v4062 = vadd.f32 %v3752, %v4026
        %v4063 = vadd.f32 %v3753, %v4029
        %s4064 = scalar_lea.vmem [#allocation9], 8
        %v4065 = vld [vmem:[%s4064] sm:$0x3]
        %v4066 = vunpack.c.l.b16 %v1763
        %v4067 = vunpack.c.l.b16 %v1773
        %v4068 = vunpack.c.l.b16 %v1787
        %v4069 = vunpack.c.l.b16 %v1797
        %v4070 = vunpack.c.l.b16 %v1811
        %v4071 = vunpack.c.l.b16 %v1821
        %v4072 = vunpack.c.l.b16 %v1835
        %v4073 = vunpack.c.l.b16 %v1845
        %v4074 = vunpack.c.l.b16 %v1859
        %v4075 = vunpack.c.l.b16 %v1869
        %v4076 = vunpack.c.l.b16 %v1883
        %v4077 = vunpack.c.l.b16 %v1893
        %v4078 = vunpack.c.l.b16 %v1907
        %v4079 = vunpack.c.l.b16 %v1917
        %v4080 = vunpack.c.l.b16 %v1931
        %v4081 = vunpack.c.l.b16 %v1941
        %v4082 = vunpack.c.l.b16 %v1955
        %v4083 = vunpack.c.l.b16 %v1965
        %v4084 = vunpack.c.l.b16 %v1979
        %v4085 = vunpack.c.l.b16 %v1989
        %v4086 = vunpack.c.l.b16 %v2003
        %v4087 = vunpack.c.l.b16 %v2013
        %v4088 = vunpack.c.l.b16 %v2027
        %v4089 = vunpack.c.l.b16 %v2037
        %v4090 = vunpack.c.l.b16 %v2051
        %v4091 = vunpack.c.l.b16 %v2061
        %v4092 = vunpack.c.l.b16 %v2075
        %v4093 = vunpack.c.l.b16 %v2085
        %v4094 = vunpack.c.l.b16 %v2099
        %v4095 = vunpack.c.l.b16 %v2109
        %v4096 = vunpack.c.l.b16 %v2123
        %v4097 = vunpack.c.l.b16 %v2133
        %v4098 = vpack.c.b16 %v4067, %v4066
        %v4099 = vpack.c.b16 %v4069, %v4068
        %v4100 = vpack.c.b16 %v4071, %v4070
        %v4101 = vpack.c.b16 %v4073, %v4072
        %v4102 = vpack.c.b16 %v4075, %v4074
        %v4103 = vpack.c.b16 %v4077, %v4076
        %v4104 = vpack.c.b16 %v4079, %v4078
        %v4105 = vpack.c.b16 %v4081, %v4080
        %v4106 = vpack.c.b16 %v4083, %v4082
        %v4107 = vpack.c.b16 %v4085, %v4084
        %v4108 = vpack.c.b16 %v4087, %v4086
        %v4109 = vpack.c.b16 %v4089, %v4088
        %v4110 = vpack.c.b16 %v4091, %v4090
        %v4111 = vpack.c.b16 %v4093, %v4092
        %v4112 = vpack.c.b16 %v4095, %v4094
        %v4113 = vpack.c.b16 %v4097, %v4096
        %v4115 = vsel %vm2970, %v4098, 0
        %v4118 = vsel %vm2970, %v4099, 0
        %v4121 = vsel %vm2970, %v4100, 0
        %v4124 = vsel %vm2970, %v4101, 0
        %v4127 = vsel %vm2970, %v4102, 0
        %v4130 = vsel %vm2970, %v4103, 0
        %v4133 = vsel %vm2970, %v4104, 0
        %v4136 = vsel %vm2970, %v4105, 0
        %v4139 = vsel %vm2970, %v4106, 0
        %v4142 = vsel %vm2970, %v4107, 0
        %v4145 = vsel %vm2970, %v4108, 0
        %v4148 = vsel %vm2970, %v4109, 0
        %v4151 = vsel %vm2970, %v4110, 0
        %v4154 = vsel %vm2970, %v4111, 0
        %v4157 = vsel %vm2970, %v4112, 0
        %v4160 = vsel %vm2970, %v4113, 0
        %v4163 = vsel %vm3019, %v4065, 0
        %4165 = vmatprep.subr.bf16.mxu0 0
        %4166 = vmatpush1.bf16.msra.mxu0 %v4163
        %4167 = vmatprep.subr.bf16.mxu0 0
        %4168 = vmatpush1.bf16.msra.mxu0 0
        %4169 = vmatprep.subr.bf16.mxu0 0
        %4170 = vmatpush1.bf16.msra.mxu0 0
        %4171 = vmatprep.subr.bf16.mxu0 0
        %4172 = vmatpush1.bf16.msra.mxu0 0
        %4173 = vmatprep.subr.bf16.mxu0 0
        %4174 = vmatpush1.bf16.msra.mxu0 0
        %4175 = vmatprep.subr.bf16.mxu0 0
        %4176 = vmatpush1.bf16.msra.mxu0 0
        %4177 = vmatprep.subr.bf16.mxu0 0
        %4178 = vmatpush1.bf16.msra.mxu0 0
        %4179 = vmatprep.subr.bf16.mxu0 0
        %4180 = vmatpush1.bf16.msra.mxu0 0
        %4181 = vmatprep.subr.bf16.mxu0 0
        %4182 = vmatpush1.bf16.msra.mxu0 0
        %4183 = vmatprep.subr.bf16.mxu0 0
        %4184 = vmatpush1.bf16.msra.mxu0 0
        %4185 = vmatprep.subr.bf16.mxu0 0
        %4186 = vmatpush1.bf16.msra.mxu0 0
        %4187 = vmatprep.subr.bf16.mxu0 0
        %4188 = vmatpush1.bf16.msra.mxu0 0
        %4189 = vmatprep.subr.bf16.mxu0 0
        %4190 = vmatpush1.bf16.msra.mxu0 0
        %4191 = vmatprep.subr.bf16.mxu0 0
        %4192 = vmatpush1.bf16.msra.mxu0 0
        %4193 = vmatprep.subr.bf16.mxu0 0
        %4194 = vmatpush1.bf16.msra.mxu0 0
        %4195 = vmatprep.subr.bf16.mxu0 0
        %4196 = vmatpush1.bf16.msra.mxu0 0
        %4197 = vmatprep.mubr.bf16.mxu0 0
        %4198 = vmatmul.mubr.bf16.gmra.mrb[0].mxu0 %v4115
        %v4199 = vpop.f32.mrb[0].mxu0
        %v4200 = vadd.f32 0.0, %v4199
        %v4201 = vpop.f32.mrb[0].mxu0
        %v4202 = vpop.f32.mrb[0].mxu0
        %v4203 = vadd.f32 0.0, %v4202
        %v4204 = vpop.f32.mrb[0].mxu0
        %4205 = vmatprep.mubr.bf16.mxu0 0
        %4206 = vmatmul.mubr.bf16.gmra.mrb[0].mxu0 %v4118
        %v4207 = vpop.f32.mrb[0].mxu0
        %v4208 = vadd.f32 0.0, %v4207
        %v4209 = vpop.f32.mrb[0].mxu0
        %v4210 = vpop.f32.mrb[0].mxu0
        %v4211 = vadd.f32 0.0, %v4210
        %v4212 = vpop.f32.mrb[0].mxu0
        %4213 = vmatprep.mubr.bf16.mxu0 0
        %4214 = vmatmul.mubr.bf16.gmra.mrb[0].mxu0 %v4121
        %v4215 = vpop.f32.mrb[0].mxu0
        %v4216 = vadd.f32 0.0, %v4215
        %v4217 = vpop.f32.mrb[0].mxu0
        %v4218 = vpop.f32.mrb[0].mxu0
        %v4219 = vadd.f32 0.0, %v4218
        %v4220 = vpop.f32.mrb[0].mxu0
        %4221 = vmatprep.mubr.bf16.mxu0 0
        %4222 = vmatmul.mubr.bf16.gmra.mrb[0].mxu0 %v4124
        %v4223 = vpop.f32.mrb[0].mxu0
        %v4224 = vadd.f32 0.0, %v4223
        %v4225 = vpop.f32.mrb[0].mxu0
        %v4226 = vpop.f32.mrb[0].mxu0
        %v4227 = vadd.f32 0.0, %v4226
        %v4228 = vpop.f32.mrb[0].mxu0
        %4229 = vmatprep.mubr.bf16.mxu0 0
        %4230 = vmatmul.mubr.bf16.gmra.mrb[0].mxu0 %v4127
        %v4231 = vpop.f32.mrb[0].mxu0
        %v4232 = vadd.f32 0.0, %v4231
        %v4233 = vpop.f32.mrb[0].mxu0
        %v4234 = vpop.f32.mrb[0].mxu0
        %v4235 = vadd.f32 0.0, %v4234
        %v4236 = vpop.f32.mrb[0].mxu0
        %4237 = vmatprep.mubr.bf16.mxu0 0
        %4238 = vmatmul.mubr.bf16.gmra.mrb[0].mxu0 %v4130
        %v4239 = vpop.f32.mrb[0].mxu0
        %v4240 = vadd.f32 0.0, %v4239
        %v4241 = vpop.f32.mrb[0].mxu0
        %v4242 = vpop.f32.mrb[0].mxu0
        %v4243 = vadd.f32 0.0, %v4242
        %v4244 = vpop.f32.mrb[0].mxu0
        %4245 = vmatprep.mubr.bf16.mxu0 0
        %4246 = vmatmul.mubr.bf16.gmra.mrb[0].mxu0 %v4133
        %v4247 = vpop.f32.mrb[0].mxu0
        %v4248 = vadd.f32 0.0, %v4247
        %v4249 = vpop.f32.mrb[0].mxu0
        %v4250 = vpop.f32.mrb[0].mxu0
        %v4251 = vadd.f32 0.0, %v4250
        %v4252 = vpop.f32.mrb[0].mxu0
        %4253 = vmatprep.mubr.bf16.mxu0 0
        %4254 = vmatmul.mubr.bf16.gmra.mrb[0].mxu0 %v4136
        %v4255 = vpop.f32.mrb[0].mxu0
        %v4256 = vadd.f32 0.0, %v4255
        %v4257 = vpop.f32.mrb[0].mxu0
        %v4258 = vpop.f32.mrb[0].mxu0
        %v4259 = vadd.f32 0.0, %v4258
        %v4260 = vpop.f32.mrb[0].mxu0
        %4261 = vmatprep.mubr.bf16.mxu0 0
        %4262 = vmatmul.mubr.bf16.gmra.mrb[0].mxu0 %v4139
        %v4263 = vpop.f32.mrb[0].mxu0
        %v4264 = vadd.f32 0.0, %v4263
        %v4265 = vpop.f32.mrb[0].mxu0
        %v4266 = vpop.f32.mrb[0].mxu0
        %v4267 = vadd.f32 0.0, %v4266
        %v4268 = vpop.f32.mrb[0].mxu0
        %4269 = vmatprep.mubr.bf16.mxu0 0
        %4270 = vmatmul.mubr.bf16.gmra.mrb[0].mxu0 %v4142
        %v4271 = vpop.f32.mrb[0].mxu0
        %v4272 = vadd.f32 0.0, %v4271
        %v4273 = vpop.f32.mrb[0].mxu0
        %v4274 = vpop.f32.mrb[0].mxu0
        %v4275 = vadd.f32 0.0, %v4274
        %v4276 = vpop.f32.mrb[0].mxu0
        %4277 = vmatprep.mubr.bf16.mxu0 0
        %4278 = vmatmul.mubr.bf16.gmra.mrb[0].mxu0 %v4145
        %v4279 = vpop.f32.mrb[0].mxu0
        %v4280 = vadd.f32 0.0, %v4279
        %v4281 = vpop.f32.mrb[0].mxu0
        %v4282 = vpop.f32.mrb[0].mxu0
        %v4283 = vadd.f32 0.0, %v4282
        %v4284 = vpop.f32.mrb[0].mxu0
        %4285 = vmatprep.mubr.bf16.mxu0 0
        %4286 = vmatmul.mubr.bf16.gmra.mrb[0].mxu0 %v4148
        %v4287 = vpop.f32.mrb[0].mxu0
        %v4288 = vadd.f32 0.0, %v4287
        %v4289 = vpop.f32.mrb[0].mxu0
        %v4290 = vpop.f32.mrb[0].mxu0
        %v4291 = vadd.f32 0.0, %v4290
        %v4292 = vpop.f32.mrb[0].mxu0
        %4293 = vmatprep.mubr.bf16.mxu0 0
        %4294 = vmatmul.mubr.bf16.gmra.mrb[0].mxu0 %v4151
        %v4295 = vpop.f32.mrb[0].mxu0
        %v4296 = vadd.f32 0.0, %v4295
        %v4297 = vpop.f32.mrb[0].mxu0
        %v4298 = vpop.f32.mrb[0].mxu0
        %v4299 = vadd.f32 0.0, %v4298
        %v4300 = vpop.f32.mrb[0].mxu0
        %4301 = vmatprep.mubr.bf16.mxu0 0
        %4302 = vmatmul.mubr.bf16.gmra.mrb[0].mxu0 %v4154
        %v4303 = vpop.f32.mrb[0].mxu0
        %v4304 = vadd.f32 0.0, %v4303
        %v4305 = vpop.f32.mrb[0].mxu0
        %v4306 = vpop.f32.mrb[0].mxu0
        %v4307 = vadd.f32 0.0, %v4306
        %v4308 = vpop.f32.mrb[0].mxu0
        %4309 = vmatprep.mubr.bf16.mxu0 0
        %4310 = vmatmul.mubr.bf16.gmra.mrb[0].mxu0 %v4157
        %v4311 = vpop.f32.mrb[0].mxu0
        %v4312 = vadd.f32 0.0, %v4311
        %v4313 = vpop.f32.mrb[0].mxu0
        %v4314 = vpop.f32.mrb[0].mxu0
        %v4315 = vadd.f32 0.0, %v4314
        %v4316 = vpop.f32.mrb[0].mxu0
        %4317 = vmatprep.mubr.bf16.mxu0 0
        %4318 = vmatmul.mubr.bf16.gmra.mrb[0].mxu0 %v4160
        %v4319 = vpop.f32.mrb[0].mxu0
        %v4320 = vadd.f32 0.0, %v4319
        %v4321 = vpop.f32.mrb[0].mxu0
        %v4322 = vpop.f32.mrb[0].mxu0
        %v4323 = vadd.f32 0.0, %v4322
        %v4324 = vpop.f32.mrb[0].mxu0
        %4325 = vdwg.mxu0
        %v4326 = vadd.f32 %v4032, %v4200
        %v4327 = vadd.f32 %v4033, %v4203
        %v4328 = vadd.f32 %v4034, %v4208
        %v4329 = vadd.f32 %v4035, %v4211
        %v4330 = vadd.f32 %v4036, %v4216
        %v4331 = vadd.f32 %v4037, %v4219
        %v4332 = vadd.f32 %v4038, %v4224
        %v4333 = vadd.f32 %v4039, %v4227
        %v4334 = vadd.f32 %v4040, %v4232
        %v4335 = vadd.f32 %v4041, %v4235
        %v4336 = vadd.f32 %v4042, %v4240
        %v4337 = vadd.f32 %v4043, %v4243
        %v4338 = vadd.f32 %v4044, %v4248
        %v4339 = vadd.f32 %v4045, %v4251
        %v4340 = vadd.f32 %v4046, %v4256
        %v4341 = vadd.f32 %v4047, %v4259
        %v4342 = vadd.f32 %v4048, %v4264
        %v4343 = vadd.f32 %v4049, %v4267
        %v4344 = vadd.f32 %v4050, %v4272
        %v4345 = vadd.f32 %v4051, %v4275
        %v4346 = vadd.f32 %v4052, %v4280
        %v4347 = vadd.f32 %v4053, %v4283
        %v4348 = vadd.f32 %v4054, %v4288
        %v4349 = vadd.f32 %v4055, %v4291
        %v4350 = vadd.f32 %v4056, %v4296
        %v4351 = vadd.f32 %v4057, %v4299
        %v4352 = vadd.f32 %v4058, %v4304
        %v4353 = vadd.f32 %v4059, %v4307
        %v4354 = vadd.f32 %v4060, %v4312
        %v4355 = vadd.f32 %v4061, %v4315
        %v4356 = vadd.f32 %v4062, %v4320
        %v4357 = vadd.f32 %v4063, %v4323
        %s4358 = scalar_lea.vmem [#allocation9], 10
        %v4359 = vld [vmem:[%s4358] sm:$0x3]
        %v4360 = vunpack.c.l.b16 %v2201
        %v4361 = vunpack.c.l.b16 %v2204
        %v4362 = vunpack.c.l.b16 %v2208
        %v4363 = vunpack.c.l.b16 %v2211
        %v4364 = vunpack.c.l.b16 %v2215
        %v4365 = vunpack.c.l.b16 %v2218
        %v4366 = vunpack.c.l.b16 %v2222
        %v4367 = vunpack.c.l.b16 %v2225
        %v4368 = vunpack.c.l.b16 %v2229
        %v4369 = vunpack.c.l.b16 %v2232
        %v4370 = vunpack.c.l.b16 %v2236
        %v4371 = vunpack.c.l.b16 %v2239
        %v4372 = vunpack.c.l.b16 %v2243
        %v4373 = vunpack.c.l.b16 %v2246
        %v4374 = vunpack.c.l.b16 %v2250
        %v4375 = vunpack.c.l.b16 %v2253
        %v4376 = vunpack.c.l.b16 %v2257
        %v4377 = vunpack.c.l.b16 %v2260
        %v4378 = vunpack.c.l.b16 %v2264
        %v4379 = vunpack.c.l.b16 %v2267
        %v4380 = vunpack.c.l.b16 %v2271
        %v4381 = vunpack.c.l.b16 %v2274
        %v4382 = vunpack.c.l.b16 %v2278
        %v4383 = vunpack.c.l.b16 %v2281
        %v4384 = vunpack.c.l.b16 %v2285
        %v4385 = vunpack.c.l.b16 %v2288
        %v4386 = vunpack.c.l.b16 %v2292
        %v4387 = vunpack.c.l.b16 %v2295
        %v4388 = vunpack.c.l.b16 %v2299
        %v4389 = vunpack.c.l.b16 %v2302
        %v4390 = vunpack.c.l.b16 %v2306
        %v4391 = vunpack.c.l.b16 %v2309
        %v4392 = vpack.c.b16 %v4361, %v4360
        %v4393 = vpack.c.b16 %v4363, %v4362
        %v4394 = vpack.c.b16 %v4365, %v4364
        %v4395 = vpack.c.b16 %v4367, %v4366
        %v4396 = vpack.c.b16 %v4369, %v4368
        %v4397 = vpack.c.b16 %v4371, %v4370
        %v4398 = vpack.c.b16 %v4373, %v4372
        %v4399 = vpack.c.b16 %v4375, %v4374
        %v4400 = vpack.c.b16 %v4377, %v4376
        %v4401 = vpack.c.b16 %v4379, %v4378
        %v4402 = vpack.c.b16 %v4381, %v4380
        %v4403 = vpack.c.b16 %v4383, %v4382
        %v4404 = vpack.c.b16 %v4385, %v4384
        %v4405 = vpack.c.b16 %v4387, %v4386
        %v4406 = vpack.c.b16 %v4389, %v4388
        %v4407 = vpack.c.b16 %v4391, %v4390
        %v4409 = vsel %vm2970, %v4392, 0
        %v4412 = vsel %vm2970, %v4393, 0
        %v4415 = vsel %vm2970, %v4394, 0
        %v4418 = vsel %vm2970, %v4395, 0
        %v4421 = vsel %vm2970, %v4396, 0
        %v4424 = vsel %vm2970, %v4397, 0
        %v4427 = vsel %vm2970, %v4398, 0
        %v4430 = vsel %vm2970, %v4399, 0
        %v4433 = vsel %vm2970, %v4400, 0
        %v4436 = vsel %vm2970, %v4401, 0
        %v4439 = vsel %vm2970, %v4402, 0
        %v4442 = vsel %vm2970, %v4403, 0
        %v4445 = vsel %vm2970, %v4404, 0
        %v4448 = vsel %vm2970, %v4405, 0
        %v4451 = vsel %vm2970, %v4406, 0
        %v4454 = vsel %vm2970, %v4407, 0
        %v4457 = vsel %vm3019, %v4359, 0
        %4459 = vmatprep.subr.bf16.mxu0 0
        %4460 = vmatpush1.bf16.msra.mxu0 %v4457
        %4461 = vmatprep.subr.bf16.mxu0 0
        %4462 = vmatpush1.bf16.msra.mxu0 0
        %4463 = vmatprep.subr.bf16.mxu0 0
        %4464 = vmatpush1.bf16.msra.mxu0 0
        %4465 = vmatprep.subr.bf16.mxu0 0
        %4466 = vmatpush1.bf16.msra.mxu0 0
        %4467 = vmatprep.subr.bf16.mxu0 0
        %4468 = vmatpush1.bf16.msra.mxu0 0
        %4469 = vmatprep.subr.bf16.mxu0 0
        %4470 = vmatpush1.bf16.msra.mxu0 0
        %4471 = vmatprep.subr.bf16.mxu0 0
        %4472 = vmatpush1.bf16.msra.mxu0 0
        %4473 = vmatprep.subr.bf16.mxu0 0
        %4474 = vmatpush1.bf16.msra.mxu0 0
        %4475 = vmatprep.subr.bf16.mxu0 0
        %4476 = vmatpush1.bf16.msra.mxu0 0
        %4477 = vmatprep.subr.bf16.mxu0 0
        %4478 = vmatpush1.bf16.msra.mxu0 0
        %4479 = vmatprep.subr.bf16.mxu0 0
        %4480 = vmatpush1.bf16.msra.mxu0 0
        %4481 = vmatprep.subr.bf16.mxu0 0
        %4482 = vmatpush1.bf16.msra.mxu0 0
        %4483 = vmatprep.subr.bf16.mxu0 0
        %4484 = vmatpush1.bf16.msra.mxu0 0
        %4485 = vmatprep.subr.bf16.mxu0 0
        %4486 = vmatpush1.bf16.msra.mxu0 0
        %4487 = vmatprep.subr.bf16.mxu0 0
        %4488 = vmatpush1.bf16.msra.mxu0 0
        %4489 = vmatprep.subr.bf16.mxu0 0
        %4490 = vmatpush1.bf16.msra.mxu0 0
        %4491 = vmatprep.mubr.bf16.mxu0 0
        %4492 = vmatmul.mubr.bf16.gmra.mrb[0].mxu0 %v4409
        %v4493 = vpop.f32.mrb[0].mxu0
        %v4494 = vadd.f32 0.0, %v4493
        %v4495 = vpop.f32.mrb[0].mxu0
        %v4496 = vpop.f32.mrb[0].mxu0
        %v4497 = vadd.f32 0.0, %v4496
        %v4498 = vpop.f32.mrb[0].mxu0
        %4499 = vmatprep.mubr.bf16.mxu0 0
        %4500 = vmatmul.mubr.bf16.gmra.mrb[0].mxu0 %v4412
        %v4501 = vpop.f32.mrb[0].mxu0
        %v4502 = vadd.f32 0.0, %v4501
        %v4503 = vpop.f32.mrb[0].mxu0
        %v4504 = vpop.f32.mrb[0].mxu0
        %v4505 = vadd.f32 0.0, %v4504
        %v4506 = vpop.f32.mrb[0].mxu0
        %4507 = vmatprep.mubr.bf16.mxu0 0
        %4508 = vmatmul.mubr.bf16.gmra.mrb[0].mxu0 %v4415
        %v4509 = vpop.f32.mrb[0].mxu0
        %v4510 = vadd.f32 0.0, %v4509
        %v4511 = vpop.f32.mrb[0].mxu0
        %v4512 = vpop.f32.mrb[0].mxu0
        %v4513 = vadd.f32 0.0, %v4512
        %v4514 = vpop.f32.mrb[0].mxu0
        %4515 = vmatprep.mubr.bf16.mxu0 0
        %4516 = vmatmul.mubr.bf16.gmra.mrb[0].mxu0 %v4418
        %v4517 = vpop.f32.mrb[0].mxu0
        %v4518 = vadd.f32 0.0, %v4517
        %v4519 = vpop.f32.mrb[0].mxu0
        %v4520 = vpop.f32.mrb[0].mxu0
        %v4521 = vadd.f32 0.0, %v4520
        %v4522 = vpop.f32.mrb[0].mxu0
        %4523 = vmatprep.mubr.bf16.mxu0 0
        %4524 = vmatmul.mubr.bf16.gmra.mrb[0].mxu0 %v4421
        %v4525 = vpop.f32.mrb[0].mxu0
        %v4526 = vadd.f32 0.0, %v4525
        %v4527 = vpop.f32.mrb[0].mxu0
        %v4528 = vpop.f32.mrb[0].mxu0
        %v4529 = vadd.f32 0.0, %v4528
        %v4530 = vpop.f32.mrb[0].mxu0
        %4531 = vmatprep.mubr.bf16.mxu0 0
        %4532 = vmatmul.mubr.bf16.gmra.mrb[0].mxu0 %v4424
        %v4533 = vpop.f32.mrb[0].mxu0
        %v4534 = vadd.f32 0.0, %v4533
        %v4535 = vpop.f32.mrb[0].mxu0
        %v4536 = vpop.f32.mrb[0].mxu0
        %v4537 = vadd.f32 0.0, %v4536
        %v4538 = vpop.f32.mrb[0].mxu0
        %4539 = vmatprep.mubr.bf16.mxu0 0
        %4540 = vmatmul.mubr.bf16.gmra.mrb[0].mxu0 %v4427
        %v4541 = vpop.f32.mrb[0].mxu0
        %v4542 = vadd.f32 0.0, %v4541
        %v4543 = vpop.f32.mrb[0].mxu0
        %v4544 = vpop.f32.mrb[0].mxu0
        %v4545 = vadd.f32 0.0, %v4544
        %v4546 = vpop.f32.mrb[0].mxu0
        %4547 = vmatprep.mubr.bf16.mxu0 0
        %4548 = vmatmul.mubr.bf16.gmra.mrb[0].mxu0 %v4430
        %v4549 = vpop.f32.mrb[0].mxu0
        %v4550 = vadd.f32 0.0, %v4549
        %v4551 = vpop.f32.mrb[0].mxu0
        %v4552 = vpop.f32.mrb[0].mxu0
        %v4553 = vadd.f32 0.0, %v4552
        %v4554 = vpop.f32.mrb[0].mxu0
        %4555 = vmatprep.mubr.bf16.mxu0 0
        %4556 = vmatmul.mubr.bf16.gmra.mrb[0].mxu0 %v4433
        %v4557 = vpop.f32.mrb[0].mxu0
        %v4558 = vadd.f32 0.0, %v4557
        %v4559 = vpop.f32.mrb[0].mxu0
        %v4560 = vpop.f32.mrb[0].mxu0
        %v4561 = vadd.f32 0.0, %v4560
        %v4562 = vpop.f32.mrb[0].mxu0
        %4563 = vmatprep.mubr.bf16.mxu0 0
        %4564 = vmatmul.mubr.bf16.gmra.mrb[0].mxu0 %v4436
        %v4565 = vpop.f32.mrb[0].mxu0
        %v4566 = vadd.f32 0.0, %v4565
        %v4567 = vpop.f32.mrb[0].mxu0
        %v4568 = vpop.f32.mrb[0].mxu0
        %v4569 = vadd.f32 0.0, %v4568
        %v4570 = vpop.f32.mrb[0].mxu0
        %4571 = vmatprep.mubr.bf16.mxu0 0
        %4572 = vmatmul.mubr.bf16.gmra.mrb[0].mxu0 %v4439
        %v4573 = vpop.f32.mrb[0].mxu0
        %v4574 = vadd.f32 0.0, %v4573
        %v4575 = vpop.f32.mrb[0].mxu0
        %v4576 = vpop.f32.mrb[0].mxu0
        %v4577 = vadd.f32 0.0, %v4576
        %v4578 = vpop.f32.mrb[0].mxu0
        %4579 = vmatprep.mubr.bf16.mxu0 0
        %4580 = vmatmul.mubr.bf16.gmra.mrb[0].mxu0 %v4442
        %v4581 = vpop.f32.mrb[0].mxu0
        %v4582 = vadd.f32 0.0, %v4581
        %v4583 = vpop.f32.mrb[0].mxu0
        %v4584 = vpop.f32.mrb[0].mxu0
        %v4585 = vadd.f32 0.0, %v4584
        %v4586 = vpop.f32.mrb[0].mxu0
        %4587 = vmatprep.mubr.bf16.mxu0 0
        %4588 = vmatmul.mubr.bf16.gmra.mrb[0].mxu0 %v4445
        %v4589 = vpop.f32.mrb[0].mxu0
        %v4590 = vadd.f32 0.0, %v4589
        %v4591 = vpop.f32.mrb[0].mxu0
        %v4592 = vpop.f32.mrb[0].mxu0
        %v4593 = vadd.f32 0.0, %v4592
        %v4594 = vpop.f32.mrb[0].mxu0
        %4595 = vmatprep.mubr.bf16.mxu0 0
        %4596 = vmatmul.mubr.bf16.gmra.mrb[0].mxu0 %v4448
        %v4597 = vpop.f32.mrb[0].mxu0
        %v4598 = vadd.f32 0.0, %v4597
        %v4599 = vpop.f32.mrb[0].mxu0
        %v4600 = vpop.f32.mrb[0].mxu0
        %v4601 = vadd.f32 0.0, %v4600
        %v4602 = vpop.f32.mrb[0].mxu0
        %4603 = vmatprep.mubr.bf16.mxu0 0
        %4604 = vmatmul.mubr.bf16.gmra.mrb[0].mxu0 %v4451
        %v4605 = vpop.f32.mrb[0].mxu0
        %v4606 = vadd.f32 0.0, %v4605
        %v4607 = vpop.f32.mrb[0].mxu0
        %v4608 = vpop.f32.mrb[0].mxu0
        %v4609 = vadd.f32 0.0, %v4608
        %v4610 = vpop.f32.mrb[0].mxu0
        %4611 = vmatprep.mubr.bf16.mxu0 0
        %4612 = vmatmul.mubr.bf16.gmra.mrb[0].mxu0 %v4454
        %v4613 = vpop.f32.mrb[0].mxu0
        %v4614 = vadd.f32 0.0, %v4613
        %v4615 = vpop.f32.mrb[0].mxu0
        %v4616 = vpop.f32.mrb[0].mxu0
        %v4617 = vadd.f32 0.0, %v4616
        %v4618 = vpop.f32.mrb[0].mxu0
        %4619 = vdwg.mxu0
        %v4620 = vadd.f32 %v4326, %v4494
        %v4621 = vadd.f32 %v4327, %v4497
        %v4622 = vadd.f32 %v4328, %v4502
        %v4623 = vadd.f32 %v4329, %v4505
        %v4624 = vadd.f32 %v4330, %v4510
        %v4625 = vadd.f32 %v4331, %v4513
        %v4626 = vadd.f32 %v4332, %v4518
        %v4627 = vadd.f32 %v4333, %v4521
        %v4628 = vadd.f32 %v4334, %v4526
        %v4629 = vadd.f32 %v4335, %v4529
        %v4630 = vadd.f32 %v4336, %v4534
        %v4631 = vadd.f32 %v4337, %v4537
        %v4632 = vadd.f32 %v4338, %v4542
        %v4633 = vadd.f32 %v4339, %v4545
        %v4634 = vadd.f32 %v4340, %v4550
        %v4635 = vadd.f32 %v4341, %v4553
        %v4636 = vadd.f32 %v4342, %v4558
        %v4637 = vadd.f32 %v4343, %v4561
        %v4638 = vadd.f32 %v4344, %v4566
        %v4639 = vadd.f32 %v4345, %v4569
        %v4640 = vadd.f32 %v4346, %v4574
        %v4641 = vadd.f32 %v4347, %v4577
        %v4642 = vadd.f32 %v4348, %v4582
        %v4643 = vadd.f32 %v4349, %v4585
        %v4644 = vadd.f32 %v4350, %v4590
        %v4645 = vadd.f32 %v4351, %v4593
        %v4646 = vadd.f32 %v4352, %v4598
        %v4647 = vadd.f32 %v4353, %v4601
        %v4648 = vadd.f32 %v4354, %v4606
        %v4649 = vadd.f32 %v4355, %v4609
        %v4650 = vadd.f32 %v4356, %v4614
        %v4651 = vadd.f32 %v4357, %v4617
        %s4652 = scalar_lea.vmem [#allocation9], 12
        %v4653 = vld [vmem:[%s4652] sm:$0x3]
        %v4670 = vunpack.c.l.b16 %v2311
        %v4671 = vunpack.c.l.b16 %v2312
        %v4672 = vunpack.c.l.b16 %v2313
        %v4673 = vunpack.c.l.b16 %v2314
        %v4674 = vunpack.c.l.b16 %v2315
        %v4675 = vunpack.c.l.b16 %v2316
        %v4676 = vunpack.c.l.b16 %v2317
        %v4677 = vunpack.c.l.b16 %v2318
        %v4678 = vunpack.c.l.b16 %v2319
        %v4679 = vunpack.c.l.b16 %v2320
        %v4680 = vunpack.c.l.b16 %v2321
        %v4681 = vunpack.c.l.b16 %v2322
        %v4682 = vunpack.c.l.b16 %v2323
        %v4683 = vunpack.c.l.b16 %v2324
        %v4684 = vunpack.c.l.b16 %v2325
        %v4685 = vunpack.c.l.b16 %v2326
        %v4686 = vunpack.c.l.b16 %v2327
        %v4687 = vunpack.c.l.b16 %v2328
        %v4688 = vunpack.c.l.b16 %v2329
        %v4689 = vunpack.c.l.b16 %v2330
        %v4690 = vunpack.c.l.b16 %v2331
        %v4691 = vunpack.c.l.b16 %v2332
        %v4692 = vunpack.c.l.b16 %v2333
        %v4693 = vunpack.c.l.b16 %v2334
        %v4694 = vunpack.c.l.b16 %v2335
        %v4695 = vunpack.c.l.b16 %v2336
        %v4696 = vunpack.c.l.b16 %v2337
        %v4697 = vunpack.c.l.b16 %v2338
        %v4698 = vunpack.c.l.b16 %v2339
        %v4699 = vunpack.c.l.b16 %v2340
        %v4700 = vunpack.c.l.b16 %v2341
        %v4701 = vunpack.c.l.b16 %v2342
        %v4702 = vpack.c.b16 %v4671, %v4670
        %v4703 = vpack.c.b16 %v4673, %v4672
        %v4704 = vpack.c.b16 %v4675, %v4674
        %v4705 = vpack.c.b16 %v4677, %v4676
        %v4706 = vpack.c.b16 %v4679, %v4678
        %v4707 = vpack.c.b16 %v4681, %v4680
        %v4708 = vpack.c.b16 %v4683, %v4682
        %v4709 = vpack.c.b16 %v4685, %v4684
        %v4710 = vpack.c.b16 %v4687, %v4686
        %v4711 = vpack.c.b16 %v4689, %v4688
        %v4712 = vpack.c.b16 %v4691, %v4690
        %v4713 = vpack.c.b16 %v4693, %v4692
        %v4714 = vpack.c.b16 %v4695, %v4694
        %v4715 = vpack.c.b16 %v4697, %v4696
        %v4716 = vpack.c.b16 %v4699, %v4698
        %v4717 = vpack.c.b16 %v4701, %v4700
        %v4719 = vsel %vm2970, %v4702, 0
        %v4722 = vsel %vm2970, %v4703, 0
        %v4725 = vsel %vm2970, %v4704, 0
        %v4728 = vsel %vm2970, %v4705, 0
        %v4731 = vsel %vm2970, %v4706, 0
        %v4734 = vsel %vm2970, %v4707, 0
        %v4737 = vsel %vm2970, %v4708, 0
        %v4740 = vsel %vm2970, %v4709, 0
        %v4743 = vsel %vm2970, %v4710, 0
        %v4746 = vsel %vm2970, %v4711, 0
        %v4749 = vsel %vm2970, %v4712, 0
        %v4752 = vsel %vm2970, %v4713, 0
        %v4755 = vsel %vm2970, %v4714, 0
        %v4758 = vsel %vm2970, %v4715, 0
        %v4761 = vsel %vm2970, %v4716, 0
        %v4764 = vsel %vm2970, %v4717, 0
        %v4767 = vsel %vm3019, %v4653, 0
        %4769 = vmatprep.subr.bf16.mxu0 0
        %4770 = vmatpush1.bf16.msra.mxu0 %v4767
        %4771 = vmatprep.subr.bf16.mxu0 0
        %4772 = vmatpush1.bf16.msra.mxu0 0
        %4773 = vmatprep.subr.bf16.mxu0 0
        %4774 = vmatpush1.bf16.msra.mxu0 0
        %4775 = vmatprep.subr.bf16.mxu0 0
        %4776 = vmatpush1.bf16.msra.mxu0 0
        %4777 = vmatprep.subr.bf16.mxu0 0
        %4778 = vmatpush1.bf16.msra.mxu0 0
        %4779 = vmatprep.subr.bf16.mxu0 0
        %4780 = vmatpush1.bf16.msra.mxu0 0
        %4781 = vmatprep.subr.bf16.mxu0 0
        %4782 = vmatpush1.bf16.msra.mxu0 0
        %4783 = vmatprep.subr.bf16.mxu0 0
        %4784 = vmatpush1.bf16.msra.mxu0 0
        %4785 = vmatprep.subr.bf16.mxu0 0
        %4786 = vmatpush1.bf16.msra.mxu0 0
        %4787 = vmatprep.subr.bf16.mxu0 0
        %4788 = vmatpush1.bf16.msra.mxu0 0
        %4789 = vmatprep.subr.bf16.mxu0 0
        %4790 = vmatpush1.bf16.msra.mxu0 0
        %4791 = vmatprep.subr.bf16.mxu0 0
        %4792 = vmatpush1.bf16.msra.mxu0 0
        %4793 = vmatprep.subr.bf16.mxu0 0
        %4794 = vmatpush1.bf16.msra.mxu0 0
        %4795 = vmatprep.subr.bf16.mxu0 0
        %4796 = vmatpush1.bf16.msra.mxu0 0
        %4797 = vmatprep.subr.bf16.mxu0 0
        %4798 = vmatpush1.bf16.msra.mxu0 0
        %4799 = vmatprep.subr.bf16.mxu0 0
        %4800 = vmatpush1.bf16.msra.mxu0 0
        %4801 = vmatprep.mubr.bf16.mxu0 0
        %4802 = vmatmul.mubr.bf16.gmra.mrb[0].mxu0 %v4719
        %v4803 = vpop.f32.mrb[0].mxu0
        %v4804 = vadd.f32 0.0, %v4803
        %v4805 = vpop.f32.mrb[0].mxu0
        %v4806 = vpop.f32.mrb[0].mxu0
        %v4807 = vadd.f32 0.0, %v4806
        %v4808 = vpop.f32.mrb[0].mxu0
        %4809 = vmatprep.mubr.bf16.mxu0 0
        %4810 = vmatmul.mubr.bf16.gmra.mrb[0].mxu0 %v4722
        %v4811 = vpop.f32.mrb[0].mxu0
        %v4812 = vadd.f32 0.0, %v4811
        %v4813 = vpop.f32.mrb[0].mxu0
        %v4814 = vpop.f32.mrb[0].mxu0
        %v4815 = vadd.f32 0.0, %v4814
        %v4816 = vpop.f32.mrb[0].mxu0
        %4817 = vmatprep.mubr.bf16.mxu0 0
        %4818 = vmatmul.mubr.bf16.gmra.mrb[0].mxu0 %v4725
        %v4819 = vpop.f32.mrb[0].mxu0
        %v4820 = vadd.f32 0.0, %v4819
        %v4821 = vpop.f32.mrb[0].mxu0
        %v4822 = vpop.f32.mrb[0].mxu0
        %v4823 = vadd.f32 0.0, %v4822
        %v4824 = vpop.f32.mrb[0].mxu0
        %4825 = vmatprep.mubr.bf16.mxu0 0
        %4826 = vmatmul.mubr.bf16.gmra.mrb[0].mxu0 %v4728
        %v4827 = vpop.f32.mrb[0].mxu0
        %v4828 = vadd.f32 0.0, %v4827
        %v4829 = vpop.f32.mrb[0].mxu0
        %v4830 = vpop.f32.mrb[0].mxu0
        %v4831 = vadd.f32 0.0, %v4830
        %v4832 = vpop.f32.mrb[0].mxu0
        %4833 = vmatprep.mubr.bf16.mxu0 0
        %4834 = vmatmul.mubr.bf16.gmra.mrb[0].mxu0 %v4731
        %v4835 = vpop.f32.mrb[0].mxu0
        %v4836 = vadd.f32 0.0, %v4835
        %v4837 = vpop.f32.mrb[0].mxu0
        %v4838 = vpop.f32.mrb[0].mxu0
        %v4839 = vadd.f32 0.0, %v4838
        %v4840 = vpop.f32.mrb[0].mxu0
        %4841 = vmatprep.mubr.bf16.mxu0 0
        %4842 = vmatmul.mubr.bf16.gmra.mrb[0].mxu0 %v4734
        %v4843 = vpop.f32.mrb[0].mxu0
        %v4844 = vadd.f32 0.0, %v4843
        %v4845 = vpop.f32.mrb[0].mxu0
        %v4846 = vpop.f32.mrb[0].mxu0
        %v4847 = vadd.f32 0.0, %v4846
        %v4848 = vpop.f32.mrb[0].mxu0
        %4849 = vmatprep.mubr.bf16.mxu0 0
        %4850 = vmatmul.mubr.bf16.gmra.mrb[0].mxu0 %v4737
        %v4851 = vpop.f32.mrb[0].mxu0
        %v4852 = vadd.f32 0.0, %v4851
        %v4853 = vpop.f32.mrb[0].mxu0
        %v4854 = vpop.f32.mrb[0].mxu0
        %v4855 = vadd.f32 0.0, %v4854
        %v4856 = vpop.f32.mrb[0].mxu0
        %4857 = vmatprep.mubr.bf16.mxu0 0
        %4858 = vmatmul.mubr.bf16.gmra.mrb[0].mxu0 %v4740
        %v4859 = vpop.f32.mrb[0].mxu0
        %v4860 = vadd.f32 0.0, %v4859
        %v4861 = vpop.f32.mrb[0].mxu0
        %v4862 = vpop.f32.mrb[0].mxu0
        %v4863 = vadd.f32 0.0, %v4862
        %v4864 = vpop.f32.mrb[0].mxu0
        %4865 = vmatprep.mubr.bf16.mxu0 0
        %4866 = vmatmul.mubr.bf16.gmra.mrb[0].mxu0 %v4743
        %v4867 = vpop.f32.mrb[0].mxu0
        %v4868 = vadd.f32 0.0, %v4867
        %v4869 = vpop.f32.mrb[0].mxu0
        %v4870 = vpop.f32.mrb[0].mxu0
        %v4871 = vadd.f32 0.0, %v4870
        %v4872 = vpop.f32.mrb[0].mxu0
        %4873 = vmatprep.mubr.bf16.mxu0 0
        %4874 = vmatmul.mubr.bf16.gmra.mrb[0].mxu0 %v4746
        %v4875 = vpop.f32.mrb[0].mxu0
        %v4876 = vadd.f32 0.0, %v4875
        %v4877 = vpop.f32.mrb[0].mxu0
        %v4878 = vpop.f32.mrb[0].mxu0
        %v4879 = vadd.f32 0.0, %v4878
        %v4880 = vpop.f32.mrb[0].mxu0
        %4881 = vmatprep.mubr.bf16.mxu0 0
        %4882 = vmatmul.mubr.bf16.gmra.mrb[0].mxu0 %v4749
        %v4883 = vpop.f32.mrb[0].mxu0
        %v4884 = vadd.f32 0.0, %v4883
        %v4885 = vpop.f32.mrb[0].mxu0
        %v4886 = vpop.f32.mrb[0].mxu0
        %v4887 = vadd.f32 0.0, %v4886
        %v4888 = vpop.f32.mrb[0].mxu0
        %4889 = vmatprep.mubr.bf16.mxu0 0
        %4890 = vmatmul.mubr.bf16.gmra.mrb[0].mxu0 %v4752
        %v4891 = vpop.f32.mrb[0].mxu0
        %v4892 = vadd.f32 0.0, %v4891
        %v4893 = vpop.f32.mrb[0].mxu0
        %v4894 = vpop.f32.mrb[0].mxu0
        %v4895 = vadd.f32 0.0, %v4894
        %v4896 = vpop.f32.mrb[0].mxu0
        %4897 = vmatprep.mubr.bf16.mxu0 0
        %4898 = vmatmul.mubr.bf16.gmra.mrb[0].mxu0 %v4755
        %v4899 = vpop.f32.mrb[0].mxu0
        %v4900 = vadd.f32 0.0, %v4899
        %v4901 = vpop.f32.mrb[0].mxu0
        %v4902 = vpop.f32.mrb[0].mxu0
        %v4903 = vadd.f32 0.0, %v4902
        %v4904 = vpop.f32.mrb[0].mxu0
        %4905 = vmatprep.mubr.bf16.mxu0 0
        %4906 = vmatmul.mubr.bf16.gmra.mrb[0].mxu0 %v4758
        %v4907 = vpop.f32.mrb[0].mxu0
        %v4908 = vadd.f32 0.0, %v4907
        %v4909 = vpop.f32.mrb[0].mxu0
        %v4910 = vpop.f32.mrb[0].mxu0
        %v4911 = vadd.f32 0.0, %v4910
        %v4912 = vpop.f32.mrb[0].mxu0
        %4913 = vmatprep.mubr.bf16.mxu0 0
        %4914 = vmatmul.mubr.bf16.gmra.mrb[0].mxu0 %v4761
        %v4915 = vpop.f32.mrb[0].mxu0
        %v4916 = vadd.f32 0.0, %v4915
        %v4917 = vpop.f32.mrb[0].mxu0
        %v4918 = vpop.f32.mrb[0].mxu0
        %v4919 = vadd.f32 0.0, %v4918
        %v4920 = vpop.f32.mrb[0].mxu0
        %4921 = vmatprep.mubr.bf16.mxu0 0
        %4922 = vmatmul.mubr.bf16.gmra.mrb[0].mxu0 %v4764
        %v4923 = vpop.f32.mrb[0].mxu0
        %v4924 = vadd.f32 0.0, %v4923
        %v4925 = vpop.f32.mrb[0].mxu0
        %v4926 = vpop.f32.mrb[0].mxu0
        %v4927 = vadd.f32 0.0, %v4926
        %v4928 = vpop.f32.mrb[0].mxu0
        %4929 = vdwg.mxu0
        %v4930 = vadd.f32 %v4620, %v4804
        %v4931 = vadd.f32 %v4621, %v4807
        %v4932 = vadd.f32 %v4622, %v4812
        %v4933 = vadd.f32 %v4623, %v4815
        %v4934 = vadd.f32 %v4624, %v4820
        %v4935 = vadd.f32 %v4625, %v4823
        %v4936 = vadd.f32 %v4626, %v4828
        %v4937 = vadd.f32 %v4627, %v4831
        %v4938 = vadd.f32 %v4628, %v4836
        %v4939 = vadd.f32 %v4629, %v4839
        %v4940 = vadd.f32 %v4630, %v4844
        %v4941 = vadd.f32 %v4631, %v4847
        %v4942 = vadd.f32 %v4632, %v4852
        %v4943 = vadd.f32 %v4633, %v4855
        %v4944 = vadd.f32 %v4634, %v4860
        %v4945 = vadd.f32 %v4635, %v4863
        %v4946 = vadd.f32 %v4636, %v4868
        %v4947 = vadd.f32 %v4637, %v4871
        %v4948 = vadd.f32 %v4638, %v4876
        %v4949 = vadd.f32 %v4639, %v4879
        %v4950 = vadd.f32 %v4640, %v4884
        %v4951 = vadd.f32 %v4641, %v4887
        %v4952 = vadd.f32 %v4642, %v4892
        %v4953 = vadd.f32 %v4643, %v4895
        %v4954 = vadd.f32 %v4644, %v4900
        %v4955 = vadd.f32 %v4645, %v4903
        %v4956 = vadd.f32 %v4646, %v4908
        %v4957 = vadd.f32 %v4647, %v4911
        %v4958 = vadd.f32 %v4648, %v4916
        %v4959 = vadd.f32 %v4649, %v4919
        %v4960 = vadd.f32 %v4650, %v4924
        %v4961 = vadd.f32 %v4651, %v4927
        %s4962 = scalar_lea.vmem [#allocation9], 14
        %v4963 = vld [vmem:[%s4962] sm:$0x3]
        %v4964 = vunpack.c.l.b16 %v2372
        %v4965 = vunpack.c.l.b16 %v2382
        %v4966 = vunpack.c.l.b16 %v2396
        %v4967 = vunpack.c.l.b16 %v2406
        %v4968 = vunpack.c.l.b16 %v2420
        %v4969 = vunpack.c.l.b16 %v2430
        %v4970 = vunpack.c.l.b16 %v2444
        %v4971 = vunpack.c.l.b16 %v2454
        %v4972 = vunpack.c.l.b16 %v2468
        %v4973 = vunpack.c.l.b16 %v2478
        %v4974 = vunpack.c.l.b16 %v2492
        %v4975 = vunpack.c.l.b16 %v2502
        %v4976 = vunpack.c.l.b16 %v2516
        %v4977 = vunpack.c.l.b16 %v2526
        %v4978 = vunpack.c.l.b16 %v2540
        %v4979 = vunpack.c.l.b16 %v2550
        %v4980 = vunpack.c.l.b16 %v2564
        %v4981 = vunpack.c.l.b16 %v2574
        %v4982 = vunpack.c.l.b16 %v2588
        %v4983 = vunpack.c.l.b16 %v2598
        %v4984 = vunpack.c.l.b16 %v2612
        %v4985 = vunpack.c.l.b16 %v2622
        %v4986 = vunpack.c.l.b16 %v2636
        %v4987 = vunpack.c.l.b16 %v2646
        %v4988 = vunpack.c.l.b16 %v2660
        %v4989 = vunpack.c.l.b16 %v2670
        %v4990 = vunpack.c.l.b16 %v2684
        %v4991 = vunpack.c.l.b16 %v2694
        %v4992 = vunpack.c.l.b16 %v2708
        %v4993 = vunpack.c.l.b16 %v2718
        %v4994 = vunpack.c.l.b16 %v2732
        %v4995 = vunpack.c.l.b16 %v2742
        %v4996 = vpack.c.b16 %v4965, %v4964
        %v4997 = vpack.c.b16 %v4967, %v4966
        %v4998 = vpack.c.b16 %v4969, %v4968
        %v4999 = vpack.c.b16 %v4971, %v4970
        %v5000 = vpack.c.b16 %v4973, %v4972
        %v5001 = vpack.c.b16 %v4975, %v4974
        %v5002 = vpack.c.b16 %v4977, %v4976
        %v5003 = vpack.c.b16 %v4979, %v4978
        %v5004 = vpack.c.b16 %v4981, %v4980
        %v5005 = vpack.c.b16 %v4983, %v4982
        %v5006 = vpack.c.b16 %v4985, %v4984
        %v5007 = vpack.c.b16 %v4987, %v4986
        %v5008 = vpack.c.b16 %v4989, %v4988
        %v5009 = vpack.c.b16 %v4991, %v4990
        %v5010 = vpack.c.b16 %v4993, %v4992
        %v5011 = vpack.c.b16 %v4995, %v4994
        %v5013 = vsel %vm2970, %v4996, 0
        %v5016 = vsel %vm2970, %v4997, 0
        %v5019 = vsel %vm2970, %v4998, 0
        %v5022 = vsel %vm2970, %v4999, 0
        %v5025 = vsel %vm2970, %v5000, 0
        %v5028 = vsel %vm2970, %v5001, 0
        %v5031 = vsel %vm2970, %v5002, 0
        %v5034 = vsel %vm2970, %v5003, 0
        %v5037 = vsel %vm2970, %v5004, 0
        %v5040 = vsel %vm2970, %v5005, 0
        %v5043 = vsel %vm2970, %v5006, 0
        %v5046 = vsel %vm2970, %v5007, 0
        %v5049 = vsel %vm2970, %v5008, 0
        %v5052 = vsel %vm2970, %v5009, 0
        %v5055 = vsel %vm2970, %v5010, 0
        %v5058 = vsel %vm2970, %v5011, 0
        %v5061 = vsel %vm3019, %v4963, 0
        %5063 = vmatprep.subr.bf16.mxu0 0
        %5064 = vmatpush1.bf16.msra.mxu0 %v5061
        %5065 = vmatprep.subr.bf16.mxu0 0
        %5066 = vmatpush1.bf16.msra.mxu0 0
        %5067 = vmatprep.subr.bf16.mxu0 0
        %5068 = vmatpush1.bf16.msra.mxu0 0
        %5069 = vmatprep.subr.bf16.mxu0 0
        %5070 = vmatpush1.bf16.msra.mxu0 0
        %5071 = vmatprep.subr.bf16.mxu0 0
        %5072 = vmatpush1.bf16.msra.mxu0 0
        %5073 = vmatprep.subr.bf16.mxu0 0
        %5074 = vmatpush1.bf16.msra.mxu0 0
        %5075 = vmatprep.subr.bf16.mxu0 0
        %5076 = vmatpush1.bf16.msra.mxu0 0
        %5077 = vmatprep.subr.bf16.mxu0 0
        %5078 = vmatpush1.bf16.msra.mxu0 0
        %5079 = vmatprep.subr.bf16.mxu0 0
        %5080 = vmatpush1.bf16.msra.mxu0 0
        %5081 = vmatprep.subr.bf16.mxu0 0
        %5082 = vmatpush1.bf16.msra.mxu0 0
        %5083 = vmatprep.subr.bf16.mxu0 0
        %5084 = vmatpush1.bf16.msra.mxu0 0
        %5085 = vmatprep.subr.bf16.mxu0 0
        %5086 = vmatpush1.bf16.msra.mxu0 0
        %5087 = vmatprep.subr.bf16.mxu0 0
        %5088 = vmatpush1.bf16.msra.mxu0 0
        %5089 = vmatprep.subr.bf16.mxu0 0
        %5090 = vmatpush1.bf16.msra.mxu0 0
        %5091 = vmatprep.subr.bf16.mxu0 0
        %5092 = vmatpush1.bf16.msra.mxu0 0
        %5093 = vmatprep.subr.bf16.mxu0 0
        %5094 = vmatpush1.bf16.msra.mxu0 0
        %5095 = vmatprep.mubr.bf16.mxu0 0
        %5096 = vmatmul.mubr.bf16.gmra.mrb[0].mxu0 %v5013
        %v5097 = vpop.f32.mrb[0].mxu0
        %v5098 = vadd.f32 0.0, %v5097
        %v5099 = vpop.f32.mrb[0].mxu0
        %v5100 = vpop.f32.mrb[0].mxu0
        %v5101 = vadd.f32 0.0, %v5100
        %v5102 = vpop.f32.mrb[0].mxu0
        %5103 = vmatprep.mubr.bf16.mxu0 0
        %5104 = vmatmul.mubr.bf16.gmra.mrb[0].mxu0 %v5016
        %v5105 = vpop.f32.mrb[0].mxu0
        %v5106 = vadd.f32 0.0, %v5105
        %v5107 = vpop.f32.mrb[0].mxu0
        %v5108 = vpop.f32.mrb[0].mxu0
        %v5109 = vadd.f32 0.0, %v5108
        %v5110 = vpop.f32.mrb[0].mxu0
        %5111 = vmatprep.mubr.bf16.mxu0 0
        %5112 = vmatmul.mubr.bf16.gmra.mrb[0].mxu0 %v5019
        %v5113 = vpop.f32.mrb[0].mxu0
        %v5114 = vadd.f32 0.0, %v5113
        %v5115 = vpop.f32.mrb[0].mxu0
        %v5116 = vpop.f32.mrb[0].mxu0
        %v5117 = vadd.f32 0.0, %v5116
        %v5118 = vpop.f32.mrb[0].mxu0
        %5119 = vmatprep.mubr.bf16.mxu0 0
        %5120 = vmatmul.mubr.bf16.gmra.mrb[0].mxu0 %v5022
        %v5121 = vpop.f32.mrb[0].mxu0
        %v5122 = vadd.f32 0.0, %v5121
        %v5123 = vpop.f32.mrb[0].mxu0
        %v5124 = vpop.f32.mrb[0].mxu0
        %v5125 = vadd.f32 0.0, %v5124
        %v5126 = vpop.f32.mrb[0].mxu0
        %5127 = vmatprep.mubr.bf16.mxu0 0
        %5128 = vmatmul.mubr.bf16.gmra.mrb[0].mxu0 %v5025
        %v5129 = vpop.f32.mrb[0].mxu0
        %v5130 = vadd.f32 0.0, %v5129
        %v5131 = vpop.f32.mrb[0].mxu0
        %v5132 = vpop.f32.mrb[0].mxu0
        %v5133 = vadd.f32 0.0, %v5132
        %v5134 = vpop.f32.mrb[0].mxu0
        %5135 = vmatprep.mubr.bf16.mxu0 0
        %5136 = vmatmul.mubr.bf16.gmra.mrb[0].mxu0 %v5028
        %v5137 = vpop.f32.mrb[0].mxu0
        %v5138 = vadd.f32 0.0, %v5137
        %v5139 = vpop.f32.mrb[0].mxu0
        %v5140 = vpop.f32.mrb[0].mxu0
        %v5141 = vadd.f32 0.0, %v5140
        %v5142 = vpop.f32.mrb[0].mxu0
        %5143 = vmatprep.mubr.bf16.mxu0 0
        %5144 = vmatmul.mubr.bf16.gmra.mrb[0].mxu0 %v5031
        %v5145 = vpop.f32.mrb[0].mxu0
        %v5146 = vadd.f32 0.0, %v5145
        %v5147 = vpop.f32.mrb[0].mxu0
        %v5148 = vpop.f32.mrb[0].mxu0
        %v5149 = vadd.f32 0.0, %v5148
        %v5150 = vpop.f32.mrb[0].mxu0
        %5151 = vmatprep.mubr.bf16.mxu0 0
        %5152 = vmatmul.mubr.bf16.gmra.mrb[0].mxu0 %v5034
        %v5153 = vpop.f32.mrb[0].mxu0
        %v5154 = vadd.f32 0.0, %v5153
        %v5155 = vpop.f32.mrb[0].mxu0
        %v5156 = vpop.f32.mrb[0].mxu0
        %v5157 = vadd.f32 0.0, %v5156
        %v5158 = vpop.f32.mrb[0].mxu0
        %5159 = vmatprep.mubr.bf16.mxu0 0
        %5160 = vmatmul.mubr.bf16.gmra.mrb[0].mxu0 %v5037
        %v5161 = vpop.f32.mrb[0].mxu0
        %v5162 = vadd.f32 0.0, %v5161
        %v5163 = vpop.f32.mrb[0].mxu0
        %v5164 = vpop.f32.mrb[0].mxu0
        %v5165 = vadd.f32 0.0, %v5164
        %v5166 = vpop.f32.mrb[0].mxu0
        %5167 = vmatprep.mubr.bf16.mxu0 0
        %5168 = vmatmul.mubr.bf16.gmra.mrb[0].mxu0 %v5040
        %v5169 = vpop.f32.mrb[0].mxu0
        %v5170 = vadd.f32 0.0, %v5169
        %v5171 = vpop.f32.mrb[0].mxu0
        %v5172 = vpop.f32.mrb[0].mxu0
        %v5173 = vadd.f32 0.0, %v5172
        %v5174 = vpop.f32.mrb[0].mxu0
        %5175 = vmatprep.mubr.bf16.mxu0 0
        %5176 = vmatmul.mubr.bf16.gmra.mrb[0].mxu0 %v5043
        %v5177 = vpop.f32.mrb[0].mxu0
        %v5178 = vadd.f32 0.0, %v5177
        %v5179 = vpop.f32.mrb[0].mxu0
        %v5180 = vpop.f32.mrb[0].mxu0
        %v5181 = vadd.f32 0.0, %v5180
        %v5182 = vpop.f32.mrb[0].mxu0
        %5183 = vmatprep.mubr.bf16.mxu0 0
        %5184 = vmatmul.mubr.bf16.gmra.mrb[0].mxu0 %v5046
        %v5185 = vpop.f32.mrb[0].mxu0
        %v5186 = vadd.f32 0.0, %v5185
        %v5187 = vpop.f32.mrb[0].mxu0
        %v5188 = vpop.f32.mrb[0].mxu0
        %v5189 = vadd.f32 0.0, %v5188
        %v5190 = vpop.f32.mrb[0].mxu0
        %5191 = vmatprep.mubr.bf16.mxu0 0
        %5192 = vmatmul.mubr.bf16.gmra.mrb[0].mxu0 %v5049
        %v5193 = vpop.f32.mrb[0].mxu0
        %v5194 = vadd.f32 0.0, %v5193
        %v5195 = vpop.f32.mrb[0].mxu0
        %v5196 = vpop.f32.mrb[0].mxu0
        %v5197 = vadd.f32 0.0, %v5196
        %v5198 = vpop.f32.mrb[0].mxu0
        %5199 = vmatprep.mubr.bf16.mxu0 0
        %5200 = vmatmul.mubr.bf16.gmra.mrb[0].mxu0 %v5052
        %v5201 = vpop.f32.mrb[0].mxu0
        %v5202 = vadd.f32 0.0, %v5201
        %v5203 = vpop.f32.mrb[0].mxu0
        %v5204 = vpop.f32.mrb[0].mxu0
        %v5205 = vadd.f32 0.0, %v5204
        %v5206 = vpop.f32.mrb[0].mxu0
        %5207 = vmatprep.mubr.bf16.mxu0 0
        %5208 = vmatmul.mubr.bf16.gmra.mrb[0].mxu0 %v5055
        %v5209 = vpop.f32.mrb[0].mxu0
        %v5210 = vadd.f32 0.0, %v5209
        %v5211 = vpop.f32.mrb[0].mxu0
        %v5212 = vpop.f32.mrb[0].mxu0
        %v5213 = vadd.f32 0.0, %v5212
        %v5214 = vpop.f32.mrb[0].mxu0
        %5215 = vmatprep.mubr.bf16.mxu0 0
        %5216 = vmatmul.mubr.bf16.gmra.mrb[0].mxu0 %v5058
        %v5217 = vpop.f32.mrb[0].mxu0
        %v5218 = vadd.f32 0.0, %v5217
        %v5219 = vpop.f32.mrb[0].mxu0
        %v5220 = vpop.f32.mrb[0].mxu0
        %v5221 = vadd.f32 0.0, %v5220
        %v5222 = vpop.f32.mrb[0].mxu0
        %5223 = vdwg.mxu0
        %v5224 = vadd.f32 %v4930, %v5098
        %v5225 = vadd.f32 %v4931, %v5101
        %v5226 = vadd.f32 %v4932, %v5106
        %v5227 = vadd.f32 %v4933, %v5109
        %v5228 = vadd.f32 %v4934, %v5114
        %v5229 = vadd.f32 %v4935, %v5117
        %v5230 = vadd.f32 %v4936, %v5122
        %v5231 = vadd.f32 %v4937, %v5125
        %v5232 = vadd.f32 %v4938, %v5130
        %v5233 = vadd.f32 %v4939, %v5133
        %v5234 = vadd.f32 %v4940, %v5138
        %v5235 = vadd.f32 %v4941, %v5141
        %v5236 = vadd.f32 %v4942, %v5146
        %v5237 = vadd.f32 %v4943, %v5149
        %v5238 = vadd.f32 %v4944, %v5154
        %v5239 = vadd.f32 %v4945, %v5157
        %v5240 = vadd.f32 %v4946, %v5162
        %v5241 = vadd.f32 %v4947, %v5165
        %v5242 = vadd.f32 %v4948, %v5170
        %v5243 = vadd.f32 %v4949, %v5173
        %v5244 = vadd.f32 %v4950, %v5178
        %v5245 = vadd.f32 %v4951, %v5181
        %v5246 = vadd.f32 %v4952, %v5186
        %v5247 = vadd.f32 %v4953, %v5189
        %v5248 = vadd.f32 %v4954, %v5194
        %v5249 = vadd.f32 %v4955, %v5197
        %v5250 = vadd.f32 %v4956, %v5202
        %v5251 = vadd.f32 %v4957, %v5205
        %v5252 = vadd.f32 %v4958, %v5210
        %v5253 = vadd.f32 %v4959, %v5213
        %v5254 = vadd.f32 %v4960, %v5218
        %v5255 = vadd.f32 %v4961, %v5221
        %s5256 = scalar_lea.vmem [#allocation9], 16
        %v5257 = vld [vmem:[%s5256] sm:$0x3]
        %v5258 = vunpack.c.l.b16 %v2810
        %v5259 = vunpack.c.l.b16 %v2813
        %v5260 = vunpack.c.l.b16 %v2817
        %v5261 = vunpack.c.l.b16 %v2820
        %v5262 = vunpack.c.l.b16 %v2824
        %v5263 = vunpack.c.l.b16 %v2827
        %v5264 = vunpack.c.l.b16 %v2831
        %v5265 = vunpack.c.l.b16 %v2834
        %v5266 = vunpack.c.l.b16 %v2838
        %v5267 = vunpack.c.l.b16 %v2841
        %v5268 = vunpack.c.l.b16 %v2845
        %v5269 = vunpack.c.l.b16 %v2848
        %v5270 = vunpack.c.l.b16 %v2852
        %v5271 = vunpack.c.l.b16 %v2855
        %v5272 = vunpack.c.l.b16 %v2859
        %v5273 = vunpack.c.l.b16 %v2862
        %v5274 = vunpack.c.l.b16 %v2866
        %v5275 = vunpack.c.l.b16 %v2869
        %v5276 = vunpack.c.l.b16 %v2873
        %v5277 = vunpack.c.l.b16 %v2876
        %v5278 = vunpack.c.l.b16 %v2880
        %v5279 = vunpack.c.l.b16 %v2883
        %v5280 = vunpack.c.l.b16 %v2887
        %v5281 = vunpack.c.l.b16 %v2890
        %v5282 = vunpack.c.l.b16 %v2894
        %v5283 = vunpack.c.l.b16 %v2897
        %v5284 = vunpack.c.l.b16 %v2901
        %v5285 = vunpack.c.l.b16 %v2904
        %v5286 = vunpack.c.l.b16 %v2908
        %v5287 = vunpack.c.l.b16 %v2911
        %v5288 = vunpack.c.l.b16 %v2915
        %v5289 = vunpack.c.l.b16 %v2918
        %v5290 = vpack.c.b16 %v5259, %v5258
        %v5291 = vpack.c.b16 %v5261, %v5260
        %v5292 = vpack.c.b16 %v5263, %v5262
        %v5293 = vpack.c.b16 %v5265, %v5264
        %v5294 = vpack.c.b16 %v5267, %v5266
        %v5295 = vpack.c.b16 %v5269, %v5268
        %v5296 = vpack.c.b16 %v5271, %v5270
        %v5297 = vpack.c.b16 %v5273, %v5272
        %v5298 = vpack.c.b16 %v5275, %v5274
        %v5299 = vpack.c.b16 %v5277, %v5276
        %v5300 = vpack.c.b16 %v5279, %v5278
        %v5301 = vpack.c.b16 %v5281, %v5280
        %v5302 = vpack.c.b16 %v5283, %v5282
        %v5303 = vpack.c.b16 %v5285, %v5284
        %v5304 = vpack.c.b16 %v5287, %v5286
        %v5305 = vpack.c.b16 %v5289, %v5288
        %v5307 = vsel %vm2970, %v5290, 0
        %v5310 = vsel %vm2970, %v5291, 0
        %v5313 = vsel %vm2970, %v5292, 0
        %v5316 = vsel %vm2970, %v5293, 0
        %v5319 = vsel %vm2970, %v5294, 0
        %v5322 = vsel %vm2970, %v5295, 0
        %v5325 = vsel %vm2970, %v5296, 0
        %v5328 = vsel %vm2970, %v5297, 0
        %v5331 = vsel %vm2970, %v5298, 0
        %v5334 = vsel %vm2970, %v5299, 0
        %v5337 = vsel %vm2970, %v5300, 0
        %v5340 = vsel %vm2970, %v5301, 0
        %v5343 = vsel %vm2970, %v5302, 0
        %v5346 = vsel %vm2970, %v5303, 0
        %v5349 = vsel %vm2970, %v5304, 0
        %v5352 = vsel %vm2970, %v5305, 0
        %v5355 = vsel %vm3019, %v5257, 0
        %5357 = vmatprep.subr.bf16.mxu0 0
        %5358 = vmatpush1.bf16.msra.mxu0 %v5355
        %5359 = vmatprep.subr.bf16.mxu0 0
        %5360 = vmatpush1.bf16.msra.mxu0 0
        %5361 = vmatprep.subr.bf16.mxu0 0
        %5362 = vmatpush1.bf16.msra.mxu0 0
        %5363 = vmatprep.subr.bf16.mxu0 0
        %5364 = vmatpush1.bf16.msra.mxu0 0
        %5365 = vmatprep.subr.bf16.mxu0 0
        %5366 = vmatpush1.bf16.msra.mxu0 0
        %5367 = vmatprep.subr.bf16.mxu0 0
        %5368 = vmatpush1.bf16.msra.mxu0 0
        %5369 = vmatprep.subr.bf16.mxu0 0
        %5370 = vmatpush1.bf16.msra.mxu0 0
        %5371 = vmatprep.subr.bf16.mxu0 0
        %5372 = vmatpush1.bf16.msra.mxu0 0
        %5373 = vmatprep.subr.bf16.mxu0 0
        %5374 = vmatpush1.bf16.msra.mxu0 0
        %5375 = vmatprep.subr.bf16.mxu0 0
        %5376 = vmatpush1.bf16.msra.mxu0 0
        %5377 = vmatprep.subr.bf16.mxu0 0
        %5378 = vmatpush1.bf16.msra.mxu0 0
        %5379 = vmatprep.subr.bf16.mxu0 0
        %5380 = vmatpush1.bf16.msra.mxu0 0
        %5381 = vmatprep.subr.bf16.mxu0 0
        %5382 = vmatpush1.bf16.msra.mxu0 0
        %5383 = vmatprep.subr.bf16.mxu0 0
        %5384 = vmatpush1.bf16.msra.mxu0 0
        %5385 = vmatprep.subr.bf16.mxu0 0
        %5386 = vmatpush1.bf16.msra.mxu0 0
        %5387 = vmatprep.subr.bf16.mxu0 0
        %5388 = vmatpush1.bf16.msra.mxu0 0
        %5389 = vmatprep.mubr.bf16.mxu0 0
        %5390 = vmatmul.mubr.bf16.gmra.mrb[0].mxu0 %v5307
        %v5391 = vpop.f32.mrb[0].mxu0
        %v5392 = vadd.f32 0.0, %v5391
        %v5393 = vpop.f32.mrb[0].mxu0
        %v5394 = vpop.f32.mrb[0].mxu0
        %v5395 = vadd.f32 0.0, %v5394
        %v5396 = vpop.f32.mrb[0].mxu0
        %5397 = vmatprep.mubr.bf16.mxu0 0
        %5398 = vmatmul.mubr.bf16.gmra.mrb[0].mxu0 %v5310
        %v5399 = vpop.f32.mrb[0].mxu0
        %v5400 = vadd.f32 0.0, %v5399
        %v5401 = vpop.f32.mrb[0].mxu0
        %v5402 = vpop.f32.mrb[0].mxu0
        %v5403 = vadd.f32 0.0, %v5402
        %v5404 = vpop.f32.mrb[0].mxu0
        %5405 = vmatprep.mubr.bf16.mxu0 0
        %5406 = vmatmul.mubr.bf16.gmra.mrb[0].mxu0 %v5313
        %v5407 = vpop.f32.mrb[0].mxu0
        %v5408 = vadd.f32 0.0, %v5407
        %v5409 = vpop.f32.mrb[0].mxu0
        %v5410 = vpop.f32.mrb[0].mxu0
        %v5411 = vadd.f32 0.0, %v5410
        %v5412 = vpop.f32.mrb[0].mxu0
        %5413 = vmatprep.mubr.bf16.mxu0 0
        %5414 = vmatmul.mubr.bf16.gmra.mrb[0].mxu0 %v5316
        %v5415 = vpop.f32.mrb[0].mxu0
        %v5416 = vadd.f32 0.0, %v5415
        %v5417 = vpop.f32.mrb[0].mxu0
        %v5418 = vpop.f32.mrb[0].mxu0
        %v5419 = vadd.f32 0.0, %v5418
        %v5420 = vpop.f32.mrb[0].mxu0
        %5421 = vmatprep.mubr.bf16.mxu0 0
        %5422 = vmatmul.mubr.bf16.gmra.mrb[0].mxu0 %v5319
        %v5423 = vpop.f32.mrb[0].mxu0
        %v5424 = vadd.f32 0.0, %v5423
        %v5425 = vpop.f32.mrb[0].mxu0
        %v5426 = vpop.f32.mrb[0].mxu0
        %v5427 = vadd.f32 0.0, %v5426
        %v5428 = vpop.f32.mrb[0].mxu0
        %5429 = vmatprep.mubr.bf16.mxu0 0
        %5430 = vmatmul.mubr.bf16.gmra.mrb[0].mxu0 %v5322
        %v5431 = vpop.f32.mrb[0].mxu0
        %v5432 = vadd.f32 0.0, %v5431
        %v5433 = vpop.f32.mrb[0].mxu0
        %v5434 = vpop.f32.mrb[0].mxu0
        %v5435 = vadd.f32 0.0, %v5434
        %v5436 = vpop.f32.mrb[0].mxu0
        %5437 = vmatprep.mubr.bf16.mxu0 0
        %5438 = vmatmul.mubr.bf16.gmra.mrb[0].mxu0 %v5325
        %v5439 = vpop.f32.mrb[0].mxu0
        %v5440 = vadd.f32 0.0, %v5439
        %v5441 = vpop.f32.mrb[0].mxu0
        %v5442 = vpop.f32.mrb[0].mxu0
        %v5443 = vadd.f32 0.0, %v5442
        %v5444 = vpop.f32.mrb[0].mxu0
        %5445 = vmatprep.mubr.bf16.mxu0 0
        %5446 = vmatmul.mubr.bf16.gmra.mrb[0].mxu0 %v5328
        %v5447 = vpop.f32.mrb[0].mxu0
        %v5448 = vadd.f32 0.0, %v5447
        %v5449 = vpop.f32.mrb[0].mxu0
        %v5450 = vpop.f32.mrb[0].mxu0
        %v5451 = vadd.f32 0.0, %v5450
        %v5452 = vpop.f32.mrb[0].mxu0
        %5453 = vmatprep.mubr.bf16.mxu0 0
        %5454 = vmatmul.mubr.bf16.gmra.mrb[0].mxu0 %v5331
        %v5455 = vpop.f32.mrb[0].mxu0
        %v5456 = vadd.f32 0.0, %v5455
        %v5457 = vpop.f32.mrb[0].mxu0
        %v5458 = vpop.f32.mrb[0].mxu0
        %v5459 = vadd.f32 0.0, %v5458
        %v5460 = vpop.f32.mrb[0].mxu0
        %5461 = vmatprep.mubr.bf16.mxu0 0
        %5462 = vmatmul.mubr.bf16.gmra.mrb[0].mxu0 %v5334
        %v5463 = vpop.f32.mrb[0].mxu0
        %v5464 = vadd.f32 0.0, %v5463
        %v5465 = vpop.f32.mrb[0].mxu0
        %v5466 = vpop.f32.mrb[0].mxu0
        %v5467 = vadd.f32 0.0, %v5466
        %v5468 = vpop.f32.mrb[0].mxu0
        %5469 = vmatprep.mubr.bf16.mxu0 0
        %5470 = vmatmul.mubr.bf16.gmra.mrb[0].mxu0 %v5337
        %v5471 = vpop.f32.mrb[0].mxu0
        %v5472 = vadd.f32 0.0, %v5471
        %v5473 = vpop.f32.mrb[0].mxu0
        %v5474 = vpop.f32.mrb[0].mxu0
        %v5475 = vadd.f32 0.0, %v5474
        %v5476 = vpop.f32.mrb[0].mxu0
        %5477 = vmatprep.mubr.bf16.mxu0 0
        %5478 = vmatmul.mubr.bf16.gmra.mrb[0].mxu0 %v5340
        %v5479 = vpop.f32.mrb[0].mxu0
        %v5480 = vadd.f32 0.0, %v5479
        %v5481 = vpop.f32.mrb[0].mxu0
        %v5482 = vpop.f32.mrb[0].mxu0
        %v5483 = vadd.f32 0.0, %v5482
        %v5484 = vpop.f32.mrb[0].mxu0
        %5485 = vmatprep.mubr.bf16.mxu0 0
        %5486 = vmatmul.mubr.bf16.gmra.mrb[0].mxu0 %v5343
        %v5487 = vpop.f32.mrb[0].mxu0
        %v5488 = vadd.f32 0.0, %v5487
        %v5489 = vpop.f32.mrb[0].mxu0
        %v5490 = vpop.f32.mrb[0].mxu0
        %v5491 = vadd.f32 0.0, %v5490
        %v5492 = vpop.f32.mrb[0].mxu0
        %5493 = vmatprep.mubr.bf16.mxu0 0
        %5494 = vmatmul.mubr.bf16.gmra.mrb[0].mxu0 %v5346
        %v5495 = vpop.f32.mrb[0].mxu0
        %v5496 = vadd.f32 0.0, %v5495
        %v5497 = vpop.f32.mrb[0].mxu0
        %v5498 = vpop.f32.mrb[0].mxu0
        %v5499 = vadd.f32 0.0, %v5498
        %v5500 = vpop.f32.mrb[0].mxu0
        %5501 = vmatprep.mubr.bf16.mxu0 0
        %5502 = vmatmul.mubr.bf16.gmra.mrb[0].mxu0 %v5349
        %v5503 = vpop.f32.mrb[0].mxu0
        %v5504 = vadd.f32 0.0, %v5503
        %v5505 = vpop.f32.mrb[0].mxu0
        %v5506 = vpop.f32.mrb[0].mxu0
        %v5507 = vadd.f32 0.0, %v5506
        %v5508 = vpop.f32.mrb[0].mxu0
        %5509 = vmatprep.mubr.bf16.mxu0 0
        %5510 = vmatmul.mubr.bf16.gmra.mrb[0].mxu0 %v5352
        %v5511 = vpop.f32.mrb[0].mxu0
        %v5512 = vadd.f32 0.0, %v5511
        %v5513 = vpop.f32.mrb[0].mxu0
        %v5514 = vpop.f32.mrb[0].mxu0
        %v5515 = vadd.f32 0.0, %v5514
        %v5516 = vpop.f32.mrb[0].mxu0
        %5517 = vdwg.mxu0
        %v5518 = vadd.f32 %v5224, %v5392
        %v5519 = vadd.f32 %v5225, %v5395
        %v5520 = vadd.f32 %v5226, %v5400
        %v5521 = vadd.f32 %v5227, %v5403
        %v5522 = vadd.f32 %v5228, %v5408
        %v5523 = vadd.f32 %v5229, %v5411
        %v5524 = vadd.f32 %v5230, %v5416
        %v5525 = vadd.f32 %v5231, %v5419
        %v5526 = vadd.f32 %v5232, %v5424
        %v5527 = vadd.f32 %v5233, %v5427
        %v5528 = vadd.f32 %v5234, %v5432
        %v5529 = vadd.f32 %v5235, %v5435
        %v5530 = vadd.f32 %v5236, %v5440
        %v5531 = vadd.f32 %v5237, %v5443
        %v5532 = vadd.f32 %v5238, %v5448
        %v5533 = vadd.f32 %v5239, %v5451
        %v5534 = vadd.f32 %v5240, %v5456
        %v5535 = vadd.f32 %v5241, %v5459
        %v5536 = vadd.f32 %v5242, %v5464
        %v5537 = vadd.f32 %v5243, %v5467
        %v5538 = vadd.f32 %v5244, %v5472
        %v5539 = vadd.f32 %v5245, %v5475
        %v5540 = vadd.f32 %v5246, %v5480
        %v5541 = vadd.f32 %v5247, %v5483
        %v5542 = vadd.f32 %v5248, %v5488
        %v5543 = vadd.f32 %v5249, %v5491
        %v5544 = vadd.f32 %v5250, %v5496
        %v5545 = vadd.f32 %v5251, %v5499
        %v5546 = vadd.f32 %v5252, %v5504
        %v5547 = vadd.f32 %v5253, %v5507
        %v5548 = vadd.f32 %v5254, %v5512
        %v5549 = vadd.f32 %v5255, %v5515
        %v5550 = vpack.c.bf16 %v5519, %v5518
        %v5551 = vpack.c.bf16 %v5521, %v5520
        %v5552 = vpack.c.bf16 %v5523, %v5522
        %v5553 = vpack.c.bf16 %v5525, %v5524
        %v5554 = vpack.c.bf16 %v5527, %v5526
        %v5555 = vpack.c.bf16 %v5529, %v5528
        %v5556 = vpack.c.bf16 %v5531, %v5530
        %v5557 = vpack.c.bf16 %v5533, %v5532
        %v5558 = vpack.c.bf16 %v5535, %v5534
        %v5559 = vpack.c.bf16 %v5537, %v5536
        %v5560 = vpack.c.bf16 %v5539, %v5538
        %v5561 = vpack.c.bf16 %v5541, %v5540
        %v5562 = vpack.c.bf16 %v5543, %v5542
        %v5563 = vpack.c.bf16 %v5545, %v5544
        %v5564 = vpack.c.bf16 %v5547, %v5546
        %v5565 = vpack.c.bf16 %v5549, %v5548
        %v5582 = vunpack.c.l.b16 %v5550
        %v5583 = vunpack.c.h.b16 %v5550
        %v5584 = vunpack.c.l.b16 %v5551
        %v5585 = vunpack.c.h.b16 %v5551
        %v5586 = vunpack.c.l.b16 %v5552
        %v5587 = vunpack.c.h.b16 %v5552
        %v5588 = vunpack.c.l.b16 %v5553
        %v5589 = vunpack.c.h.b16 %v5553
        %v5590 = vunpack.c.l.b16 %v5554
        %v5591 = vunpack.c.h.b16 %v5554
        %v5592 = vunpack.c.l.b16 %v5555
        %v5593 = vunpack.c.h.b16 %v5555
        %v5594 = vunpack.c.l.b16 %v5556
        %v5595 = vunpack.c.h.b16 %v5556
        %v5596 = vunpack.c.l.b16 %v5557
        %v5597 = vunpack.c.h.b16 %v5557
        %v5598 = vunpack.c.l.b16 %v5558
        %v5599 = vunpack.c.h.b16 %v5558
        %v5600 = vunpack.c.l.b16 %v5559
        %v5601 = vunpack.c.h.b16 %v5559
        %v5602 = vunpack.c.l.b16 %v5560
        %v5603 = vunpack.c.h.b16 %v5560
        %v5604 = vunpack.c.l.b16 %v5561
        %v5605 = vunpack.c.h.b16 %v5561
        %v5606 = vunpack.c.l.b16 %v5562
        %v5607 = vunpack.c.h.b16 %v5562
        %v5608 = vunpack.c.l.b16 %v5563
        %v5609 = vunpack.c.h.b16 %v5563
        %v5610 = vunpack.c.l.b16 %v5564
        %v5611 = vunpack.c.h.b16 %v5564
        %v5612 = vunpack.c.l.b16 %v5565
        %v5613 = vunpack.c.h.b16 %v5565
        %v5614 = vpack.c.b16 %v5582, %v5582
        %v5615 = vpack.c.b16 %v5583, %v5583
        %v5616 = vpack.c.b16 %v5584, %v5584
        %v5617 = vpack.c.b16 %v5585, %v5585
        %v5618 = vpack.c.b16 %v5586, %v5586
        %v5619 = vpack.c.b16 %v5587, %v5587
        %v5620 = vpack.c.b16 %v5588, %v5588
        %v5621 = vpack.c.b16 %v5589, %v5589
        %v5622 = vpack.c.b16 %v5590, %v5590
        %v5623 = vpack.c.b16 %v5591, %v5591
        %v5624 = vpack.c.b16 %v5592, %v5592
        %v5625 = vpack.c.b16 %v5593, %v5593
        %v5626 = vpack.c.b16 %v5594, %v5594
        %v5627 = vpack.c.b16 %v5595, %v5595
        %v5628 = vpack.c.b16 %v5596, %v5596
        %v5629 = vpack.c.b16 %v5597, %v5597
        %v5630 = vpack.c.b16 %v5598, %v5598
        %v5631 = vpack.c.b16 %v5599, %v5599
        %v5632 = vpack.c.b16 %v5600, %v5600
        %v5633 = vpack.c.b16 %v5601, %v5601
        %v5634 = vpack.c.b16 %v5602, %v5602
        %v5635 = vpack.c.b16 %v5603, %v5603
        %v5636 = vpack.c.b16 %v5604, %v5604
        %v5637 = vpack.c.b16 %v5605, %v5605
        %v5638 = vpack.c.b16 %v5606, %v5606
        %v5639 = vpack.c.b16 %v5607, %v5607
        %v5640 = vpack.c.b16 %v5608, %v5608
        %v5641 = vpack.c.b16 %v5609, %v5609
        %v5642 = vpack.c.b16 %v5610, %v5610
        %v5643 = vpack.c.b16 %v5611, %v5611
        %v5644 = vpack.c.b16 %v5612, %v5612
        %v5645 = vpack.c.b16 %v5613, %v5613
        %5678 = vst.msk [vmem:[%s303] sm:$0xf] %vm976, %v5614
        %5679 = vst.msk [vmem:[%s303 + $0x4] sm:$0xf] %vm976, %v5615
        %5680 = vst.msk [vmem:[%s303 + $0x8] sm:$0xf] %vm976, %v5616
        %5681 = vst.msk [vmem:[%s303 + $0xc] sm:$0xf] %vm976, %v5617
        %5682 = vst.msk [vmem:[%s303 + $0x10] sm:$0xf] %vm976, %v5618
        %5683 = vst.msk [vmem:[%s303 + $0x14] sm:$0xf] %vm976, %v5619
        %5684 = vst.msk [vmem:[%s303 + $0x18] sm:$0xf] %vm976, %v5620
        %5685 = vst.msk [vmem:[%s303 + $0x1c] sm:$0xf] %vm976, %v5621
        %5686 = vst.msk [vmem:[%s303 + $0x20] sm:$0xf] %vm976, %v5622
        %5687 = vst.msk [vmem:[%s303 + $0x24] sm:$0xf] %vm976, %v5623
        %5688 = vst.msk [vmem:[%s303 + $0x28] sm:$0xf] %vm976, %v5624
        %5689 = vst.msk [vmem:[%s303 + $0x2c] sm:$0xf] %vm976, %v5625
        %5690 = vst.msk [vmem:[%s303 + $0x30] sm:$0xf] %vm976, %v5626
        %5691 = vst.msk [vmem:[%s303 + $0x34] sm:$0xf] %vm976, %v5627
        %5692 = vst.msk [vmem:[%s303 + $0x38] sm:$0xf] %vm976, %v5628
        %5693 = vst.msk [vmem:[%s303 + $0x3c] sm:$0xf] %vm976, %v5629
        %5694 = vst.msk [vmem:[%s303 + $0x40] sm:$0xf] %vm976, %v5630
        %5695 = vst.msk [vmem:[%s303 + $0x44] sm:$0xf] %vm976, %v5631
        %5696 = vst.msk [vmem:[%s303 + $0x48] sm:$0xf] %vm976, %v5632
        %5697 = vst.msk [vmem:[%s303 + $0x4c] sm:$0xf] %vm976, %v5633
        %5698 = vst.msk [vmem:[%s303 + $0x50] sm:$0xf] %vm976, %v5634
        %5699 = vst.msk [vmem:[%s303 + $0x54] sm:$0xf] %vm976, %v5635
        %5700 = vst.msk [vmem:[%s303 + $0x58] sm:$0xf] %vm976, %v5636
        %5701 = vst.msk [vmem:[%s303 + $0x5c] sm:$0xf] %vm976, %v5637
        %5702 = vst.msk [vmem:[%s303 + $0x60] sm:$0xf] %vm976, %v5638
        %5703 = vst.msk [vmem:[%s303 + $0x64] sm:$0xf] %vm976, %v5639
        %5704 = vst.msk [vmem:[%s303 + $0x68] sm:$0xf] %vm976, %v5640
        %5705 = vst.msk [vmem:[%s303 + $0x6c] sm:$0xf] %vm976, %v5641
        %5706 = vst.msk [vmem:[%s303 + $0x70] sm:$0xf] %vm976, %v5642
        %5707 = vst.msk [vmem:[%s303 + $0x74] sm:$0xf] %vm976, %v5643
        %5708 = vst.msk [vmem:[%s303 + $0x78] sm:$0xf] %vm976, %v5644
        %5709 = vst.msk [vmem:[%s303 + $0x7c] sm:$0xf] %vm976, %v5645
        %v5710 = vld [vmem:[%s310] sm:$0x1]
        %v5711 = vsel %vm2970, %v5518, 0.0
        %v5712 = vsel %vm2970, %v5519, 0.0
        %v5713 = vadd.f32 %v5711, %v5712
        %v5714 = vsel %vm2970, %v5520, 0.0
        %v5715 = vadd.f32 %v5713, %v5714
        %v5716 = vsel %vm2970, %v5521, 0.0
        %v5717 = vadd.f32 %v5715, %v5716
        %v5718 = vsel %vm2970, %v5522, 0.0
        %v5719 = vadd.f32 %v5717, %v5718
        %v5720 = vsel %vm2970, %v5523, 0.0
        %v5721 = vadd.f32 %v5719, %v5720
        %v5722 = vsel %vm2970, %v5524, 0.0
        %v5723 = vadd.f32 %v5721, %v5722
        %v5724 = vsel %vm2970, %v5525, 0.0
        %v5725 = vadd.f32 %v5723, %v5724
        %v5726 = vsel %vm2970, %v5526, 0.0
        %v5727 = vadd.f32 %v5725, %v5726
        %v5728 = vsel %vm2970, %v5527, 0.0
        %v5729 = vadd.f32 %v5727, %v5728
        %v5730 = vsel %vm2970, %v5528, 0.0
        %v5731 = vadd.f32 %v5729, %v5730
        %v5732 = vsel %vm2970, %v5529, 0.0
        %v5733 = vadd.f32 %v5731, %v5732
        %v5734 = vsel %vm2970, %v5530, 0.0
        %v5735 = vadd.f32 %v5733, %v5734
        %v5736 = vsel %vm2970, %v5531, 0.0
        %v5737 = vadd.f32 %v5735, %v5736
        %v5738 = vsel %vm2970, %v5532, 0.0
        %v5739 = vadd.f32 %v5737, %v5738
        %v5740 = vsel %vm2970, %v5533, 0.0
        %v5741 = vadd.f32 %v5739, %v5740
        %v5742 = vsel %vm2970, %v5534, 0.0
        %v5743 = vadd.f32 %v5741, %v5742
        %v5744 = vsel %vm2970, %v5535, 0.0
        %v5745 = vadd.f32 %v5743, %v5744
        %v5746 = vsel %vm2970, %v5536, 0.0
        %v5747 = vadd.f32 %v5745, %v5746
        %v5748 = vsel %vm2970, %v5537, 0.0
        %v5749 = vadd.f32 %v5747, %v5748
        %v5750 = vsel %vm2970, %v5538, 0.0
        %v5751 = vadd.f32 %v5749, %v5750
        %v5752 = vsel %vm2970, %v5539, 0.0
        %v5753 = vadd.f32 %v5751, %v5752
        %v5754 = vsel %vm2970, %v5540, 0.0
        %v5755 = vadd.f32 %v5753, %v5754
        %v5756 = vsel %vm2970, %v5541, 0.0
        %v5757 = vadd.f32 %v5755, %v5756
        %v5758 = vsel %vm2970, %v5542, 0.0
        %v5759 = vadd.f32 %v5757, %v5758
        %v5760 = vsel %vm2970, %v5543, 0.0
        %v5761 = vadd.f32 %v5759, %v5760
        %v5762 = vsel %vm2970, %v5544, 0.0
        %v5763 = vadd.f32 %v5761, %v5762
        %v5764 = vsel %vm2970, %v5545, 0.0
        %v5765 = vadd.f32 %v5763, %v5764
        %v5766 = vsel %vm2970, %v5546, 0.0
        %v5767 = vadd.f32 %v5765, %v5766
        %v5768 = vsel %vm2970, %v5547, 0.0
        %v5769 = vadd.f32 %v5767, %v5768
        %v5770 = vsel %vm2970, %v5548, 0.0
        %v5771 = vadd.f32 %v5769, %v5770
        %v5772 = vsel %vm2970, %v5549, 0.0
        %v5773 = vadd.f32 %v5771, %v5772
        %v5774 = vrot.slane %v5773, 4
        %v5775 = vadd.f32 %v5773, %v5774
        %v5776 = vrot.slane %v5775, 2
        %v5777 = vadd.f32 %v5775, %v5776
        %v5778 = vrot.slane %v5777, 1
        %v5779 = vadd.f32 %v5777, %v5778
        %v5780 = vadd.f32 %v5710, %v5779
        %vm5781 = vcmask 24576
        %5782 = vst.msk [vmem:[%s310] sm:$0x1] %vm5781, %v5780
        %v5783 = vld [vmem:[%s310 + $0x1] sm:$0x1]
        %v5784 = vmul.f32 %v5518, %v5518
        %v5785 = vmul.f32 %v5519, %v5519
        %v5786 = vmul.f32 %v5520, %v5520
        %v5787 = vmul.f32 %v5521, %v5521
        %v5788 = vmul.f32 %v5522, %v5522
        %v5789 = vmul.f32 %v5523, %v5523
        %v5790 = vmul.f32 %v5524, %v5524
        %v5791 = vmul.f32 %v5525, %v5525
        %v5792 = vmul.f32 %v5526, %v5526
        %v5793 = vmul.f32 %v5527, %v5527
        %v5794 = vmul.f32 %v5528, %v5528
        %v5795 = vmul.f32 %v5529, %v5529
        %v5796 = vmul.f32 %v5530, %v5530
        %v5797 = vmul.f32 %v5531, %v5531
        %v5798 = vmul.f32 %v5532, %v5532
        %v5799 = vmul.f32 %v5533, %v5533
        %v5800 = vmul.f32 %v5534, %v5534
        %v5801 = vmul.f32 %v5535, %v5535
        %v5802 = vmul.f32 %v5536, %v5536
        %v5803 = vmul.f32 %v5537, %v5537
        %v5804 = vmul.f32 %v5538, %v5538
        %v5805 = vmul.f32 %v5539, %v5539
        %v5806 = vmul.f32 %v5540, %v5540
        %v5807 = vmul.f32 %v5541, %v5541
        %v5808 = vmul.f32 %v5542, %v5542
        %v5809 = vmul.f32 %v5543, %v5543
        %v5810 = vmul.f32 %v5544, %v5544
        %v5811 = vmul.f32 %v5545, %v5545
        %v5812 = vmul.f32 %v5546, %v5546
        %v5813 = vmul.f32 %v5547, %v5547
        %v5814 = vmul.f32 %v5548, %v5548
        %v5815 = vmul.f32 %v5549, %v5549
        %v5816 = vsel %vm2970, %v5784, 0.0
        %v5817 = vsel %vm2970, %v5785, 0.0
        %v5818 = vadd.f32 %v5816, %v5817
        %v5819 = vsel %vm2970, %v5786, 0.0
        %v5820 = vadd.f32 %v5818, %v5819
        %v5821 = vsel %vm2970, %v5787, 0.0
        %v5822 = vadd.f32 %v5820, %v5821
        %v5823 = vsel %vm2970, %v5788, 0.0
        %v5824 = vadd.f32 %v5822, %v5823
        %v5825 = vsel %vm2970, %v5789, 0.0
        %v5826 = vadd.f32 %v5824, %v5825
        %v5827 = vsel %vm2970, %v5790, 0.0
        %v5828 = vadd.f32 %v5826, %v5827
        %v5829 = vsel %vm2970, %v5791, 0.0
        %v5830 = vadd.f32 %v5828, %v5829
        %v5831 = vsel %vm2970, %v5792, 0.0
        %v5832 = vadd.f32 %v5830, %v5831
        %v5833 = vsel %vm2970, %v5793, 0.0
        %v5834 = vadd.f32 %v5832, %v5833
        %v5835 = vsel %vm2970, %v5794, 0.0
        %v5836 = vadd.f32 %v5834, %v5835
        %v5837 = vsel %vm2970, %v5795, 0.0
        %v5838 = vadd.f32 %v5836, %v5837
        %v5839 = vsel %vm2970, %v5796, 0.0
        %v5840 = vadd.f32 %v5838, %v5839
        %v5841 = vsel %vm2970, %v5797, 0.0
        %v5842 = vadd.f32 %v5840, %v5841
        %v5843 = vsel %vm2970, %v5798, 0.0
        %v5844 = vadd.f32 %v5842, %v5843
        %v5845 = vsel %vm2970, %v5799, 0.0
        %v5846 = vadd.f32 %v5844, %v5845
        %v5847 = vsel %vm2970, %v5800, 0.0
        %v5848 = vadd.f32 %v5846, %v5847
        %v5849 = vsel %vm2970, %v5801, 0.0
        %v5850 = vadd.f32 %v5848, %v5849
        %v5851 = vsel %vm2970, %v5802, 0.0
        %v5852 = vadd.f32 %v5850, %v5851
        %v5853 = vsel %vm2970, %v5803, 0.0
        %v5854 = vadd.f32 %v5852, %v5853
        %v5855 = vsel %vm2970, %v5804, 0.0
        %v5856 = vadd.f32 %v5854, %v5855
        %v5857 = vsel %vm2970, %v5805, 0.0
        %v5858 = vadd.f32 %v5856, %v5857
        %v5859 = vsel %vm2970, %v5806, 0.0
        %v5860 = vadd.f32 %v5858, %v5859
        %v5861 = vsel %vm2970, %v5807, 0.0
        %v5862 = vadd.f32 %v5860, %v5861
        %v5863 = vsel %vm2970, %v5808, 0.0
        %v5864 = vadd.f32 %v5862, %v5863
        %v5865 = vsel %vm2970, %v5809, 0.0
        %v5866 = vadd.f32 %v5864, %v5865
        %v5867 = vsel %vm2970, %v5810, 0.0
        %v5868 = vadd.f32 %v5866, %v5867
        %v5869 = vsel %vm2970, %v5811, 0.0
        %v5870 = vadd.f32 %v5868, %v5869
        %v5871 = vsel %vm2970, %v5812, 0.0
        %v5872 = vadd.f32 %v5870, %v5871
        %v5873 = vsel %vm2970, %v5813, 0.0
        %v5874 = vadd.f32 %v5872, %v5873
        %v5875 = vsel %vm2970, %v5814, 0.0
        %v5876 = vadd.f32 %v5874, %v5875
        %v5877 = vsel %vm2970, %v5815, 0.0
        %v5878 = vadd.f32 %v5876, %v5877
        %v5879 = vrot.slane %v5878, 4
        %v5880 = vadd.f32 %v5878, %v5879
        %v5881 = vrot.slane %v5880, 2
        %v5882 = vadd.f32 %v5880, %v5881
        %v5883 = vrot.slane %v5882, 1
        %v5884 = vadd.f32 %v5882, %v5883
        %v5885 = vadd.f32 %v5783, %v5884
        %5886 = vst.msk [vmem:[%s310 + $0x1] sm:$0x1] %vm5781, %v5885
        %s5887 = sand.u32 %s141, 1
        %s5888 = scalar_lea.sflag [#allocation5], %s5887
        %s5889 = sand.u32 %s141, 1
        %s5890 = smul.addr %s5889, 128
        %s5891 = scalar_lea.vmem [#allocation11], %s5890
        %s5892 = sand.u32 %s167, 1
        %s5893 = scalar_lea.sflag [#allocation13], %s5892
        %s5894 = sand.u32 %s167, 1
        %s5895 = smul.addr %s5894, 2
        %s5896 = scalar_lea.vmem [#allocation12], %s5895
        // Predicated region
        $region57: #{basic_block_forward.4} parent=35 // pred_check
          %p5897 = pneg %p151
        $region58: #{basic_block_forward.4} parent=35 // pred_check_branch
          %5899 = sbr.rel (%p5897) target = $region60
        $region59: #{basic_block_forward.4} parent=35 // pred_region
          %s5900 = sadd.s32 %s32, %s33
          %s5902 = ssub.s32 2048, 2048
          %5903 = vsyncadd %s5888, %s5902
          %s5904 = smul.addr %s5900, 32
          %s5905 = smul.addr %s5904, 64
          %s5906 = scalar_lea.hbm %s4, %s5905
          %s5907 = sshll.u32 %s5891, 4
          %s5908 = int_to_ptr.vmem [resolvable:$true] %s5907
          %5913 = dma.vmem_to_hbm [thread:$0]  %s5908, 2048, %s5906, %s5888, 64, 64, 4
        $region60: #{basic_block_forward.4} parent=35 // pred_fallthru
          _
        // Predicated region
        $region61: #{basic_block_forward.4} parent=35 // pred_check
          %p5914 = pneg %p177
        $region62: #{basic_block_forward.4} parent=35 // pred_check_branch
          %5916 = sbr.rel (%p5914) target = $region64
        $region63: #{basic_block_forward.4} parent=35 // pred_region
          %s5918 = ssub.s32 32, 32
          %5919 = vsyncadd %s5893, %s5918
          %s5920 = smul.addr %s32, 32
          %s5921 = scalar_lea.hbm %s5, %s5920
          %s5923 = sshll.u32 %s5896, 4
          %s5924 = int_to_ptr.vmem [resolvable:$true] %s5923
          %5926 = dma.vmem_to_hbm [thread:$0]  %s5924, 32, %s5921, %s5893
        $region64: #{basic_block_forward.4} parent=35 // pred_fallthru
          _
      $region36: #{basic_block_forward.4} parent=5 // pred_fallthru
        _
      %p5927 = scmp.le.s32.totalorder 2, %s23
      // Predicated region
      $region65: #{basic_block_forward.4} parent=5 // pred_check
        %p5928 = pneg %p5927
      $region66: #{basic_block_forward.4} parent=5 // pred_check_branch
        %5930 = sbr.rel (%p5928) target = $region68
      $region67: #{basic_block_forward.4} parent=5 // pred_region
        %s5931 = ssub.s32 %s23, 2
        // Predicated region
        $region69: #{basic_block_forward.4} parent=67 // pred_check
          %p5932 = pneg %p157
        $region70: #{basic_block_forward.4} parent=67 // pred_check_branch
          %5934 = sbr.rel (%p5932) target = $region72
        $region71: #{basic_block_forward.4} parent=67 // pred_region
          %s5935 = sand.u32 %s142, 1
          %s5936 = scalar_lea.sflag [#allocation5], %s5935
          %s5937 = sand.u32 %s142, 1
          %s5938 = smul.addr %s5937, 128
          %s5939 = scalar_lea.vmem [#allocation11], %s5938
          %5940 = dma.done %s5936, 2048
        $region72: #{basic_block_forward.4} parent=67 // pred_fallthru
          _
        // Predicated region
        $region73: #{basic_block_forward.4} parent=67 // pred_check
          %p5941 = pneg %p183
        $region74: #{basic_block_forward.4} parent=67 // pred_check_branch
          %5943 = sbr.rel (%p5941) target = $region76
        $region75: #{basic_block_forward.4} parent=67 // pred_region
          %s5944 = sand.u32 %s168, 1
          %s5945 = scalar_lea.sflag [#allocation13], %s5944
          %s5946 = sand.u32 %s168, 1
          %s5947 = smul.addr %s5946, 2
          %s5948 = scalar_lea.vmem [#allocation12], %s5947
          %5949 = dma.done %s5945, 32
        $region76: #{basic_block_forward.4} parent=67 // pred_fallthru
          _
      $region68: #{basic_block_forward.4} parent=5 // pred_fallthru
        _
    $region6: #{basic_block_forward.4} parent=1 // loop_footer
      %s27 = sadd.s32 1, %s23
    $region7: #{basic_block_forward.4} parent=1 // loop_footer_branch
      %22 = sbr.rel target = $region3
    $region8: #{basic_block_forward.4} parent=1 // loop_exit
      _
    %5950 = vsyncpa [#allocation4], 1
    %s5951 = scalar_lea.sflag [#allocation4], 1
    %5952 = vsyncpa %s5951, 1
    %5953 = vsyncpa [#allocation7], 1
    %5954 = vsyncpa [#allocation10], 1
    %5955 = vsyncpa [#allocation5], 1
    %s5956 = scalar_lea.sflag [#allocation5], 1
    %5957 = vsyncpa %s5956, 1
    %5958 = vsyncpa [#allocation13], 1
    %s5959 = scalar_lea.sflag [#allocation13], 1
    %5960 = vsyncpa %s5959, 1

// kernel: basic_block_forward.3
$region0: #{basic_block_forward.3}
  #allocation0 [shape = 'u32[]', space=smem, size = 0x4, offset = 0x4, fixed_abs, tag = 'smem constant byte address 0x4 - core index']
  #allocation1 [shape = 'u32[144,128]{1,0:T(1,128)}', space=vmem, size = 0x12000, scoped, tag = 'internal scratch']
  #allocation2 [shape = 'bf16[1,18,18,4]{3,2,1,0:T(8,128)(2,1)}', space=vmem, size = 0x1b000, scoped, tag = 'scratch operand']
  %s0 = inlined_call_operand.hbm [shape: bf16[2,16,16,4], index: 0, kind: input, shape index: {}]
  %s1 = inlined_call_operand.hbm [shape: bf16[9,4,4], index: 1, kind: input, shape index: {}]
  %s2 = inlined_call_operand.hbm [shape: bf16[2,16,16,4], index: 2, kind: output, shape index: {0}]
  %s3 = inlined_call_operand.hbm [shape: f32[2,2,4], index: 3, kind: output, shape index: {1}]
  %4 = xla_tuple %s2, %s3
  %s5 = sld [smem:[#allocation0]]
  $region61: #{basic_block_forward.3} parent=0
    _
  %s7 = ssub.s32 1, %s5
  %s8 = scalar_select 0, %s7, %s5
  $region1: #{basic_block_forward.3} parent=0
    #allocation3 [shape = 'u8[131072]{0}', space=vmem, size = 0x20000, scoped, tag = 'input window, operand 0']
    #allocation4 [shape = 's32[2]{0}', space=sflag, size = 0x8, scoped, tag = 'scoped memory for basic_block_forward.3']
    #allocation5 [shape = 's32[2]{0}', space=sflag, size = 0x8, scoped, tag = 'scoped memory for basic_block_forward.3']
    #allocation6 [shape = 'u8[9216]{0}', space=vmem, size = 0x2400, scoped, tag = 'input window, operand 1, single buffered']
    #allocation7 [shape = 's32[1]{0}', space=sflag, size = 0x4, scoped, tag = 'scoped memory for basic_block_forward.3']
    #allocation8 [shape = 'u8[131072]{0}', space=vmem, size = 0x20000, scoped, tag = 'output window, operand 0']
    #allocation9 [shape = 'u8[2048]{0}', space=vmem, size = 0x800, scoped, tag = 'output window, operand 1']
    #allocation10 [shape = 's32[2]{0}', space=sflag, size = 0x8, scoped, tag = 'scoped memory for basic_block_forward.3']
    %9 = vsyncpa [#allocation4], 0
    %s10 = scalar_lea.sflag [#allocation4], 1
    %11 = vsyncpa %s10, 0
    %12 = vsyncpa [#allocation7], 0
    %13 = vsyncpa [#allocation5], 0
    %s14 = scalar_lea.sflag [#allocation5], 1
    %15 = vsyncpa %s14, 0
    %16 = vsyncpa [#allocation10], 0
    %s17 = scalar_lea.sflag [#allocation10], 1
    %18 = vsyncpa %s17, 0
    loop: start=0, step=1, limit=4
    $region2: #{basic_block_forward.3} parent=1 // loop_pre_header
      _
    $region3: #{basic_block_forward.3} parent=1 // loop_header
      %s20 = sphi 0, %s24
      %p21 = scmp.ge.s32.totalorder %s20, 4
      %s27 = sphi 0, %s39
      %s28 = sphi 0, %s35
      %s29 = sphi 0, %s27
      %s30 = sphi 0, %s28
      %s31 = sphi 0, %s29
      %s32 = sphi 0, %s30
      %s44 = sphi 0, %s46
      %s47 = sphi 0, %s44
      %s48 = sphi 0, %s47
      %s64 = sphi 0, %s48
      %s68 = sphi 0, %s68
      %s70 = sphi 0, %s68
      %s71 = sphi 0, %s70
      %s85 = sphi 0, %s71
      %s93 = sphi 0, %s95
      %s96 = sphi 0, %s93
      %s97 = sphi 0, %s96
      %s113 = sphi 0, %s97
      %s119 = sphi 0, %s121
      %s122 = sphi 0, %s119
      %s123 = sphi 0, %s122
      %s139 = sphi 0, %s123
    $region4: #{basic_block_forward.3} parent=1 // loop_header_branch
      %23 = sbr.rel (%p21) target = $region8
    $region5: #{basic_block_forward.3} parent=1 // loop_body
      %s25 = ssub.s32 %s20, 1
      %s26 = ssub.s32 %s20, 2
      %s33 = sadd.s32 1, %s28
      %p34 = scmp.ge.s32.totalorder %s33, 1
      %s35 = scalar_select %p34, 0, %s33
      %s36 = sadd.s32 1, %s27
      %s37 = scalar_select %p34, %s36, %s27
      %p38 = scmp.ge.s32.totalorder %s37, 2
      %s39 = scalar_select %p38, 0, %s37
      %s40 = sadd.s32 %s27, %s28
      %s41 = sadd.s32 %s39, %s35
      %s42 = ssub.s32 %s40, %s41
      %p43 = scmp.eq.s32.totalorder %s42, 0
      %s45 = sadd.s32 %s44, 1
      %s46 = scalar_select %p43, %s44, %s45
      %p49 = pneg %p43
      %p50 = scmp.eq.s32.totalorder %s20, 1
      %p51 = por %p49, %p50
      %p52 = scmp.ne.s32.totalorder %s44, %s47
      %p53 = scmp.eq.s32.totalorder %s20, 0
      %p54 = por %p52, %p53
      %p55 = scmp.ne.s32.totalorder %s44, %s47
      %p56 = scmp.eq.s32.totalorder %s25, 1
      %p57 = por %p55, %p56
      %p58 = scmp.ne.s32.totalorder %s47, %s48
      %p59 = scmp.eq.s32.totalorder %s25, 0
      %p60 = por %p58, %p59
      %p61 = scmp.ne.s32.totalorder %s47, %s48
      %p62 = scmp.eq.s32.totalorder %s26, 1
      %p63 = por %p61, %p62
      %p65 = scmp.ne.s32.totalorder %s48, %s64
      %p66 = scmp.eq.s32.totalorder %s26, 0
      %p67 = por %p65, %p66
      %s69 = sadd.s32 %s68, 1
      %p72 = scmp.eq.s32.totalorder %s20, 1
      %p73 = scmp.ne.s32.totalorder %s68, %s70
      %p74 = scmp.eq.s32.totalorder %s20, 0
      %p75 = por %p73, %p74
      %p76 = scmp.ne.s32.totalorder %s68, %s70
      %p77 = scmp.eq.s32.totalorder %s25, 1
      %p78 = por %p76, %p77
      %p79 = scmp.ne.s32.totalorder %s70, %s71
      %p80 = scmp.eq.s32.totalorder %s25, 0
      %p81 = por %p79, %p80
      %p82 = scmp.ne.s32.totalorder %s70, %s71
      %p83 = scmp.eq.s32.totalorder %s26, 1
      %p84 = por %p82, %p83
      %p86 = scmp.ne.s32.totalorder %s71, %s85
      %p87 = scmp.eq.s32.totalorder %s26, 0
      %p88 = por %p86, %p87
      %s89 = sadd.s32 %s27, %s28
      %s90 = sadd.s32 %s39, %s35
      %s91 = ssub.s32 %s89, %s90
      %p92 = scmp.eq.s32.totalorder %s91, 0
      %s94 = sadd.s32 %s93, 1
      %s95 = scalar_select %p92, %s93, %s94
      %p98 = pneg %p92
      %p99 = scmp.eq.s32.totalorder %s20, 1
      %p100 = por %p98, %p99
      %p101 = scmp.ne.s32.totalorder %s93, %s96
      %p102 = scmp.eq.s32.totalorder %s20, 0
      %p103 = por %p101, %p102
      %p104 = scmp.ne.s32.totalorder %s93, %s96
      %p105 = scmp.eq.s32.totalorder %s25, 1
      %p106 = por %p104, %p105
      %p107 = scmp.ne.s32.totalorder %s96, %s97
      %p108 = scmp.eq.s32.totalorder %s25, 0
      %p109 = por %p107, %p108
      %p110 = scmp.ne.s32.totalorder %s96, %s97
      %p111 = scmp.eq.s32.totalorder %s26, 1
      %p112 = por %p110, %p111
      %p114 = scmp.ne.s32.totalorder %s97, %s113
      %p115 = scmp.eq.s32.totalorder %s26, 0
      %p116 = por %p114, %p115
      %s117 = ssub.s32 %s27, %s39
      %p118 = scmp.eq.s32.totalorder %s117, 0
      %s120 = sadd.s32 %s119, 1
      %s121 = scalar_select %p118, %s119, %s120
      %p124 = pneg %p118
      %p125 = scmp.eq.s32.totalorder %s20, 1
      %p126 = por %p124, %p125
      %p127 = scmp.ne.s32.totalorder %s119, %s122
      %p128 = scmp.eq.s32.totalorder %s20, 0
      %p129 = por %p127, %p128
      %p130 = scmp.ne.s32.totalorder %s119, %s122
      %p131 = scmp.eq.s32.totalorder %s25, 1
      %p132 = por %p130, %p131
      %p133 = scmp.ne.s32.totalorder %s122, %s123
      %p134 = scmp.eq.s32.totalorder %s25, 0
      %p135 = por %p133, %p134
      %p136 = scmp.ne.s32.totalorder %s122, %s123
      %p137 = scmp.eq.s32.totalorder %s26, 1
      %p138 = por %p136, %p137
      %p140 = scmp.ne.s32.totalorder %s123, %s139
      %p141 = scmp.eq.s32.totalorder %s26, 0
      %p142 = por %p140, %p141
      %p143 = scmp.le.s32.totalorder 1, %s20
      %p144 = scmp.lt.s32.totalorder %s20, 3
      %p145 = pnand %p143, %p144
      %p146 = pneg %p145
      // Predicated region
      $region9: #{basic_block_forward.3} parent=5 // pred_check
        _
      $region10: #{basic_block_forward.3} parent=5 // pred_check_branch
        %148 = sbr.rel (%p145) target = $region12
      $region11: #{basic_block_forward.3} parent=5 // pred_region
        %s149 = ssub.s32 %s20, 1
        // Predicated region
        $region13: #{basic_block_forward.3} parent=11 // pred_check
          %p150 = pneg %p81
        $region14: #{basic_block_forward.3} parent=11 // pred_check_branch
          %152 = sbr.rel (%p150) target = $region16
        $region15: #{basic_block_forward.3} parent=11 // pred_region
          %s154 = ssub.s32 288, 288
          %155 = vsyncadd [#allocation7], %s154
          %s156 = sshll.u32 [#allocation6], 4
          %s157 = int_to_ptr.vmem [resolvable:$true] %s156
          %162 = dma.hbm_to_vmem [thread:$0]  %s1, 288, %s157, [#allocation7], 32, 32, 2
        $region16: #{basic_block_forward.3} parent=11 // pred_fallthru
          _
      $region12: #{basic_block_forward.3} parent=5 // pred_fallthru
        _
      %p163 = scmp.lt.s32.totalorder %s20, 2
      // Predicated region
      $region17: #{basic_block_forward.3} parent=5 // pred_check
        %p164 = pneg %p163
      $region18: #{basic_block_forward.3} parent=5 // pred_check_branch
        %166 = sbr.rel (%p164) target = $region20
      $region19: #{basic_block_forward.3} parent=5 // pred_region
        // Predicated region
        $region21: #{basic_block_forward.3} parent=19 // pred_check
          %p167 = pneg %p54
        $region22: #{basic_block_forward.3} parent=19 // pred_check_branch
          %169 = sbr.rel (%p167) target = $region24
        $region23: #{basic_block_forward.3} parent=19 // pred_region
          %s170 = sand.u32 %s44, 1
          %s171 = scalar_lea.sflag [#allocation4], %s170
          %s172 = sand.u32 %s44, 1
          %s173 = smul.addr %s172, 128
          %s174 = scalar_lea.vmem [#allocation3], %s173
          %s175 = sadd.s32 %s27, %s28
          %s177 = ssub.s32 2048, 2048
          %178 = vsyncadd %s171, %s177
          %s179 = smul.addr %s175, 32
          %s180 = smul.addr %s179, 64
          %s181 = scalar_lea.hbm %s0, %s180
          %s182 = sshll.u32 %s174, 4
          %s183 = int_to_ptr.vmem [resolvable:$true] %s182
          %188 = dma.hbm_to_vmem [thread:$0]  %s181, 2048, %s183, %s171, 64, 64, 4
        $region24: #{basic_block_forward.3} parent=19 // pred_fallthru
          _
      $region20: #{basic_block_forward.3} parent=5 // pred_fallthru
        _
      %p189 = scmp.le.s32.totalorder 1, %s20
      %p190 = scmp.lt.s32.totalorder %s20, 3
      %p191 = pnand %p189, %p190
      %p192 = pneg %p191
      // Predicated region
      $region25: #{basic_block_forward.3} parent=5 // pred_check
        _
      $region26: #{basic_block_forward.3} parent=5 // pred_check_branch
        %194 = sbr.rel (%p191) target = $region28
      $region27: #{basic_block_forward.3} parent=5 // pred_region
        %s195 = ssub.s32 %s20, 1
        %s196 = sand.u32 %s47, 1
        %s197 = scalar_lea.sflag [#allocation4], %s196
        %s198 = sand.u32 %s47, 1
        %s199 = smul.addr %s198, 128
        %s200 = scalar_lea.vmem [#allocation3], %s199
        // Predicated region
        $region29: #{basic_block_forward.3} parent=27 // pred_check
          %p201 = pneg %p60
        $region30: #{basic_block_forward.3} parent=27 // pred_check_branch
          %203 = sbr.rel (%p201) target = $region32
        $region31: #{basic_block_forward.3} parent=27 // pred_region
          %204 = dma.done %s197, 2048
        $region32: #{basic_block_forward.3} parent=27 // pred_fallthru
          _
        // Predicated region
        $region33: #{basic_block_forward.3} parent=27 // pred_check
          %p205 = pneg %p81
        $region34: #{basic_block_forward.3} parent=27 // pred_check_branch
          %207 = sbr.rel (%p205) target = $region36
        $region35: #{basic_block_forward.3} parent=27 // pred_region
          %208 = dma.done [#allocation7], 288
        $region36: #{basic_block_forward.3} parent=27 // pred_fallthru
          _
        %s209 = sand.u32 %s47, 1
        %s210 = scalar_lea.sflag [#allocation4], %s209
        %s211 = sand.u32 %s47, 1
        %s212 = smul.addr %s211, 128
        %s213 = scalar_lea.vmem [#allocation3], %s212
        %p214 = pneg %p60
        %p215 = pneg %p57
        %p216 = pneg %p81
        %p217 = pneg %p78
        %p218 = pneg %p109
        %p219 = pneg %p106
        %s220 = sand.u32 %s96, 1
        %s221 = scalar_lea.sflag [#allocation5], %s220
        %s222 = sand.u32 %s96, 1
        %s223 = smul.addr %s222, 128
        %s224 = scalar_lea.vmem [#allocation8], %s223
        %p225 = pneg %p135
        %p226 = pneg %p132
        %s227 = sand.u32 %s122, 1
        %s228 = scalar_lea.sflag [#allocation10], %s227
        %s229 = sand.u32 %s122, 1
        %s230 = smul.addr %s229, 2
        %s231 = scalar_lea.vmem [#allocation9], %s230
        %s232 = sadd.s32 %s29, %s30
        %s233 = sadd.s32 %s29, %s30
        %p235 = scmp.eq.s32.totalorder %s30, 0
        // Predicated region
        $region37: #{basic_block_forward.3} parent=27 // pred_check
          %p236 = pneg %p235
        $region38: #{basic_block_forward.3} parent=27 // pred_check_branch
          %238 = sbr.rel (%p236) target = $region40
        $region39: #{basic_block_forward.3} parent=27 // pred_region
          %vm239 = vcmask 27648
          %240 = vst.msk [vmem:[#allocation2] sm:$0xf] %vm239, 0
          %241 = vst.msk [vmem:[#allocation2 + $0x4] sm:$0xf] %vm239, 0
          %vm242 = vcmask 24576
          %243 = vst.msk [vmem:[#allocation2 + $0x8] sm:$0x1] %vm242, 0
          %244 = vst.msk [vmem:[#allocation2 + $0xc] sm:$0xf] %vm239, 0
          %245 = vst.msk [vmem:[#allocation2 + $0x10] sm:$0xf] %vm239, 0
          %246 = vst.msk [vmem:[#allocation2 + $0x14] sm:$0x1] %vm242, 0
          %247 = vst.msk [vmem:[#allocation2 + $0x18] sm:$0xf] %vm239, 0
          %248 = vst.msk [vmem:[#allocation2 + $0x1c] sm:$0xf] %vm239, 0
          %249 = vst.msk [vmem:[#allocation2 + $0x20] sm:$0x1] %vm242, 0
          %250 = vst.msk [vmem:[#allocation2 + $0x24] sm:$0xf] %vm239, 0
          %251 = vst.msk [vmem:[#allocation2 + $0x28] sm:$0xf] %vm239, 0
          %252 = vst.msk [vmem:[#allocation2 + $0x2c] sm:$0x1] %vm242, 0
          %253 = vst.msk [vmem:[#allocation2 + $0x30] sm:$0xf] %vm239, 0
          %254 = vst.msk [vmem:[#allocation2 + $0x34] sm:$0xf] %vm239, 0
          %255 = vst.msk [vmem:[#allocation2 + $0x38] sm:$0x1] %vm242, 0
          %256 = vst.msk [vmem:[#allocation2 + $0x3c] sm:$0xf] %vm239, 0
          %257 = vst.msk [vmem:[#allocation2 + $0x40] sm:$0xf] %vm239, 0
          %258 = vst.msk [vmem:[#allocation2 + $0x44] sm:$0x1] %vm242, 0
          %259 = vst.msk [vmem:[#allocation2 + $0x48] sm:$0xf] %vm239, 0
          %260 = vst.msk [vmem:[#allocation2 + $0x4c] sm:$0xf] %vm239, 0
          %261 = vst.msk [vmem:[#allocation2 + $0x50] sm:$0x1] %vm242, 0
          %262 = vst.msk [vmem:[#allocation2 + $0x54] sm:$0xf] %vm239, 0
          %263 = vst.msk [vmem:[#allocation2 + $0x58] sm:$0xf] %vm239, 0
          %264 = vst.msk [vmem:[#allocation2 + $0x5c] sm:$0x1] %vm242, 0
          %265 = vst.msk [vmem:[#allocation2 + $0x60] sm:$0xf] %vm239, 0
          %266 = vst.msk [vmem:[#allocation2 + $0x64] sm:$0xf] %vm239, 0
          %267 = vst.msk [vmem:[#allocation2 + $0x68] sm:$0x1] %vm242, 0
          %268 = vst.msk [vmem:[#allocation2 + $0x6c] sm:$0xf] %vm239, 0
          %269 = vst.msk [vmem:[#allocation2 + $0x70] sm:$0xf] %vm239, 0
          %270 = vst.msk [vmem:[#allocation2 + $0x74] sm:$0x1] %vm242, 0
          %271 = vst.msk [vmem:[#allocation2 + $0x78] sm:$0xf] %vm239, 0
          %272 = vst.msk [vmem:[#allocation2 + $0x7c] sm:$0xf] %vm239, 0
          %273 = vst.msk [vmem:[#allocation2 + $0x80] sm:$0x1] %vm242, 0
          %274 = vst.msk [vmem:[#allocation2 + $0x84] sm:$0xf] %vm239, 0
          %275 = vst.msk [vmem:[#allocation2 + $0x88] sm:$0xf] %vm239, 0
          %276 = vst.msk [vmem:[#allocation2 + $0x8c] sm:$0x1] %vm242, 0
          %277 = vst.msk [vmem:[#allocation2 + $0x90] sm:$0xf] %vm239, 0
          %278 = vst.msk [vmem:[#allocation2 + $0x94] sm:$0xf] %vm239, 0
          %279 = vst.msk [vmem:[#allocation2 + $0x98] sm:$0x1] %vm242, 0
          %280 = vst.msk [vmem:[#allocation2 + $0x9c] sm:$0xf] %vm239, 0
          %281 = vst.msk [vmem:[#allocation2 + $0xa0] sm:$0xf] %vm239, 0
          %282 = vst.msk [vmem:[#allocation2 + $0xa4] sm:$0x1] %vm242, 0
          %283 = vst.msk [vmem:[#allocation2 + $0xa8] sm:$0xf] %vm239, 0
          %284 = vst.msk [vmem:[#allocation2 + $0xac] sm:$0xf] %vm239, 0
          %285 = vst.msk [vmem:[#allocation2 + $0xb0] sm:$0x1] %vm242, 0
          %286 = vst.msk [vmem:[#allocation2 + $0xb4] sm:$0xf] %vm239, 0
          %287 = vst.msk [vmem:[#allocation2 + $0xb8] sm:$0xf] %vm239, 0
          %288 = vst.msk [vmem:[#allocation2 + $0xbc] sm:$0x1] %vm242, 0
          %289 = vst.msk [vmem:[#allocation2 + $0xc0] sm:$0xf] %vm239, 0
          %290 = vst.msk [vmem:[#allocation2 + $0xc4] sm:$0xf] %vm239, 0
          %291 = vst.msk [vmem:[#allocation2 + $0xc8] sm:$0x1] %vm242, 0
          %292 = vst.msk [vmem:[#allocation2 + $0xcc] sm:$0xf] %vm239, 0
          %293 = vst.msk [vmem:[#allocation2 + $0xd0] sm:$0xf] %vm239, 0
          %294 = vst.msk [vmem:[#allocation2 + $0xd4] sm:$0x1] %vm242, 0
          %vm295 = vcmask 25600
          %296 = vst.msk [vmem:[%s231] sm:$0x3] %vm295, 0.0
        $region40: #{basic_block_forward.3} parent=27 // pred_fallthru
          _
        %v297 = vld [vmem:[%s200] sm:$0xf]
        %v298 = vld [vmem:[%s200 + $0x4] sm:$0xf]
        %v299 = vld [vmem:[%s200 + $0x8] sm:$0xf]
        %v300 = vld [vmem:[%s200 + $0xc] sm:$0xf]
        %v301 = vld [vmem:[%s200 + $0x10] sm:$0xf]
        %v302 = vld [vmem:[%s200 + $0x14] sm:$0xf]
        %v303 = vld [vmem:[%s200 + $0x18] sm:$0xf]
        %v304 = vld [vmem:[%s200 + $0x1c] sm:$0xf]
        %v305 = vld [vmem:[%s200 + $0x20] sm:$0xf]
        %v306 = vld [vmem:[%s200 + $0x24] sm:$0xf]
        %v307 = vld [vmem:[%s200 + $0x28] sm:$0xf]
        %v308 = vld [vmem:[%s200 + $0x2c] sm:$0xf]
        %v309 = vld [vmem:[%s200 + $0x30] sm:$0xf]
        %v310 = vld [vmem:[%s200 + $0x34] sm:$0xf]
        %v311 = vld [vmem:[%s200 + $0x38] sm:$0xf]
        %v312 = vld [vmem:[%s200 + $0x3c] sm:$0xf]
        %v313 = vld [vmem:[%s200 + $0x40] sm:$0xf]
        %v314 = vld [vmem:[%s200 + $0x44] sm:$0xf]
        %v315 = vld [vmem:[%s200 + $0x48] sm:$0xf]
        %v316 = vld [vmem:[%s200 + $0x4c] sm:$0xf]
        %v317 = vld [vmem:[%s200 + $0x50] sm:$0xf]
        %v318 = vld [vmem:[%s200 + $0x54] sm:$0xf]
        %v319 = vld [vmem:[%s200 + $0x58] sm:$0xf]
        %v320 = vld [vmem:[%s200 + $0x5c] sm:$0xf]
        %v321 = vld [vmem:[%s200 + $0x60] sm:$0xf]
        %v322 = vld [vmem:[%s200 + $0x64] sm:$0xf]
        %v323 = vld [vmem:[%s200 + $0x68] sm:$0xf]
        %v324 = vld [vmem:[%s200 + $0x6c] sm:$0xf]
        %v325 = vld [vmem:[%s200 + $0x70] sm:$0xf]
        %v326 = vld [vmem:[%s200 + $0x74] sm:$0xf]
        %v327 = vld [vmem:[%s200 + $0x78] sm:$0xf]
        %v328 = vld [vmem:[%s200 + $0x7c] sm:$0xf]
        %vm329 = vsmask.f32 256
        %vm330 = vsmask.f32 4368
        %vm331 = vmor %vm329, %vm330
        %v333 = vshrl.u32 %v297, 16
        %v335 = vrot.slane %v333, 7
        %v336 = vshll.u32 %v297, 16
        %v338 = vor.u32 %v335, %v336
        %v339 = vrot.slane %v335, 4
        %v341 = vshrl.u32 %v298, 16
        %v343 = vrot.slane %v341, 7
        %v344 = vshll.u32 %v298, 16
        %v346 = vor.u32 %v343, %v344
        %v347 = vsel %vm331, %v339, %v346
        %v348 = vrot.slane %v343, 4
        %v350 = vshrl.u32 %v299, 16
        %v352 = vrot.slane %v350, 7
        %v353 = vshll.u32 %v299, 16
        %v355 = vor.u32 %v352, %v353
        %v356 = vrot.slane %v352, 4
        %v358 = vshrl.u32 %v300, 16
        %v360 = vrot.slane %v358, 7
        %v361 = vshll.u32 %v300, 16
        %v363 = vor.u32 %v360, %v361
        %v364 = vsel %vm331, %v356, %v363
        %v365 = vrot.slane %v360, 4
        %v367 = vshrl.u32 %v301, 16
        %v369 = vrot.slane %v367, 7
        %v370 = vshll.u32 %v301, 16
        %v372 = vor.u32 %v369, %v370
        %v373 = vrot.slane %v369, 4
        %v375 = vshrl.u32 %v302, 16
        %v377 = vrot.slane %v375, 7
        %v378 = vshll.u32 %v302, 16
        %v380 = vor.u32 %v377, %v378
        %v381 = vsel %vm331, %v373, %v380
        %v382 = vrot.slane %v377, 4
        %v384 = vshrl.u32 %v303, 16
        %v386 = vrot.slane %v384, 7
        %v387 = vshll.u32 %v303, 16
        %v389 = vor.u32 %v386, %v387
        %v390 = vrot.slane %v386, 4
        %v392 = vshrl.u32 %v304, 16
        %v394 = vrot.slane %v392, 7
        %v395 = vshll.u32 %v304, 16
        %v397 = vor.u32 %v394, %v395
        %v398 = vsel %vm331, %v390, %v397
        %v399 = vrot.slane %v394, 4
        %v401 = vshrl.u32 %v305, 16
        %v403 = vrot.slane %v401, 7
        %v404 = vshll.u32 %v305, 16
        %v406 = vor.u32 %v403, %v404
        %v407 = vrot.slane %v403, 4
        %v409 = vshrl.u32 %v306, 16
        %v411 = vrot.slane %v409, 7
        %v412 = vshll.u32 %v306, 16
        %v414 = vor.u32 %v411, %v412
        %v415 = vsel %vm331, %v407, %v414
        %v416 = vrot.slane %v411, 4
        %v418 = vshrl.u32 %v307, 16
        %v420 = vrot.slane %v418, 7
        %v421 = vshll.u32 %v307, 16
        %v423 = vor.u32 %v420, %v421
        %v424 = vrot.slane %v420, 4
        %v426 = vshrl.u32 %v308, 16
        %v428 = vrot.slane %v426, 7
        %v429 = vshll.u32 %v308, 16
        %v431 = vor.u32 %v428, %v429
        %v432 = vsel %vm331, %v424, %v431
        %v433 = vrot.slane %v428, 4
        %v435 = vshrl.u32 %v309, 16
        %v437 = vrot.slane %v435, 7
        %v438 = vshll.u32 %v309, 16
        %v440 = vor.u32 %v437, %v438
        %v441 = vrot.slane %v437, 4
        %v443 = vshrl.u32 %v310, 16
        %v445 = vrot.slane %v443, 7
        %v446 = vshll.u32 %v310, 16
        %v448 = vor.u32 %v445, %v446
        %v449 = vsel %vm331, %v441, %v448
        %v450 = vrot.slane %v445, 4
        %v452 = vshrl.u32 %v311, 16
        %v454 = vrot.slane %v452, 7
        %v455 = vshll.u32 %v311, 16
        %v457 = vor.u32 %v454, %v455
        %v458 = vrot.slane %v454, 4
        %v460 = vshrl.u32 %v312, 16
        %v462 = vrot.slane %v460, 7
        %v463 = vshll.u32 %v312, 16
        %v465 = vor.u32 %v462, %v463
        %v466 = vsel %vm331, %v458, %v465
        %v467 = vrot.slane %v462, 4
        %v469 = vshrl.u32 %v313, 16
        %v471 = vrot.slane %v469, 7
        %v472 = vshll.u32 %v313, 16
        %v474 = vor.u32 %v471, %v472
        %v475 = vrot.slane %v471, 4
        %v477 = vshrl.u32 %v314, 16
        %v479 = vrot.slane %v477, 7
        %v480 = vshll.u32 %v314, 16
        %v482 = vor.u32 %v479, %v480
        %v483 = vsel %vm331, %v475, %v482
        %v484 = vrot.slane %v479, 4
        %v486 = vshrl.u32 %v315, 16
        %v488 = vrot.slane %v486, 7
        %v489 = vshll.u32 %v315, 16
        %v491 = vor.u32 %v488, %v489
        %v492 = vrot.slane %v488, 4
        %v494 = vshrl.u32 %v316, 16
        %v496 = vrot.slane %v494, 7
        %v497 = vshll.u32 %v316, 16
        %v499 = vor.u32 %v496, %v497
        %v500 = vsel %vm331, %v492, %v499
        %v501 = vrot.slane %v496, 4
        %v503 = vshrl.u32 %v317, 16
        %v505 = vrot.slane %v503, 7
        %v506 = vshll.u32 %v317, 16
        %v508 = vor.u32 %v505, %v506
        %v509 = vrot.slane %v505, 4
        %v511 = vshrl.u32 %v318, 16
        %v513 = vrot.slane %v511, 7
        %v514 = vshll.u32 %v318, 16
        %v516 = vor.u32 %v513, %v514
        %v517 = vsel %vm331, %v509, %v516
        %v518 = vrot.slane %v513, 4
        %v520 = vshrl.u32 %v319, 16
        %v522 = vrot.slane %v520, 7
        %v523 = vshll.u32 %v319, 16
        %v525 = vor.u32 %v522, %v523
        %v526 = vrot.slane %v522, 4
        %v528 = vshrl.u32 %v320, 16
        %v530 = vrot.slane %v528, 7
        %v531 = vshll.u32 %v320, 16
        %v533 = vor.u32 %v530, %v531
        %v534 = vsel %vm331, %v526, %v533
        %v535 = vrot.slane %v530, 4
        %v537 = vshrl.u32 %v321, 16
        %v539 = vrot.slane %v537, 7
        %v540 = vshll.u32 %v321, 16
        %v542 = vor.u32 %v539, %v540
        %v543 = vrot.slane %v539, 4
        %v545 = vshrl.u32 %v322, 16
        %v547 = vrot.slane %v545, 7
        %v548 = vshll.u32 %v322, 16
        %v550 = vor.u32 %v547, %v548
        %v551 = vsel %vm331, %v543, %v550
        %v552 = vrot.slane %v547, 4
        %v554 = vshrl.u32 %v323, 16
        %v556 = vrot.slane %v554, 7
        %v557 = vshll.u32 %v323, 16
        %v559 = vor.u32 %v556, %v557
        %v560 = vrot.slane %v556, 4
        %v562 = vshrl.u32 %v324, 16
        %v564 = vrot.slane %v562, 7
        %v565 = vshll.u32 %v324, 16
        %v567 = vor.u32 %v564, %v565
        %v568 = vsel %vm331, %v560, %v567
        %v569 = vrot.slane %v564, 4
        %v571 = vshrl.u32 %v325, 16
        %v573 = vrot.slane %v571, 7
        %v574 = vshll.u32 %v325, 16
        %v576 = vor.u32 %v573, %v574
        %v577 = vrot.slane %v573, 4
        %v579 = vshrl.u32 %v326, 16
        %v581 = vrot.slane %v579, 7
        %v582 = vshll.u32 %v326, 16
        %v584 = vor.u32 %v581, %v582
        %v585 = vsel %vm331, %v577, %v584
        %v586 = vrot.slane %v581, 4
        %v588 = vshrl.u32 %v327, 16
        %v590 = vrot.slane %v588, 7
        %v591 = vshll.u32 %v327, 16
        %v593 = vor.u32 %v590, %v591
        %v594 = vrot.slane %v590, 4
        %v596 = vshrl.u32 %v328, 16
        %v598 = vrot.slane %v596, 7
        %v599 = vshll.u32 %v328, 16
        %v601 = vor.u32 %v598, %v599
        %v602 = vsel %vm331, %v594, %v601
        %v603 = vrot.slane %v598, 4
        %s652 = scalar_lea.vmem [#allocation2], 12
        %vm653 = vcmask 27648
        %vm654 = vsmask.f32 7938
        %vm655 = vmand %vm653, %vm654
        %v656 = vld [vmem:[%s652] sm:$0xf]
        %v657 = vsel %vm655, %v338, %v656
        %658 = vst [vmem:[%s652] sm:$0xf] %v657
        %vm659 = vcmask 27648
        %660 = vst.msk [vmem:[%s652 + $0x4] sm:$0xf] %vm659, %v347
        %vm661 = vcmask 24576
        %vm662 = vmand %vm661, %vm329
        %v663 = vld [vmem:[%s652 + $0x8] sm:$0x1]
        %v664 = vsel %vm662, %v348, %v663
        %665 = vst [vmem:[%s652 + $0x8] sm:$0x1] %v664
        %v666 = vld [vmem:[%s652 + $0xc] sm:$0xf]
        %v667 = vsel %vm655, %v355, %v666
        %668 = vst [vmem:[%s652 + $0xc] sm:$0xf] %v667
        %669 = vst.msk [vmem:[%s652 + $0x10] sm:$0xf] %vm659, %v364
        %v670 = vld [vmem:[%s652 + $0x14] sm:$0x1]
        %v671 = vsel %vm662, %v365, %v670
        %672 = vst [vmem:[%s652 + $0x14] sm:$0x1] %v671
        %v673 = vld [vmem:[%s652 + $0x18] sm:$0xf]
        %v674 = vsel %vm655, %v372, %v673
        %675 = vst [vmem:[%s652 + $0x18] sm:$0xf] %v674
        %676 = vst.msk [vmem:[%s652 + $0x1c] sm:$0xf] %vm659, %v381
        %v677 = vld [vmem:[%s652 + $0x20] sm:$0x1]
        %v678 = vsel %vm662, %v382, %v677
        %679 = vst [vmem:[%s652 + $0x20] sm:$0x1] %v678
        %v680 = vld [vmem:[%s652 + $0x24] sm:$0xf]
        %v681 = vsel %vm655, %v389, %v680
        %682 = vst [vmem:[%s652 + $0x24] sm:$0xf] %v681
        %683 = vst.msk [vmem:[%s652 + $0x28] sm:$0xf] %vm659, %v398
        %v684 = vld [vmem:[%s652 + $0x2c] sm:$0x1]
        %v685 = vsel %vm662, %v399, %v684
        %686 = vst [vmem:[%s652 + $0x2c] sm:$0x1] %v685
        %v687 = vld [vmem:[%s652 + $0x30] sm:$0xf]
        %v688 = vsel %vm655, %v406, %v687
        %689 = vst [vmem:[%s652 + $0x30] sm:$0xf] %v688
        %690 = vst.msk [vmem:[%s652 + $0x34] sm:$0xf] %vm659, %v415
        %v691 = vld [vmem:[%s652 + $0x38] sm:$0x1]
        %v692 = vsel %vm662, %v416, %v691
        %693 = vst [vmem:[%s652 + $0x38] sm:$0x1] %v692
        %v694 = vld [vmem:[%s652 + $0x3c] sm:$0xf]
        %v695 = vsel %vm655, %v423, %v694
        %696 = vst [vmem:[%s652 + $0x3c] sm:$0xf] %v695
        %697 = vst.msk [vmem:[%s652 + $0x40] sm:$0xf] %vm659, %v432
        %v698 = vld [vmem:[%s652 + $0x44] sm:$0x1]
        %v699 = vsel %vm662, %v433, %v698
        %700 = vst [vmem:[%s652 + $0x44] sm:$0x1] %v699
        %v701 = vld [vmem:[%s652 + $0x48] sm:$0xf]
        %v702 = vsel %vm655, %v440, %v701
        %703 = vst [vmem:[%s652 + $0x48] sm:$0xf] %v702
        %704 = vst.msk [vmem:[%s652 + $0x4c] sm:$0xf] %vm659, %v449
        %v705 = vld [vmem:[%s652 + $0x50] sm:$0x1]
        %v706 = vsel %vm662, %v450, %v705
        %707 = vst [vmem:[%s652 + $0x50] sm:$0x1] %v706
        %v708 = vld [vmem:[%s652 + $0x54] sm:$0xf]
        %v709 = vsel %vm655, %v457, %v708
        %710 = vst [vmem:[%s652 + $0x54] sm:$0xf] %v709
        %711 = vst.msk [vmem:[%s652 + $0x58] sm:$0xf] %vm659, %v466
        %v712 = vld [vmem:[%s652 + $0x5c] sm:$0x1]
        %v713 = vsel %vm662, %v467, %v712
        %714 = vst [vmem:[%s652 + $0x5c] sm:$0x1] %v713
        %v715 = vld [vmem:[%s652 + $0x60] sm:$0xf]
        %v716 = vsel %vm655, %v474, %v715
        %717 = vst [vmem:[%s652 + $0x60] sm:$0xf] %v716
        %718 = vst.msk [vmem:[%s652 + $0x64] sm:$0xf] %vm659, %v483
        %v719 = vld [vmem:[%s652 + $0x68] sm:$0x1]
        %v720 = vsel %vm662, %v484, %v719
        %721 = vst [vmem:[%s652 + $0x68] sm:$0x1] %v720
        %v722 = vld [vmem:[%s652 + $0x6c] sm:$0xf]
        %v723 = vsel %vm655, %v491, %v722
        %724 = vst [vmem:[%s652 + $0x6c] sm:$0xf] %v723
        %725 = vst.msk [vmem:[%s652 + $0x70] sm:$0xf] %vm659, %v500
        %v726 = vld [vmem:[%s652 + $0x74] sm:$0x1]
        %v727 = vsel %vm662, %v501, %v726
        %728 = vst [vmem:[%s652 + $0x74] sm:$0x1] %v727
        %v729 = vld [vmem:[%s652 + $0x78] sm:$0xf]
        %v730 = vsel %vm655, %v508, %v729
        %731 = vst [vmem:[%s652 + $0x78] sm:$0xf] %v730
        %732 = vst.msk [vmem:[%s652 + $0x7c] sm:$0xf] %vm659, %v517
        %v733 = vld [vmem:[%s652 + $0x80] sm:$0x1]
        %v734 = vsel %vm662, %v518, %v733
        %735 = vst [vmem:[%s652 + $0x80] sm:$0x1] %v734
        %v736 = vld [vmem:[%s652 + $0x84] sm:$0xf]
        %v737 = vsel %vm655, %v525, %v736
        %738 = vst [vmem:[%s652 + $0x84] sm:$0xf] %v737
        %739 = vst.msk [vmem:[%s652 + $0x88] sm:$0xf] %vm659, %v534
        %v740 = vld [vmem:[%s652 + $0x8c] sm:$0x1]
        %v741 = vsel %vm662, %v535, %v740
        %742 = vst [vmem:[%s652 + $0x8c] sm:$0x1] %v741
        %v743 = vld [vmem:[%s652 + $0x90] sm:$0xf]
        %v744 = vsel %vm655, %v542, %v743
        %745 = vst [vmem:[%s652 + $0x90] sm:$0xf] %v744
        %746 = vst.msk [vmem:[%s652 + $0x94] sm:$0xf] %vm659, %v551
        %v747 = vld [vmem:[%s652 + $0x98] sm:$0x1]
        %v748 = vsel %vm662, %v552, %v747
        %749 = vst [vmem:[%s652 + $0x98] sm:$0x1] %v748
        %v750 = vld [vmem:[%s652 + $0x9c] sm:$0xf]
        %v751 = vsel %vm655, %v559, %v750
        %752 = vst [vmem:[%s652 + $0x9c] sm:$0xf] %v751
        %753 = vst.msk [vmem:[%s652 + $0xa0] sm:$0xf] %vm659, %v568
        %v754 = vld [vmem:[%s652 + $0xa4] sm:$0x1]
        %v755 = vsel %vm662, %v569, %v754
        %756 = vst [vmem:[%s652 + $0xa4] sm:$0x1] %v755
        %v757 = vld [vmem:[%s652 + $0xa8] sm:$0xf]
        %v758 = vsel %vm655, %v576, %v757
        %759 = vst [vmem:[%s652 + $0xa8] sm:$0xf] %v758
        %760 = vst.msk [vmem:[%s652 + $0xac] sm:$0xf] %vm659, %v585
        %v761 = vld [vmem:[%s652 + $0xb0] sm:$0x1]
        %v762 = vsel %vm662, %v586, %v761
        %763 = vst [vmem:[%s652 + $0xb0] sm:$0x1] %v762
        %v764 = vld [vmem:[%s652 + $0xb4] sm:$0xf]
        %v765 = vsel %vm655, %v593, %v764
        %766 = vst [vmem:[%s652 + $0xb4] sm:$0xf] %v765
        %767 = vst.msk [vmem:[%s652 + $0xb8] sm:$0xf] %vm659, %v602
        %v768 = vld [vmem:[%s652 + $0xbc] sm:$0x1]
        %v769 = vsel %vm662, %v603, %v768
        %770 = vst [vmem:[%s652 + $0xbc] sm:$0x1] %v769
        %v771 = vld [vmem:[#allocation2] sm:$0xf]
        %v772 = vld [vmem:[#allocation2 + $0x4] sm:$0xf]
        %v773 = vld [vmem:[#allocation2 + $0xc] sm:$0xf]
        %v774 = vld [vmem:[#allocation2 + $0x10] sm:$0xf]
        %v775 = vld [vmem:[#allocation2 + $0x18] sm:$0xf]
        %v776 = vld [vmem:[#allocation2 + $0x1c] sm:$0xf]
        %v777 = vld [vmem:[#allocation2 + $0x24] sm:$0xf]
        %v778 = vld [vmem:[#allocation2 + $0x28] sm:$0xf]
        %v779 = vld [vmem:[#allocation2 + $0x30] sm:$0xf]
        %v780 = vld [vmem:[#allocation2 + $0x34] sm:$0xf]
        %v781 = vld [vmem:[#allocation2 + $0x3c] sm:$0xf]
        %v782 = vld [vmem:[#allocation2 + $0x40] sm:$0xf]
        %v783 = vld [vmem:[#allocation2 + $0x48] sm:$0xf]
        %v784 = vld [vmem:[#allocation2 + $0x4c] sm:$0xf]
        %v785 = vld [vmem:[#allocation2 + $0x54] sm:$0xf]
        %v786 = vld [vmem:[#allocation2 + $0x58] sm:$0xf]
        %v787 = vld [vmem:[#allocation2 + $0x60] sm:$0xf]
        %v788 = vld [vmem:[#allocation2 + $0x64] sm:$0xf]
        %v789 = vld [vmem:[#allocation2 + $0x6c] sm:$0xf]
        %v790 = vld [vmem:[#allocation2 + $0x70] sm:$0xf]
        %v791 = vld [vmem:[#allocation2 + $0x78] sm:$0xf]
        %v792 = vld [vmem:[#allocation2 + $0x7c] sm:$0xf]
        %v793 = vld [vmem:[#allocation2 + $0x84] sm:$0xf]
        %v794 = vld [vmem:[#allocation2 + $0x88] sm:$0xf]
        %v795 = vld [vmem:[#allocation2 + $0x90] sm:$0xf]
        %v796 = vld [vmem:[#allocation2 + $0x94] sm:$0xf]
        %v797 = vld [vmem:[#allocation2 + $0x9c] sm:$0xf]
        %v798 = vld [vmem:[#allocation2 + $0xa0] sm:$0xf]
        %v799 = vld [vmem:[#allocation2 + $0xa8] sm:$0xf]
        %v800 = vld [vmem:[#allocation2 + $0xac] sm:$0xf]
        %v801 = vld [vmem:[#allocation2 + $0xb4] sm:$0xf]
        %v802 = vld [vmem:[#allocation2 + $0xb8] sm:$0xf]
        %v803 = vld [vmem:[#allocation2 + $0x8] sm:$0x1]
        %v804 = vld [vmem:[#allocation2 + $0x14] sm:$0x1]
        %v805 = vld [vmem:[#allocation2 + $0x20] sm:$0x1]
        %v806 = vld [vmem:[#allocation2 + $0x2c] sm:$0x1]
        %v807 = vld [vmem:[#allocation2 + $0x38] sm:$0x1]
        %v808 = vld [vmem:[#allocation2 + $0x44] sm:$0x1]
        %v809 = vld [vmem:[#allocation2 + $0x50] sm:$0x1]
        %v810 = vld [vmem:[#allocation2 + $0x5c] sm:$0x1]
        %v811 = vld [vmem:[#allocation2 + $0x68] sm:$0x1]
        %v812 = vld [vmem:[#allocation2 + $0x74] sm:$0x1]
        %v813 = vld [vmem:[#allocation2 + $0x80] sm:$0x1]
        %v814 = vld [vmem:[#allocation2 + $0x8c] sm:$0x1]
        %v815 = vld [vmem:[#allocation2 + $0x98] sm:$0x1]
        %v816 = vld [vmem:[#allocation2 + $0xa4] sm:$0x1]
        %v817 = vld [vmem:[#allocation2 + $0xb0] sm:$0x1]
        %v818 = vld [vmem:[#allocation2 + $0xbc] sm:$0x1]
        %vm819 = vsmask.f32 3328
        %vm820 = vsmask.f32 7440
        %vm821 = vmor %vm819, %vm820
        %v823 = vshrl.u32 %v771, 16
        %v825 = vrot.slane %v823, 4
        %v826 = vshll.u32 %v771, 16
        %v828 = vrot.slane %v826, 5
        %v829 = vor.u32 %v825, %v828
        %v830 = vrot.slane %v829, 4
        %v832 = vshll.u32 %v772, 16
        %v834 = vrot.slane %v832, 5
        %v835 = vsel %vm821, %v830, %v834
        %v836 = vshrl.u32 %v772, 16
        %v838 = vrot.slane %v836, 4
        %v839 = vor.u32 %v838, %v834
        %v840 = vrot.slane %v839, 4
        %v842 = vshll.u32 %v803, 16
        %v844 = vrot.slane %v842, 5
        %v845 = vsel %vm821, %v840, %v844
        %v847 = vshrl.u32 %v773, 16
        %v849 = vrot.slane %v847, 4
        %v850 = vshll.u32 %v773, 16
        %v852 = vrot.slane %v850, 5
        %v853 = vor.u32 %v849, %v852
        %v854 = vrot.slane %v853, 4
        %v856 = vshll.u32 %v774, 16
        %v858 = vrot.slane %v856, 5
        %v859 = vsel %vm821, %v854, %v858
        %v860 = vshrl.u32 %v774, 16
        %v862 = vrot.slane %v860, 4
        %v863 = vor.u32 %v862, %v858
        %v864 = vrot.slane %v863, 4
        %v866 = vshll.u32 %v804, 16
        %v868 = vrot.slane %v866, 5
        %v869 = vsel %vm821, %v864, %v868
        %v871 = vshrl.u32 %v775, 16
        %v873 = vrot.slane %v871, 4
        %v874 = vshll.u32 %v775, 16
        %v876 = vrot.slane %v874, 5
        %v877 = vor.u32 %v873, %v876
        %v878 = vrot.slane %v877, 4
        %v880 = vshll.u32 %v776, 16
        %v882 = vrot.slane %v880, 5
        %v883 = vsel %vm821, %v878, %v882
        %v884 = vshrl.u32 %v776, 16
        %v886 = vrot.slane %v884, 4
        %v887 = vor.u32 %v886, %v882
        %v888 = vrot.slane %v887, 4
        %v890 = vshll.u32 %v805, 16
        %v892 = vrot.slane %v890, 5
        %v893 = vsel %vm821, %v888, %v892
        %v895 = vshrl.u32 %v777, 16
        %v897 = vrot.slane %v895, 4
        %v898 = vshll.u32 %v777, 16
        %v900 = vrot.slane %v898, 5
        %v901 = vor.u32 %v897, %v900
        %v902 = vrot.slane %v901, 4
        %v904 = vshll.u32 %v778, 16
        %v906 = vrot.slane %v904, 5
        %v907 = vsel %vm821, %v902, %v906
        %v908 = vshrl.u32 %v778, 16
        %v910 = vrot.slane %v908, 4
        %v911 = vor.u32 %v910, %v906
        %v912 = vrot.slane %v911, 4
        %v914 = vshll.u32 %v806, 16
        %v916 = vrot.slane %v914, 5
        %v917 = vsel %vm821, %v912, %v916
        %v919 = vshrl.u32 %v779, 16
        %v921 = vrot.slane %v919, 4
        %v922 = vshll.u32 %v779, 16
        %v924 = vrot.slane %v922, 5
        %v925 = vor.u32 %v921, %v924
        %v926 = vrot.slane %v925, 4
        %v928 = vshll.u32 %v780, 16
        %v930 = vrot.slane %v928, 5
        %v931 = vsel %vm821, %v926, %v930
        %v932 = vshrl.u32 %v780, 16
        %v934 = vrot.slane %v932, 4
        %v935 = vor.u32 %v934, %v930
        %v936 = vrot.slane %v935, 4
        %v938 = vshll.u32 %v807, 16
        %v940 = vrot.slane %v938, 5
        %v941 = vsel %vm821, %v936, %v940
        %v943 = vshrl.u32 %v781, 16
        %v945 = vrot.slane %v943, 4
        %v946 = vshll.u32 %v781, 16
        %v948 = vrot.slane %v946, 5
        %v949 = vor.u32 %v945, %v948
        %v950 = vrot.slane %v949, 4
        %v952 = vshll.u32 %v782, 16
        %v954 = vrot.slane %v952, 5
        %v955 = vsel %vm821, %v950, %v954
        %v956 = vshrl.u32 %v782, 16
        %v958 = vrot.slane %v956, 4
        %v959 = vor.u32 %v958, %v954
        %v960 = vrot.slane %v959, 4
        %v962 = vshll.u32 %v808, 16
        %v964 = vrot.slane %v962, 5
        %v965 = vsel %vm821, %v960, %v964
        %v967 = vshrl.u32 %v783, 16
        %v969 = vrot.slane %v967, 4
        %v970 = vshll.u32 %v783, 16
        %v972 = vrot.slane %v970, 5
        %v973 = vor.u32 %v969, %v972
        %v974 = vrot.slane %v973, 4
        %v976 = vshll.u32 %v784, 16
        %v978 = vrot.slane %v976, 5
        %v979 = vsel %vm821, %v974, %v978
        %v980 = vshrl.u32 %v784, 16
        %v982 = vrot.slane %v980, 4
        %v983 = vor.u32 %v982, %v978
        %v984 = vrot.slane %v983, 4
        %v986 = vshll.u32 %v809, 16
        %v988 = vrot.slane %v986, 5
        %v989 = vsel %vm821, %v984, %v988
        %v991 = vshrl.u32 %v785, 16
        %v993 = vrot.slane %v991, 4
        %v994 = vshll.u32 %v785, 16
        %v996 = vrot.slane %v994, 5
        %v997 = vor.u32 %v993, %v996
        %v998 = vrot.slane %v997, 4
        %v1000 = vshll.u32 %v786, 16
        %v1002 = vrot.slane %v1000, 5
        %v1003 = vsel %vm821, %v998, %v1002
        %v1004 = vshrl.u32 %v786, 16
        %v1006 = vrot.slane %v1004, 4
        %v1007 = vor.u32 %v1006, %v1002
        %v1008 = vrot.slane %v1007, 4
        %v1010 = vshll.u32 %v810, 16
        %v1012 = vrot.slane %v1010, 5
        %v1013 = vsel %vm821, %v1008, %v1012
        %v1015 = vshrl.u32 %v787, 16
        %v1017 = vrot.slane %v1015, 4
        %v1018 = vshll.u32 %v787, 16
        %v1020 = vrot.slane %v1018, 5
        %v1021 = vor.u32 %v1017, %v1020
        %v1022 = vrot.slane %v1021, 4
        %v1024 = vshll.u32 %v788, 16
        %v1026 = vrot.slane %v1024, 5
        %v1027 = vsel %vm821, %v1022, %v1026
        %v1028 = vshrl.u32 %v788, 16
        %v1030 = vrot.slane %v1028, 4
        %v1031 = vor.u32 %v1030, %v1026
        %v1032 = vrot.slane %v1031, 4
        %v1034 = vshll.u32 %v811, 16
        %v1036 = vrot.slane %v1034, 5
        %v1037 = vsel %vm821, %v1032, %v1036
        %v1039 = vshrl.u32 %v789, 16
        %v1041 = vrot.slane %v1039, 4
        %v1042 = vshll.u32 %v789, 16
        %v1044 = vrot.slane %v1042, 5
        %v1045 = vor.u32 %v1041, %v1044
        %v1046 = vrot.slane %v1045, 4
        %v1048 = vshll.u32 %v790, 16
        %v1050 = vrot.slane %v1048, 5
        %v1051 = vsel %vm821, %v1046, %v1050
        %v1052 = vshrl.u32 %v790, 16
        %v1054 = vrot.slane %v1052, 4
        %v1055 = vor.u32 %v1054, %v1050
        %v1056 = vrot.slane %v1055, 4
        %v1058 = vshll.u32 %v812, 16
        %v1060 = vrot.slane %v1058, 5
        %v1061 = vsel %vm821, %v1056, %v1060
        %v1063 = vshrl.u32 %v791, 16
        %v1065 = vrot.slane %v1063, 4
        %v1066 = vshll.u32 %v791, 16
        %v1068 = vrot.slane %v1066, 5
        %v1069 = vor.u32 %v1065, %v1068
        %v1070 = vrot.slane %v1069, 4
        %v1072 = vshll.u32 %v792, 16
        %v1074 = vrot.slane %v1072, 5
        %v1075 = vsel %vm821, %v1070, %v1074
        %v1076 = vshrl.u32 %v792, 16
        %v1078 = vrot.slane %v1076, 4
        %v1079 = vor.u32 %v1078, %v1074
        %v1080 = vrot.slane %v1079, 4
        %v1082 = vshll.u32 %v813, 16
        %v1084 = vrot.slane %v1082, 5
        %v1085 = vsel %vm821, %v1080, %v1084
        %v1087 = vshrl.u32 %v793, 16
        %v1089 = vrot.slane %v1087, 4
        %v1090 = vshll.u32 %v793, 16
        %v1092 = vrot.slane %v1090, 5
        %v1093 = vor.u32 %v1089, %v1092
        %v1094 = vrot.slane %v1093, 4
        %v1096 = vshll.u32 %v794, 16
        %v1098 = vrot.slane %v1096, 5
        %v1099 = vsel %vm821, %v1094, %v1098
        %v1100 = vshrl.u32 %v794, 16
        %v1102 = vrot.slane %v1100, 4
        %v1103 = vor.u32 %v1102, %v1098
        %v1104 = vrot.slane %v1103, 4
        %v1106 = vshll.u32 %v814, 16
        %v1108 = vrot.slane %v1106, 5
        %v1109 = vsel %vm821, %v1104, %v1108
        %v1111 = vshrl.u32 %v795, 16
        %v1113 = vrot.slane %v1111, 4
        %v1114 = vshll.u32 %v795, 16
        %v1116 = vrot.slane %v1114, 5
        %v1117 = vor.u32 %v1113, %v1116
        %v1118 = vrot.slane %v1117, 4
        %v1120 = vshll.u32 %v796, 16
        %v1122 = vrot.slane %v1120, 5
        %v1123 = vsel %vm821, %v1118, %v1122
        %v1124 = vshrl.u32 %v796, 16
        %v1126 = vrot.slane %v1124, 4
        %v1127 = vor.u32 %v1126, %v1122
        %v1128 = vrot.slane %v1127, 4
        %v1130 = vshll.u32 %v815, 16
        %v1132 = vrot.slane %v1130, 5
        %v1133 = vsel %vm821, %v1128, %v1132
        %v1135 = vshrl.u32 %v797, 16
        %v1137 = vrot.slane %v1135, 4
        %v1138 = vshll.u32 %v797, 16
        %v1140 = vrot.slane %v1138, 5
        %v1141 = vor.u32 %v1137, %v1140
        %v1142 = vrot.slane %v1141, 4
        %v1144 = vshll.u32 %v798, 16
        %v1146 = vrot.slane %v1144, 5
        %v1147 = vsel %vm821, %v1142, %v1146
        %v1148 = vshrl.u32 %v798, 16
        %v1150 = vrot.slane %v1148, 4
        %v1151 = vor.u32 %v1150, %v1146
        %v1152 = vrot.slane %v1151, 4
        %v1154 = vshll.u32 %v816, 16
        %v1156 = vrot.slane %v1154, 5
        %v1157 = vsel %vm821, %v1152, %v1156
        %v1159 = vshrl.u32 %v799, 16
        %v1161 = vrot.slane %v1159, 4
        %v1162 = vshll.u32 %v799, 16
        %v1164 = vrot.slane %v1162, 5
        %v1165 = vor.u32 %v1161, %v1164
        %v1166 = vrot.slane %v1165, 4
        %v1168 = vshll.u32 %v800, 16
        %v1170 = vrot.slane %v1168, 5
        %v1171 = vsel %vm821, %v1166, %v1170
        %v1172 = vshrl.u32 %v800, 16
        %v1174 = vrot.slane %v1172, 4
        %v1175 = vor.u32 %v1174, %v1170
        %v1176 = vrot.slane %v1175, 4
        %v1178 = vshll.u32 %v817, 16
        %v1180 = vrot.slane %v1178, 5
        %v1181 = vsel %vm821, %v1176, %v1180
        %v1183 = vshrl.u32 %v801, 16
        %v1185 = vrot.slane %v1183, 4
        %v1186 = vshll.u32 %v801, 16
        %v1188 = vrot.slane %v1186, 5
        %v1189 = vor.u32 %v1185, %v1188
        %v1190 = vrot.slane %v1189, 4
        %v1192 = vshll.u32 %v802, 16
        %v1194 = vrot.slane %v1192, 5
        %v1195 = vsel %vm821, %v1190, %v1194
        %v1196 = vshrl.u32 %v802, 16
        %v1198 = vrot.slane %v1196, 4
        %v1199 = vor.u32 %v1198, %v1194
        %v1200 = vrot.slane %v1199, 4
        %v1202 = vshll.u32 %v818, 16
        %v1204 = vrot.slane %v1202, 5
        %v1205 = vsel %vm821, %v1200, %v1204
        %v1206 = vld [vmem:[#allocation2] sm:$0xe]
        %v1207 = vld [vmem:[#allocation2 + $0xc] sm:$0xe]
        %v1208 = vld [vmem:[#allocation2 + $0x18] sm:$0xe]
        %v1209 = vld [vmem:[#allocation2 + $0x24] sm:$0xe]
        %v1210 = vld [vmem:[#allocation2 + $0x30] sm:$0xe]
        %v1211 = vld [vmem:[#allocation2 + $0x3c] sm:$0xe]
        %v1212 = vld [vmem:[#allocation2 + $0x48] sm:$0xe]
        %v1213 = vld [vmem:[#allocation2 + $0x54] sm:$0xe]
        %v1214 = vld [vmem:[#allocation2 + $0x60] sm:$0xe]
        %v1215 = vld [vmem:[#allocation2 + $0x6c] sm:$0xe]
        %v1216 = vld [vmem:[#allocation2 + $0x78] sm:$0xe]
        %v1217 = vld [vmem:[#allocation2 + $0x84] sm:$0xe]
        %v1218 = vld [vmem:[#allocation2 + $0x90] sm:$0xe]
        %v1219 = vld [vmem:[#allocation2 + $0x9c] sm:$0xe]
        %v1220 = vld [vmem:[#allocation2 + $0xa8] sm:$0xe]
        %v1221 = vld [vmem:[#allocation2 + $0xb4] sm:$0xe]
        %vm1270 = vcmask 1042432
        %vm1271 = vcmask 1046532
        %vm1272 = vmor %vm1270, %vm1271
        %v1273 = vrot.slane %v1206, 5
        %v1274 = vrot.slane %v1273, 4
        %v1275 = vrot.slane %v772, 5
        %v1276 = vsel %vm1272, %v1274, %v1275
        %v1277 = vrot.slane %v1275, 4
        %v1278 = vrot.slane %v803, 5
        %v1279 = vsel %vm1272, %v1277, %v1278
        %v1280 = vrot.slane %v1207, 5
        %v1281 = vrot.slane %v1280, 4
        %v1282 = vrot.slane %v774, 5
        %v1283 = vsel %vm1272, %v1281, %v1282
        %v1284 = vrot.slane %v1282, 4
        %v1285 = vrot.slane %v804, 5
        %v1286 = vsel %vm1272, %v1284, %v1285
        %v1287 = vrot.slane %v1208, 5
        %v1288 = vrot.slane %v1287, 4
        %v1289 = vrot.slane %v776, 5
        %v1290 = vsel %vm1272, %v1288, %v1289
        %v1291 = vrot.slane %v1289, 4
        %v1292 = vrot.slane %v805, 5
        %v1293 = vsel %vm1272, %v1291, %v1292
        %v1294 = vrot.slane %v1209, 5
        %v1295 = vrot.slane %v1294, 4
        %v1296 = vrot.slane %v778, 5
        %v1297 = vsel %vm1272, %v1295, %v1296
        %v1298 = vrot.slane %v1296, 4
        %v1299 = vrot.slane %v806, 5
        %v1300 = vsel %vm1272, %v1298, %v1299
        %v1301 = vrot.slane %v1210, 5
        %v1302 = vrot.slane %v1301, 4
        %v1303 = vrot.slane %v780, 5
        %v1304 = vsel %vm1272, %v1302, %v1303
        %v1305 = vrot.slane %v1303, 4
        %v1306 = vrot.slane %v807, 5
        %v1307 = vsel %vm1272, %v1305, %v1306
        %v1308 = vrot.slane %v1211, 5
        %v1309 = vrot.slane %v1308, 4
        %v1310 = vrot.slane %v782, 5
        %v1311 = vsel %vm1272, %v1309, %v1310
        %v1312 = vrot.slane %v1310, 4
        %v1313 = vrot.slane %v808, 5
        %v1314 = vsel %vm1272, %v1312, %v1313
        %v1315 = vrot.slane %v1212, 5
        %v1316 = vrot.slane %v1315, 4
        %v1317 = vrot.slane %v784, 5
        %v1318 = vsel %vm1272, %v1316, %v1317
        %v1319 = vrot.slane %v1317, 4
        %v1320 = vrot.slane %v809, 5
        %v1321 = vsel %vm1272, %v1319, %v1320
        %v1322 = vrot.slane %v1213, 5
        %v1323 = vrot.slane %v1322, 4
        %v1324 = vrot.slane %v786, 5
        %v1325 = vsel %vm1272, %v1323, %v1324
        %v1326 = vrot.slane %v1324, 4
        %v1327 = vrot.slane %v810, 5
        %v1328 = vsel %vm1272, %v1326, %v1327
        %v1329 = vrot.slane %v1214, 5
        %v1330 = vrot.slane %v1329, 4
        %v1331 = vrot.slane %v788, 5
        %v1332 = vsel %vm1272, %v1330, %v1331
        %v1333 = vrot.slane %v1331, 4
        %v1334 = vrot.slane %v811, 5
        %v1335 = vsel %vm1272, %v1333, %v1334
        %v1336 = vrot.slane %v1215, 5
        %v1337 = vrot.slane %v1336, 4
        %v1338 = vrot.slane %v790, 5
        %v1339 = vsel %vm1272, %v1337, %v1338
        %v1340 = vrot.slane %v1338, 4
        %v1341 = vrot.slane %v812, 5
        %v1342 = vsel %vm1272, %v1340, %v1341
        %v1343 = vrot.slane %v1216, 5
        %v1344 = vrot.slane %v1343, 4
        %v1345 = vrot.slane %v792, 5
        %v1346 = vsel %vm1272, %v1344, %v1345
        %v1347 = vrot.slane %v1345, 4
        %v1348 = vrot.slane %v813, 5
        %v1349 = vsel %vm1272, %v1347, %v1348
        %v1350 = vrot.slane %v1217, 5
        %v1351 = vrot.slane %v1350, 4
        %v1352 = vrot.slane %v794, 5
        %v1353 = vsel %vm1272, %v1351, %v1352
        %v1354 = vrot.slane %v1352, 4
        %v1355 = vrot.slane %v814, 5
        %v1356 = vsel %vm1272, %v1354, %v1355
        %v1357 = vrot.slane %v1218, 5
        %v1358 = vrot.slane %v1357, 4
        %v1359 = vrot.slane %v796, 5
        %v1360 = vsel %vm1272, %v1358, %v1359
        %v1361 = vrot.slane %v1359, 4
        %v1362 = vrot.slane %v815, 5
        %v1363 = vsel %vm1272, %v1361, %v1362
        %v1364 = vrot.slane %v1219, 5
        %v1365 = vrot.slane %v1364, 4
        %v1366 = vrot.slane %v798, 5
        %v1367 = vsel %vm1272, %v1365, %v1366
        %v1368 = vrot.slane %v1366, 4
        %v1369 = vrot.slane %v816, 5
        %v1370 = vsel %vm1272, %v1368, %v1369
        %v1371 = vrot.slane %v1220, 5
        %v1372 = vrot.slane %v1371, 4
        %v1373 = vrot.slane %v800, 5
        %v1374 = vsel %vm1272, %v1372, %v1373
        %v1375 = vrot.slane %v1373, 4
        %v1376 = vrot.slane %v817, 5
        %v1377 = vsel %vm1272, %v1375, %v1376
        %v1378 = vrot.slane %v1221, 5
        %v1379 = vrot.slane %v1378, 4
        %v1380 = vrot.slane %v802, 5
        %v1381 = vsel %vm1272, %v1379, %v1380
        %v1382 = vrot.slane %v1380, 4
        %v1383 = vrot.slane %v818, 5
        %v1384 = vsel %vm1272, %v1382, %v1383
        %v1385 = vld [vmem:[%s652] sm:$0xf]
        %v1386 = vld [vmem:[%s652 + $0x4] sm:$0xf]
        %v1387 = vld [vmem:[%s652 + $0xc] sm:$0xf]
        %v1388 = vld [vmem:[%s652 + $0x10] sm:$0xf]
        %v1389 = vld [vmem:[%s652 + $0x18] sm:$0xf]
        %v1390 = vld [vmem:[%s652 + $0x1c] sm:$0xf]
        %v1391 = vld [vmem:[%s652 + $0x24] sm:$0xf]
        %v1392 = vld [vmem:[%s652 + $0x28] sm:$0xf]
        %v1393 = vld [vmem:[%s652 + $0x30] sm:$0xf]
        %v1394 = vld [vmem:[%s652 + $0x34] sm:$0xf]
        %v1395 = vld [vmem:[%s652 + $0x3c] sm:$0xf]
        %v1396 = vld [vmem:[%s652 + $0x40] sm:$0xf]
        %v1397 = vld [vmem:[%s652 + $0x48] sm:$0xf]
        %v1398 = vld [vmem:[%s652 + $0x4c] sm:$0xf]
        %v1399 = vld [vmem:[%s652 + $0x54] sm:$0xf]
        %v1400 = vld [vmem:[%s652 + $0x58] sm:$0xf]
        %v1401 = vld [vmem:[%s652 + $0x60] sm:$0xf]
        %v1402 = vld [vmem:[%s652 + $0x64] sm:$0xf]
        %v1403 = vld [vmem:[%s652 + $0x6c] sm:$0xf]
        %v1404 = vld [vmem:[%s652 + $0x70] sm:$0xf]
        %v1405 = vld [vmem:[%s652 + $0x78] sm:$0xf]
        %v1406 = vld [vmem:[%s652 + $0x7c] sm:$0xf]
        %v1407 = vld [vmem:[%s652 + $0x84] sm:$0xf]
        %v1408 = vld [vmem:[%s652 + $0x88] sm:$0xf]
        %v1409 = vld [vmem:[%s652 + $0x90] sm:$0xf]
        %v1410 = vld [vmem:[%s652 + $0x94] sm:$0xf]
        %v1411 = vld [vmem:[%s652 + $0x9c] sm:$0xf]
        %v1412 = vld [vmem:[%s652 + $0xa0] sm:$0xf]
        %v1413 = vld [vmem:[%s652 + $0xa8] sm:$0xf]
        %v1414 = vld [vmem:[%s652 + $0xac] sm:$0xf]
        %v1415 = vld [vmem:[%s652 + $0xb4] sm:$0xf]
        %v1416 = vld [vmem:[%s652 + $0xb8] sm:$0xf]
        %v1417 = vld [vmem:[%s652 + $0x8] sm:$0x1]
        %v1418 = vld [vmem:[%s652 + $0x14] sm:$0x1]
        %v1419 = vld [vmem:[%s652 + $0x20] sm:$0x1]
        %v1420 = vld [vmem:[%s652 + $0x2c] sm:$0x1]
        %v1421 = vld [vmem:[%s652 + $0x38] sm:$0x1]
        %v1422 = vld [vmem:[%s652 + $0x44] sm:$0x1]
        %v1423 = vld [vmem:[%s652 + $0x50] sm:$0x1]
        %v1424 = vld [vmem:[%s652 + $0x5c] sm:$0x1]
        %v1425 = vld [vmem:[%s652 + $0x68] sm:$0x1]
        %v1426 = vld [vmem:[%s652 + $0x74] sm:$0x1]
        %v1427 = vld [vmem:[%s652 + $0x80] sm:$0x1]
        %v1428 = vld [vmem:[%s652 + $0x8c] sm:$0x1]
        %v1429 = vld [vmem:[%s652 + $0x98] sm:$0x1]
        %v1430 = vld [vmem:[%s652 + $0xa4] sm:$0x1]
        %v1431 = vld [vmem:[%s652 + $0xb0] sm:$0x1]
        %v1432 = vld [vmem:[%s652 + $0xbc] sm:$0x1]
        %v1434 = vshrl.u32 %v1385, 16
        %v1436 = vrot.slane %v1434, 4
        %v1437 = vshll.u32 %v1385, 16
        %v1439 = vrot.slane %v1437, 5
        %v1440 = vor.u32 %v1436, %v1439
        %v1441 = vrot.slane %v1440, 4
        %v1443 = vshll.u32 %v1386, 16
        %v1445 = vrot.slane %v1443, 5
        %v1446 = vsel %vm821, %v1441, %v1445
        %v1447 = vshrl.u32 %v1386, 16
        %v1449 = vrot.slane %v1447, 4
        %v1450 = vor.u32 %v1449, %v1445
        %v1451 = vrot.slane %v1450, 4
        %v1453 = vshll.u32 %v1417, 16
        %v1455 = vrot.slane %v1453, 5
        %v1456 = vsel %vm821, %v1451, %v1455
        %v1458 = vshrl.u32 %v1387, 16
        %v1460 = vrot.slane %v1458, 4
        %v1461 = vshll.u32 %v1387, 16
        %v1463 = vrot.slane %v1461, 5
        %v1464 = vor.u32 %v1460, %v1463
        %v1465 = vrot.slane %v1464, 4
        %v1467 = vshll.u32 %v1388, 16
        %v1469 = vrot.slane %v1467, 5
        %v1470 = vsel %vm821, %v1465, %v1469
        %v1471 = vshrl.u32 %v1388, 16
        %v1473 = vrot.slane %v1471, 4
        %v1474 = vor.u32 %v1473, %v1469
        %v1475 = vrot.slane %v1474, 4
        %v1477 = vshll.u32 %v1418, 16
        %v1479 = vrot.slane %v1477, 5
        %v1480 = vsel %vm821, %v1475, %v1479
        %v1482 = vshrl.u32 %v1389, 16
        %v1484 = vrot.slane %v1482, 4
        %v1485 = vshll.u32 %v1389, 16
        %v1487 = vrot.slane %v1485, 5
        %v1488 = vor.u32 %v1484, %v1487
        %v1489 = vrot.slane %v1488, 4
        %v1491 = vshll.u32 %v1390, 16
        %v1493 = vrot.slane %v1491, 5
        %v1494 = vsel %vm821, %v1489, %v1493
        %v1495 = vshrl.u32 %v1390, 16
        %v1497 = vrot.slane %v1495, 4
        %v1498 = vor.u32 %v1497, %v1493
        %v1499 = vrot.slane %v1498, 4
        %v1501 = vshll.u32 %v1419, 16
        %v1503 = vrot.slane %v1501, 5
        %v1504 = vsel %vm821, %v1499, %v1503
        %v1506 = vshrl.u32 %v1391, 16
        %v1508 = vrot.slane %v1506, 4
        %v1509 = vshll.u32 %v1391, 16
        %v1511 = vrot.slane %v1509, 5
        %v1512 = vor.u32 %v1508, %v1511
        %v1513 = vrot.slane %v1512, 4
        %v1515 = vshll.u32 %v1392, 16
        %v1517 = vrot.slane %v1515, 5
        %v1518 = vsel %vm821, %v1513, %v1517
        %v1519 = vshrl.u32 %v1392, 16
        %v1521 = vrot.slane %v1519, 4
        %v1522 = vor.u32 %v1521, %v1517
        %v1523 = vrot.slane %v1522, 4
        %v1525 = vshll.u32 %v1420, 16
        %v1527 = vrot.slane %v1525, 5
        %v1528 = vsel %vm821, %v1523, %v1527
        %v1530 = vshrl.u32 %v1393, 16
        %v1532 = vrot.slane %v1530, 4
        %v1533 = vshll.u32 %v1393, 16
        %v1535 = vrot.slane %v1533, 5
        %v1536 = vor.u32 %v1532, %v1535
        %v1537 = vrot.slane %v1536, 4
        %v1539 = vshll.u32 %v1394, 16
        %v1541 = vrot.slane %v1539, 5
        %v1542 = vsel %vm821, %v1537, %v1541
        %v1543 = vshrl.u32 %v1394, 16
        %v1545 = vrot.slane %v1543, 4
        %v1546 = vor.u32 %v1545, %v1541
        %v1547 = vrot.slane %v1546, 4
        %v1549 = vshll.u32 %v1421, 16
        %v1551 = vrot.slane %v1549, 5
        %v1552 = vsel %vm821, %v1547, %v1551
        %v1554 = vshrl.u32 %v1395, 16
        %v1556 = vrot.slane %v1554, 4
        %v1557 = vshll.u32 %v1395, 16
        %v1559 = vrot.slane %v1557, 5
        %v1560 = vor.u32 %v1556, %v1559
        %v1561 = vrot.slane %v1560, 4
        %v1563 = vshll.u32 %v1396, 16
        %v1565 = vrot.slane %v1563, 5
        %v1566 = vsel %vm821, %v1561, %v1565
        %v1567 = vshrl.u32 %v1396, 16
        %v1569 = vrot.slane %v1567, 4
        %v1570 = vor.u32 %v1569, %v1565
        %v1571 = vrot.slane %v1570, 4
        %v1573 = vshll.u32 %v1422, 16
        %v1575 = vrot.slane %v1573, 5
        %v1576 = vsel %vm821, %v1571, %v1575
        %v1578 = vshrl.u32 %v1397, 16
        %v1580 = vrot.slane %v1578, 4
        %v1581 = vshll.u32 %v1397, 16
        %v1583 = vrot.slane %v1581, 5
        %v1584 = vor.u32 %v1580, %v1583
        %v1585 = vrot.slane %v1584, 4
        %v1587 = vshll.u32 %v1398, 16
        %v1589 = vrot.slane %v1587, 5
        %v1590 = vsel %vm821, %v1585, %v1589
        %v1591 = vshrl.u32 %v1398, 16
        %v1593 = vrot.slane %v1591, 4
        %v1594 = vor.u32 %v1593, %v1589
        %v1595 = vrot.slane %v1594, 4
        %v1597 = vshll.u32 %v1423, 16
        %v1599 = vrot.slane %v1597, 5
        %v1600 = vsel %vm821, %v1595, %v1599
        %v1602 = vshrl.u32 %v1399, 16
        %v1604 = vrot.slane %v1602, 4
        %v1605 = vshll.u32 %v1399, 16
        %v1607 = vrot.slane %v1605, 5
        %v1608 = vor.u32 %v1604, %v1607
        %v1609 = vrot.slane %v1608, 4
        %v1611 = vshll.u32 %v1400, 16
        %v1613 = vrot.slane %v1611, 5
        %v1614 = vsel %vm821, %v1609, %v1613
        %v1615 = vshrl.u32 %v1400, 16
        %v1617 = vrot.slane %v1615, 4
        %v1618 = vor.u32 %v1617, %v1613
        %v1619 = vrot.slane %v1618, 4
        %v1621 = vshll.u32 %v1424, 16
        %v1623 = vrot.slane %v1621, 5
        %v1624 = vsel %vm821, %v1619, %v1623
        %v1626 = vshrl.u32 %v1401, 16
        %v1628 = vrot.slane %v1626, 4
        %v1629 = vshll.u32 %v1401, 16
        %v1631 = vrot.slane %v1629, 5
        %v1632 = vor.u32 %v1628, %v1631
        %v1633 = vrot.slane %v1632, 4
        %v1635 = vshll.u32 %v1402, 16
        %v1637 = vrot.slane %v1635, 5
        %v1638 = vsel %vm821, %v1633, %v1637
        %v1639 = vshrl.u32 %v1402, 16
        %v1641 = vrot.slane %v1639, 4
        %v1642 = vor.u32 %v1641, %v1637
        %v1643 = vrot.slane %v1642, 4
        %v1645 = vshll.u32 %v1425, 16
        %v1647 = vrot.slane %v1645, 5
        %v1648 = vsel %vm821, %v1643, %v1647
        %v1650 = vshrl.u32 %v1403, 16
        %v1652 = vrot.slane %v1650, 4
        %v1653 = vshll.u32 %v1403, 16
        %v1655 = vrot.slane %v1653, 5
        %v1656 = vor.u32 %v1652, %v1655
        %v1657 = vrot.slane %v1656, 4
        %v1659 = vshll.u32 %v1404, 16
        %v1661 = vrot.slane %v1659, 5
        %v1662 = vsel %vm821, %v1657, %v1661
        %v1663 = vshrl.u32 %v1404, 16
        %v1665 = vrot.slane %v1663, 4
        %v1666 = vor.u32 %v1665, %v1661
        %v1667 = vrot.slane %v1666, 4
        %v1669 = vshll.u32 %v1426, 16
        %v1671 = vrot.slane %v1669, 5
        %v1672 = vsel %vm821, %v1667, %v1671
        %v1674 = vshrl.u32 %v1405, 16
        %v1676 = vrot.slane %v1674, 4
        %v1677 = vshll.u32 %v1405, 16
        %v1679 = vrot.slane %v1677, 5
        %v1680 = vor.u32 %v1676, %v1679
        %v1681 = vrot.slane %v1680, 4
        %v1683 = vshll.u32 %v1406, 16
        %v1685 = vrot.slane %v1683, 5
        %v1686 = vsel %vm821, %v1681, %v1685
        %v1687 = vshrl.u32 %v1406, 16
        %v1689 = vrot.slane %v1687, 4
        %v1690 = vor.u32 %v1689, %v1685
        %v1691 = vrot.slane %v1690, 4
        %v1693 = vshll.u32 %v1427, 16
        %v1695 = vrot.slane %v1693, 5
        %v1696 = vsel %vm821, %v1691, %v1695
        %v1698 = vshrl.u32 %v1407, 16
        %v1700 = vrot.slane %v1698, 4
        %v1701 = vshll.u32 %v1407, 16
        %v1703 = vrot.slane %v1701, 5
        %v1704 = vor.u32 %v1700, %v1703
        %v1705 = vrot.slane %v1704, 4
        %v1707 = vshll.u32 %v1408, 16
        %v1709 = vrot.slane %v1707, 5
        %v1710 = vsel %vm821, %v1705, %v1709
        %v1711 = vshrl.u32 %v1408, 16
        %v1713 = vrot.slane %v1711, 4
        %v1714 = vor.u32 %v1713, %v1709
        %v1715 = vrot.slane %v1714, 4
        %v1717 = vshll.u32 %v1428, 16
        %v1719 = vrot.slane %v1717, 5
        %v1720 = vsel %vm821, %v1715, %v1719
        %v1722 = vshrl.u32 %v1409, 16
        %v1724 = vrot.slane %v1722, 4
        %v1725 = vshll.u32 %v1409, 16
        %v1727 = vrot.slane %v1725, 5
        %v1728 = vor.u32 %v1724, %v1727
        %v1729 = vrot.slane %v1728, 4
        %v1731 = vshll.u32 %v1410, 16
        %v1733 = vrot.slane %v1731, 5
        %v1734 = vsel %vm821, %v1729, %v1733
        %v1735 = vshrl.u32 %v1410, 16
        %v1737 = vrot.slane %v1735, 4
        %v1738 = vor.u32 %v1737, %v1733
        %v1739 = vrot.slane %v1738, 4
        %v1741 = vshll.u32 %v1429, 16
        %v1743 = vrot.slane %v1741, 5
        %v1744 = vsel %vm821, %v1739, %v1743
        %v1746 = vshrl.u32 %v1411, 16
        %v1748 = vrot.slane %v1746, 4
        %v1749 = vshll.u32 %v1411, 16
        %v1751 = vrot.slane %v1749, 5
        %v1752 = vor.u32 %v1748, %v1751
        %v1753 = vrot.slane %v1752, 4
        %v1755 = vshll.u32 %v1412, 16
        %v1757 = vrot.slane %v1755, 5
        %v1758 = vsel %vm821, %v1753, %v1757
        %v1759 = vshrl.u32 %v1412, 16
        %v1761 = vrot.slane %v1759, 4
        %v1762 = vor.u32 %v1761, %v1757
        %v1763 = vrot.slane %v1762, 4
        %v1765 = vshll.u32 %v1430, 16
        %v1767 = vrot.slane %v1765, 5
        %v1768 = vsel %vm821, %v1763, %v1767
        %v1770 = vshrl.u32 %v1413, 16
        %v1772 = vrot.slane %v1770, 4
        %v1773 = vshll.u32 %v1413, 16
        %v1775 = vrot.slane %v1773, 5
        %v1776 = vor.u32 %v1772, %v1775
        %v1777 = vrot.slane %v1776, 4
        %v1779 = vshll.u32 %v1414, 16
        %v1781 = vrot.slane %v1779, 5
        %v1782 = vsel %vm821, %v1777, %v1781
        %v1783 = vshrl.u32 %v1414, 16
        %v1785 = vrot.slane %v1783, 4
        %v1786 = vor.u32 %v1785, %v1781
        %v1787 = vrot.slane %v1786, 4
        %v1789 = vshll.u32 %v1431, 16
        %v1791 = vrot.slane %v1789, 5
        %v1792 = vsel %vm821, %v1787, %v1791
        %v1794 = vshrl.u32 %v1415, 16
        %v1796 = vrot.slane %v1794, 4
        %v1797 = vshll.u32 %v1415, 16
        %v1799 = vrot.slane %v1797, 5
        %v1800 = vor.u32 %v1796, %v1799
        %v1801 = vrot.slane %v1800, 4
        %v1803 = vshll.u32 %v1416, 16
        %v1805 = vrot.slane %v1803, 5
        %v1806 = vsel %vm821, %v1801, %v1805
        %v1807 = vshrl.u32 %v1416, 16
        %v1809 = vrot.slane %v1807, 4
        %v1810 = vor.u32 %v1809, %v1805
        %v1811 = vrot.slane %v1810, 4
        %v1813 = vshll.u32 %v1432, 16
        %v1815 = vrot.slane %v1813, 5
        %v1816 = vsel %vm821, %v1811, %v1815
        %v1817 = vld [vmem:[%s652] sm:$0xe]
        %v1818 = vld [vmem:[%s652 + $0xc] sm:$0xe]
        %v1819 = vld [vmem:[%s652 + $0x18] sm:$0xe]
        %v1820 = vld [vmem:[%s652 + $0x24] sm:$0xe]
        %v1821 = vld [vmem:[%s652 + $0x30] sm:$0xe]
        %v1822 = vld [vmem:[%s652 + $0x3c] sm:$0xe]
        %v1823 = vld [vmem:[%s652 + $0x48] sm:$0xe]
        %v1824 = vld [vmem:[%s652 + $0x54] sm:$0xe]
        %v1825 = vld [vmem:[%s652 + $0x60] sm:$0xe]
        %v1826 = vld [vmem:[%s652 + $0x6c] sm:$0xe]
        %v1827 = vld [vmem:[%s652 + $0x78] sm:$0xe]
        %v1828 = vld [vmem:[%s652 + $0x84] sm:$0xe]
        %v1829 = vld [vmem:[%s652 + $0x90] sm:$0xe]
        %v1830 = vld [vmem:[%s652 + $0x9c] sm:$0xe]
        %v1831 = vld [vmem:[%s652 + $0xa8] sm:$0xe]
        %v1832 = vld [vmem:[%s652 + $0xb4] sm:$0xe]
        %v1881 = vrot.slane %v1817, 5
        %v1882 = vrot.slane %v1881, 4
        %v1883 = vrot.slane %v1386, 5
        %v1884 = vsel %vm1272, %v1882, %v1883
        %v1885 = vrot.slane %v1883, 4
        %v1886 = vrot.slane %v1417, 5
        %v1887 = vsel %vm1272, %v1885, %v1886
        %v1888 = vrot.slane %v1818, 5
        %v1889 = vrot.slane %v1888, 4
        %v1890 = vrot.slane %v1388, 5
        %v1891 = vsel %vm1272, %v1889, %v1890
        %v1892 = vrot.slane %v1890, 4
        %v1893 = vrot.slane %v1418, 5
        %v1894 = vsel %vm1272, %v1892, %v1893
        %v1895 = vrot.slane %v1819, 5
        %v1896 = vrot.slane %v1895, 4
        %v1897 = vrot.slane %v1390, 5
        %v1898 = vsel %vm1272, %v1896, %v1897
        %v1899 = vrot.slane %v1897, 4
        %v1900 = vrot.slane %v1419, 5
        %v1901 = vsel %vm1272, %v1899, %v1900
        %v1902 = vrot.slane %v1820, 5
        %v1903 = vrot.slane %v1902, 4
        %v1904 = vrot.slane %v1392, 5
        %v1905 = vsel %vm1272, %v1903, %v1904
        %v1906 = vrot.slane %v1904, 4
        %v1907 = vrot.slane %v1420, 5
        %v1908 = vsel %vm1272, %v1906, %v1907
        %v1909 = vrot.slane %v1821, 5
        %v1910 = vrot.slane %v1909, 4
        %v1911 = vrot.slane %v1394, 5
        %v1912 = vsel %vm1272, %v1910, %v1911
        %v1913 = vrot.slane %v1911, 4
        %v1914 = vrot.slane %v1421, 5
        %v1915 = vsel %vm1272, %v1913, %v1914
        %v1916 = vrot.slane %v1822, 5
        %v1917 = vrot.slane %v1916, 4
        %v1918 = vrot.slane %v1396, 5
        %v1919 = vsel %vm1272, %v1917, %v1918
        %v1920 = vrot.slane %v1918, 4
        %v1921 = vrot.slane %v1422, 5
        %v1922 = vsel %vm1272, %v1920, %v1921
        %v1923 = vrot.slane %v1823, 5
        %v1924 = vrot.slane %v1923, 4
        %v1925 = vrot.slane %v1398, 5
        %v1926 = vsel %vm1272, %v1924, %v1925
        %v1927 = vrot.slane %v1925, 4
        %v1928 = vrot.slane %v1423, 5
        %v1929 = vsel %vm1272, %v1927, %v1928
        %v1930 = vrot.slane %v1824, 5
        %v1931 = vrot.slane %v1930, 4
        %v1932 = vrot.slane %v1400, 5
        %v1933 = vsel %vm1272, %v1931, %v1932
        %v1934 = vrot.slane %v1932, 4
        %v1935 = vrot.slane %v1424, 5
        %v1936 = vsel %vm1272, %v1934, %v1935
        %v1937 = vrot.slane %v1825, 5
        %v1938 = vrot.slane %v1937, 4
        %v1939 = vrot.slane %v1402, 5
        %v1940 = vsel %vm1272, %v1938, %v1939
        %v1941 = vrot.slane %v1939, 4
        %v1942 = vrot.slane %v1425, 5
        %v1943 = vsel %vm1272, %v1941, %v1942
        %v1944 = vrot.slane %v1826, 5
        %v1945 = vrot.slane %v1944, 4
        %v1946 = vrot.slane %v1404, 5
        %v1947 = vsel %vm1272, %v1945, %v1946
        %v1948 = vrot.slane %v1946, 4
        %v1949 = vrot.slane %v1426, 5
        %v1950 = vsel %vm1272, %v1948, %v1949
        %v1951 = vrot.slane %v1827, 5
        %v1952 = vrot.slane %v1951, 4
        %v1953 = vrot.slane %v1406, 5
        %v1954 = vsel %vm1272, %v1952, %v1953
        %v1955 = vrot.slane %v1953, 4
        %v1956 = vrot.slane %v1427, 5
        %v1957 = vsel %vm1272, %v1955, %v1956
        %v1958 = vrot.slane %v1828, 5
        %v1959 = vrot.slane %v1958, 4
        %v1960 = vrot.slane %v1408, 5
        %v1961 = vsel %vm1272, %v1959, %v1960
        %v1962 = vrot.slane %v1960, 4
        %v1963 = vrot.slane %v1428, 5
        %v1964 = vsel %vm1272, %v1962, %v1963
        %v1965 = vrot.slane %v1829, 5
        %v1966 = vrot.slane %v1965, 4
        %v1967 = vrot.slane %v1410, 5
        %v1968 = vsel %vm1272, %v1966, %v1967
        %v1969 = vrot.slane %v1967, 4
        %v1970 = vrot.slane %v1429, 5
        %v1971 = vsel %vm1272, %v1969, %v1970
        %v1972 = vrot.slane %v1830, 5
        %v1973 = vrot.slane %v1972, 4
        %v1974 = vrot.slane %v1412, 5
        %v1975 = vsel %vm1272, %v1973, %v1974
        %v1976 = vrot.slane %v1974, 4
        %v1977 = vrot.slane %v1430, 5
        %v1978 = vsel %vm1272, %v1976, %v1977
        %v1979 = vrot.slane %v1831, 5
        %v1980 = vrot.slane %v1979, 4
        %v1981 = vrot.slane %v1414, 5
        %v1982 = vsel %vm1272, %v1980, %v1981
        %v1983 = vrot.slane %v1981, 4
        %v1984 = vrot.slane %v1431, 5
        %v1985 = vsel %vm1272, %v1983, %v1984
        %v1986 = vrot.slane %v1832, 5
        %v1987 = vrot.slane %v1986, 4
        %v1988 = vrot.slane %v1416, 5
        %v1989 = vsel %vm1272, %v1987, %v1988
        %v1990 = vrot.slane %v1988, 4
        %v1991 = vrot.slane %v1432, 5
        %v1992 = vsel %vm1272, %v1990, %v1991
        %s1993 = scalar_lea.vmem [#allocation2], 24
        %v1994 = vld [vmem:[%s1993] sm:$0xf]
        %v1995 = vld [vmem:[%s1993 + $0x4] sm:$0xf]
        %v1996 = vld [vmem:[%s1993 + $0xc] sm:$0xf]
        %v1997 = vld [vmem:[%s1993 + $0x10] sm:$0xf]
        %v1998 = vld [vmem:[%s1993 + $0x18] sm:$0xf]
        %v1999 = vld [vmem:[%s1993 + $0x1c] sm:$0xf]
        %v2000 = vld [vmem:[%s1993 + $0x24] sm:$0xf]
        %v2001 = vld [vmem:[%s1993 + $0x28] sm:$0xf]
        %v2002 = vld [vmem:[%s1993 + $0x30] sm:$0xf]
        %v2003 = vld [vmem:[%s1993 + $0x34] sm:$0xf]
        %v2004 = vld [vmem:[%s1993 + $0x3c] sm:$0xf]
        %v2005 = vld [vmem:[%s1993 + $0x40] sm:$0xf]
        %v2006 = vld [vmem:[%s1993 + $0x48] sm:$0xf]
        %v2007 = vld [vmem:[%s1993 + $0x4c] sm:$0xf]
        %v2008 = vld [vmem:[%s1993 + $0x54] sm:$0xf]
        %v2009 = vld [vmem:[%s1993 + $0x58] sm:$0xf]
        %v2010 = vld [vmem:[%s1993 + $0x60] sm:$0xf]
        %v2011 = vld [vmem:[%s1993 + $0x64] sm:$0xf]
        %v2012 = vld [vmem:[%s1993 + $0x6c] sm:$0xf]
        %v2013 = vld [vmem:[%s1993 + $0x70] sm:$0xf]
        %v2014 = vld [vmem:[%s1993 + $0x78] sm:$0xf]
        %v2015 = vld [vmem:[%s1993 + $0x7c] sm:$0xf]
        %v2016 = vld [vmem:[%s1993 + $0x84] sm:$0xf]
        %v2017 = vld [vmem:[%s1993 + $0x88] sm:$0xf]
        %v2018 = vld [vmem:[%s1993 + $0x90] sm:$0xf]
        %v2019 = vld [vmem:[%s1993 + $0x94] sm:$0xf]
        %v2020 = vld [vmem:[%s1993 + $0x9c] sm:$0xf]
        %v2021 = vld [vmem:[%s1993 + $0xa0] sm:$0xf]
        %v2022 = vld [vmem:[%s1993 + $0xa8] sm:$0xf]
        %v2023 = vld [vmem:[%s1993 + $0xac] sm:$0xf]
        %v2024 = vld [vmem:[%s1993 + $0xb4] sm:$0xf]
        %v2025 = vld [vmem:[%s1993 + $0xb8] sm:$0xf]
        %v2026 = vld [vmem:[%s1993 + $0x8] sm:$0x1]
        %v2027 = vld [vmem:[%s1993 + $0x14] sm:$0x1]
        %v2028 = vld [vmem:[%s1993 + $0x20] sm:$0x1]
        %v2029 = vld [vmem:[%s1993 + $0x2c] sm:$0x1]
        %v2030 = vld [vmem:[%s1993 + $0x38] sm:$0x1]
        %v2031 = vld [vmem:[%s1993 + $0x44] sm:$0x1]
        %v2032 = vld [vmem:[%s1993 + $0x50] sm:$0x1]
        %v2033 = vld [vmem:[%s1993 + $0x5c] sm:$0x1]
        %v2034 = vld [vmem:[%s1993 + $0x68] sm:$0x1]
        %v2035 = vld [vmem:[%s1993 + $0x74] sm:$0x1]
        %v2036 = vld [vmem:[%s1993 + $0x80] sm:$0x1]
        %v2037 = vld [vmem:[%s1993 + $0x8c] sm:$0x1]
        %v2038 = vld [vmem:[%s1993 + $0x98] sm:$0x1]
        %v2039 = vld [vmem:[%s1993 + $0xa4] sm:$0x1]
        %v2040 = vld [vmem:[%s1993 + $0xb0] sm:$0x1]
        %v2041 = vld [vmem:[%s1993 + $0xbc] sm:$0x1]
        %v2043 = vshrl.u32 %v1994, 16
        %v2045 = vrot.slane %v2043, 4
        %v2046 = vshll.u32 %v1994, 16
        %v2048 = vrot.slane %v2046, 5
        %v2049 = vor.u32 %v2045, %v2048
        %v2050 = vrot.slane %v2049, 4
        %v2052 = vshll.u32 %v1995, 16
        %v2054 = vrot.slane %v2052, 5
        %v2055 = vsel %vm821, %v2050, %v2054
        %v2056 = vshrl.u32 %v1995, 16
        %v2058 = vrot.slane %v2056, 4
        %v2059 = vor.u32 %v2058, %v2054
        %v2060 = vrot.slane %v2059, 4
        %v2062 = vshll.u32 %v2026, 16
        %v2064 = vrot.slane %v2062, 5
        %v2065 = vsel %vm821, %v2060, %v2064
        %v2067 = vshrl.u32 %v1996, 16
        %v2069 = vrot.slane %v2067, 4
        %v2070 = vshll.u32 %v1996, 16
        %v2072 = vrot.slane %v2070, 5
        %v2073 = vor.u32 %v2069, %v2072
        %v2074 = vrot.slane %v2073, 4
        %v2076 = vshll.u32 %v1997, 16
        %v2078 = vrot.slane %v2076, 5
        %v2079 = vsel %vm821, %v2074, %v2078
        %v2080 = vshrl.u32 %v1997, 16
        %v2082 = vrot.slane %v2080, 4
        %v2083 = vor.u32 %v2082, %v2078
        %v2084 = vrot.slane %v2083, 4
        %v2086 = vshll.u32 %v2027, 16
        %v2088 = vrot.slane %v2086, 5
        %v2089 = vsel %vm821, %v2084, %v2088
        %v2091 = vshrl.u32 %v1998, 16
        %v2093 = vrot.slane %v2091, 4
        %v2094 = vshll.u32 %v1998, 16
        %v2096 = vrot.slane %v2094, 5
        %v2097 = vor.u32 %v2093, %v2096
        %v2098 = vrot.slane %v2097, 4
        %v2100 = vshll.u32 %v1999, 16
        %v2102 = vrot.slane %v2100, 5
        %v2103 = vsel %vm821, %v2098, %v2102
        %v2104 = vshrl.u32 %v1999, 16
        %v2106 = vrot.slane %v2104, 4
        %v2107 = vor.u32 %v2106, %v2102
        %v2108 = vrot.slane %v2107, 4
        %v2110 = vshll.u32 %v2028, 16
        %v2112 = vrot.slane %v2110, 5
        %v2113 = vsel %vm821, %v2108, %v2112
        %v2115 = vshrl.u32 %v2000, 16
        %v2117 = vrot.slane %v2115, 4
        %v2118 = vshll.u32 %v2000, 16
        %v2120 = vrot.slane %v2118, 5
        %v2121 = vor.u32 %v2117, %v2120
        %v2122 = vrot.slane %v2121, 4
        %v2124 = vshll.u32 %v2001, 16
        %v2126 = vrot.slane %v2124, 5
        %v2127 = vsel %vm821, %v2122, %v2126
        %v2128 = vshrl.u32 %v2001, 16
        %v2130 = vrot.slane %v2128, 4
        %v2131 = vor.u32 %v2130, %v2126
        %v2132 = vrot.slane %v2131, 4
        %v2134 = vshll.u32 %v2029, 16
        %v2136 = vrot.slane %v2134, 5
        %v2137 = vsel %vm821, %v2132, %v2136
        %v2139 = vshrl.u32 %v2002, 16
        %v2141 = vrot.slane %v2139, 4
        %v2142 = vshll.u32 %v2002, 16
        %v2144 = vrot.slane %v2142, 5
        %v2145 = vor.u32 %v2141, %v2144
        %v2146 = vrot.slane %v2145, 4
        %v2148 = vshll.u32 %v2003, 16
        %v2150 = vrot.slane %v2148, 5
        %v2151 = vsel %vm821, %v2146, %v2150
        %v2152 = vshrl.u32 %v2003, 16
        %v2154 = vrot.slane %v2152, 4
        %v2155 = vor.u32 %v2154, %v2150
        %v2156 = vrot.slane %v2155, 4
        %v2158 = vshll.u32 %v2030, 16
        %v2160 = vrot.slane %v2158, 5
        %v2161 = vsel %vm821, %v2156, %v2160
        %v2163 = vshrl.u32 %v2004, 16
        %v2165 = vrot.slane %v2163, 4
        %v2166 = vshll.u32 %v2004, 16
        %v2168 = vrot.slane %v2166, 5
        %v2169 = vor.u32 %v2165, %v2168
        %v2170 = vrot.slane %v2169, 4
        %v2172 = vshll.u32 %v2005, 16
        %v2174 = vrot.slane %v2172, 5
        %v2175 = vsel %vm821, %v2170, %v2174
        %v2176 = vshrl.u32 %v2005, 16
        %v2178 = vrot.slane %v2176, 4
        %v2179 = vor.u32 %v2178, %v2174
        %v2180 = vrot.slane %v2179, 4
        %v2182 = vshll.u32 %v2031, 16
        %v2184 = vrot.slane %v2182, 5
        %v2185 = vsel %vm821, %v2180, %v2184
        %v2187 = vshrl.u32 %v2006, 16
        %v2189 = vrot.slane %v2187, 4
        %v2190 = vshll.u32 %v2006, 16
        %v2192 = vrot.slane %v2190, 5
        %v2193 = vor.u32 %v2189, %v2192
        %v2194 = vrot.slane %v2193, 4
        %v2196 = vshll.u32 %v2007, 16
        %v2198 = vrot.slane %v2196, 5
        %v2199 = vsel %vm821, %v2194, %v2198
        %v2200 = vshrl.u32 %v2007, 16
        %v2202 = vrot.slane %v2200, 4
        %v2203 = vor.u32 %v2202, %v2198
        %v2204 = vrot.slane %v2203, 4
        %v2206 = vshll.u32 %v2032, 16
        %v2208 = vrot.slane %v2206, 5
        %v2209 = vsel %vm821, %v2204, %v2208
        %v2211 = vshrl.u32 %v2008, 16
        %v2213 = vrot.slane %v2211, 4
        %v2214 = vshll.u32 %v2008, 16
        %v2216 = vrot.slane %v2214, 5
        %v2217 = vor.u32 %v2213, %v2216
        %v2218 = vrot.slane %v2217, 4
        %v2220 = vshll.u32 %v2009, 16
        %v2222 = vrot.slane %v2220, 5
        %v2223 = vsel %vm821, %v2218, %v2222
        %v2224 = vshrl.u32 %v2009, 16
        %v2226 = vrot.slane %v2224, 4
        %v2227 = vor.u32 %v2226, %v2222
        %v2228 = vrot.slane %v2227, 4
        %v2230 = vshll.u32 %v2033, 16
        %v2232 = vrot.slane %v2230, 5
        %v2233 = vsel %vm821, %v2228, %v2232
        %v2235 = vshrl.u32 %v2010, 16
        %v2237 = vrot.slane %v2235, 4
        %v2238 = vshll.u32 %v2010, 16
        %v2240 = vrot.slane %v2238, 5
        %v2241 = vor.u32 %v2237, %v2240
        %v2242 = vrot.slane %v2241, 4
        %v2244 = vshll.u32 %v2011, 16
        %v2246 = vrot.slane %v2244, 5
        %v2247 = vsel %vm821, %v2242, %v2246
        %v2248 = vshrl.u32 %v2011, 16
        %v2250 = vrot.slane %v2248, 4
        %v2251 = vor.u32 %v2250, %v2246
        %v2252 = vrot.slane %v2251, 4
        %v2254 = vshll.u32 %v2034, 16
        %v2256 = vrot.slane %v2254, 5
        %v2257 = vsel %vm821, %v2252, %v2256
        %v2259 = vshrl.u32 %v2012, 16
        %v2261 = vrot.slane %v2259, 4
        %v2262 = vshll.u32 %v2012, 16
        %v2264 = vrot.slane %v2262, 5
        %v2265 = vor.u32 %v2261, %v2264
        %v2266 = vrot.slane %v2265, 4
        %v2268 = vshll.u32 %v2013, 16
        %v2270 = vrot.slane %v2268, 5
        %v2271 = vsel %vm821, %v2266, %v2270
        %v2272 = vshrl.u32 %v2013, 16
        %v2274 = vrot.slane %v2272, 4
        %v2275 = vor.u32 %v2274, %v2270
        %v2276 = vrot.slane %v2275, 4
        %v2278 = vshll.u32 %v2035, 16
        %v2280 = vrot.slane %v2278, 5
        %v2281 = vsel %vm821, %v2276, %v2280
        %v2283 = vshrl.u32 %v2014, 16
        %v2285 = vrot.slane %v2283, 4
        %v2286 = vshll.u32 %v2014, 16
        %v2288 = vrot.slane %v2286, 5
        %v2289 = vor.u32 %v2285, %v2288
        %v2290 = vrot.slane %v2289, 4
        %v2292 = vshll.u32 %v2015, 16
        %v2294 = vrot.slane %v2292, 5
        %v2295 = vsel %vm821, %v2290, %v2294
        %v2296 = vshrl.u32 %v2015, 16
        %v2298 = vrot.slane %v2296, 4
        %v2299 = vor.u32 %v2298, %v2294
        %v2300 = vrot.slane %v2299, 4
        %v2302 = vshll.u32 %v2036, 16
        %v2304 = vrot.slane %v2302, 5
        %v2305 = vsel %vm821, %v2300, %v2304
        %v2307 = vshrl.u32 %v2016, 16
        %v2309 = vrot.slane %v2307, 4
        %v2310 = vshll.u32 %v2016, 16
        %v2312 = vrot.slane %v2310, 5
        %v2313 = vor.u32 %v2309, %v2312
        %v2314 = vrot.slane %v2313, 4
        %v2316 = vshll.u32 %v2017, 16
        %v2318 = vrot.slane %v2316, 5
        %v2319 = vsel %vm821, %v2314, %v2318
        %v2320 = vshrl.u32 %v2017, 16
        %v2322 = vrot.slane %v2320, 4
        %v2323 = vor.u32 %v2322, %v2318
        %v2324 = vrot.slane %v2323, 4
        %v2326 = vshll.u32 %v2037, 16
        %v2328 = vrot.slane %v2326, 5
        %v2329 = vsel %vm821, %v2324, %v2328
        %v2331 = vshrl.u32 %v2018, 16
        %v2333 = vrot.slane %v2331, 4
        %v2334 = vshll.u32 %v2018, 16
        %v2336 = vrot.slane %v2334, 5
        %v2337 = vor.u32 %v2333, %v2336
        %v2338 = vrot.slane %v2337, 4
        %v2340 = vshll.u32 %v2019, 16
        %v2342 = vrot.slane %v2340, 5
        %v2343 = vsel %vm821, %v2338, %v2342
        %v2344 = vshrl.u32 %v2019, 16
        %v2346 = vrot.slane %v2344, 4
        %v2347 = vor.u32 %v2346, %v2342
        %v2348 = vrot.slane %v2347, 4
        %v2350 = vshll.u32 %v2038, 16
        %v2352 = vrot.slane %v2350, 5
        %v2353 = vsel %vm821, %v2348, %v2352
        %v2355 = vshrl.u32 %v2020, 16
        %v2357 = vrot.slane %v2355, 4
        %v2358 = vshll.u32 %v2020, 16
        %v2360 = vrot.slane %v2358, 5
        %v2361 = vor.u32 %v2357, %v2360
        %v2362 = vrot.slane %v2361, 4
        %v2364 = vshll.u32 %v2021, 16
        %v2366 = vrot.slane %v2364, 5
        %v2367 = vsel %vm821, %v2362, %v2366
        %v2368 = vshrl.u32 %v2021, 16
        %v2370 = vrot.slane %v2368, 4
        %v2371 = vor.u32 %v2370, %v2366
        %v2372 = vrot.slane %v2371, 4
        %v2374 = vshll.u32 %v2039, 16
        %v2376 = vrot.slane %v2374, 5
        %v2377 = vsel %vm821, %v2372, %v2376
        %v2379 = vshrl.u32 %v2022, 16
        %v2381 = vrot.slane %v2379, 4
        %v2382 = vshll.u32 %v2022, 16
        %v2384 = vrot.slane %v2382, 5
        %v2385 = vor.u32 %v2381, %v2384
        %v2386 = vrot.slane %v2385, 4
        %v2388 = vshll.u32 %v2023, 16
        %v2390 = vrot.slane %v2388, 5
        %v2391 = vsel %vm821, %v2386, %v2390
        %v2392 = vshrl.u32 %v2023, 16
        %v2394 = vrot.slane %v2392, 4
        %v2395 = vor.u32 %v2394, %v2390
        %v2396 = vrot.slane %v2395, 4
        %v2398 = vshll.u32 %v2040, 16
        %v2400 = vrot.slane %v2398, 5
        %v2401 = vsel %vm821, %v2396, %v2400
        %v2403 = vshrl.u32 %v2024, 16
        %v2405 = vrot.slane %v2403, 4
        %v2406 = vshll.u32 %v2024, 16
        %v2408 = vrot.slane %v2406, 5
        %v2409 = vor.u32 %v2405, %v2408
        %v2410 = vrot.slane %v2409, 4
        %v2412 = vshll.u32 %v2025, 16
        %v2414 = vrot.slane %v2412, 5
        %v2415 = vsel %vm821, %v2410, %v2414
        %v2416 = vshrl.u32 %v2025, 16
        %v2418 = vrot.slane %v2416, 4
        %v2419 = vor.u32 %v2418, %v2414
        %v2420 = vrot.slane %v2419, 4
        %v2422 = vshll.u32 %v2041, 16
        %v2424 = vrot.slane %v2422, 5
        %v2425 = vsel %vm821, %v2420, %v2424
        %v2426 = vld [vmem:[%s1993] sm:$0xe]
        %v2427 = vld [vmem:[%s1993 + $0xc] sm:$0xe]
        %v2428 = vld [vmem:[%s1993 + $0x18] sm:$0xe]
        %v2429 = vld [vmem:[%s1993 + $0x24] sm:$0xe]
        %v2430 = vld [vmem:[%s1993 + $0x30] sm:$0xe]
        %v2431 = vld [vmem:[%s1993 + $0x3c] sm:$0xe]
        %v2432 = vld [vmem:[%s1993 + $0x48] sm:$0xe]
        %v2433 = vld [vmem:[%s1993 + $0x54] sm:$0xe]
        %v2434 = vld [vmem:[%s1993 + $0x60] sm:$0xe]
        %v2435 = vld [vmem:[%s1993 + $0x6c] sm:$0xe]
        %v2436 = vld [vmem:[%s1993 + $0x78] sm:$0xe]
        %v2437 = vld [vmem:[%s1993 + $0x84] sm:$0xe]
        %v2438 = vld [vmem:[%s1993 + $0x90] sm:$0xe]
        %v2439 = vld [vmem:[%s1993 + $0x9c] sm:$0xe]
        %v2440 = vld [vmem:[%s1993 + $0xa8] sm:$0xe]
        %v2441 = vld [vmem:[%s1993 + $0xb4] sm:$0xe]
        %v2490 = vrot.slane %v2426, 5
        %v2491 = vrot.slane %v2490, 4
        %v2492 = vrot.slane %v1995, 5
        %v2493 = vsel %vm1272, %v2491, %v2492
        %v2494 = vrot.slane %v2492, 4
        %v2495 = vrot.slane %v2026, 5
        %v2496 = vsel %vm1272, %v2494, %v2495
        %v2497 = vrot.slane %v2427, 5
        %v2498 = vrot.slane %v2497, 4
        %v2499 = vrot.slane %v1997, 5
        %v2500 = vsel %vm1272, %v2498, %v2499
        %v2501 = vrot.slane %v2499, 4
        %v2502 = vrot.slane %v2027, 5
        %v2503 = vsel %vm1272, %v2501, %v2502
        %v2504 = vrot.slane %v2428, 5
        %v2505 = vrot.slane %v2504, 4
        %v2506 = vrot.slane %v1999, 5
        %v2507 = vsel %vm1272, %v2505, %v2506
        %v2508 = vrot.slane %v2506, 4
        %v2509 = vrot.slane %v2028, 5
        %v2510 = vsel %vm1272, %v2508, %v2509
        %v2511 = vrot.slane %v2429, 5
        %v2512 = vrot.slane %v2511, 4
        %v2513 = vrot.slane %v2001, 5
        %v2514 = vsel %vm1272, %v2512, %v2513
        %v2515 = vrot.slane %v2513, 4
        %v2516 = vrot.slane %v2029, 5
        %v2517 = vsel %vm1272, %v2515, %v2516
        %v2518 = vrot.slane %v2430, 5
        %v2519 = vrot.slane %v2518, 4
        %v2520 = vrot.slane %v2003, 5
        %v2521 = vsel %vm1272, %v2519, %v2520
        %v2522 = vrot.slane %v2520, 4
        %v2523 = vrot.slane %v2030, 5
        %v2524 = vsel %vm1272, %v2522, %v2523
        %v2525 = vrot.slane %v2431, 5
        %v2526 = vrot.slane %v2525, 4
        %v2527 = vrot.slane %v2005, 5
        %v2528 = vsel %vm1272, %v2526, %v2527
        %v2529 = vrot.slane %v2527, 4
        %v2530 = vrot.slane %v2031, 5
        %v2531 = vsel %vm1272, %v2529, %v2530
        %v2532 = vrot.slane %v2432, 5
        %v2533 = vrot.slane %v2532, 4
        %v2534 = vrot.slane %v2007, 5
        %v2535 = vsel %vm1272, %v2533, %v2534
        %v2536 = vrot.slane %v2534, 4
        %v2537 = vrot.slane %v2032, 5
        %v2538 = vsel %vm1272, %v2536, %v2537
        %v2539 = vrot.slane %v2433, 5
        %v2540 = vrot.slane %v2539, 4
        %v2541 = vrot.slane %v2009, 5
        %v2542 = vsel %vm1272, %v2540, %v2541
        %v2543 = vrot.slane %v2541, 4
        %v2544 = vrot.slane %v2033, 5
        %v2545 = vsel %vm1272, %v2543, %v2544
        %v2546 = vrot.slane %v2434, 5
        %v2547 = vrot.slane %v2546, 4
        %v2548 = vrot.slane %v2011, 5
        %v2549 = vsel %vm1272, %v2547, %v2548
        %v2550 = vrot.slane %v2548, 4
        %v2551 = vrot.slane %v2034, 5
        %v2552 = vsel %vm1272, %v2550, %v2551
        %v2553 = vrot.slane %v2435, 5
        %v2554 = vrot.slane %v2553, 4
        %v2555 = vrot.slane %v2013, 5
        %v2556 = vsel %vm1272, %v2554, %v2555
        %v2557 = vrot.slane %v2555, 4
        %v2558 = vrot.slane %v2035, 5
        %v2559 = vsel %vm1272, %v2557, %v2558
        %v2560 = vrot.slane %v2436, 5
        %v2561 = vrot.slane %v2560, 4
        %v2562 = vrot.slane %v2015, 5
        %v2563 = vsel %vm1272, %v2561, %v2562
        %v2564 = vrot.slane %v2562, 4
        %v2565 = vrot.slane %v2036, 5
        %v2566 = vsel %vm1272, %v2564, %v2565
        %v2567 = vrot.slane %v2437, 5
        %v2568 = vrot.slane %v2567, 4
        %v2569 = vrot.slane %v2017, 5
        %v2570 = vsel %vm1272, %v2568, %v2569
        %v2571 = vrot.slane %v2569, 4
        %v2572 = vrot.slane %v2037, 5
        %v2573 = vsel %vm1272, %v2571, %v2572
        %v2574 = vrot.slane %v2438, 5
        %v2575 = vrot.slane %v2574, 4
        %v2576 = vrot.slane %v2019, 5
        %v2577 = vsel %vm1272, %v2575, %v2576
        %v2578 = vrot.slane %v2576, 4
        %v2579 = vrot.slane %v2038, 5
        %v2580 = vsel %vm1272, %v2578, %v2579
        %v2581 = vrot.slane %v2439, 5
        %v2582 = vrot.slane %v2581, 4
        %v2583 = vrot.slane %v2021, 5
        %v2584 = vsel %vm1272, %v2582, %v2583
        %v2585 = vrot.slane %v2583, 4
        %v2586 = vrot.slane %v2039, 5
        %v2587 = vsel %vm1272, %v2585, %v2586
        %v2588 = vrot.slane %v2440, 5
        %v2589 = vrot.slane %v2588, 4
        %v2590 = vrot.slane %v2023, 5
        %v2591 = vsel %vm1272, %v2589, %v2590
        %v2592 = vrot.slane %v2590, 4
        %v2593 = vrot.slane %v2040, 5
        %v2594 = vsel %vm1272, %v2592, %v2593
        %v2595 = vrot.slane %v2441, 5
        %v2596 = vrot.slane %v2595, 4
        %v2597 = vrot.slane %v2025, 5
        %v2598 = vsel %vm1272, %v2596, %v2597
        %v2599 = vrot.slane %v2597, 4
        %v2600 = vrot.slane %v2041, 5
        %v2601 = vsel %vm1272, %v2599, %v2600
        %v2602 = vld [vmem:[#allocation6] sm:$0x3]
        %s2603 = scalar_lea.vmem [#allocation6], 2
        %v2604 = vld [vmem:[%s2603] sm:$0x3]
        %v2605 = vunpack.c.l.b16 %v835
        %v2606 = vunpack.c.l.b16 %v845
        %v2607 = vunpack.c.l.b16 %v859
        %v2608 = vunpack.c.l.b16 %v869
        %v2609 = vunpack.c.l.b16 %v883
        %v2610 = vunpack.c.l.b16 %v893
        %v2611 = vunpack.c.l.b16 %v907
        %v2612 = vunpack.c.l.b16 %v917
        %v2613 = vunpack.c.l.b16 %v931
        %v2614 = vunpack.c.l.b16 %v941
        %v2615 = vunpack.c.l.b16 %v955
        %v2616 = vunpack.c.l.b16 %v965
        %v2617 = vunpack.c.l.b16 %v979
        %v2618 = vunpack.c.l.b16 %v989
        %v2619 = vunpack.c.l.b16 %v1003
        %v2620 = vunpack.c.l.b16 %v1013
        %v2621 = vunpack.c.l.b16 %v1027
        %v2622 = vunpack.c.l.b16 %v1037
        %v2623 = vunpack.c.l.b16 %v1051
        %v2624 = vunpack.c.l.b16 %v1061
        %v2625 = vunpack.c.l.b16 %v1075
        %v2626 = vunpack.c.l.b16 %v1085
        %v2627 = vunpack.c.l.b16 %v1099
        %v2628 = vunpack.c.l.b16 %v1109
        %v2629 = vunpack.c.l.b16 %v1123
        %v2630 = vunpack.c.l.b16 %v1133
        %v2631 = vunpack.c.l.b16 %v1147
        %v2632 = vunpack.c.l.b16 %v1157
        %v2633 = vunpack.c.l.b16 %v1171
        %v2634 = vunpack.c.l.b16 %v1181
        %v2635 = vunpack.c.l.b16 %v1195
        %v2636 = vunpack.c.l.b16 %v1205
        %v2637 = vpack.c.b16 %v2606, %v2605
        %v2638 = vpack.c.b16 %v2608, %v2607
        %v2639 = vpack.c.b16 %v2610, %v2609
        %v2640 = vpack.c.b16 %v2612, %v2611
        %v2641 = vpack.c.b16 %v2614, %v2613
        %v2642 = vpack.c.b16 %v2616, %v2615
        %v2643 = vpack.c.b16 %v2618, %v2617
        %v2644 = vpack.c.b16 %v2620, %v2619
        %v2645 = vpack.c.b16 %v2622, %v2621
        %v2646 = vpack.c.b16 %v2624, %v2623
        %v2647 = vpack.c.b16 %v2626, %v2625
        %v2648 = vpack.c.b16 %v2628, %v2627
        %v2649 = vpack.c.b16 %v2630, %v2629
        %v2650 = vpack.c.b16 %v2632, %v2631
        %v2651 = vpack.c.b16 %v2634, %v2633
        %v2652 = vpack.c.b16 %v2636, %v2635
        %vm2653 = vcmask 31744
        %v2655 = vsel %vm2653, %v2637, 0
        %v2658 = vsel %vm2653, %v2638, 0
        %v2661 = vsel %vm2653, %v2639, 0
        %v2664 = vsel %vm2653, %v2640, 0
        %v2667 = vsel %vm2653, %v2641, 0
        %v2670 = vsel %vm2653, %v2642, 0
        %v2673 = vsel %vm2653, %v2643, 0
        %v2676 = vsel %vm2653, %v2644, 0
        %v2679 = vsel %vm2653, %v2645, 0
        %v2682 = vsel %vm2653, %v2646, 0
        %v2685 = vsel %vm2653, %v2647, 0
        %v2688 = vsel %vm2653, %v2648, 0
        %v2691 = vsel %vm2653, %v2649, 0
        %v2694 = vsel %vm2653, %v2650, 0
        %v2697 = vsel %vm2653, %v2651, 0
        %v2700 = vsel %vm2653, %v2652, 0
        %vm2702 = vcmask 1041408
        %v2704 = vsel %vm2702, %v2604, 0
        %2706 = vmatprep.subr.bf16.mxu0 0
        %2707 = vmatpush1.bf16.msra.mxu0 %v2704
        %2708 = vmatprep.subr.bf16.mxu0 0
        %2709 = vmatpush1.bf16.msra.mxu0 0
        %2710 = vmatprep.subr.bf16.mxu0 0
        %2711 = vmatpush1.bf16.msra.mxu0 0
        %2712 = vmatprep.subr.bf16.mxu0 0
        %2713 = vmatpush1.bf16.msra.mxu0 0
        %2714 = vmatprep.subr.bf16.mxu0 0
        %2715 = vmatpush1.bf16.msra.mxu0 0
        %2716 = vmatprep.subr.bf16.mxu0 0
        %2717 = vmatpush1.bf16.msra.mxu0 0
        %2718 = vmatprep.subr.bf16.mxu0 0
        %2719 = vmatpush1.bf16.msra.mxu0 0
        %2720 = vmatprep.subr.bf16.mxu0 0
        %2721 = vmatpush1.bf16.msra.mxu0 0
        %2722 = vmatprep.subr.bf16.mxu0 0
        %2723 = vmatpush1.bf16.msra.mxu0 0
        %2724 = vmatprep.subr.bf16.mxu0 0
        %2725 = vmatpush1.bf16.msra.mxu0 0
        %2726 = vmatprep.subr.bf16.mxu0 0
        %2727 = vmatpush1.bf16.msra.mxu0 0
        %2728 = vmatprep.subr.bf16.mxu0 0
        %2729 = vmatpush1.bf16.msra.mxu0 0
        %2730 = vmatprep.subr.bf16.mxu0 0
        %2731 = vmatpush1.bf16.msra.mxu0 0
        %2732 = vmatprep.subr.bf16.mxu0 0
        %2733 = vmatpush1.bf16.msra.mxu0 0
        %2734 = vmatprep.subr.bf16.mxu0 0
        %2735 = vmatpush1.bf16.msra.mxu0 0
        %2736 = vmatprep.subr.bf16.mxu0 0
        %2737 = vmatpush1.bf16.msra.mxu0 0
        %2738 = vmatprep.mubr.bf16.mxu0 0
        %2739 = vmatmul.mubr.bf16.gmra.mrb[0].mxu0 %v2655
        %v2740 = vpop.f32.mrb[0].mxu0
        %v2741 = vadd.f32 0.0, %v2740
        %v2742 = vpop.f32.mrb[0].mxu0
        %v2743 = vpop.f32.mrb[0].mxu0
        %v2744 = vadd.f32 0.0, %v2743
        %v2745 = vpop.f32.mrb[0].mxu0
        %2746 = vmatprep.mubr.bf16.mxu0 0
        %2747 = vmatmul.mubr.bf16.gmra.mrb[0].mxu0 %v2658
        %v2748 = vpop.f32.mrb[0].mxu0
        %v2749 = vadd.f32 0.0, %v2748
        %v2750 = vpop.f32.mrb[0].mxu0
        %v2751 = vpop.f32.mrb[0].mxu0
        %v2752 = vadd.f32 0.0, %v2751
        %v2753 = vpop.f32.mrb[0].mxu0
        %2754 = vmatprep.mubr.bf16.mxu0 0
        %2755 = vmatmul.mubr.bf16.gmra.mrb[0].mxu0 %v2661
        %v2756 = vpop.f32.mrb[0].mxu0
        %v2757 = vadd.f32 0.0, %v2756
        %v2758 = vpop.f32.mrb[0].mxu0
        %v2759 = vpop.f32.mrb[0].mxu0
        %v2760 = vadd.f32 0.0, %v2759
        %v2761 = vpop.f32.mrb[0].mxu0
        %2762 = vmatprep.mubr.bf16.mxu0 0
        %2763 = vmatmul.mubr.bf16.gmra.mrb[0].mxu0 %v2664
        %v2764 = vpop.f32.mrb[0].mxu0
        %v2765 = vadd.f32 0.0, %v2764
        %v2766 = vpop.f32.mrb[0].mxu0
        %v2767 = vpop.f32.mrb[0].mxu0
        %v2768 = vadd.f32 0.0, %v2767
        %v2769 = vpop.f32.mrb[0].mxu0
        %2770 = vmatprep.mubr.bf16.mxu0 0
        %2771 = vmatmul.mubr.bf16.gmra.mrb[0].mxu0 %v2667
        %v2772 = vpop.f32.mrb[0].mxu0
        %v2773 = vadd.f32 0.0, %v2772
        %v2774 = vpop.f32.mrb[0].mxu0
        %v2775 = vpop.f32.mrb[0].mxu0
        %v2776 = vadd.f32 0.0, %v2775
        %v2777 = vpop.f32.mrb[0].mxu0
        %2778 = vmatprep.mubr.bf16.mxu0 0
        %2779 = vmatmul.mubr.bf16.gmra.mrb[0].mxu0 %v2670
        %v2780 = vpop.f32.mrb[0].mxu0
        %v2781 = vadd.f32 0.0, %v2780
        %v2782 = vpop.f32.mrb[0].mxu0
        %v2783 = vpop.f32.mrb[0].mxu0
        %v2784 = vadd.f32 0.0, %v2783
        %v2785 = vpop.f32.mrb[0].mxu0
        %2786 = vmatprep.mubr.bf16.mxu0 0
        %2787 = vmatmul.mubr.bf16.gmra.mrb[0].mxu0 %v2673
        %v2788 = vpop.f32.mrb[0].mxu0
        %v2789 = vadd.f32 0.0, %v2788
        %v2790 = vpop.f32.mrb[0].mxu0
        %v2791 = vpop.f32.mrb[0].mxu0
        %v2792 = vadd.f32 0.0, %v2791
        %v2793 = vpop.f32.mrb[0].mxu0
        %2794 = vmatprep.mubr.bf16.mxu0 0
        %2795 = vmatmul.mubr.bf16.gmra.mrb[0].mxu0 %v2676
        %v2796 = vpop.f32.mrb[0].mxu0
        %v2797 = vadd.f32 0.0, %v2796
        %v2798 = vpop.f32.mrb[0].mxu0
        %v2799 = vpop.f32.mrb[0].mxu0
        %v2800 = vadd.f32 0.0, %v2799
        %v2801 = vpop.f32.mrb[0].mxu0
        %2802 = vmatprep.mubr.bf16.mxu0 0
        %2803 = vmatmul.mubr.bf16.gmra.mrb[0].mxu0 %v2679
        %v2804 = vpop.f32.mrb[0].mxu0
        %v2805 = vadd.f32 0.0, %v2804
        %v2806 = vpop.f32.mrb[0].mxu0
        %v2807 = vpop.f32.mrb[0].mxu0
        %v2808 = vadd.f32 0.0, %v2807
        %v2809 = vpop.f32.mrb[0].mxu0
        %2810 = vmatprep.mubr.bf16.mxu0 0
        %2811 = vmatmul.mubr.bf16.gmra.mrb[0].mxu0 %v2682
        %v2812 = vpop.f32.mrb[0].mxu0
        %v2813 = vadd.f32 0.0, %v2812
        %v2814 = vpop.f32.mrb[0].mxu0
        %v2815 = vpop.f32.mrb[0].mxu0
        %v2816 = vadd.f32 0.0, %v2815
        %v2817 = vpop.f32.mrb[0].mxu0
        %2818 = vmatprep.mubr.bf16.mxu0 0
        %2819 = vmatmul.mubr.bf16.gmra.mrb[0].mxu0 %v2685
        %v2820 = vpop.f32.mrb[0].mxu0
        %v2821 = vadd.f32 0.0, %v2820
        %v2822 = vpop.f32.mrb[0].mxu0
        %v2823 = vpop.f32.mrb[0].mxu0
        %v2824 = vadd.f32 0.0, %v2823
        %v2825 = vpop.f32.mrb[0].mxu0
        %2826 = vmatprep.mubr.bf16.mxu0 0
        %2827 = vmatmul.mubr.bf16.gmra.mrb[0].mxu0 %v2688
        %v2828 = vpop.f32.mrb[0].mxu0
        %v2829 = vadd.f32 0.0, %v2828
        %v2830 = vpop.f32.mrb[0].mxu0
        %v2831 = vpop.f32.mrb[0].mxu0
        %v2832 = vadd.f32 0.0, %v2831
        %v2833 = vpop.f32.mrb[0].mxu0
        %2834 = vmatprep.mubr.bf16.mxu0 0
        %2835 = vmatmul.mubr.bf16.gmra.mrb[0].mxu0 %v2691
        %v2836 = vpop.f32.mrb[0].mxu0
        %v2837 = vadd.f32 0.0, %v2836
        %v2838 = vpop.f32.mrb[0].mxu0
        %v2839 = vpop.f32.mrb[0].mxu0
        %v2840 = vadd.f32 0.0, %v2839
        %v2841 = vpop.f32.mrb[0].mxu0
        %2842 = vmatprep.mubr.bf16.mxu0 0
        %2843 = vmatmul.mubr.bf16.gmra.mrb[0].mxu0 %v2694
        %v2844 = vpop.f32.mrb[0].mxu0
        %v2845 = vadd.f32 0.0, %v2844
        %v2846 = vpop.f32.mrb[0].mxu0
        %v2847 = vpop.f32.mrb[0].mxu0
        %v2848 = vadd.f32 0.0, %v2847
        %v2849 = vpop.f32.mrb[0].mxu0
        %2850 = vmatprep.mubr.bf16.mxu0 0
        %2851 = vmatmul.mubr.bf16.gmra.mrb[0].mxu0 %v2697
        %v2852 = vpop.f32.mrb[0].mxu0
        %v2853 = vadd.f32 0.0, %v2852
        %v2854 = vpop.f32.mrb[0].mxu0
        %v2855 = vpop.f32.mrb[0].mxu0
        %v2856 = vadd.f32 0.0, %v2855
        %v2857 = vpop.f32.mrb[0].mxu0
        %2858 = vmatprep.mubr.bf16.mxu0 0
        %2859 = vmatmul.mubr.bf16.gmra.mrb[0].mxu0 %v2700
        %v2860 = vpop.f32.mrb[0].mxu0
        %v2861 = vadd.f32 0.0, %v2860
        %v2862 = vpop.f32.mrb[0].mxu0
        %v2863 = vpop.f32.mrb[0].mxu0
        %v2864 = vadd.f32 0.0, %v2863
        %v2865 = vpop.f32.mrb[0].mxu0
        %2866 = vdwg.mxu0
        %v2883 = vunpack.c.l.b16 %v771
        %v2884 = vunpack.c.l.b16 %v772
        %v2885 = vunpack.c.l.b16 %v773
        %v2886 = vunpack.c.l.b16 %v774
        %v2887 = vunpack.c.l.b16 %v775
        %v2888 = vunpack.c.l.b16 %v776
        %v2889 = vunpack.c.l.b16 %v777
        %v2890 = vunpack.c.l.b16 %v778
        %v2891 = vunpack.c.l.b16 %v779
        %v2892 = vunpack.c.l.b16 %v780
        %v2893 = vunpack.c.l.b16 %v781
        %v2894 = vunpack.c.l.b16 %v782
        %v2895 = vunpack.c.l.b16 %v783
        %v2896 = vunpack.c.l.b16 %v784
        %v2897 = vunpack.c.l.b16 %v785
        %v2898 = vunpack.c.l.b16 %v786
        %v2899 = vunpack.c.l.b16 %v787
        %v2900 = vunpack.c.l.b16 %v788
        %v2901 = vunpack.c.l.b16 %v789
        %v2902 = vunpack.c.l.b16 %v790
        %v2903 = vunpack.c.l.b16 %v791
        %v2904 = vunpack.c.l.b16 %v792
        %v2905 = vunpack.c.l.b16 %v793
        %v2906 = vunpack.c.l.b16 %v794
        %v2907 = vunpack.c.l.b16 %v795
        %v2908 = vunpack.c.l.b16 %v796
        %v2909 = vunpack.c.l.b16 %v797
        %v2910 = vunpack.c.l.b16 %v798
        %v2911 = vunpack.c.l.b16 %v799
        %v2912 = vunpack.c.l.b16 %v800
        %v2913 = vunpack.c.l.b16 %v801
        %v2914 = vunpack.c.l.b16 %v802
        %v2915 = vpack.c.b16 %v2884, %v2883
        %v2916 = vpack.c.b16 %v2886, %v2885
        %v2917 = vpack.c.b16 %v2888, %v2887
        %v2918 = vpack.c.b16 %v2890, %v2889
        %v2919 = vpack.c.b16 %v2892, %v2891
        %v2920 = vpack.c.b16 %v2894, %v2893
        %v2921 = vpack.c.b16 %v2896, %v2895
        %v2922 = vpack.c.b16 %v2898, %v2897
        %v2923 = vpack.c.b16 %v2900, %v2899
        %v2924 = vpack.c.b16 %v2902, %v2901
        %v2925 = vpack.c.b16 %v2904, %v2903
        %v2926 = vpack.c.b16 %v2906, %v2905
        %v2927 = vpack.c.b16 %v2908, %v2907
        %v2928 = vpack.c.b16 %v2910, %v2909
        %v2929 = vpack.c.b16 %v2912, %v2911
        %v2930 = vpack.c.b16 %v2914, %v2913
        %v2932 = vsel %vm2653, %v2915, 0
        %v2935 = vsel %vm2653, %v2916, 0
        %v2938 = vsel %vm2653, %v2917, 0
        %v2941 = vsel %vm2653, %v2918, 0
        %v2944 = vsel %vm2653, %v2919, 0
        %v2947 = vsel %vm2653, %v2920, 0
        %v2950 = vsel %vm2653, %v2921, 0
        %v2953 = vsel %vm2653, %v2922, 0
        %v2956 = vsel %vm2653, %v2923, 0
        %v2959 = vsel %vm2653, %v2924, 0
        %v2962 = vsel %vm2653, %v2925, 0
        %v2965 = vsel %vm2653, %v2926, 0
        %v2968 = vsel %vm2653, %v2927, 0
        %v2971 = vsel %vm2653, %v2928, 0
        %v2974 = vsel %vm2653, %v2929, 0
        %v2977 = vsel %vm2653, %v2930, 0
        %v2980 = vsel %vm2702, %v2602, 0
        %2982 = vmatprep.subr.bf16.mxu0 0
        %2983 = vmatpush1.bf16.msra.mxu0 %v2980
        %2984 = vmatprep.subr.bf16.mxu0 0
        %2985 = vmatpush1.bf16.msra.mxu0 0
        %2986 = vmatprep.subr.bf16.mxu0 0
        %2987 = vmatpush1.bf16.msra.mxu0 0
        %2988 = vmatprep.subr.bf16.mxu0 0
        %2989 = vmatpush1.bf16.msra.mxu0 0
        %2990 = vmatprep.subr.bf16.mxu0 0
        %2991 = vmatpush1.bf16.msra.mxu0 0
        %2992 = vmatprep.subr.bf16.mxu0 0
        %2993 = vmatpush1.bf16.msra.mxu0 0
        %2994 = vmatprep.subr.bf16.mxu0 0
        %2995 = vmatpush1.bf16.msra.mxu0 0
        %2996 = vmatprep.subr.bf16.mxu0 0
        %2997 = vmatpush1.bf16.msra.mxu0 0
        %2998 = vmatprep.subr.bf16.mxu0 0
        %2999 = vmatpush1.bf16.msra.mxu0 0
        %3000 = vmatprep.subr.bf16.mxu0 0
        %3001 = vmatpush1.bf16.msra.mxu0 0
        %3002 = vmatprep.subr.bf16.mxu0 0
        %3003 = vmatpush1.bf16.msra.mxu0 0
        %3004 = vmatprep.subr.bf16.mxu0 0
        %3005 = vmatpush1.bf16.msra.mxu0 0
        %3006 = vmatprep.subr.bf16.mxu0 0
        %3007 = vmatpush1.bf16.msra.mxu0 0
        %3008 = vmatprep.subr.bf16.mxu0 0
        %3009 = vmatpush1.bf16.msra.mxu0 0
        %3010 = vmatprep.subr.bf16.mxu0 0
        %3011 = vmatpush1.bf16.msra.mxu0 0
        %3012 = vmatprep.subr.bf16.mxu0 0
        %3013 = vmatpush1.bf16.msra.mxu0 0
        %3014 = vmatprep.mubr.bf16.mxu0 0
        %3015 = vmatmul.mubr.bf16.gmra.mrb[0].mxu0 %v2932
        %v3016 = vpop.f32.mrb[0].mxu0
        %v3017 = vadd.f32 %v2741, %v3016
        %v3018 = vpop.f32.mrb[0].mxu0
        %v3019 = vpop.f32.mrb[0].mxu0
        %v3020 = vadd.f32 %v2744, %v3019
        %v3021 = vpop.f32.mrb[0].mxu0
        %3022 = vmatprep.mubr.bf16.mxu0 0
        %3023 = vmatmul.mubr.bf16.gmra.mrb[0].mxu0 %v2935
        %v3024 = vpop.f32.mrb[0].mxu0
        %v3025 = vadd.f32 %v2749, %v3024
        %v3026 = vpop.f32.mrb[0].mxu0
        %v3027 = vpop.f32.mrb[0].mxu0
        %v3028 = vadd.f32 %v2752, %v3027
        %v3029 = vpop.f32.mrb[0].mxu0
        %3030 = vmatprep.mubr.bf16.mxu0 0
        %3031 = vmatmul.mubr.bf16.gmra.mrb[0].mxu0 %v2938
        %v3032 = vpop.f32.mrb[0].mxu0
        %v3033 = vadd.f32 %v2757, %v3032
        %v3034 = vpop.f32.mrb[0].mxu0
        %v3035 = vpop.f32.mrb[0].mxu0
        %v3036 = vadd.f32 %v2760, %v3035
        %v3037 = vpop.f32.mrb[0].mxu0
        %3038 = vmatprep.mubr.bf16.mxu0 0
        %3039 = vmatmul.mubr.bf16.gmra.mrb[0].mxu0 %v2941
        %v3040 = vpop.f32.mrb[0].mxu0
        %v3041 = vadd.f32 %v2765, %v3040
        %v3042 = vpop.f32.mrb[0].mxu0
        %v3043 = vpop.f32.mrb[0].mxu0
        %v3044 = vadd.f32 %v2768, %v3043
        %v3045 = vpop.f32.mrb[0].mxu0
        %3046 = vmatprep.mubr.bf16.mxu0 0
        %3047 = vmatmul.mubr.bf16.gmra.mrb[0].mxu0 %v2944
        %v3048 = vpop.f32.mrb[0].mxu0
        %v3049 = vadd.f32 %v2773, %v3048
        %v3050 = vpop.f32.mrb[0].mxu0
        %v3051 = vpop.f32.mrb[0].mxu0
        %v3052 = vadd.f32 %v2776, %v3051
        %v3053 = vpop.f32.mrb[0].mxu0
        %3054 = vmatprep.mubr.bf16.mxu0 0
        %3055 = vmatmul.mubr.bf16.gmra.mrb[0].mxu0 %v2947
        %v3056 = vpop.f32.mrb[0].mxu0
        %v3057 = vadd.f32 %v2781, %v3056
        %v3058 = vpop.f32.mrb[0].mxu0
        %v3059 = vpop.f32.mrb[0].mxu0
        %v3060 = vadd.f32 %v2784, %v3059
        %v3061 = vpop.f32.mrb[0].mxu0
        %3062 = vmatprep.mubr.bf16.mxu0 0
        %3063 = vmatmul.mubr.bf16.gmra.mrb[0].mxu0 %v2950
        %v3064 = vpop.f32.mrb[0].mxu0
        %v3065 = vadd.f32 %v2789, %v3064
        %v3066 = vpop.f32.mrb[0].mxu0
        %v3067 = vpop.f32.mrb[0].mxu0
        %v3068 = vadd.f32 %v2792, %v3067
        %v3069 = vpop.f32.mrb[0].mxu0
        %3070 = vmatprep.mubr.bf16.mxu0 0
        %3071 = vmatmul.mubr.bf16.gmra.mrb[0].mxu0 %v2953
        %v3072 = vpop.f32.mrb[0].mxu0
        %v3073 = vadd.f32 %v2797, %v3072
        %v3074 = vpop.f32.mrb[0].mxu0
        %v3075 = vpop.f32.mrb[0].mxu0
        %v3076 = vadd.f32 %v2800, %v3075
        %v3077 = vpop.f32.mrb[0].mxu0
        %3078 = vmatprep.mubr.bf16.mxu0 0
        %3079 = vmatmul.mubr.bf16.gmra.mrb[0].mxu0 %v2956
        %v3080 = vpop.f32.mrb[0].mxu0
        %v3081 = vadd.f32 %v2805, %v3080
        %v3082 = vpop.f32.mrb[0].mxu0
        %v3083 = vpop.f32.mrb[0].mxu0
        %v3084 = vadd.f32 %v2808, %v3083
        %v3085 = vpop.f32.mrb[0].mxu0
        %3086 = vmatprep.mubr.bf16.mxu0 0
        %3087 = vmatmul.mubr.bf16.gmra.mrb[0].mxu0 %v2959
        %v3088 = vpop.f32.mrb[0].mxu0
        %v3089 = vadd.f32 %v2813, %v3088
        %v3090 = vpop.f32.mrb[0].mxu0
        %v3091 = vpop.f32.mrb[0].mxu0
        %v3092 = vadd.f32 %v2816, %v3091
        %v3093 = vpop.f32.mrb[0].mxu0
        %3094 = vmatprep.mubr.bf16.mxu0 0
        %3095 = vmatmul.mubr.bf16.gmra.mrb[0].mxu0 %v2962
        %v3096 = vpop.f32.mrb[0].mxu0
        %v3097 = vadd.f32 %v2821, %v3096
        %v3098 = vpop.f32.mrb[0].mxu0
        %v3099 = vpop.f32.mrb[0].mxu0
        %v3100 = vadd.f32 %v2824, %v3099
        %v3101 = vpop.f32.mrb[0].mxu0
        %3102 = vmatprep.mubr.bf16.mxu0 0
        %3103 = vmatmul.mubr.bf16.gmra.mrb[0].mxu0 %v2965
        %v3104 = vpop.f32.mrb[0].mxu0
        %v3105 = vadd.f32 %v2829, %v3104
        %v3106 = vpop.f32.mrb[0].mxu0
        %v3107 = vpop.f32.mrb[0].mxu0
        %v3108 = vadd.f32 %v2832, %v3107
        %v3109 = vpop.f32.mrb[0].mxu0
        %3110 = vmatprep.mubr.bf16.mxu0 0
        %3111 = vmatmul.mubr.bf16.gmra.mrb[0].mxu0 %v2968
        %v3112 = vpop.f32.mrb[0].mxu0
        %v3113 = vadd.f32 %v2837, %v3112
        %v3114 = vpop.f32.mrb[0].mxu0
        %v3115 = vpop.f32.mrb[0].mxu0
        %v3116 = vadd.f32 %v2840, %v3115
        %v3117 = vpop.f32.mrb[0].mxu0
        %3118 = vmatprep.mubr.bf16.mxu0 0
        %3119 = vmatmul.mubr.bf16.gmra.mrb[0].mxu0 %v2971
        %v3120 = vpop.f32.mrb[0].mxu0
        %v3121 = vadd.f32 %v2845, %v3120
        %v3122 = vpop.f32.mrb[0].mxu0
        %v3123 = vpop.f32.mrb[0].mxu0
        %v3124 = vadd.f32 %v2848, %v3123
        %v3125 = vpop.f32.mrb[0].mxu0
        %3126 = vmatprep.mubr.bf16.mxu0 0
        %3127 = vmatmul.mubr.bf16.gmra.mrb[0].mxu0 %v2974
        %v3128 = vpop.f32.mrb[0].mxu0
        %v3129 = vadd.f32 %v2853, %v3128
        %v3130 = vpop.f32.mrb[0].mxu0
        %v3131 = vpop.f32.mrb[0].mxu0
        %v3132 = vadd.f32 %v2856, %v3131
        %v3133 = vpop.f32.mrb[0].mxu0
        %3134 = vmatprep.mubr.bf16.mxu0 0
        %3135 = vmatmul.mubr.bf16.gmra.mrb[0].mxu0 %v2977
        %v3136 = vpop.f32.mrb[0].mxu0
        %v3137 = vadd.f32 %v2861, %v3136
        %v3138 = vpop.f32.mrb[0].mxu0
        %v3139 = vpop.f32.mrb[0].mxu0
        %v3140 = vadd.f32 %v2864, %v3139
        %v3141 = vpop.f32.mrb[0].mxu0
        %3142 = vdwg.mxu0
        %s3143 = scalar_lea.vmem [#allocation6], 4
        %v3144 = vld [vmem:[%s3143] sm:$0x3]
        %v3145 = vunpack.c.l.b16 %v1276
        %v3146 = vunpack.c.l.b16 %v1279
        %v3147 = vunpack.c.l.b16 %v1283
        %v3148 = vunpack.c.l.b16 %v1286
        %v3149 = vunpack.c.l.b16 %v1290
        %v3150 = vunpack.c.l.b16 %v1293
        %v3151 = vunpack.c.l.b16 %v1297
        %v3152 = vunpack.c.l.b16 %v1300
        %v3153 = vunpack.c.l.b16 %v1304
        %v3154 = vunpack.c.l.b16 %v1307
        %v3155 = vunpack.c.l.b16 %v1311
        %v3156 = vunpack.c.l.b16 %v1314
        %v3157 = vunpack.c.l.b16 %v1318
        %v3158 = vunpack.c.l.b16 %v1321
        %v3159 = vunpack.c.l.b16 %v1325
        %v3160 = vunpack.c.l.b16 %v1328
        %v3161 = vunpack.c.l.b16 %v1332
        %v3162 = vunpack.c.l.b16 %v1335
        %v3163 = vunpack.c.l.b16 %v1339
        %v3164 = vunpack.c.l.b16 %v1342
        %v3165 = vunpack.c.l.b16 %v1346
        %v3166 = vunpack.c.l.b16 %v1349
        %v3167 = vunpack.c.l.b16 %v1353
        %v3168 = vunpack.c.l.b16 %v1356
        %v3169 = vunpack.c.l.b16 %v1360
        %v3170 = vunpack.c.l.b16 %v1363
        %v3171 = vunpack.c.l.b16 %v1367
        %v3172 = vunpack.c.l.b16 %v1370
        %v3173 = vunpack.c.l.b16 %v1374
        %v3174 = vunpack.c.l.b16 %v1377
        %v3175 = vunpack.c.l.b16 %v1381
        %v3176 = vunpack.c.l.b16 %v1384
        %v3177 = vpack.c.b16 %v3146, %v3145
        %v3178 = vpack.c.b16 %v3148, %v3147
        %v3179 = vpack.c.b16 %v3150, %v3149
        %v3180 = vpack.c.b16 %v3152, %v3151
        %v3181 = vpack.c.b16 %v3154, %v3153
        %v3182 = vpack.c.b16 %v3156, %v3155
        %v3183 = vpack.c.b16 %v3158, %v3157
        %v3184 = vpack.c.b16 %v3160, %v3159
        %v3185 = vpack.c.b16 %v3162, %v3161
        %v3186 = vpack.c.b16 %v3164, %v3163
        %v3187 = vpack.c.b16 %v3166, %v3165
        %v3188 = vpack.c.b16 %v3168, %v3167
        %v3189 = vpack.c.b16 %v3170, %v3169
        %v3190 = vpack.c.b16 %v3172, %v3171
        %v3191 = vpack.c.b16 %v3174, %v3173
        %v3192 = vpack.c.b16 %v3176, %v3175
        %v3194 = vsel %vm2653, %v3177, 0
        %v3197 = vsel %vm2653, %v3178, 0
        %v3200 = vsel %vm2653, %v3179, 0
        %v3203 = vsel %vm2653, %v3180, 0
        %v3206 = vsel %vm2653, %v3181, 0
        %v3209 = vsel %vm2653, %v3182, 0
        %v3212 = vsel %vm2653, %v3183, 0
        %v3215 = vsel %vm2653, %v3184, 0
        %v3218 = vsel %vm2653, %v3185, 0
        %v3221 = vsel %vm2653, %v3186, 0
        %v3224 = vsel %vm2653, %v3187, 0
        %v3227 = vsel %vm2653, %v3188, 0
        %v3230 = vsel %vm2653, %v3189, 0
        %v3233 = vsel %vm2653, %v3190, 0
        %v3236 = vsel %vm2653, %v3191, 0
        %v3239 = vsel %vm2653, %v3192, 0
        %v3242 = vsel %vm2702, %v3144, 0
        %3244 = vmatprep.subr.bf16.mxu0 0
        %3245 = vmatpush1.bf16.msra.mxu0 %v3242
        %3246 = vmatprep.subr.bf16.mxu0 0
        %3247 = vmatpush1.bf16.msra.mxu0 0
        %3248 = vmatprep.subr.bf16.mxu0 0
        %3249 = vmatpush1.bf16.msra.mxu0 0
        %3250 = vmatprep.subr.bf16.mxu0 0
        %3251 = vmatpush1.bf16.msra.mxu0 0
        %3252 = vmatprep.subr.bf16.mxu0 0
        %3253 = vmatpush1.bf16.msra.mxu0 0
        %3254 = vmatprep.subr.bf16.mxu0 0
        %3255 = vmatpush1.bf16.msra.mxu0 0
        %3256 = vmatprep.subr.bf16.mxu0 0
        %3257 = vmatpush1.bf16.msra.mxu0 0
        %3258 = vmatprep.subr.bf16.mxu0 0
        %3259 = vmatpush1.bf16.msra.mxu0 0
        %3260 = vmatprep.subr.bf16.mxu0 0
        %3261 = vmatpush1.bf16.msra.mxu0 0
        %3262 = vmatprep.subr.bf16.mxu0 0
        %3263 = vmatpush1.bf16.msra.mxu0 0
        %3264 = vmatprep.subr.bf16.mxu0 0
        %3265 = vmatpush1.bf16.msra.mxu0 0
        %3266 = vmatprep.subr.bf16.mxu0 0
        %3267 = vmatpush1.bf16.msra.mxu0 0
        %3268 = vmatprep.subr.bf16.mxu0 0
        %3269 = vmatpush1.bf16.msra.mxu0 0
        %3270 = vmatprep.subr.bf16.mxu0 0
        %3271 = vmatpush1.bf16.msra.mxu0 0
        %3272 = vmatprep.subr.bf16.mxu0 0
        %3273 = vmatpush1.bf16.msra.mxu0 0
        %3274 = vmatprep.subr.bf16.mxu0 0
        %3275 = vmatpush1.bf16.msra.mxu0 0
        %3276 = vmatprep.mubr.bf16.mxu0 0
        %3277 = vmatmul.mubr.bf16.gmra.mrb[0].mxu0 %v3194
        %v3278 = vpop.f32.mrb[0].mxu0
        %v3279 = vadd.f32 0.0, %v3278
        %v3280 = vpop.f32.mrb[0].mxu0
        %v3281 = vpop.f32.mrb[0].mxu0
        %v3282 = vadd.f32 0.0, %v3281
        %v3283 = vpop.f32.mrb[0].mxu0
        %3284 = vmatprep.mubr.bf16.mxu0 0
        %3285 = vmatmul.mubr.bf16.gmra.mrb[0].mxu0 %v3197
        %v3286 = vpop.f32.mrb[0].mxu0
        %v3287 = vadd.f32 0.0, %v3286
        %v3288 = vpop.f32.mrb[0].mxu0
        %v3289 = vpop.f32.mrb[0].mxu0
        %v3290 = vadd.f32 0.0, %v3289
        %v3291 = vpop.f32.mrb[0].mxu0
        %3292 = vmatprep.mubr.bf16.mxu0 0
        %3293 = vmatmul.mubr.bf16.gmra.mrb[0].mxu0 %v3200
        %v3294 = vpop.f32.mrb[0].mxu0
        %v3295 = vadd.f32 0.0, %v3294
        %v3296 = vpop.f32.mrb[0].mxu0
        %v3297 = vpop.f32.mrb[0].mxu0
        %v3298 = vadd.f32 0.0, %v3297
        %v3299 = vpop.f32.mrb[0].mxu0
        %3300 = vmatprep.mubr.bf16.mxu0 0
        %3301 = vmatmul.mubr.bf16.gmra.mrb[0].mxu0 %v3203
        %v3302 = vpop.f32.mrb[0].mxu0
        %v3303 = vadd.f32 0.0, %v3302
        %v3304 = vpop.f32.mrb[0].mxu0
        %v3305 = vpop.f32.mrb[0].mxu0
        %v3306 = vadd.f32 0.0, %v3305
        %v3307 = vpop.f32.mrb[0].mxu0
        %3308 = vmatprep.mubr.bf16.mxu0 0
        %3309 = vmatmul.mubr.bf16.gmra.mrb[0].mxu0 %v3206
        %v3310 = vpop.f32.mrb[0].mxu0
        %v3311 = vadd.f32 0.0, %v3310
        %v3312 = vpop.f32.mrb[0].mxu0
        %v3313 = vpop.f32.mrb[0].mxu0
        %v3314 = vadd.f32 0.0, %v3313
        %v3315 = vpop.f32.mrb[0].mxu0
        %3316 = vmatprep.mubr.bf16.mxu0 0
        %3317 = vmatmul.mubr.bf16.gmra.mrb[0].mxu0 %v3209
        %v3318 = vpop.f32.mrb[0].mxu0
        %v3319 = vadd.f32 0.0, %v3318
        %v3320 = vpop.f32.mrb[0].mxu0
        %v3321 = vpop.f32.mrb[0].mxu0
        %v3322 = vadd.f32 0.0, %v3321
        %v3323 = vpop.f32.mrb[0].mxu0
        %3324 = vmatprep.mubr.bf16.mxu0 0
        %3325 = vmatmul.mubr.bf16.gmra.mrb[0].mxu0 %v3212
        %v3326 = vpop.f32.mrb[0].mxu0
        %v3327 = vadd.f32 0.0, %v3326
        %v3328 = vpop.f32.mrb[0].mxu0
        %v3329 = vpop.f32.mrb[0].mxu0
        %v3330 = vadd.f32 0.0, %v3329
        %v3331 = vpop.f32.mrb[0].mxu0
        %3332 = vmatprep.mubr.bf16.mxu0 0
        %3333 = vmatmul.mubr.bf16.gmra.mrb[0].mxu0 %v3215
        %v3334 = vpop.f32.mrb[0].mxu0
        %v3335 = vadd.f32 0.0, %v3334
        %v3336 = vpop.f32.mrb[0].mxu0
        %v3337 = vpop.f32.mrb[0].mxu0
        %v3338 = vadd.f32 0.0, %v3337
        %v3339 = vpop.f32.mrb[0].mxu0
        %3340 = vmatprep.mubr.bf16.mxu0 0
        %3341 = vmatmul.mubr.bf16.gmra.mrb[0].mxu0 %v3218
        %v3342 = vpop.f32.mrb[0].mxu0
        %v3343 = vadd.f32 0.0, %v3342
        %v3344 = vpop.f32.mrb[0].mxu0
        %v3345 = vpop.f32.mrb[0].mxu0
        %v3346 = vadd.f32 0.0, %v3345
        %v3347 = vpop.f32.mrb[0].mxu0
        %3348 = vmatprep.mubr.bf16.mxu0 0
        %3349 = vmatmul.mubr.bf16.gmra.mrb[0].mxu0 %v3221
        %v3350 = vpop.f32.mrb[0].mxu0
        %v3351 = vadd.f32 0.0, %v3350
        %v3352 = vpop.f32.mrb[0].mxu0
        %v3353 = vpop.f32.mrb[0].mxu0
        %v3354 = vadd.f32 0.0, %v3353
        %v3355 = vpop.f32.mrb[0].mxu0
        %3356 = vmatprep.mubr.bf16.mxu0 0
        %3357 = vmatmul.mubr.bf16.gmra.mrb[0].mxu0 %v3224
        %v3358 = vpop.f32.mrb[0].mxu0
        %v3359 = vadd.f32 0.0, %v3358
        %v3360 = vpop.f32.mrb[0].mxu0
        %v3361 = vpop.f32.mrb[0].mxu0
        %v3362 = vadd.f32 0.0, %v3361
        %v3363 = vpop.f32.mrb[0].mxu0
        %3364 = vmatprep.mubr.bf16.mxu0 0
        %3365 = vmatmul.mubr.bf16.gmra.mrb[0].mxu0 %v3227
        %v3366 = vpop.f32.mrb[0].mxu0
        %v3367 = vadd.f32 0.0, %v3366
        %v3368 = vpop.f32.mrb[0].mxu0
        %v3369 = vpop.f32.mrb[0].mxu0
        %v3370 = vadd.f32 0.0, %v3369
        %v3371 = vpop.f32.mrb[0].mxu0
        %3372 = vmatprep.mubr.bf16.mxu0 0
        %3373 = vmatmul.mubr.bf16.gmra.mrb[0].mxu0 %v3230
        %v3374 = vpop.f32.mrb[0].mxu0
        %v3375 = vadd.f32 0.0, %v3374
        %v3376 = vpop.f32.mrb[0].mxu0
        %v3377 = vpop.f32.mrb[0].mxu0
        %v3378 = vadd.f32 0.0, %v3377
        %v3379 = vpop.f32.mrb[0].mxu0
        %3380 = vmatprep.mubr.bf16.mxu0 0
        %3381 = vmatmul.mubr.bf16.gmra.mrb[0].mxu0 %v3233
        %v3382 = vpop.f32.mrb[0].mxu0
        %v3383 = vadd.f32 0.0, %v3382
        %v3384 = vpop.f32.mrb[0].mxu0
        %v3385 = vpop.f32.mrb[0].mxu0
        %v3386 = vadd.f32 0.0, %v3385
        %v3387 = vpop.f32.mrb[0].mxu0
        %3388 = vmatprep.mubr.bf16.mxu0 0
        %3389 = vmatmul.mubr.bf16.gmra.mrb[0].mxu0 %v3236
        %v3390 = vpop.f32.mrb[0].mxu0
        %v3391 = vadd.f32 0.0, %v3390
        %v3392 = vpop.f32.mrb[0].mxu0
        %v3393 = vpop.f32.mrb[0].mxu0
        %v3394 = vadd.f32 0.0, %v3393
        %v3395 = vpop.f32.mrb[0].mxu0
        %3396 = vmatprep.mubr.bf16.mxu0 0
        %3397 = vmatmul.mubr.bf16.gmra.mrb[0].mxu0 %v3239
        %v3398 = vpop.f32.mrb[0].mxu0
        %v3399 = vadd.f32 0.0, %v3398
        %v3400 = vpop.f32.mrb[0].mxu0
        %v3401 = vpop.f32.mrb[0].mxu0
        %v3402 = vadd.f32 0.0, %v3401
        %v3403 = vpop.f32.mrb[0].mxu0
        %3404 = vdwg.mxu0
        %v3405 = vadd.f32 %v3017, %v3279
        %v3406 = vadd.f32 %v3020, %v3282
        %v3407 = vadd.f32 %v3025, %v3287
        %v3408 = vadd.f32 %v3028, %v3290
        %v3409 = vadd.f32 %v3033, %v3295
        %v3410 = vadd.f32 %v3036, %v3298
        %v3411 = vadd.f32 %v3041, %v3303
        %v3412 = vadd.f32 %v3044, %v3306
        %v3413 = vadd.f32 %v3049, %v3311
        %v3414 = vadd.f32 %v3052, %v3314
        %v3415 = vadd.f32 %v3057, %v3319
        %v3416 = vadd.f32 %v3060, %v3322
        %v3417 = vadd.f32 %v3065, %v3327
        %v3418 = vadd.f32 %v3068, %v3330
        %v3419 = vadd.f32 %v3073, %v3335
        %v3420 = vadd.f32 %v3076, %v3338
        %v3421 = vadd.f32 %v3081, %v3343
        %v3422 = vadd.f32 %v3084, %v3346
        %v3423 = vadd.f32 %v3089, %v3351
        %v3424 = vadd.f32 %v3092, %v3354
        %v3425 = vadd.f32 %v3097, %v3359
        %v3426 = vadd.f32 %v3100, %v3362
        %v3427 = vadd.f32 %v3105, %v3367
        %v3428 = vadd.f32 %v3108, %v3370
        %v3429 = vadd.f32 %v3113, %v3375
        %v3430 = vadd.f32 %v3116, %v3378
        %v3431 = vadd.f32 %v3121, %v3383
        %v3432 = vadd.f32 %v3124, %v3386
        %v3433 = vadd.f32 %v3129, %v3391
        %v3434 = vadd.f32 %v3132, %v3394
        %v3435 = vadd.f32 %v3137, %v3399
        %v3436 = vadd.f32 %v3140, %v3402
        %s3437 = scalar_lea.vmem [#allocation6], 6
        %v3438 = vld [vmem:[%s3437] sm:$0x3]
        %v3455 = vunpack.c.l.b16 %v1385
        %v3456 = vunpack.c.l.b16 %v1386
        %v3457 = vunpack.c.l.b16 %v1387
        %v3458 = vunpack.c.l.b16 %v1388
        %v3459 = vunpack.c.l.b16 %v1389
        %v3460 = vunpack.c.l.b16 %v1390
        %v3461 = vunpack.c.l.b16 %v1391
        %v3462 = vunpack.c.l.b16 %v1392
        %v3463 = vunpack.c.l.b16 %v1393
        %v3464 = vunpack.c.l.b16 %v1394
        %v3465 = vunpack.c.l.b16 %v1395
        %v3466 = vunpack.c.l.b16 %v1396
        %v3467 = vunpack.c.l.b16 %v1397
        %v3468 = vunpack.c.l.b16 %v1398
        %v3469 = vunpack.c.l.b16 %v1399
        %v3470 = vunpack.c.l.b16 %v1400
        %v3471 = vunpack.c.l.b16 %v1401
        %v3472 = vunpack.c.l.b16 %v1402
        %v3473 = vunpack.c.l.b16 %v1403
        %v3474 = vunpack.c.l.b16 %v1404
        %v3475 = vunpack.c.l.b16 %v1405
        %v3476 = vunpack.c.l.b16 %v1406
        %v3477 = vunpack.c.l.b16 %v1407
        %v3478 = vunpack.c.l.b16 %v1408
        %v3479 = vunpack.c.l.b16 %v1409
        %v3480 = vunpack.c.l.b16 %v1410
        %v3481 = vunpack.c.l.b16 %v1411
        %v3482 = vunpack.c.l.b16 %v1412
        %v3483 = vunpack.c.l.b16 %v1413
        %v3484 = vunpack.c.l.b16 %v1414
        %v3485 = vunpack.c.l.b16 %v1415
        %v3486 = vunpack.c.l.b16 %v1416
        %v3487 = vpack.c.b16 %v3456, %v3455
        %v3488 = vpack.c.b16 %v3458, %v3457
        %v3489 = vpack.c.b16 %v3460, %v3459
        %v3490 = vpack.c.b16 %v3462, %v3461
        %v3491 = vpack.c.b16 %v3464, %v3463
        %v3492 = vpack.c.b16 %v3466, %v3465
        %v3493 = vpack.c.b16 %v3468, %v3467
        %v3494 = vpack.c.b16 %v3470, %v3469
        %v3495 = vpack.c.b16 %v3472, %v3471
        %v3496 = vpack.c.b16 %v3474, %v3473
        %v3497 = vpack.c.b16 %v3476, %v3475
        %v3498 = vpack.c.b16 %v3478, %v3477
        %v3499 = vpack.c.b16 %v3480, %v3479
        %v3500 = vpack.c.b16 %v3482, %v3481
        %v3501 = vpack.c.b16 %v3484, %v3483
        %v3502 = vpack.c.b16 %v3486, %v3485
        %v3504 = vsel %vm2653, %v3487, 0
        %v3507 = vsel %vm2653, %v3488, 0
        %v3510 = vsel %vm2653, %v3489, 0
        %v3513 = vsel %vm2653, %v3490, 0
        %v3516 = vsel %vm2653, %v3491, 0
        %v3519 = vsel %vm2653, %v3492, 0
        %v3522 = vsel %vm2653, %v3493, 0
        %v3525 = vsel %vm2653, %v3494, 0
        %v3528 = vsel %vm2653, %v3495, 0
        %v3531 = vsel %vm2653, %v3496, 0
        %v3534 = vsel %vm2653, %v3497, 0
        %v3537 = vsel %vm2653, %v3498, 0
        %v3540 = vsel %vm2653, %v3499, 0
        %v3543 = vsel %vm2653, %v3500, 0
        %v3546 = vsel %vm2653, %v3501, 0
        %v3549 = vsel %vm2653, %v3502, 0
        %v3552 = vsel %vm2702, %v3438, 0
        %3554 = vmatprep.subr.bf16.mxu0 0
        %3555 = vmatpush1.bf16.msra.mxu0 %v3552
        %3556 = vmatprep.subr.bf16.mxu0 0
        %3557 = vmatpush1.bf16.msra.mxu0 0
        %3558 = vmatprep.subr.bf16.mxu0 0
        %3559 = vmatpush1.bf16.msra.mxu0 0
        %3560 = vmatprep.subr.bf16.mxu0 0
        %3561 = vmatpush1.bf16.msra.mxu0 0
        %3562 = vmatprep.subr.bf16.mxu0 0
        %3563 = vmatpush1.bf16.msra.mxu0 0
        %3564 = vmatprep.subr.bf16.mxu0 0
        %3565 = vmatpush1.bf16.msra.mxu0 0
        %3566 = vmatprep.subr.bf16.mxu0 0
        %3567 = vmatpush1.bf16.msra.mxu0 0
        %3568 = vmatprep.subr.bf16.mxu0 0
        %3569 = vmatpush1.bf16.msra.mxu0 0
        %3570 = vmatprep.subr.bf16.mxu0 0
        %3571 = vmatpush1.bf16.msra.mxu0 0
        %3572 = vmatprep.subr.bf16.mxu0 0
        %3573 = vmatpush1.bf16.msra.mxu0 0
        %3574 = vmatprep.subr.bf16.mxu0 0
        %3575 = vmatpush1.bf16.msra.mxu0 0
        %3576 = vmatprep.subr.bf16.mxu0 0
        %3577 = vmatpush1.bf16.msra.mxu0 0
        %3578 = vmatprep.subr.bf16.mxu0 0
        %3579 = vmatpush1.bf16.msra.mxu0 0
        %3580 = vmatprep.subr.bf16.mxu0 0
        %3581 = vmatpush1.bf16.msra.mxu0 0
        %3582 = vmatprep.subr.bf16.mxu0 0
        %3583 = vmatpush1.bf16.msra.mxu0 0
        %3584 = vmatprep.subr.bf16.mxu0 0
        %3585 = vmatpush1.bf16.msra.mxu0 0
        %3586 = vmatprep.mubr.bf16.mxu0 0
        %3587 = vmatmul.mubr.bf16.gmra.mrb[0].mxu0 %v3504
        %v3588 = vpop.f32.mrb[0].mxu0
        %v3589 = vadd.f32 0.0, %v3588
        %v3590 = vpop.f32.mrb[0].mxu0
        %v3591 = vpop.f32.mrb[0].mxu0
        %v3592 = vadd.f32 0.0, %v3591
        %v3593 = vpop.f32.mrb[0].mxu0
        %3594 = vmatprep.mubr.bf16.mxu0 0
        %3595 = vmatmul.mubr.bf16.gmra.mrb[0].mxu0 %v3507
        %v3596 = vpop.f32.mrb[0].mxu0
        %v3597 = vadd.f32 0.0, %v3596
        %v3598 = vpop.f32.mrb[0].mxu0
        %v3599 = vpop.f32.mrb[0].mxu0
        %v3600 = vadd.f32 0.0, %v3599
        %v3601 = vpop.f32.mrb[0].mxu0
        %3602 = vmatprep.mubr.bf16.mxu0 0
        %3603 = vmatmul.mubr.bf16.gmra.mrb[0].mxu0 %v3510
        %v3604 = vpop.f32.mrb[0].mxu0
        %v3605 = vadd.f32 0.0, %v3604
        %v3606 = vpop.f32.mrb[0].mxu0
        %v3607 = vpop.f32.mrb[0].mxu0
        %v3608 = vadd.f32 0.0, %v3607
        %v3609 = vpop.f32.mrb[0].mxu0
        %3610 = vmatprep.mubr.bf16.mxu0 0
        %3611 = vmatmul.mubr.bf16.gmra.mrb[0].mxu0 %v3513
        %v3612 = vpop.f32.mrb[0].mxu0
        %v3613 = vadd.f32 0.0, %v3612
        %v3614 = vpop.f32.mrb[0].mxu0
        %v3615 = vpop.f32.mrb[0].mxu0
        %v3616 = vadd.f32 0.0, %v3615
        %v3617 = vpop.f32.mrb[0].mxu0
        %3618 = vmatprep.mubr.bf16.mxu0 0
        %3619 = vmatmul.mubr.bf16.gmra.mrb[0].mxu0 %v3516
        %v3620 = vpop.f32.mrb[0].mxu0
        %v3621 = vadd.f32 0.0, %v3620
        %v3622 = vpop.f32.mrb[0].mxu0
        %v3623 = vpop.f32.mrb[0].mxu0
        %v3624 = vadd.f32 0.0, %v3623
        %v3625 = vpop.f32.mrb[0].mxu0
        %3626 = vmatprep.mubr.bf16.mxu0 0
        %3627 = vmatmul.mubr.bf16.gmra.mrb[0].mxu0 %v3519
        %v3628 = vpop.f32.mrb[0].mxu0
        %v3629 = vadd.f32 0.0, %v3628
        %v3630 = vpop.f32.mrb[0].mxu0
        %v3631 = vpop.f32.mrb[0].mxu0
        %v3632 = vadd.f32 0.0, %v3631
        %v3633 = vpop.f32.mrb[0].mxu0
        %3634 = vmatprep.mubr.bf16.mxu0 0
        %3635 = vmatmul.mubr.bf16.gmra.mrb[0].mxu0 %v3522
        %v3636 = vpop.f32.mrb[0].mxu0
        %v3637 = vadd.f32 0.0, %v3636
        %v3638 = vpop.f32.mrb[0].mxu0
        %v3639 = vpop.f32.mrb[0].mxu0
        %v3640 = vadd.f32 0.0, %v3639
        %v3641 = vpop.f32.mrb[0].mxu0
        %3642 = vmatprep.mubr.bf16.mxu0 0
        %3643 = vmatmul.mubr.bf16.gmra.mrb[0].mxu0 %v3525
        %v3644 = vpop.f32.mrb[0].mxu0
        %v3645 = vadd.f32 0.0, %v3644
        %v3646 = vpop.f32.mrb[0].mxu0
        %v3647 = vpop.f32.mrb[0].mxu0
        %v3648 = vadd.f32 0.0, %v3647
        %v3649 = vpop.f32.mrb[0].mxu0
        %3650 = vmatprep.mubr.bf16.mxu0 0
        %3651 = vmatmul.mubr.bf16.gmra.mrb[0].mxu0 %v3528
        %v3652 = vpop.f32.mrb[0].mxu0
        %v3653 = vadd.f32 0.0, %v3652
        %v3654 = vpop.f32.mrb[0].mxu0
        %v3655 = vpop.f32.mrb[0].mxu0
        %v3656 = vadd.f32 0.0, %v3655
        %v3657 = vpop.f32.mrb[0].mxu0
        %3658 = vmatprep.mubr.bf16.mxu0 0
        %3659 = vmatmul.mubr.bf16.gmra.mrb[0].mxu0 %v3531
        %v3660 = vpop.f32.mrb[0].mxu0
        %v3661 = vadd.f32 0.0, %v3660
        %v3662 = vpop.f32.mrb[0].mxu0
        %v3663 = vpop.f32.mrb[0].mxu0
        %v3664 = vadd.f32 0.0, %v3663
        %v3665 = vpop.f32.mrb[0].mxu0
        %3666 = vmatprep.mubr.bf16.mxu0 0
        %3667 = vmatmul.mubr.bf16.gmra.mrb[0].mxu0 %v3534
        %v3668 = vpop.f32.mrb[0].mxu0
        %v3669 = vadd.f32 0.0, %v3668
        %v3670 = vpop.f32.mrb[0].mxu0
        %v3671 = vpop.f32.mrb[0].mxu0
        %v3672 = vadd.f32 0.0, %v3671
        %v3673 = vpop.f32.mrb[0].mxu0
        %3674 = vmatprep.mubr.bf16.mxu0 0
        %3675 = vmatmul.mubr.bf16.gmra.mrb[0].mxu0 %v3537
        %v3676 = vpop.f32.mrb[0].mxu0
        %v3677 = vadd.f32 0.0, %v3676
        %v3678 = vpop.f32.mrb[0].mxu0
        %v3679 = vpop.f32.mrb[0].mxu0
        %v3680 = vadd.f32 0.0, %v3679
        %v3681 = vpop.f32.mrb[0].mxu0
        %3682 = vmatprep.mubr.bf16.mxu0 0
        %3683 = vmatmul.mubr.bf16.gmra.mrb[0].mxu0 %v3540
        %v3684 = vpop.f32.mrb[0].mxu0
        %v3685 = vadd.f32 0.0, %v3684
        %v3686 = vpop.f32.mrb[0].mxu0
        %v3687 = vpop.f32.mrb[0].mxu0
        %v3688 = vadd.f32 0.0, %v3687
        %v3689 = vpop.f32.mrb[0].mxu0
        %3690 = vmatprep.mubr.bf16.mxu0 0
        %3691 = vmatmul.mubr.bf16.gmra.mrb[0].mxu0 %v3543
        %v3692 = vpop.f32.mrb[0].mxu0
        %v3693 = vadd.f32 0.0, %v3692
        %v3694 = vpop.f32.mrb[0].mxu0
        %v3695 = vpop.f32.mrb[0].mxu0
        %v3696 = vadd.f32 0.0, %v3695
        %v3697 = vpop.f32.mrb[0].mxu0
        %3698 = vmatprep.mubr.bf16.mxu0 0
        %3699 = vmatmul.mubr.bf16.gmra.mrb[0].mxu0 %v3546
        %v3700 = vpop.f32.mrb[0].mxu0
        %v3701 = vadd.f32 0.0, %v3700
        %v3702 = vpop.f32.mrb[0].mxu0
        %v3703 = vpop.f32.mrb[0].mxu0
        %v3704 = vadd.f32 0.0, %v3703
        %v3705 = vpop.f32.mrb[0].mxu0
        %3706 = vmatprep.mubr.bf16.mxu0 0
        %3707 = vmatmul.mubr.bf16.gmra.mrb[0].mxu0 %v3549
        %v3708 = vpop.f32.mrb[0].mxu0
        %v3709 = vadd.f32 0.0, %v3708
        %v3710 = vpop.f32.mrb[0].mxu0
        %v3711 = vpop.f32.mrb[0].mxu0
        %v3712 = vadd.f32 0.0, %v3711
        %v3713 = vpop.f32.mrb[0].mxu0
        %3714 = vdwg.mxu0
        %v3715 = vadd.f32 %v3405, %v3589
        %v3716 = vadd.f32 %v3406, %v3592
        %v3717 = vadd.f32 %v3407, %v3597
        %v3718 = vadd.f32 %v3408, %v3600
        %v3719 = vadd.f32 %v3409, %v3605
        %v3720 = vadd.f32 %v3410, %v3608
        %v3721 = vadd.f32 %v3411, %v3613
        %v3722 = vadd.f32 %v3412, %v3616
        %v3723 = vadd.f32 %v3413, %v3621
        %v3724 = vadd.f32 %v3414, %v3624
        %v3725 = vadd.f32 %v3415, %v3629
        %v3726 = vadd.f32 %v3416, %v3632
        %v3727 = vadd.f32 %v3417, %v3637
        %v3728 = vadd.f32 %v3418, %v3640
        %v3729 = vadd.f32 %v3419, %v3645
        %v3730 = vadd.f32 %v3420, %v3648
        %v3731 = vadd.f32 %v3421, %v3653
        %v3732 = vadd.f32 %v3422, %v3656
        %v3733 = vadd.f32 %v3423, %v3661
        %v3734 = vadd.f32 %v3424, %v3664
        %v3735 = vadd.f32 %v3425, %v3669
        %v3736 = vadd.f32 %v3426, %v3672
        %v3737 = vadd.f32 %v3427, %v3677
        %v3738 = vadd.f32 %v3428, %v3680
        %v3739 = vadd.f32 %v3429, %v3685
        %v3740 = vadd.f32 %v3430, %v3688
        %v3741 = vadd.f32 %v3431, %v3693
        %v3742 = vadd.f32 %v3432, %v3696
        %v3743 = vadd.f32 %v3433, %v3701
        %v3744 = vadd.f32 %v3434, %v3704
        %v3745 = vadd.f32 %v3435, %v3709
        %v3746 = vadd.f32 %v3436, %v3712
        %s3747 = scalar_lea.vmem [#allocation6], 8
        %v3748 = vld [vmem:[%s3747] sm:$0x3]
        %v3749 = vunpack.c.l.b16 %v1446
        %v3750 = vunpack.c.l.b16 %v1456
        %v3751 = vunpack.c.l.b16 %v1470
        %v3752 = vunpack.c.l.b16 %v1480
        %v3753 = vunpack.c.l.b16 %v1494
        %v3754 = vunpack.c.l.b16 %v1504
        %v3755 = vunpack.c.l.b16 %v1518
        %v3756 = vunpack.c.l.b16 %v1528
        %v3757 = vunpack.c.l.b16 %v1542
        %v3758 = vunpack.c.l.b16 %v1552
        %v3759 = vunpack.c.l.b16 %v1566
        %v3760 = vunpack.c.l.b16 %v1576
        %v3761 = vunpack.c.l.b16 %v1590
        %v3762 = vunpack.c.l.b16 %v1600
        %v3763 = vunpack.c.l.b16 %v1614
        %v3764 = vunpack.c.l.b16 %v1624
        %v3765 = vunpack.c.l.b16 %v1638
        %v3766 = vunpack.c.l.b16 %v1648
        %v3767 = vunpack.c.l.b16 %v1662
        %v3768 = vunpack.c.l.b16 %v1672
        %v3769 = vunpack.c.l.b16 %v1686
        %v3770 = vunpack.c.l.b16 %v1696
        %v3771 = vunpack.c.l.b16 %v1710
        %v3772 = vunpack.c.l.b16 %v1720
        %v3773 = vunpack.c.l.b16 %v1734
        %v3774 = vunpack.c.l.b16 %v1744
        %v3775 = vunpack.c.l.b16 %v1758
        %v3776 = vunpack.c.l.b16 %v1768
        %v3777 = vunpack.c.l.b16 %v1782
        %v3778 = vunpack.c.l.b16 %v1792
        %v3779 = vunpack.c.l.b16 %v1806
        %v3780 = vunpack.c.l.b16 %v1816
        %v3781 = vpack.c.b16 %v3750, %v3749
        %v3782 = vpack.c.b16 %v3752, %v3751
        %v3783 = vpack.c.b16 %v3754, %v3753
        %v3784 = vpack.c.b16 %v3756, %v3755
        %v3785 = vpack.c.b16 %v3758, %v3757
        %v3786 = vpack.c.b16 %v3760, %v3759
        %v3787 = vpack.c.b16 %v3762, %v3761
        %v3788 = vpack.c.b16 %v3764, %v3763
        %v3789 = vpack.c.b16 %v3766, %v3765
        %v3790 = vpack.c.b16 %v3768, %v3767
        %v3791 = vpack.c.b16 %v3770, %v3769
        %v3792 = vpack.c.b16 %v3772, %v3771
        %v3793 = vpack.c.b16 %v3774, %v3773
        %v3794 = vpack.c.b16 %v3776, %v3775
        %v3795 = vpack.c.b16 %v3778, %v3777
        %v3796 = vpack.c.b16 %v3780, %v3779
        %v3798 = vsel %vm2653, %v3781, 0
        %v3801 = vsel %vm2653, %v3782, 0
        %v3804 = vsel %vm2653, %v3783, 0
        %v3807 = vsel %vm2653, %v3784, 0
        %v3810 = vsel %vm2653, %v3785, 0
        %v3813 = vsel %vm2653, %v3786, 0
        %v3816 = vsel %vm2653, %v3787, 0
        %v3819 = vsel %vm2653, %v3788, 0
        %v3822 = vsel %vm2653, %v3789, 0
        %v3825 = vsel %vm2653, %v3790, 0
        %v3828 = vsel %vm2653, %v3791, 0
        %v3831 = vsel %vm2653, %v3792, 0
        %v3834 = vsel %vm2653, %v3793, 0
        %v3837 = vsel %vm2653, %v3794, 0
        %v3840 = vsel %vm2653, %v3795, 0
        %v3843 = vsel %vm2653, %v3796, 0
        %v3846 = vsel %vm2702, %v3748, 0
        %3848 = vmatprep.subr.bf16.mxu0 0
        %3849 = vmatpush1.bf16.msra.mxu0 %v3846
        %3850 = vmatprep.subr.bf16.mxu0 0
        %3851 = vmatpush1.bf16.msra.mxu0 0
        %3852 = vmatprep.subr.bf16.mxu0 0
        %3853 = vmatpush1.bf16.msra.mxu0 0
        %3854 = vmatprep.subr.bf16.mxu0 0
        %3855 = vmatpush1.bf16.msra.mxu0 0
        %3856 = vmatprep.subr.bf16.mxu0 0
        %3857 = vmatpush1.bf16.msra.mxu0 0
        %3858 = vmatprep.subr.bf16.mxu0 0
        %3859 = vmatpush1.bf16.msra.mxu0 0
        %3860 = vmatprep.subr.bf16.mxu0 0
        %3861 = vmatpush1.bf16.msra.mxu0 0
        %3862 = vmatprep.subr.bf16.mxu0 0
        %3863 = vmatpush1.bf16.msra.mxu0 0
        %3864 = vmatprep.subr.bf16.mxu0 0
        %3865 = vmatpush1.bf16.msra.mxu0 0
        %3866 = vmatprep.subr.bf16.mxu0 0
        %3867 = vmatpush1.bf16.msra.mxu0 0
        %3868 = vmatprep.subr.bf16.mxu0 0
        %3869 = vmatpush1.bf16.msra.mxu0 0
        %3870 = vmatprep.subr.bf16.mxu0 0
        %3871 = vmatpush1.bf16.msra.mxu0 0
        %3872 = vmatprep.subr.bf16.mxu0 0
        %3873 = vmatpush1.bf16.msra.mxu0 0
        %3874 = vmatprep.subr.bf16.mxu0 0
        %3875 = vmatpush1.bf16.msra.mxu0 0
        %3876 = vmatprep.subr.bf16.mxu0 0
        %3877 = vmatpush1.bf16.msra.mxu0 0
        %3878 = vmatprep.subr.bf16.mxu0 0
        %3879 = vmatpush1.bf16.msra.mxu0 0
        %3880 = vmatprep.mubr.bf16.mxu0 0
        %3881 = vmatmul.mubr.bf16.gmra.mrb[0].mxu0 %v3798
        %v3882 = vpop.f32.mrb[0].mxu0
        %v3883 = vadd.f32 0.0, %v3882
        %v3884 = vpop.f32.mrb[0].mxu0
        %v3885 = vpop.f32.mrb[0].mxu0
        %v3886 = vadd.f32 0.0, %v3885
        %v3887 = vpop.f32.mrb[0].mxu0
        %3888 = vmatprep.mubr.bf16.mxu0 0
        %3889 = vmatmul.mubr.bf16.gmra.mrb[0].mxu0 %v3801
        %v3890 = vpop.f32.mrb[0].mxu0
        %v3891 = vadd.f32 0.0, %v3890
        %v3892 = vpop.f32.mrb[0].mxu0
        %v3893 = vpop.f32.mrb[0].mxu0
        %v3894 = vadd.f32 0.0, %v3893
        %v3895 = vpop.f32.mrb[0].mxu0
        %3896 = vmatprep.mubr.bf16.mxu0 0
        %3897 = vmatmul.mubr.bf16.gmra.mrb[0].mxu0 %v3804
        %v3898 = vpop.f32.mrb[0].mxu0
        %v3899 = vadd.f32 0.0, %v3898
        %v3900 = vpop.f32.mrb[0].mxu0
        %v3901 = vpop.f32.mrb[0].mxu0
        %v3902 = vadd.f32 0.0, %v3901
        %v3903 = vpop.f32.mrb[0].mxu0
        %3904 = vmatprep.mubr.bf16.mxu0 0
        %3905 = vmatmul.mubr.bf16.gmra.mrb[0].mxu0 %v3807
        %v3906 = vpop.f32.mrb[0].mxu0
        %v3907 = vadd.f32 0.0, %v3906
        %v3908 = vpop.f32.mrb[0].mxu0
        %v3909 = vpop.f32.mrb[0].mxu0
        %v3910 = vadd.f32 0.0, %v3909
        %v3911 = vpop.f32.mrb[0].mxu0
        %3912 = vmatprep.mubr.bf16.mxu0 0
        %3913 = vmatmul.mubr.bf16.gmra.mrb[0].mxu0 %v3810
        %v3914 = vpop.f32.mrb[0].mxu0
        %v3915 = vadd.f32 0.0, %v3914
        %v3916 = vpop.f32.mrb[0].mxu0
        %v3917 = vpop.f32.mrb[0].mxu0
        %v3918 = vadd.f32 0.0, %v3917
        %v3919 = vpop.f32.mrb[0].mxu0
        %3920 = vmatprep.mubr.bf16.mxu0 0
        %3921 = vmatmul.mubr.bf16.gmra.mrb[0].mxu0 %v3813
        %v3922 = vpop.f32.mrb[0].mxu0
        %v3923 = vadd.f32 0.0, %v3922
        %v3924 = vpop.f32.mrb[0].mxu0
        %v3925 = vpop.f32.mrb[0].mxu0
        %v3926 = vadd.f32 0.0, %v3925
        %v3927 = vpop.f32.mrb[0].mxu0
        %3928 = vmatprep.mubr.bf16.mxu0 0
        %3929 = vmatmul.mubr.bf16.gmra.mrb[0].mxu0 %v3816
        %v3930 = vpop.f32.mrb[0].mxu0
        %v3931 = vadd.f32 0.0, %v3930
        %v3932 = vpop.f32.mrb[0].mxu0
        %v3933 = vpop.f32.mrb[0].mxu0
        %v3934 = vadd.f32 0.0, %v3933
        %v3935 = vpop.f32.mrb[0].mxu0
        %3936 = vmatprep.mubr.bf16.mxu0 0
        %3937 = vmatmul.mubr.bf16.gmra.mrb[0].mxu0 %v3819
        %v3938 = vpop.f32.mrb[0].mxu0
        %v3939 = vadd.f32 0.0, %v3938
        %v3940 = vpop.f32.mrb[0].mxu0
        %v3941 = vpop.f32.mrb[0].mxu0
        %v3942 = vadd.f32 0.0, %v3941
        %v3943 = vpop.f32.mrb[0].mxu0
        %3944 = vmatprep.mubr.bf16.mxu0 0
        %3945 = vmatmul.mubr.bf16.gmra.mrb[0].mxu0 %v3822
        %v3946 = vpop.f32.mrb[0].mxu0
        %v3947 = vadd.f32 0.0, %v3946
        %v3948 = vpop.f32.mrb[0].mxu0
        %v3949 = vpop.f32.mrb[0].mxu0
        %v3950 = vadd.f32 0.0, %v3949
        %v3951 = vpop.f32.mrb[0].mxu0
        %3952 = vmatprep.mubr.bf16.mxu0 0
        %3953 = vmatmul.mubr.bf16.gmra.mrb[0].mxu0 %v3825
        %v3954 = vpop.f32.mrb[0].mxu0
        %v3955 = vadd.f32 0.0, %v3954
        %v3956 = vpop.f32.mrb[0].mxu0
        %v3957 = vpop.f32.mrb[0].mxu0
        %v3958 = vadd.f32 0.0, %v3957
        %v3959 = vpop.f32.mrb[0].mxu0
        %3960 = vmatprep.mubr.bf16.mxu0 0
        %3961 = vmatmul.mubr.bf16.gmra.mrb[0].mxu0 %v3828
        %v3962 = vpop.f32.mrb[0].mxu0
        %v3963 = vadd.f32 0.0, %v3962
        %v3964 = vpop.f32.mrb[0].mxu0
        %v3965 = vpop.f32.mrb[0].mxu0
        %v3966 = vadd.f32 0.0, %v3965
        %v3967 = vpop.f32.mrb[0].mxu0
        %3968 = vmatprep.mubr.bf16.mxu0 0
        %3969 = vmatmul.mubr.bf16.gmra.mrb[0].mxu0 %v3831
        %v3970 = vpop.f32.mrb[0].mxu0
        %v3971 = vadd.f32 0.0, %v3970
        %v3972 = vpop.f32.mrb[0].mxu0
        %v3973 = vpop.f32.mrb[0].mxu0
        %v3974 = vadd.f32 0.0, %v3973
        %v3975 = vpop.f32.mrb[0].mxu0
        %3976 = vmatprep.mubr.bf16.mxu0 0
        %3977 = vmatmul.mubr.bf16.gmra.mrb[0].mxu0 %v3834
        %v3978 = vpop.f32.mrb[0].mxu0
        %v3979 = vadd.f32 0.0, %v3978
        %v3980 = vpop.f32.mrb[0].mxu0
        %v3981 = vpop.f32.mrb[0].mxu0
        %v3982 = vadd.f32 0.0, %v3981
        %v3983 = vpop.f32.mrb[0].mxu0
        %3984 = vmatprep.mubr.bf16.mxu0 0
        %3985 = vmatmul.mubr.bf16.gmra.mrb[0].mxu0 %v3837
        %v3986 = vpop.f32.mrb[0].mxu0
        %v3987 = vadd.f32 0.0, %v3986
        %v3988 = vpop.f32.mrb[0].mxu0
        %v3989 = vpop.f32.mrb[0].mxu0
        %v3990 = vadd.f32 0.0, %v3989
        %v3991 = vpop.f32.mrb[0].mxu0
        %3992 = vmatprep.mubr.bf16.mxu0 0
        %3993 = vmatmul.mubr.bf16.gmra.mrb[0].mxu0 %v3840
        %v3994 = vpop.f32.mrb[0].mxu0
        %v3995 = vadd.f32 0.0, %v3994
        %v3996 = vpop.f32.mrb[0].mxu0
        %v3997 = vpop.f32.mrb[0].mxu0
        %v3998 = vadd.f32 0.0, %v3997
        %v3999 = vpop.f32.mrb[0].mxu0
        %4000 = vmatprep.mubr.bf16.mxu0 0
        %4001 = vmatmul.mubr.bf16.gmra.mrb[0].mxu0 %v3843
        %v4002 = vpop.f32.mrb[0].mxu0
        %v4003 = vadd.f32 0.0, %v4002
        %v4004 = vpop.f32.mrb[0].mxu0
        %v4005 = vpop.f32.mrb[0].mxu0
        %v4006 = vadd.f32 0.0, %v4005
        %v4007 = vpop.f32.mrb[0].mxu0
        %4008 = vdwg.mxu0
        %v4009 = vadd.f32 %v3715, %v3883
        %v4010 = vadd.f32 %v3716, %v3886
        %v4011 = vadd.f32 %v3717, %v3891
        %v4012 = vadd.f32 %v3718, %v3894
        %v4013 = vadd.f32 %v3719, %v3899
        %v4014 = vadd.f32 %v3720, %v3902
        %v4015 = vadd.f32 %v3721, %v3907
        %v4016 = vadd.f32 %v3722, %v3910
        %v4017 = vadd.f32 %v3723, %v3915
        %v4018 = vadd.f32 %v3724, %v3918
        %v4019 = vadd.f32 %v3725, %v3923
        %v4020 = vadd.f32 %v3726, %v3926
        %v4021 = vadd.f32 %v3727, %v3931
        %v4022 = vadd.f32 %v3728, %v3934
        %v4023 = vadd.f32 %v3729, %v3939
        %v4024 = vadd.f32 %v3730, %v3942
        %v4025 = vadd.f32 %v3731, %v3947
        %v4026 = vadd.f32 %v3732, %v3950
        %v4027 = vadd.f32 %v3733, %v3955
        %v4028 = vadd.f32 %v3734, %v3958
        %v4029 = vadd.f32 %v3735, %v3963
        %v4030 = vadd.f32 %v3736, %v3966
        %v4031 = vadd.f32 %v3737, %v3971
        %v4032 = vadd.f32 %v3738, %v3974
        %v4033 = vadd.f32 %v3739, %v3979
        %v4034 = vadd.f32 %v3740, %v3982
        %v4035 = vadd.f32 %v3741, %v3987
        %v4036 = vadd.f32 %v3742, %v3990
        %v4037 = vadd.f32 %v3743, %v3995
        %v4038 = vadd.f32 %v3744, %v3998
        %v4039 = vadd.f32 %v3745, %v4003
        %v4040 = vadd.f32 %v3746, %v4006
        %s4041 = scalar_lea.vmem [#allocation6], 10
        %v4042 = vld [vmem:[%s4041] sm:$0x3]
        %v4043 = vunpack.c.l.b16 %v1884
        %v4044 = vunpack.c.l.b16 %v1887
        %v4045 = vunpack.c.l.b16 %v1891
        %v4046 = vunpack.c.l.b16 %v1894
        %v4047 = vunpack.c.l.b16 %v1898
        %v4048 = vunpack.c.l.b16 %v1901
        %v4049 = vunpack.c.l.b16 %v1905
        %v4050 = vunpack.c.l.b16 %v1908
        %v4051 = vunpack.c.l.b16 %v1912
        %v4052 = vunpack.c.l.b16 %v1915
        %v4053 = vunpack.c.l.b16 %v1919
        %v4054 = vunpack.c.l.b16 %v1922
        %v4055 = vunpack.c.l.b16 %v1926
        %v4056 = vunpack.c.l.b16 %v1929
        %v4057 = vunpack.c.l.b16 %v1933
        %v4058 = vunpack.c.l.b16 %v1936
        %v4059 = vunpack.c.l.b16 %v1940
        %v4060 = vunpack.c.l.b16 %v1943
        %v4061 = vunpack.c.l.b16 %v1947
        %v4062 = vunpack.c.l.b16 %v1950
        %v4063 = vunpack.c.l.b16 %v1954
        %v4064 = vunpack.c.l.b16 %v1957
        %v4065 = vunpack.c.l.b16 %v1961
        %v4066 = vunpack.c.l.b16 %v1964
        %v4067 = vunpack.c.l.b16 %v1968
        %v4068 = vunpack.c.l.b16 %v1971
        %v4069 = vunpack.c.l.b16 %v1975
        %v4070 = vunpack.c.l.b16 %v1978
        %v4071 = vunpack.c.l.b16 %v1982
        %v4072 = vunpack.c.l.b16 %v1985
        %v4073 = vunpack.c.l.b16 %v1989
        %v4074 = vunpack.c.l.b16 %v1992
        %v4075 = vpack.c.b16 %v4044, %v4043
        %v4076 = vpack.c.b16 %v4046, %v4045
        %v4077 = vpack.c.b16 %v4048, %v4047
        %v4078 = vpack.c.b16 %v4050, %v4049
        %v4079 = vpack.c.b16 %v4052, %v4051
        %v4080 = vpack.c.b16 %v4054, %v4053
        %v4081 = vpack.c.b16 %v4056, %v4055
        %v4082 = vpack.c.b16 %v4058, %v4057
        %v4083 = vpack.c.b16 %v4060, %v4059
        %v4084 = vpack.c.b16 %v4062, %v4061
        %v4085 = vpack.c.b16 %v4064, %v4063
        %v4086 = vpack.c.b16 %v4066, %v4065
        %v4087 = vpack.c.b16 %v4068, %v4067
        %v4088 = vpack.c.b16 %v4070, %v4069
        %v4089 = vpack.c.b16 %v4072, %v4071
        %v4090 = vpack.c.b16 %v4074, %v4073
        %v4092 = vsel %vm2653, %v4075, 0
        %v4095 = vsel %vm2653, %v4076, 0
        %v4098 = vsel %vm2653, %v4077, 0
        %v4101 = vsel %vm2653, %v4078, 0
        %v4104 = vsel %vm2653, %v4079, 0
        %v4107 = vsel %vm2653, %v4080, 0
        %v4110 = vsel %vm2653, %v4081, 0
        %v4113 = vsel %vm2653, %v4082, 0
        %v4116 = vsel %vm2653, %v4083, 0
        %v4119 = vsel %vm2653, %v4084, 0
        %v4122 = vsel %vm2653, %v4085, 0
        %v4125 = vsel %vm2653, %v4086, 0
        %v4128 = vsel %vm2653, %v4087, 0
        %v4131 = vsel %vm2653, %v4088, 0
        %v4134 = vsel %vm2653, %v4089, 0
        %v4137 = vsel %vm2653, %v4090, 0
        %v4140 = vsel %vm2702, %v4042, 0
        %4142 = vmatprep.subr.bf16.mxu0 0
        %4143 = vmatpush1.bf16.msra.mxu0 %v4140
        %4144 = vmatprep.subr.bf16.mxu0 0
        %4145 = vmatpush1.bf16.msra.mxu0 0
        %4146 = vmatprep.subr.bf16.mxu0 0
        %4147 = vmatpush1.bf16.msra.mxu0 0
        %4148 = vmatprep.subr.bf16.mxu0 0
        %4149 = vmatpush1.bf16.msra.mxu0 0
        %4150 = vmatprep.subr.bf16.mxu0 0
        %4151 = vmatpush1.bf16.msra.mxu0 0
        %4152 = vmatprep.subr.bf16.mxu0 0
        %4153 = vmatpush1.bf16.msra.mxu0 0
        %4154 = vmatprep.subr.bf16.mxu0 0
        %4155 = vmatpush1.bf16.msra.mxu0 0
        %4156 = vmatprep.subr.bf16.mxu0 0
        %4157 = vmatpush1.bf16.msra.mxu0 0
        %4158 = vmatprep.subr.bf16.mxu0 0
        %4159 = vmatpush1.bf16.msra.mxu0 0
        %4160 = vmatprep.subr.bf16.mxu0 0
        %4161 = vmatpush1.bf16.msra.mxu0 0
        %4162 = vmatprep.subr.bf16.mxu0 0
        %4163 = vmatpush1.bf16.msra.mxu0 0
        %4164 = vmatprep.subr.bf16.mxu0 0
        %4165 = vmatpush1.bf16.msra.mxu0 0
        %4166 = vmatprep.subr.bf16.mxu0 0
        %4167 = vmatpush1.bf16.msra.mxu0 0
        %4168 = vmatprep.subr.bf16.mxu0 0
        %4169 = vmatpush1.bf16.msra.mxu0 0
        %4170 = vmatprep.subr.bf16.mxu0 0
        %4171 = vmatpush1.bf16.msra.mxu0 0
        %4172 = vmatprep.subr.bf16.mxu0 0
        %4173 = vmatpush1.bf16.msra.mxu0 0
        %4174 = vmatprep.mubr.bf16.mxu0 0
        %4175 = vmatmul.mubr.bf16.gmra.mrb[0].mxu0 %v4092
        %v4176 = vpop.f32.mrb[0].mxu0
        %v4177 = vadd.f32 0.0, %v4176
        %v4178 = vpop.f32.mrb[0].mxu0
        %v4179 = vpop.f32.mrb[0].mxu0
        %v4180 = vadd.f32 0.0, %v4179
        %v4181 = vpop.f32.mrb[0].mxu0
        %4182 = vmatprep.mubr.bf16.mxu0 0
        %4183 = vmatmul.mubr.bf16.gmra.mrb[0].mxu0 %v4095
        %v4184 = vpop.f32.mrb[0].mxu0
        %v4185 = vadd.f32 0.0, %v4184
        %v4186 = vpop.f32.mrb[0].mxu0
        %v4187 = vpop.f32.mrb[0].mxu0
        %v4188 = vadd.f32 0.0, %v4187
        %v4189 = vpop.f32.mrb[0].mxu0
        %4190 = vmatprep.mubr.bf16.mxu0 0
        %4191 = vmatmul.mubr.bf16.gmra.mrb[0].mxu0 %v4098
        %v4192 = vpop.f32.mrb[0].mxu0
        %v4193 = vadd.f32 0.0, %v4192
        %v4194 = vpop.f32.mrb[0].mxu0
        %v4195 = vpop.f32.mrb[0].mxu0
        %v4196 = vadd.f32 0.0, %v4195
        %v4197 = vpop.f32.mrb[0].mxu0
        %4198 = vmatprep.mubr.bf16.mxu0 0
        %4199 = vmatmul.mubr.bf16.gmra.mrb[0].mxu0 %v4101
        %v4200 = vpop.f32.mrb[0].mxu0
        %v4201 = vadd.f32 0.0, %v4200
        %v4202 = vpop.f32.mrb[0].mxu0
        %v4203 = vpop.f32.mrb[0].mxu0
        %v4204 = vadd.f32 0.0, %v4203
        %v4205 = vpop.f32.mrb[0].mxu0
        %4206 = vmatprep.mubr.bf16.mxu0 0
        %4207 = vmatmul.mubr.bf16.gmra.mrb[0].mxu0 %v4104
        %v4208 = vpop.f32.mrb[0].mxu0
        %v4209 = vadd.f32 0.0, %v4208
        %v4210 = vpop.f32.mrb[0].mxu0
        %v4211 = vpop.f32.mrb[0].mxu0
        %v4212 = vadd.f32 0.0, %v4211
        %v4213 = vpop.f32.mrb[0].mxu0
        %4214 = vmatprep.mubr.bf16.mxu0 0
        %4215 = vmatmul.mubr.bf16.gmra.mrb[0].mxu0 %v4107
        %v4216 = vpop.f32.mrb[0].mxu0
        %v4217 = vadd.f32 0.0, %v4216
        %v4218 = vpop.f32.mrb[0].mxu0
        %v4219 = vpop.f32.mrb[0].mxu0
        %v4220 = vadd.f32 0.0, %v4219
        %v4221 = vpop.f32.mrb[0].mxu0
        %4222 = vmatprep.mubr.bf16.mxu0 0
        %4223 = vmatmul.mubr.bf16.gmra.mrb[0].mxu0 %v4110
        %v4224 = vpop.f32.mrb[0].mxu0
        %v4225 = vadd.f32 0.0, %v4224
        %v4226 = vpop.f32.mrb[0].mxu0
        %v4227 = vpop.f32.mrb[0].mxu0
        %v4228 = vadd.f32 0.0, %v4227
        %v4229 = vpop.f32.mrb[0].mxu0
        %4230 = vmatprep.mubr.bf16.mxu0 0
        %4231 = vmatmul.mubr.bf16.gmra.mrb[0].mxu0 %v4113
        %v4232 = vpop.f32.mrb[0].mxu0
        %v4233 = vadd.f32 0.0, %v4232
        %v4234 = vpop.f32.mrb[0].mxu0
        %v4235 = vpop.f32.mrb[0].mxu0
        %v4236 = vadd.f32 0.0, %v4235
        %v4237 = vpop.f32.mrb[0].mxu0
        %4238 = vmatprep.mubr.bf16.mxu0 0
        %4239 = vmatmul.mubr.bf16.gmra.mrb[0].mxu0 %v4116
        %v4240 = vpop.f32.mrb[0].mxu0
        %v4241 = vadd.f32 0.0, %v4240
        %v4242 = vpop.f32.mrb[0].mxu0
        %v4243 = vpop.f32.mrb[0].mxu0
        %v4244 = vadd.f32 0.0, %v4243
        %v4245 = vpop.f32.mrb[0].mxu0
        %4246 = vmatprep.mubr.bf16.mxu0 0
        %4247 = vmatmul.mubr.bf16.gmra.mrb[0].mxu0 %v4119
        %v4248 = vpop.f32.mrb[0].mxu0
        %v4249 = vadd.f32 0.0, %v4248
        %v4250 = vpop.f32.mrb[0].mxu0
        %v4251 = vpop.f32.mrb[0].mxu0
        %v4252 = vadd.f32 0.0, %v4251
        %v4253 = vpop.f32.mrb[0].mxu0
        %4254 = vmatprep.mubr.bf16.mxu0 0
        %4255 = vmatmul.mubr.bf16.gmra.mrb[0].mxu0 %v4122
        %v4256 = vpop.f32.mrb[0].mxu0
        %v4257 = vadd.f32 0.0, %v4256
        %v4258 = vpop.f32.mrb[0].mxu0
        %v4259 = vpop.f32.mrb[0].mxu0
        %v4260 = vadd.f32 0.0, %v4259
        %v4261 = vpop.f32.mrb[0].mxu0
        %4262 = vmatprep.mubr.bf16.mxu0 0
        %4263 = vmatmul.mubr.bf16.gmra.mrb[0].mxu0 %v4125
        %v4264 = vpop.f32.mrb[0].mxu0
        %v4265 = vadd.f32 0.0, %v4264
        %v4266 = vpop.f32.mrb[0].mxu0
        %v4267 = vpop.f32.mrb[0].mxu0
        %v4268 = vadd.f32 0.0, %v4267
        %v4269 = vpop.f32.mrb[0].mxu0
        %4270 = vmatprep.mubr.bf16.mxu0 0
        %4271 = vmatmul.mubr.bf16.gmra.mrb[0].mxu0 %v4128
        %v4272 = vpop.f32.mrb[0].mxu0
        %v4273 = vadd.f32 0.0, %v4272
        %v4274 = vpop.f32.mrb[0].mxu0
        %v4275 = vpop.f32.mrb[0].mxu0
        %v4276 = vadd.f32 0.0, %v4275
        %v4277 = vpop.f32.mrb[0].mxu0
        %4278 = vmatprep.mubr.bf16.mxu0 0
        %4279 = vmatmul.mubr.bf16.gmra.mrb[0].mxu0 %v4131
        %v4280 = vpop.f32.mrb[0].mxu0
        %v4281 = vadd.f32 0.0, %v4280
        %v4282 = vpop.f32.mrb[0].mxu0
        %v4283 = vpop.f32.mrb[0].mxu0
        %v4284 = vadd.f32 0.0, %v4283
        %v4285 = vpop.f32.mrb[0].mxu0
        %4286 = vmatprep.mubr.bf16.mxu0 0
        %4287 = vmatmul.mubr.bf16.gmra.mrb[0].mxu0 %v4134
        %v4288 = vpop.f32.mrb[0].mxu0
        %v4289 = vadd.f32 0.0, %v4288
        %v4290 = vpop.f32.mrb[0].mxu0
        %v4291 = vpop.f32.mrb[0].mxu0
        %v4292 = vadd.f32 0.0, %v4291
        %v4293 = vpop.f32.mrb[0].mxu0
        %4294 = vmatprep.mubr.bf16.mxu0 0
        %4295 = vmatmul.mubr.bf16.gmra.mrb[0].mxu0 %v4137
        %v4296 = vpop.f32.mrb[0].mxu0
        %v4297 = vadd.f32 0.0, %v4296
        %v4298 = vpop.f32.mrb[0].mxu0
        %v4299 = vpop.f32.mrb[0].mxu0
        %v4300 = vadd.f32 0.0, %v4299
        %v4301 = vpop.f32.mrb[0].mxu0
        %4302 = vdwg.mxu0
        %v4303 = vadd.f32 %v4009, %v4177
        %v4304 = vadd.f32 %v4010, %v4180
        %v4305 = vadd.f32 %v4011, %v4185
        %v4306 = vadd.f32 %v4012, %v4188
        %v4307 = vadd.f32 %v4013, %v4193
        %v4308 = vadd.f32 %v4014, %v4196
        %v4309 = vadd.f32 %v4015, %v4201
        %v4310 = vadd.f32 %v4016, %v4204
        %v4311 = vadd.f32 %v4017, %v4209
        %v4312 = vadd.f32 %v4018, %v4212
        %v4313 = vadd.f32 %v4019, %v4217
        %v4314 = vadd.f32 %v4020, %v4220
        %v4315 = vadd.f32 %v4021, %v4225
        %v4316 = vadd.f32 %v4022, %v4228
        %v4317 = vadd.f32 %v4023, %v4233
        %v4318 = vadd.f32 %v4024, %v4236
        %v4319 = vadd.f32 %v4025, %v4241
        %v4320 = vadd.f32 %v4026, %v4244
        %v4321 = vadd.f32 %v4027, %v4249
        %v4322 = vadd.f32 %v4028, %v4252
        %v4323 = vadd.f32 %v4029, %v4257
        %v4324 = vadd.f32 %v4030, %v4260
        %v4325 = vadd.f32 %v4031, %v4265
        %v4326 = vadd.f32 %v4032, %v4268
        %v4327 = vadd.f32 %v4033, %v4273
        %v4328 = vadd.f32 %v4034, %v4276
        %v4329 = vadd.f32 %v4035, %v4281
        %v4330 = vadd.f32 %v4036, %v4284
        %v4331 = vadd.f32 %v4037, %v4289
        %v4332 = vadd.f32 %v4038, %v4292
        %v4333 = vadd.f32 %v4039, %v4297
        %v4334 = vadd.f32 %v4040, %v4300
        %s4335 = scalar_lea.vmem [#allocation6], 12
        %v4336 = vld [vmem:[%s4335] sm:$0x3]
        %v4353 = vunpack.c.l.b16 %v1994
        %v4354 = vunpack.c.l.b16 %v1995
        %v4355 = vunpack.c.l.b16 %v1996
        %v4356 = vunpack.c.l.b16 %v1997
        %v4357 = vunpack.c.l.b16 %v1998
        %v4358 = vunpack.c.l.b16 %v1999
        %v4359 = vunpack.c.l.b16 %v2000
        %v4360 = vunpack.c.l.b16 %v2001
        %v4361 = vunpack.c.l.b16 %v2002
        %v4362 = vunpack.c.l.b16 %v2003
        %v4363 = vunpack.c.l.b16 %v2004
        %v4364 = vunpack.c.l.b16 %v2005
        %v4365 = vunpack.c.l.b16 %v2006
        %v4366 = vunpack.c.l.b16 %v2007
        %v4367 = vunpack.c.l.b16 %v2008
        %v4368 = vunpack.c.l.b16 %v2009
        %v4369 = vunpack.c.l.b16 %v2010
        %v4370 = vunpack.c.l.b16 %v2011
        %v4371 = vunpack.c.l.b16 %v2012
        %v4372 = vunpack.c.l.b16 %v2013
        %v4373 = vunpack.c.l.b16 %v2014
        %v4374 = vunpack.c.l.b16 %v2015
        %v4375 = vunpack.c.l.b16 %v2016
        %v4376 = vunpack.c.l.b16 %v2017
        %v4377 = vunpack.c.l.b16 %v2018
        %v4378 = vunpack.c.l.b16 %v2019
        %v4379 = vunpack.c.l.b16 %v2020
        %v4380 = vunpack.c.l.b16 %v2021
        %v4381 = vunpack.c.l.b16 %v2022
        %v4382 = vunpack.c.l.b16 %v2023
        %v4383 = vunpack.c.l.b16 %v2024
        %v4384 = vunpack.c.l.b16 %v2025
        %v4385 = vpack.c.b16 %v4354, %v4353
        %v4386 = vpack.c.b16 %v4356, %v4355
        %v4387 = vpack.c.b16 %v4358, %v4357
        %v4388 = vpack.c.b16 %v4360, %v4359
        %v4389 = vpack.c.b16 %v4362, %v4361
        %v4390 = vpack.c.b16 %v4364, %v4363
        %v4391 = vpack.c.b16 %v4366, %v4365
        %v4392 = vpack.c.b16 %v4368, %v4367
        %v4393 = vpack.c.b16 %v4370, %v4369
        %v4394 = vpack.c.b16 %v4372, %v4371
        %v4395 = vpack.c.b16 %v4374, %v4373
        %v4396 = vpack.c.b16 %v4376, %v4375
        %v4397 = vpack.c.b16 %v4378, %v4377
        %v4398 = vpack.c.b16 %v4380, %v4379
        %v4399 = vpack.c.b16 %v4382, %v4381
        %v4400 = vpack.c.b16 %v4384, %v4383
        %v4402 = vsel %vm2653, %v4385, 0
        %v4405 = vsel %vm2653, %v4386, 0
        %v4408 = vsel %vm2653, %v4387, 0
        %v4411 = vsel %vm2653, %v4388, 0
        %v4414 = vsel %vm2653, %v4389, 0
        %v4417 = vsel %vm2653, %v4390, 0
        %v4420 = vsel %vm2653, %v4391, 0
        %v4423 = vsel %vm2653, %v4392, 0
        %v4426 = vsel %vm2653, %v4393, 0
        %v4429 = vsel %vm2653, %v4394, 0
        %v4432 = vsel %vm2653, %v4395, 0
        %v4435 = vsel %vm2653, %v4396, 0
        %v4438 = vsel %vm2653, %v4397, 0
        %v4441 = vsel %vm2653, %v4398, 0
        %v4444 = vsel %vm2653, %v4399, 0
        %v4447 = vsel %vm2653, %v4400, 0
        %v4450 = vsel %vm2702, %v4336, 0
        %4452 = vmatprep.subr.bf16.mxu0 0
        %4453 = vmatpush1.bf16.msra.mxu0 %v4450
        %4454 = vmatprep.subr.bf16.mxu0 0
        %4455 = vmatpush1.bf16.msra.mxu0 0
        %4456 = vmatprep.subr.bf16.mxu0 0
        %4457 = vmatpush1.bf16.msra.mxu0 0
        %4458 = vmatprep.subr.bf16.mxu0 0
        %4459 = vmatpush1.bf16.msra.mxu0 0
        %4460 = vmatprep.subr.bf16.mxu0 0
        %4461 = vmatpush1.bf16.msra.mxu0 0
        %4462 = vmatprep.subr.bf16.mxu0 0
        %4463 = vmatpush1.bf16.msra.mxu0 0
        %4464 = vmatprep.subr.bf16.mxu0 0
        %4465 = vmatpush1.bf16.msra.mxu0 0
        %4466 = vmatprep.subr.bf16.mxu0 0
        %4467 = vmatpush1.bf16.msra.mxu0 0
        %4468 = vmatprep.subr.bf16.mxu0 0
        %4469 = vmatpush1.bf16.msra.mxu0 0
        %4470 = vmatprep.subr.bf16.mxu0 0
        %4471 = vmatpush1.bf16.msra.mxu0 0
        %4472 = vmatprep.subr.bf16.mxu0 0
        %4473 = vmatpush1.bf16.msra.mxu0 0
        %4474 = vmatprep.subr.bf16.mxu0 0
        %4475 = vmatpush1.bf16.msra.mxu0 0
        %4476 = vmatprep.subr.bf16.mxu0 0
        %4477 = vmatpush1.bf16.msra.mxu0 0
        %4478 = vmatprep.subr.bf16.mxu0 0
        %4479 = vmatpush1.bf16.msra.mxu0 0
        %4480 = vmatprep.subr.bf16.mxu0 0
        %4481 = vmatpush1.bf16.msra.mxu0 0
        %4482 = vmatprep.subr.bf16.mxu0 0
        %4483 = vmatpush1.bf16.msra.mxu0 0
        %4484 = vmatprep.mubr.bf16.mxu0 0
        %4485 = vmatmul.mubr.bf16.gmra.mrb[0].mxu0 %v4402
        %v4486 = vpop.f32.mrb[0].mxu0
        %v4487 = vadd.f32 0.0, %v4486
        %v4488 = vpop.f32.mrb[0].mxu0
        %v4489 = vpop.f32.mrb[0].mxu0
        %v4490 = vadd.f32 0.0, %v4489
        %v4491 = vpop.f32.mrb[0].mxu0
        %4492 = vmatprep.mubr.bf16.mxu0 0
        %4493 = vmatmul.mubr.bf16.gmra.mrb[0].mxu0 %v4405
        %v4494 = vpop.f32.mrb[0].mxu0
        %v4495 = vadd.f32 0.0, %v4494
        %v4496 = vpop.f32.mrb[0].mxu0
        %v4497 = vpop.f32.mrb[0].mxu0
        %v4498 = vadd.f32 0.0, %v4497
        %v4499 = vpop.f32.mrb[0].mxu0
        %4500 = vmatprep.mubr.bf16.mxu0 0
        %4501 = vmatmul.mubr.bf16.gmra.mrb[0].mxu0 %v4408
        %v4502 = vpop.f32.mrb[0].mxu0
        %v4503 = vadd.f32 0.0, %v4502
        %v4504 = vpop.f32.mrb[0].mxu0
        %v4505 = vpop.f32.mrb[0].mxu0
        %v4506 = vadd.f32 0.0, %v4505
        %v4507 = vpop.f32.mrb[0].mxu0
        %4508 = vmatprep.mubr.bf16.mxu0 0
        %4509 = vmatmul.mubr.bf16.gmra.mrb[0].mxu0 %v4411
        %v4510 = vpop.f32.mrb[0].mxu0
        %v4511 = vadd.f32 0.0, %v4510
        %v4512 = vpop.f32.mrb[0].mxu0
        %v4513 = vpop.f32.mrb[0].mxu0
        %v4514 = vadd.f32 0.0, %v4513
        %v4515 = vpop.f32.mrb[0].mxu0
        %4516 = vmatprep.mubr.bf16.mxu0 0
        %4517 = vmatmul.mubr.bf16.gmra.mrb[0].mxu0 %v4414
        %v4518 = vpop.f32.mrb[0].mxu0
        %v4519 = vadd.f32 0.0, %v4518
        %v4520 = vpop.f32.mrb[0].mxu0
        %v4521 = vpop.f32.mrb[0].mxu0
        %v4522 = vadd.f32 0.0, %v4521
        %v4523 = vpop.f32.mrb[0].mxu0
        %4524 = vmatprep.mubr.bf16.mxu0 0
        %4525 = vmatmul.mubr.bf16.gmra.mrb[0].mxu0 %v4417
        %v4526 = vpop.f32.mrb[0].mxu0
        %v4527 = vadd.f32 0.0, %v4526
        %v4528 = vpop.f32.mrb[0].mxu0
        %v4529 = vpop.f32.mrb[0].mxu0
        %v4530 = vadd.f32 0.0, %v4529
        %v4531 = vpop.f32.mrb[0].mxu0
        %4532 = vmatprep.mubr.bf16.mxu0 0
        %4533 = vmatmul.mubr.bf16.gmra.mrb[0].mxu0 %v4420
        %v4534 = vpop.f32.mrb[0].mxu0
        %v4535 = vadd.f32 0.0, %v4534
        %v4536 = vpop.f32.mrb[0].mxu0
        %v4537 = vpop.f32.mrb[0].mxu0
        %v4538 = vadd.f32 0.0, %v4537
        %v4539 = vpop.f32.mrb[0].mxu0
        %4540 = vmatprep.mubr.bf16.mxu0 0
        %4541 = vmatmul.mubr.bf16.gmra.mrb[0].mxu0 %v4423
        %v4542 = vpop.f32.mrb[0].mxu0
        %v4543 = vadd.f32 0.0, %v4542
        %v4544 = vpop.f32.mrb[0].mxu0
        %v4545 = vpop.f32.mrb[0].mxu0
        %v4546 = vadd.f32 0.0, %v4545
        %v4547 = vpop.f32.mrb[0].mxu0
        %4548 = vmatprep.mubr.bf16.mxu0 0
        %4549 = vmatmul.mubr.bf16.gmra.mrb[0].mxu0 %v4426
        %v4550 = vpop.f32.mrb[0].mxu0
        %v4551 = vadd.f32 0.0, %v4550
        %v4552 = vpop.f32.mrb[0].mxu0
        %v4553 = vpop.f32.mrb[0].mxu0
        %v4554 = vadd.f32 0.0, %v4553
        %v4555 = vpop.f32.mrb[0].mxu0
        %4556 = vmatprep.mubr.bf16.mxu0 0
        %4557 = vmatmul.mubr.bf16.gmra.mrb[0].mxu0 %v4429
        %v4558 = vpop.f32.mrb[0].mxu0
        %v4559 = vadd.f32 0.0, %v4558
        %v4560 = vpop.f32.mrb[0].mxu0
        %v4561 = vpop.f32.mrb[0].mxu0
        %v4562 = vadd.f32 0.0, %v4561
        %v4563 = vpop.f32.mrb[0].mxu0
        %4564 = vmatprep.mubr.bf16.mxu0 0
        %4565 = vmatmul.mubr.bf16.gmra.mrb[0].mxu0 %v4432
        %v4566 = vpop.f32.mrb[0].mxu0
        %v4567 = vadd.f32 0.0, %v4566
        %v4568 = vpop.f32.mrb[0].mxu0
        %v4569 = vpop.f32.mrb[0].mxu0
        %v4570 = vadd.f32 0.0, %v4569
        %v4571 = vpop.f32.mrb[0].mxu0
        %4572 = vmatprep.mubr.bf16.mxu0 0
        %4573 = vmatmul.mubr.bf16.gmra.mrb[0].mxu0 %v4435
        %v4574 = vpop.f32.mrb[0].mxu0
        %v4575 = vadd.f32 0.0, %v4574
        %v4576 = vpop.f32.mrb[0].mxu0
        %v4577 = vpop.f32.mrb[0].mxu0
        %v4578 = vadd.f32 0.0, %v4577
        %v4579 = vpop.f32.mrb[0].mxu0
        %4580 = vmatprep.mubr.bf16.mxu0 0
        %4581 = vmatmul.mubr.bf16.gmra.mrb[0].mxu0 %v4438
        %v4582 = vpop.f32.mrb[0].mxu0
        %v4583 = vadd.f32 0.0, %v4582
        %v4584 = vpop.f32.mrb[0].mxu0
        %v4585 = vpop.f32.mrb[0].mxu0
        %v4586 = vadd.f32 0.0, %v4585
        %v4587 = vpop.f32.mrb[0].mxu0
        %4588 = vmatprep.mubr.bf16.mxu0 0
        %4589 = vmatmul.mubr.bf16.gmra.mrb[0].mxu0 %v4441
        %v4590 = vpop.f32.mrb[0].mxu0
        %v4591 = vadd.f32 0.0, %v4590
        %v4592 = vpop.f32.mrb[0].mxu0
        %v4593 = vpop.f32.mrb[0].mxu0
        %v4594 = vadd.f32 0.0, %v4593
        %v4595 = vpop.f32.mrb[0].mxu0
        %4596 = vmatprep.mubr.bf16.mxu0 0
        %4597 = vmatmul.mubr.bf16.gmra.mrb[0].mxu0 %v4444
        %v4598 = vpop.f32.mrb[0].mxu0
        %v4599 = vadd.f32 0.0, %v4598
        %v4600 = vpop.f32.mrb[0].mxu0
        %v4601 = vpop.f32.mrb[0].mxu0
        %v4602 = vadd.f32 0.0, %v4601
        %v4603 = vpop.f32.mrb[0].mxu0
        %4604 = vmatprep.mubr.bf16.mxu0 0
        %4605 = vmatmul.mubr.bf16.gmra.mrb[0].mxu0 %v4447
        %v4606 = vpop.f32.mrb[0].mxu0
        %v4607 = vadd.f32 0.0, %v4606
        %v4608 = vpop.f32.mrb[0].mxu0
        %v4609 = vpop.f32.mrb[0].mxu0
        %v4610 = vadd.f32 0.0, %v4609
        %v4611 = vpop.f32.mrb[0].mxu0
        %4612 = vdwg.mxu0
        %v4613 = vadd.f32 %v4303, %v4487
        %v4614 = vadd.f32 %v4304, %v4490
        %v4615 = vadd.f32 %v4305, %v4495
        %v4616 = vadd.f32 %v4306, %v4498
        %v4617 = vadd.f32 %v4307, %v4503
        %v4618 = vadd.f32 %v4308, %v4506
        %v4619 = vadd.f32 %v4309, %v4511
        %v4620 = vadd.f32 %v4310, %v4514
        %v4621 = vadd.f32 %v4311, %v4519
        %v4622 = vadd.f32 %v4312, %v4522
        %v4623 = vadd.f32 %v4313, %v4527
        %v4624 = vadd.f32 %v4314, %v4530
        %v4625 = vadd.f32 %v4315, %v4535
        %v4626 = vadd.f32 %v4316, %v4538
        %v4627 = vadd.f32 %v4317, %v4543
        %v4628 = vadd.f32 %v4318, %v4546
        %v4629 = vadd.f32 %v4319, %v4551
        %v4630 = vadd.f32 %v4320, %v4554
        %v4631 = vadd.f32 %v4321, %v4559
        %v4632 = vadd.f32 %v4322, %v4562
        %v4633 = vadd.f32 %v4323, %v4567
        %v4634 = vadd.f32 %v4324, %v4570
        %v4635 = vadd.f32 %v4325, %v4575
        %v4636 = vadd.f32 %v4326, %v4578
        %v4637 = vadd.f32 %v4327, %v4583
        %v4638 = vadd.f32 %v4328, %v4586
        %v4639 = vadd.f32 %v4329, %v4591
        %v4640 = vadd.f32 %v4330, %v4594
        %v4641 = vadd.f32 %v4331, %v4599
        %v4642 = vadd.f32 %v4332, %v4602
        %v4643 = vadd.f32 %v4333, %v4607
        %v4644 = vadd.f32 %v4334, %v4610
        %s4645 = scalar_lea.vmem [#allocation6], 14
        %v4646 = vld [vmem:[%s4645] sm:$0x3]
        %v4647 = vunpack.c.l.b16 %v2055
        %v4648 = vunpack.c.l.b16 %v2065
        %v4649 = vunpack.c.l.b16 %v2079
        %v4650 = vunpack.c.l.b16 %v2089
        %v4651 = vunpack.c.l.b16 %v2103
        %v4652 = vunpack.c.l.b16 %v2113
        %v4653 = vunpack.c.l.b16 %v2127
        %v4654 = vunpack.c.l.b16 %v2137
        %v4655 = vunpack.c.l.b16 %v2151
        %v4656 = vunpack.c.l.b16 %v2161
        %v4657 = vunpack.c.l.b16 %v2175
        %v4658 = vunpack.c.l.b16 %v2185
        %v4659 = vunpack.c.l.b16 %v2199
        %v4660 = vunpack.c.l.b16 %v2209
        %v4661 = vunpack.c.l.b16 %v2223
        %v4662 = vunpack.c.l.b16 %v2233
        %v4663 = vunpack.c.l.b16 %v2247
        %v4664 = vunpack.c.l.b16 %v2257
        %v4665 = vunpack.c.l.b16 %v2271
        %v4666 = vunpack.c.l.b16 %v2281
        %v4667 = vunpack.c.l.b16 %v2295
        %v4668 = vunpack.c.l.b16 %v2305
        %v4669 = vunpack.c.l.b16 %v2319
        %v4670 = vunpack.c.l.b16 %v2329
        %v4671 = vunpack.c.l.b16 %v2343
        %v4672 = vunpack.c.l.b16 %v2353
        %v4673 = vunpack.c.l.b16 %v2367
        %v4674 = vunpack.c.l.b16 %v2377
        %v4675 = vunpack.c.l.b16 %v2391
        %v4676 = vunpack.c.l.b16 %v2401
        %v4677 = vunpack.c.l.b16 %v2415
        %v4678 = vunpack.c.l.b16 %v2425
        %v4679 = vpack.c.b16 %v4648, %v4647
        %v4680 = vpack.c.b16 %v4650, %v4649
        %v4681 = vpack.c.b16 %v4652, %v4651
        %v4682 = vpack.c.b16 %v4654, %v4653
        %v4683 = vpack.c.b16 %v4656, %v4655
        %v4684 = vpack.c.b16 %v4658, %v4657
        %v4685 = vpack.c.b16 %v4660, %v4659
        %v4686 = vpack.c.b16 %v4662, %v4661
        %v4687 = vpack.c.b16 %v4664, %v4663
        %v4688 = vpack.c.b16 %v4666, %v4665
        %v4689 = vpack.c.b16 %v4668, %v4667
        %v4690 = vpack.c.b16 %v4670, %v4669
        %v4691 = vpack.c.b16 %v4672, %v4671
        %v4692 = vpack.c.b16 %v4674, %v4673
        %v4693 = vpack.c.b16 %v4676, %v4675
        %v4694 = vpack.c.b16 %v4678, %v4677
        %v4696 = vsel %vm2653, %v4679, 0
        %v4699 = vsel %vm2653, %v4680, 0
        %v4702 = vsel %vm2653, %v4681, 0
        %v4705 = vsel %vm2653, %v4682, 0
        %v4708 = vsel %vm2653, %v4683, 0
        %v4711 = vsel %vm2653, %v4684, 0
        %v4714 = vsel %vm2653, %v4685, 0
        %v4717 = vsel %vm2653, %v4686, 0
        %v4720 = vsel %vm2653, %v4687, 0
        %v4723 = vsel %vm2653, %v4688, 0
        %v4726 = vsel %vm2653, %v4689, 0
        %v4729 = vsel %vm2653, %v4690, 0
        %v4732 = vsel %vm2653, %v4691, 0
        %v4735 = vsel %vm2653, %v4692, 0
        %v4738 = vsel %vm2653, %v4693, 0
        %v4741 = vsel %vm2653, %v4694, 0
        %v4744 = vsel %vm2702, %v4646, 0
        %4746 = vmatprep.subr.bf16.mxu0 0
        %4747 = vmatpush1.bf16.msra.mxu0 %v4744
        %4748 = vmatprep.subr.bf16.mxu0 0
        %4749 = vmatpush1.bf16.msra.mxu0 0
        %4750 = vmatprep.subr.bf16.mxu0 0
        %4751 = vmatpush1.bf16.msra.mxu0 0
        %4752 = vmatprep.subr.bf16.mxu0 0
        %4753 = vmatpush1.bf16.msra.mxu0 0
        %4754 = vmatprep.subr.bf16.mxu0 0
        %4755 = vmatpush1.bf16.msra.mxu0 0
        %4756 = vmatprep.subr.bf16.mxu0 0
        %4757 = vmatpush1.bf16.msra.mxu0 0
        %4758 = vmatprep.subr.bf16.mxu0 0
        %4759 = vmatpush1.bf16.msra.mxu0 0
        %4760 = vmatprep.subr.bf16.mxu0 0
        %4761 = vmatpush1.bf16.msra.mxu0 0
        %4762 = vmatprep.subr.bf16.mxu0 0
        %4763 = vmatpush1.bf16.msra.mxu0 0
        %4764 = vmatprep.subr.bf16.mxu0 0
        %4765 = vmatpush1.bf16.msra.mxu0 0
        %4766 = vmatprep.subr.bf16.mxu0 0
        %4767 = vmatpush1.bf16.msra.mxu0 0
        %4768 = vmatprep.subr.bf16.mxu0 0
        %4769 = vmatpush1.bf16.msra.mxu0 0
        %4770 = vmatprep.subr.bf16.mxu0 0
        %4771 = vmatpush1.bf16.msra.mxu0 0
        %4772 = vmatprep.subr.bf16.mxu0 0
        %4773 = vmatpush1.bf16.msra.mxu0 0
        %4774 = vmatprep.subr.bf16.mxu0 0
        %4775 = vmatpush1.bf16.msra.mxu0 0
        %4776 = vmatprep.subr.bf16.mxu0 0
        %4777 = vmatpush1.bf16.msra.mxu0 0
        %4778 = vmatprep.mubr.bf16.mxu0 0
        %4779 = vmatmul.mubr.bf16.gmra.mrb[0].mxu0 %v4696
        %v4780 = vpop.f32.mrb[0].mxu0
        %v4781 = vadd.f32 0.0, %v4780
        %v4782 = vpop.f32.mrb[0].mxu0
        %v4783 = vpop.f32.mrb[0].mxu0
        %v4784 = vadd.f32 0.0, %v4783
        %v4785 = vpop.f32.mrb[0].mxu0
        %4786 = vmatprep.mubr.bf16.mxu0 0
        %4787 = vmatmul.mubr.bf16.gmra.mrb[0].mxu0 %v4699
        %v4788 = vpop.f32.mrb[0].mxu0
        %v4789 = vadd.f32 0.0, %v4788
        %v4790 = vpop.f32.mrb[0].mxu0
        %v4791 = vpop.f32.mrb[0].mxu0
        %v4792 = vadd.f32 0.0, %v4791
        %v4793 = vpop.f32.mrb[0].mxu0
        %4794 = vmatprep.mubr.bf16.mxu0 0
        %4795 = vmatmul.mubr.bf16.gmra.mrb[0].mxu0 %v4702
        %v4796 = vpop.f32.mrb[0].mxu0
        %v4797 = vadd.f32 0.0, %v4796
        %v4798 = vpop.f32.mrb[0].mxu0
        %v4799 = vpop.f32.mrb[0].mxu0
        %v4800 = vadd.f32 0.0, %v4799
        %v4801 = vpop.f32.mrb[0].mxu0
        %4802 = vmatprep.mubr.bf16.mxu0 0
        %4803 = vmatmul.mubr.bf16.gmra.mrb[0].mxu0 %v4705
        %v4804 = vpop.f32.mrb[0].mxu0
        %v4805 = vadd.f32 0.0, %v4804
        %v4806 = vpop.f32.mrb[0].mxu0
        %v4807 = vpop.f32.mrb[0].mxu0
        %v4808 = vadd.f32 0.0, %v4807
        %v4809 = vpop.f32.mrb[0].mxu0
        %4810 = vmatprep.mubr.bf16.mxu0 0
        %4811 = vmatmul.mubr.bf16.gmra.mrb[0].mxu0 %v4708
        %v4812 = vpop.f32.mrb[0].mxu0
        %v4813 = vadd.f32 0.0, %v4812
        %v4814 = vpop.f32.mrb[0].mxu0
        %v4815 = vpop.f32.mrb[0].mxu0
        %v4816 = vadd.f32 0.0, %v4815
        %v4817 = vpop.f32.mrb[0].mxu0
        %4818 = vmatprep.mubr.bf16.mxu0 0
        %4819 = vmatmul.mubr.bf16.gmra.mrb[0].mxu0 %v4711
        %v4820 = vpop.f32.mrb[0].mxu0
        %v4821 = vadd.f32 0.0, %v4820
        %v4822 = vpop.f32.mrb[0].mxu0
        %v4823 = vpop.f32.mrb[0].mxu0
        %v4824 = vadd.f32 0.0, %v4823
        %v4825 = vpop.f32.mrb[0].mxu0
        %4826 = vmatprep.mubr.bf16.mxu0 0
        %4827 = vmatmul.mubr.bf16.gmra.mrb[0].mxu0 %v4714
        %v4828 = vpop.f32.mrb[0].mxu0
        %v4829 = vadd.f32 0.0, %v4828
        %v4830 = vpop.f32.mrb[0].mxu0
        %v4831 = vpop.f32.mrb[0].mxu0
        %v4832 = vadd.f32 0.0, %v4831
        %v4833 = vpop.f32.mrb[0].mxu0
        %4834 = vmatprep.mubr.bf16.mxu0 0
        %4835 = vmatmul.mubr.bf16.gmra.mrb[0].mxu0 %v4717
        %v4836 = vpop.f32.mrb[0].mxu0
        %v4837 = vadd.f32 0.0, %v4836
        %v4838 = vpop.f32.mrb[0].mxu0
        %v4839 = vpop.f32.mrb[0].mxu0
        %v4840 = vadd.f32 0.0, %v4839
        %v4841 = vpop.f32.mrb[0].mxu0
        %4842 = vmatprep.mubr.bf16.mxu0 0
        %4843 = vmatmul.mubr.bf16.gmra.mrb[0].mxu0 %v4720
        %v4844 = vpop.f32.mrb[0].mxu0
        %v4845 = vadd.f32 0.0, %v4844
        %v4846 = vpop.f32.mrb[0].mxu0
        %v4847 = vpop.f32.mrb[0].mxu0
        %v4848 = vadd.f32 0.0, %v4847
        %v4849 = vpop.f32.mrb[0].mxu0
        %4850 = vmatprep.mubr.bf16.mxu0 0
        %4851 = vmatmul.mubr.bf16.gmra.mrb[0].mxu0 %v4723
        %v4852 = vpop.f32.mrb[0].mxu0
        %v4853 = vadd.f32 0.0, %v4852
        %v4854 = vpop.f32.mrb[0].mxu0
        %v4855 = vpop.f32.mrb[0].mxu0
        %v4856 = vadd.f32 0.0, %v4855
        %v4857 = vpop.f32.mrb[0].mxu0
        %4858 = vmatprep.mubr.bf16.mxu0 0
        %4859 = vmatmul.mubr.bf16.gmra.mrb[0].mxu0 %v4726
        %v4860 = vpop.f32.mrb[0].mxu0
        %v4861 = vadd.f32 0.0, %v4860
        %v4862 = vpop.f32.mrb[0].mxu0
        %v4863 = vpop.f32.mrb[0].mxu0
        %v4864 = vadd.f32 0.0, %v4863
        %v4865 = vpop.f32.mrb[0].mxu0
        %4866 = vmatprep.mubr.bf16.mxu0 0
        %4867 = vmatmul.mubr.bf16.gmra.mrb[0].mxu0 %v4729
        %v4868 = vpop.f32.mrb[0].mxu0
        %v4869 = vadd.f32 0.0, %v4868
        %v4870 = vpop.f32.mrb[0].mxu0
        %v4871 = vpop.f32.mrb[0].mxu0
        %v4872 = vadd.f32 0.0, %v4871
        %v4873 = vpop.f32.mrb[0].mxu0
        %4874 = vmatprep.mubr.bf16.mxu0 0
        %4875 = vmatmul.mubr.bf16.gmra.mrb[0].mxu0 %v4732
        %v4876 = vpop.f32.mrb[0].mxu0
        %v4877 = vadd.f32 0.0, %v4876
        %v4878 = vpop.f32.mrb[0].mxu0
        %v4879 = vpop.f32.mrb[0].mxu0
        %v4880 = vadd.f32 0.0, %v4879
        %v4881 = vpop.f32.mrb[0].mxu0
        %4882 = vmatprep.mubr.bf16.mxu0 0
        %4883 = vmatmul.mubr.bf16.gmra.mrb[0].mxu0 %v4735
        %v4884 = vpop.f32.mrb[0].mxu0
        %v4885 = vadd.f32 0.0, %v4884
        %v4886 = vpop.f32.mrb[0].mxu0
        %v4887 = vpop.f32.mrb[0].mxu0
        %v4888 = vadd.f32 0.0, %v4887
        %v4889 = vpop.f32.mrb[0].mxu0
        %4890 = vmatprep.mubr.bf16.mxu0 0
        %4891 = vmatmul.mubr.bf16.gmra.mrb[0].mxu0 %v4738
        %v4892 = vpop.f32.mrb[0].mxu0
        %v4893 = vadd.f32 0.0, %v4892
        %v4894 = vpop.f32.mrb[0].mxu0
        %v4895 = vpop.f32.mrb[0].mxu0
        %v4896 = vadd.f32 0.0, %v4895
        %v4897 = vpop.f32.mrb[0].mxu0
        %4898 = vmatprep.mubr.bf16.mxu0 0
        %4899 = vmatmul.mubr.bf16.gmra.mrb[0].mxu0 %v4741
        %v4900 = vpop.f32.mrb[0].mxu0
        %v4901 = vadd.f32 0.0, %v4900
        %v4902 = vpop.f32.mrb[0].mxu0
        %v4903 = vpop.f32.mrb[0].mxu0
        %v4904 = vadd.f32 0.0, %v4903
        %v4905 = vpop.f32.mrb[0].mxu0
        %4906 = vdwg.mxu0
        %v4907 = vadd.f32 %v4613, %v4781
        %v4908 = vadd.f32 %v4614, %v4784
        %v4909 = vadd.f32 %v4615, %v4789
        %v4910 = vadd.f32 %v4616, %v4792
        %v4911 = vadd.f32 %v4617, %v4797
        %v4912 = vadd.f32 %v4618, %v4800
        %v4913 = vadd.f32 %v4619, %v4805
        %v4914 = vadd.f32 %v4620, %v4808
        %v4915 = vadd.f32 %v4621, %v4813
        %v4916 = vadd.f32 %v4622, %v4816
        %v4917 = vadd.f32 %v4623, %v4821
        %v4918 = vadd.f32 %v4624, %v4824
        %v4919 = vadd.f32 %v4625, %v4829
        %v4920 = vadd.f32 %v4626, %v4832
        %v4921 = vadd.f32 %v4627, %v4837
        %v4922 = vadd.f32 %v4628, %v4840
        %v4923 = vadd.f32 %v4629, %v4845
        %v4924 = vadd.f32 %v4630, %v4848
        %v4925 = vadd.f32 %v4631, %v4853
        %v4926 = vadd.f32 %v4632, %v4856
        %v4927 = vadd.f32 %v4633, %v4861
        %v4928 = vadd.f32 %v4634, %v4864
        %v4929 = vadd.f32 %v4635, %v4869
        %v4930 = vadd.f32 %v4636, %v4872
        %v4931 = vadd.f32 %v4637, %v4877
        %v4932 = vadd.f32 %v4638, %v4880
        %v4933 = vadd.f32 %v4639, %v4885
        %v4934 = vadd.f32 %v4640, %v4888
        %v4935 = vadd.f32 %v4641, %v4893
        %v4936 = vadd.f32 %v4642, %v4896
        %v4937 = vadd.f32 %v4643, %v4901
        %v4938 = vadd.f32 %v4644, %v4904
        %s4939 = scalar_lea.vmem [#allocation6], 16
        %v4940 = vld [vmem:[%s4939] sm:$0x3]
        %v4941 = vunpack.c.l.b16 %v2493
        %v4942 = vunpack.c.l.b16 %v2496
        %v4943 = vunpack.c.l.b16 %v2500
        %v4944 = vunpack.c.l.b16 %v2503
        %v4945 = vunpack.c.l.b16 %v2507
        %v4946 = vunpack.c.l.b16 %v2510
        %v4947 = vunpack.c.l.b16 %v2514
        %v4948 = vunpack.c.l.b16 %v2517
        %v4949 = vunpack.c.l.b16 %v2521
        %v4950 = vunpack.c.l.b16 %v2524
        %v4951 = vunpack.c.l.b16 %v2528
        %v4952 = vunpack.c.l.b16 %v2531
        %v4953 = vunpack.c.l.b16 %v2535
        %v4954 = vunpack.c.l.b16 %v2538
        %v4955 = vunpack.c.l.b16 %v2542
        %v4956 = vunpack.c.l.b16 %v2545
        %v4957 = vunpack.c.l.b16 %v2549
        %v4958 = vunpack.c.l.b16 %v2552
        %v4959 = vunpack.c.l.b16 %v2556
        %v4960 = vunpack.c.l.b16 %v2559
        %v4961 = vunpack.c.l.b16 %v2563
        %v4962 = vunpack.c.l.b16 %v2566
        %v4963 = vunpack.c.l.b16 %v2570
        %v4964 = vunpack.c.l.b16 %v2573
        %v4965 = vunpack.c.l.b16 %v2577
        %v4966 = vunpack.c.l.b16 %v2580
        %v4967 = vunpack.c.l.b16 %v2584
        %v4968 = vunpack.c.l.b16 %v2587
        %v4969 = vunpack.c.l.b16 %v2591
        %v4970 = vunpack.c.l.b16 %v2594
        %v4971 = vunpack.c.l.b16 %v2598
        %v4972 = vunpack.c.l.b16 %v2601
        %v4973 = vpack.c.b16 %v4942, %v4941
        %v4974 = vpack.c.b16 %v4944, %v4943
        %v4975 = vpack.c.b16 %v4946, %v4945
        %v4976 = vpack.c.b16 %v4948, %v4947
        %v4977 = vpack.c.b16 %v4950, %v4949
        %v4978 = vpack.c.b16 %v4952, %v4951
        %v4979 = vpack.c.b16 %v4954, %v4953
        %v4980 = vpack.c.b16 %v4956, %v4955
        %v4981 = vpack.c.b16 %v4958, %v4957
        %v4982 = vpack.c.b16 %v4960, %v4959
        %v4983 = vpack.c.b16 %v4962, %v4961
        %v4984 = vpack.c.b16 %v4964, %v4963
        %v4985 = vpack.c.b16 %v4966, %v4965
        %v4986 = vpack.c.b16 %v4968, %v4967
        %v4987 = vpack.c.b16 %v4970, %v4969
        %v4988 = vpack.c.b16 %v4972, %v4971
        %v4990 = vsel %vm2653, %v4973, 0
        %v4993 = vsel %vm2653, %v4974, 0
        %v4996 = vsel %vm2653, %v4975, 0
        %v4999 = vsel %vm2653, %v4976, 0
        %v5002 = vsel %vm2653, %v4977, 0
        %v5005 = vsel %vm2653, %v4978, 0
        %v5008 = vsel %vm2653, %v4979, 0
        %v5011 = vsel %vm2653, %v4980, 0
        %v5014 = vsel %vm2653, %v4981, 0
        %v5017 = vsel %vm2653, %v4982, 0
        %v5020 = vsel %vm2653, %v4983, 0
        %v5023 = vsel %vm2653, %v4984, 0
        %v5026 = vsel %vm2653, %v4985, 0
        %v5029 = vsel %vm2653, %v4986, 0
        %v5032 = vsel %vm2653, %v4987, 0
        %v5035 = vsel %vm2653, %v4988, 0
        %v5038 = vsel %vm2702, %v4940, 0
        %5040 = vmatprep.subr.bf16.mxu0 0
        %5041 = vmatpush1.bf16.msra.mxu0 %v5038
        %5042 = vmatprep.subr.bf16.mxu0 0
        %5043 = vmatpush1.bf16.msra.mxu0 0
        %5044 = vmatprep.subr.bf16.mxu0 0
        %5045 = vmatpush1.bf16.msra.mxu0 0
        %5046 = vmatprep.subr.bf16.mxu0 0
        %5047 = vmatpush1.bf16.msra.mxu0 0
        %5048 = vmatprep.subr.bf16.mxu0 0
        %5049 = vmatpush1.bf16.msra.mxu0 0
        %5050 = vmatprep.subr.bf16.mxu0 0
        %5051 = vmatpush1.bf16.msra.mxu0 0
        %5052 = vmatprep.subr.bf16.mxu0 0
        %5053 = vmatpush1.bf16.msra.mxu0 0
        %5054 = vmatprep.subr.bf16.mxu0 0
        %5055 = vmatpush1.bf16.msra.mxu0 0
        %5056 = vmatprep.subr.bf16.mxu0 0
        %5057 = vmatpush1.bf16.msra.mxu0 0
        %5058 = vmatprep.subr.bf16.mxu0 0
        %5059 = vmatpush1.bf16.msra.mxu0 0
        %5060 = vmatprep.subr.bf16.mxu0 0
        %5061 = vmatpush1.bf16.msra.mxu0 0
        %5062 = vmatprep.subr.bf16.mxu0 0
        %5063 = vmatpush1.bf16.msra.mxu0 0
        %5064 = vmatprep.subr.bf16.mxu0 0
        %5065 = vmatpush1.bf16.msra.mxu0 0
        %5066 = vmatprep.subr.bf16.mxu0 0
        %5067 = vmatpush1.bf16.msra.mxu0 0
        %5068 = vmatprep.subr.bf16.mxu0 0
        %5069 = vmatpush1.bf16.msra.mxu0 0
        %5070 = vmatprep.subr.bf16.mxu0 0
        %5071 = vmatpush1.bf16.msra.mxu0 0
        %5072 = vmatprep.mubr.bf16.mxu0 0
        %5073 = vmatmul.mubr.bf16.gmra.mrb[0].mxu0 %v4990
        %v5074 = vpop.f32.mrb[0].mxu0
        %v5075 = vadd.f32 0.0, %v5074
        %v5076 = vpop.f32.mrb[0].mxu0
        %v5077 = vpop.f32.mrb[0].mxu0
        %v5078 = vadd.f32 0.0, %v5077
        %v5079 = vpop.f32.mrb[0].mxu0
        %5080 = vmatprep.mubr.bf16.mxu0 0
        %5081 = vmatmul.mubr.bf16.gmra.mrb[0].mxu0 %v4993
        %v5082 = vpop.f32.mrb[0].mxu0
        %v5083 = vadd.f32 0.0, %v5082
        %v5084 = vpop.f32.mrb[0].mxu0
        %v5085 = vpop.f32.mrb[0].mxu0
        %v5086 = vadd.f32 0.0, %v5085
        %v5087 = vpop.f32.mrb[0].mxu0
        %5088 = vmatprep.mubr.bf16.mxu0 0
        %5089 = vmatmul.mubr.bf16.gmra.mrb[0].mxu0 %v4996
        %v5090 = vpop.f32.mrb[0].mxu0
        %v5091 = vadd.f32 0.0, %v5090
        %v5092 = vpop.f32.mrb[0].mxu0
        %v5093 = vpop.f32.mrb[0].mxu0
        %v5094 = vadd.f32 0.0, %v5093
        %v5095 = vpop.f32.mrb[0].mxu0
        %5096 = vmatprep.mubr.bf16.mxu0 0
        %5097 = vmatmul.mubr.bf16.gmra.mrb[0].mxu0 %v4999
        %v5098 = vpop.f32.mrb[0].mxu0
        %v5099 = vadd.f32 0.0, %v5098
        %v5100 = vpop.f32.mrb[0].mxu0
        %v5101 = vpop.f32.mrb[0].mxu0
        %v5102 = vadd.f32 0.0, %v5101
        %v5103 = vpop.f32.mrb[0].mxu0
        %5104 = vmatprep.mubr.bf16.mxu0 0
        %5105 = vmatmul.mubr.bf16.gmra.mrb[0].mxu0 %v5002
        %v5106 = vpop.f32.mrb[0].mxu0
        %v5107 = vadd.f32 0.0, %v5106
        %v5108 = vpop.f32.mrb[0].mxu0
        %v5109 = vpop.f32.mrb[0].mxu0
        %v5110 = vadd.f32 0.0, %v5109
        %v5111 = vpop.f32.mrb[0].mxu0
        %5112 = vmatprep.mubr.bf16.mxu0 0
        %5113 = vmatmul.mubr.bf16.gmra.mrb[0].mxu0 %v5005
        %v5114 = vpop.f32.mrb[0].mxu0
        %v5115 = vadd.f32 0.0, %v5114
        %v5116 = vpop.f32.mrb[0].mxu0
        %v5117 = vpop.f32.mrb[0].mxu0
        %v5118 = vadd.f32 0.0, %v5117
        %v5119 = vpop.f32.mrb[0].mxu0
        %5120 = vmatprep.mubr.bf16.mxu0 0
        %5121 = vmatmul.mubr.bf16.gmra.mrb[0].mxu0 %v5008
        %v5122 = vpop.f32.mrb[0].mxu0
        %v5123 = vadd.f32 0.0, %v5122
        %v5124 = vpop.f32.mrb[0].mxu0
        %v5125 = vpop.f32.mrb[0].mxu0
        %v5126 = vadd.f32 0.0, %v5125
        %v5127 = vpop.f32.mrb[0].mxu0
        %5128 = vmatprep.mubr.bf16.mxu0 0
        %5129 = vmatmul.mubr.bf16.gmra.mrb[0].mxu0 %v5011
        %v5130 = vpop.f32.mrb[0].mxu0
        %v5131 = vadd.f32 0.0, %v5130
        %v5132 = vpop.f32.mrb[0].mxu0
        %v5133 = vpop.f32.mrb[0].mxu0
        %v5134 = vadd.f32 0.0, %v5133
        %v5135 = vpop.f32.mrb[0].mxu0
        %5136 = vmatprep.mubr.bf16.mxu0 0
        %5137 = vmatmul.mubr.bf16.gmra.mrb[0].mxu0 %v5014
        %v5138 = vpop.f32.mrb[0].mxu0
        %v5139 = vadd.f32 0.0, %v5138
        %v5140 = vpop.f32.mrb[0].mxu0
        %v5141 = vpop.f32.mrb[0].mxu0
        %v5142 = vadd.f32 0.0, %v5141
        %v5143 = vpop.f32.mrb[0].mxu0
        %5144 = vmatprep.mubr.bf16.mxu0 0
        %5145 = vmatmul.mubr.bf16.gmra.mrb[0].mxu0 %v5017
        %v5146 = vpop.f32.mrb[0].mxu0
        %v5147 = vadd.f32 0.0, %v5146
        %v5148 = vpop.f32.mrb[0].mxu0
        %v5149 = vpop.f32.mrb[0].mxu0
        %v5150 = vadd.f32 0.0, %v5149
        %v5151 = vpop.f32.mrb[0].mxu0
        %5152 = vmatprep.mubr.bf16.mxu0 0
        %5153 = vmatmul.mubr.bf16.gmra.mrb[0].mxu0 %v5020
        %v5154 = vpop.f32.mrb[0].mxu0
        %v5155 = vadd.f32 0.0, %v5154
        %v5156 = vpop.f32.mrb[0].mxu0
        %v5157 = vpop.f32.mrb[0].mxu0
        %v5158 = vadd.f32 0.0, %v5157
        %v5159 = vpop.f32.mrb[0].mxu0
        %5160 = vmatprep.mubr.bf16.mxu0 0
        %5161 = vmatmul.mubr.bf16.gmra.mrb[0].mxu0 %v5023
        %v5162 = vpop.f32.mrb[0].mxu0
        %v5163 = vadd.f32 0.0, %v5162
        %v5164 = vpop.f32.mrb[0].mxu0
        %v5165 = vpop.f32.mrb[0].mxu0
        %v5166 = vadd.f32 0.0, %v5165
        %v5167 = vpop.f32.mrb[0].mxu0
        %5168 = vmatprep.mubr.bf16.mxu0 0
        %5169 = vmatmul.mubr.bf16.gmra.mrb[0].mxu0 %v5026
        %v5170 = vpop.f32.mrb[0].mxu0
        %v5171 = vadd.f32 0.0, %v5170
        %v5172 = vpop.f32.mrb[0].mxu0
        %v5173 = vpop.f32.mrb[0].mxu0
        %v5174 = vadd.f32 0.0, %v5173
        %v5175 = vpop.f32.mrb[0].mxu0
        %5176 = vmatprep.mubr.bf16.mxu0 0
        %5177 = vmatmul.mubr.bf16.gmra.mrb[0].mxu0 %v5029
        %v5178 = vpop.f32.mrb[0].mxu0
        %v5179 = vadd.f32 0.0, %v5178
        %v5180 = vpop.f32.mrb[0].mxu0
        %v5181 = vpop.f32.mrb[0].mxu0
        %v5182 = vadd.f32 0.0, %v5181
        %v5183 = vpop.f32.mrb[0].mxu0
        %5184 = vmatprep.mubr.bf16.mxu0 0
        %5185 = vmatmul.mubr.bf16.gmra.mrb[0].mxu0 %v5032
        %v5186 = vpop.f32.mrb[0].mxu0
        %v5187 = vadd.f32 0.0, %v5186
        %v5188 = vpop.f32.mrb[0].mxu0
        %v5189 = vpop.f32.mrb[0].mxu0
        %v5190 = vadd.f32 0.0, %v5189
        %v5191 = vpop.f32.mrb[0].mxu0
        %5192 = vmatprep.mubr.bf16.mxu0 0
        %5193 = vmatmul.mubr.bf16.gmra.mrb[0].mxu0 %v5035
        %v5194 = vpop.f32.mrb[0].mxu0
        %v5195 = vadd.f32 0.0, %v5194
        %v5196 = vpop.f32.mrb[0].mxu0
        %v5197 = vpop.f32.mrb[0].mxu0
        %v5198 = vadd.f32 0.0, %v5197
        %v5199 = vpop.f32.mrb[0].mxu0
        %5200 = vdwg.mxu0
        %v5201 = vadd.f32 %v4907, %v5075
        %v5202 = vadd.f32 %v4908, %v5078
        %v5203 = vadd.f32 %v4909, %v5083
        %v5204 = vadd.f32 %v4910, %v5086
        %v5205 = vadd.f32 %v4911, %v5091
        %v5206 = vadd.f32 %v4912, %v5094
        %v5207 = vadd.f32 %v4913, %v5099
        %v5208 = vadd.f32 %v4914, %v5102
        %v5209 = vadd.f32 %v4915, %v5107
        %v5210 = vadd.f32 %v4916, %v5110
        %v5211 = vadd.f32 %v4917, %v5115
        %v5212 = vadd.f32 %v4918, %v5118
        %v5213 = vadd.f32 %v4919, %v5123
        %v5214 = vadd.f32 %v4920, %v5126
        %v5215 = vadd.f32 %v4921, %v5131
        %v5216 = vadd.f32 %v4922, %v5134
        %v5217 = vadd.f32 %v4923, %v5139
        %v5218 = vadd.f32 %v4924, %v5142
        %v5219 = vadd.f32 %v4925, %v5147
        %v5220 = vadd.f32 %v4926, %v5150
        %v5221 = vadd.f32 %v4927, %v5155
        %v5222 = vadd.f32 %v4928, %v5158
        %v5223 = vadd.f32 %v4929, %v5163
        %v5224 = vadd.f32 %v4930, %v5166
        %v5225 = vadd.f32 %v4931, %v5171
        %v5226 = vadd.f32 %v4932, %v5174
        %v5227 = vadd.f32 %v4933, %v5179
        %v5228 = vadd.f32 %v4934, %v5182
        %v5229 = vadd.f32 %v4935, %v5187
        %v5230 = vadd.f32 %v4936, %v5190
        %v5231 = vadd.f32 %v4937, %v5195
        %v5232 = vadd.f32 %v4938, %v5198
        %v5233 = vpack.c.bf16 %v5202, %v5201
        %v5234 = vpack.c.bf16 %v5204, %v5203
        %v5235 = vpack.c.bf16 %v5206, %v5205
        %v5236 = vpack.c.bf16 %v5208, %v5207
        %v5237 = vpack.c.bf16 %v5210, %v5209
        %v5238 = vpack.c.bf16 %v5212, %v5211
        %v5239 = vpack.c.bf16 %v5214, %v5213
        %v5240 = vpack.c.bf16 %v5216, %v5215
        %v5241 = vpack.c.bf16 %v5218, %v5217
        %v5242 = vpack.c.bf16 %v5220, %v5219
        %v5243 = vpack.c.bf16 %v5222, %v5221
        %v5244 = vpack.c.bf16 %v5224, %v5223
        %v5245 = vpack.c.bf16 %v5226, %v5225
        %v5246 = vpack.c.bf16 %v5228, %v5227
        %v5247 = vpack.c.bf16 %v5230, %v5229
        %v5248 = vpack.c.bf16 %v5232, %v5231
        %v5265 = vunpack.c.l.b16 %v5233
        %v5266 = vunpack.c.h.b16 %v5233
        %v5267 = vunpack.c.l.b16 %v5234
        %v5268 = vunpack.c.h.b16 %v5234
        %v5269 = vunpack.c.l.b16 %v5235
        %v5270 = vunpack.c.h.b16 %v5235
        %v5271 = vunpack.c.l.b16 %v5236
        %v5272 = vunpack.c.h.b16 %v5236
        %v5273 = vunpack.c.l.b16 %v5237
        %v5274 = vunpack.c.h.b16 %v5237
        %v5275 = vunpack.c.l.b16 %v5238
        %v5276 = vunpack.c.h.b16 %v5238
        %v5277 = vunpack.c.l.b16 %v5239
        %v5278 = vunpack.c.h.b16 %v5239
        %v5279 = vunpack.c.l.b16 %v5240
        %v5280 = vunpack.c.h.b16 %v5240
        %v5281 = vunpack.c.l.b16 %v5241
        %v5282 = vunpack.c.h.b16 %v5241
        %v5283 = vunpack.c.l.b16 %v5242
        %v5284 = vunpack.c.h.b16 %v5242
        %v5285 = vunpack.c.l.b16 %v5243
        %v5286 = vunpack.c.h.b16 %v5243
        %v5287 = vunpack.c.l.b16 %v5244
        %v5288 = vunpack.c.h.b16 %v5244
        %v5289 = vunpack.c.l.b16 %v5245
        %v5290 = vunpack.c.h.b16 %v5245
        %v5291 = vunpack.c.l.b16 %v5246
        %v5292 = vunpack.c.h.b16 %v5246
        %v5293 = vunpack.c.l.b16 %v5247
        %v5294 = vunpack.c.h.b16 %v5247
        %v5295 = vunpack.c.l.b16 %v5248
        %v5296 = vunpack.c.h.b16 %v5248
        %v5297 = vpack.c.b16 %v5265, %v5265
        %v5298 = vpack.c.b16 %v5266, %v5266
        %v5299 = vpack.c.b16 %v5267, %v5267
        %v5300 = vpack.c.b16 %v5268, %v5268
        %v5301 = vpack.c.b16 %v5269, %v5269
        %v5302 = vpack.c.b16 %v5270, %v5270
        %v5303 = vpack.c.b16 %v5271, %v5271
        %v5304 = vpack.c.b16 %v5272, %v5272
        %v5305 = vpack.c.b16 %v5273, %v5273
        %v5306 = vpack.c.b16 %v5274, %v5274
        %v5307 = vpack.c.b16 %v5275, %v5275
        %v5308 = vpack.c.b16 %v5276, %v5276
        %v5309 = vpack.c.b16 %v5277, %v5277
        %v5310 = vpack.c.b16 %v5278, %v5278
        %v5311 = vpack.c.b16 %v5279, %v5279
        %v5312 = vpack.c.b16 %v5280, %v5280
        %v5313 = vpack.c.b16 %v5281, %v5281
        %v5314 = vpack.c.b16 %v5282, %v5282
        %v5315 = vpack.c.b16 %v5283, %v5283
        %v5316 = vpack.c.b16 %v5284, %v5284
        %v5317 = vpack.c.b16 %v5285, %v5285
        %v5318 = vpack.c.b16 %v5286, %v5286
        %v5319 = vpack.c.b16 %v5287, %v5287
        %v5320 = vpack.c.b16 %v5288, %v5288
        %v5321 = vpack.c.b16 %v5289, %v5289
        %v5322 = vpack.c.b16 %v5290, %v5290
        %v5323 = vpack.c.b16 %v5291, %v5291
        %v5324 = vpack.c.b16 %v5292, %v5292
        %v5325 = vpack.c.b16 %v5293, %v5293
        %v5326 = vpack.c.b16 %v5294, %v5294
        %v5327 = vpack.c.b16 %v5295, %v5295
        %v5328 = vpack.c.b16 %v5296, %v5296
        %5361 = vst.msk [vmem:[%s224] sm:$0xf] %vm659, %v5297
        %5362 = vst.msk [vmem:[%s224 + $0x4] sm:$0xf] %vm659, %v5298
        %5363 = vst.msk [vmem:[%s224 + $0x8] sm:$0xf] %vm659, %v5299
        %5364 = vst.msk [vmem:[%s224 + $0xc] sm:$0xf] %vm659, %v5300
        %5365 = vst.msk [vmem:[%s224 + $0x10] sm:$0xf] %vm659, %v5301
        %5366 = vst.msk [vmem:[%s224 + $0x14] sm:$0xf] %vm659, %v5302
        %5367 = vst.msk [vmem:[%s224 + $0x18] sm:$0xf] %vm659, %v5303
        %5368 = vst.msk [vmem:[%s224 + $0x1c] sm:$0xf] %vm659, %v5304
        %5369 = vst.msk [vmem:[%s224 + $0x20] sm:$0xf] %vm659, %v5305
        %5370 = vst.msk [vmem:[%s224 + $0x24] sm:$0xf] %vm659, %v5306
        %5371 = vst.msk [vmem:[%s224 + $0x28] sm:$0xf] %vm659, %v5307
        %5372 = vst.msk [vmem:[%s224 + $0x2c] sm:$0xf] %vm659, %v5308
        %5373 = vst.msk [vmem:[%s224 + $0x30] sm:$0xf] %vm659, %v5309
        %5374 = vst.msk [vmem:[%s224 + $0x34] sm:$0xf] %vm659, %v5310
        %5375 = vst.msk [vmem:[%s224 + $0x38] sm:$0xf] %vm659, %v5311
        %5376 = vst.msk [vmem:[%s224 + $0x3c] sm:$0xf] %vm659, %v5312
        %5377 = vst.msk [vmem:[%s224 + $0x40] sm:$0xf] %vm659, %v5313
        %5378 = vst.msk [vmem:[%s224 + $0x44] sm:$0xf] %vm659, %v5314
        %5379 = vst.msk [vmem:[%s224 + $0x48] sm:$0xf] %vm659, %v5315
        %5380 = vst.msk [vmem:[%s224 + $0x4c] sm:$0xf] %vm659, %v5316
        %5381 = vst.msk [vmem:[%s224 + $0x50] sm:$0xf] %vm659, %v5317
        %5382 = vst.msk [vmem:[%s224 + $0x54] sm:$0xf] %vm659, %v5318
        %5383 = vst.msk [vmem:[%s224 + $0x58] sm:$0xf] %vm659, %v5319
        %5384 = vst.msk [vmem:[%s224 + $0x5c] sm:$0xf] %vm659, %v5320
        %5385 = vst.msk [vmem:[%s224 + $0x60] sm:$0xf] %vm659, %v5321
        %5386 = vst.msk [vmem:[%s224 + $0x64] sm:$0xf] %vm659, %v5322
        %5387 = vst.msk [vmem:[%s224 + $0x68] sm:$0xf] %vm659, %v5323
        %5388 = vst.msk [vmem:[%s224 + $0x6c] sm:$0xf] %vm659, %v5324
        %5389 = vst.msk [vmem:[%s224 + $0x70] sm:$0xf] %vm659, %v5325
        %5390 = vst.msk [vmem:[%s224 + $0x74] sm:$0xf] %vm659, %v5326
        %5391 = vst.msk [vmem:[%s224 + $0x78] sm:$0xf] %vm659, %v5327
        %5392 = vst.msk [vmem:[%s224 + $0x7c] sm:$0xf] %vm659, %v5328
        %v5393 = vld [vmem:[%s231] sm:$0x1]
        %v5394 = vsel %vm2653, %v5201, 0.0
        %v5395 = vsel %vm2653, %v5202, 0.0
        %v5396 = vadd.f32 %v5394, %v5395
        %v5397 = vsel %vm2653, %v5203, 0.0
        %v5398 = vadd.f32 %v5396, %v5397
        %v5399 = vsel %vm2653, %v5204, 0.0
        %v5400 = vadd.f32 %v5398, %v5399
        %v5401 = vsel %vm2653, %v5205, 0.0
        %v5402 = vadd.f32 %v5400, %v5401
        %v5403 = vsel %vm2653, %v5206, 0.0
        %v5404 = vadd.f32 %v5402, %v5403
        %v5405 = vsel %vm2653, %v5207, 0.0
        %v5406 = vadd.f32 %v5404, %v5405
        %v5407 = vsel %vm2653, %v5208, 0.0
        %v5408 = vadd.f32 %v5406, %v5407
        %v5409 = vsel %vm2653, %v5209, 0.0
        %v5410 = vadd.f32 %v5408, %v5409
        %v5411 = vsel %vm2653, %v5210, 0.0
        %v5412 = vadd.f32 %v5410, %v5411
        %v5413 = vsel %vm2653, %v5211, 0.0
        %v5414 = vadd.f32 %v5412, %v5413
        %v5415 = vsel %vm2653, %v5212, 0.0
        %v5416 = vadd.f32 %v5414, %v5415
        %v5417 = vsel %vm2653, %v5213, 0.0
        %v5418 = vadd.f32 %v5416, %v5417
        %v5419 = vsel %vm2653, %v5214, 0.0
        %v5420 = vadd.f32 %v5418, %v5419
        %v5421 = vsel %vm2653, %v5215, 0.0
        %v5422 = vadd.f32 %v5420, %v5421
        %v5423 = vsel %vm2653, %v5216, 0.0
        %v5424 = vadd.f32 %v5422, %v5423
        %v5425 = vsel %vm2653, %v5217, 0.0
        %v5426 = vadd.f32 %v5424, %v5425
        %v5427 = vsel %vm2653, %v5218, 0.0
        %v5428 = vadd.f32 %v5426, %v5427
        %v5429 = vsel %vm2653, %v5219, 0.0
        %v5430 = vadd.f32 %v5428, %v5429
        %v5431 = vsel %vm2653, %v5220, 0.0
        %v5432 = vadd.f32 %v5430, %v5431
        %v5433 = vsel %vm2653, %v5221, 0.0
        %v5434 = vadd.f32 %v5432, %v5433
        %v5435 = vsel %vm2653, %v5222, 0.0
        %v5436 = vadd.f32 %v5434, %v5435
        %v5437 = vsel %vm2653, %v5223, 0.0
        %v5438 = vadd.f32 %v5436, %v5437
        %v5439 = vsel %vm2653, %v5224, 0.0
        %v5440 = vadd.f32 %v5438, %v5439
        %v5441 = vsel %vm2653, %v5225, 0.0
        %v5442 = vadd.f32 %v5440, %v5441
        %v5443 = vsel %vm2653, %v5226, 0.0
        %v5444 = vadd.f32 %v5442, %v5443
        %v5445 = vsel %vm2653, %v5227, 0.0
        %v5446 = vadd.f32 %v5444, %v5445
        %v5447 = vsel %vm2653, %v5228, 0.0
        %v5448 = vadd.f32 %v5446, %v5447
        %v5449 = vsel %vm2653, %v5229, 0.0
        %v5450 = vadd.f32 %v5448, %v5449
        %v5451 = vsel %vm2653, %v5230, 0.0
        %v5452 = vadd.f32 %v5450, %v5451
        %v5453 = vsel %vm2653, %v5231, 0.0
        %v5454 = vadd.f32 %v5452, %v5453
        %v5455 = vsel %vm2653, %v5232, 0.0
        %v5456 = vadd.f32 %v5454, %v5455
        %v5457 = vrot.slane %v5456, 4
        %v5458 = vadd.f32 %v5456, %v5457
        %v5459 = vrot.slane %v5458, 2
        %v5460 = vadd.f32 %v5458, %v5459
        %v5461 = vrot.slane %v5460, 1
        %v5462 = vadd.f32 %v5460, %v5461
        %v5463 = vadd.f32 %v5393, %v5462
        %vm5464 = vcmask 24576
        %5465 = vst.msk [vmem:[%s231] sm:$0x1] %vm5464, %v5463
        %v5466 = vld [vmem:[%s231 + $0x1] sm:$0x1]
        %v5467 = vmul.f32 %v5201, %v5201
        %v5468 = vmul.f32 %v5202, %v5202
        %v5469 = vmul.f32 %v5203, %v5203
        %v5470 = vmul.f32 %v5204, %v5204
        %v5471 = vmul.f32 %v5205, %v5205
        %v5472 = vmul.f32 %v5206, %v5206
        %v5473 = vmul.f32 %v5207, %v5207
        %v5474 = vmul.f32 %v5208, %v5208
        %v5475 = vmul.f32 %v5209, %v5209
        %v5476 = vmul.f32 %v5210, %v5210
        %v5477 = vmul.f32 %v5211, %v5211
        %v5478 = vmul.f32 %v5212, %v5212
        %v5479 = vmul.f32 %v5213, %v5213
        %v5480 = vmul.f32 %v5214, %v5214
        %v5481 = vmul.f32 %v5215, %v5215
        %v5482 = vmul.f32 %v5216, %v5216
        %v5483 = vmul.f32 %v5217, %v5217
        %v5484 = vmul.f32 %v5218, %v5218
        %v5485 = vmul.f32 %v5219, %v5219
        %v5486 = vmul.f32 %v5220, %v5220
        %v5487 = vmul.f32 %v5221, %v5221
        %v5488 = vmul.f32 %v5222, %v5222
        %v5489 = vmul.f32 %v5223, %v5223
        %v5490 = vmul.f32 %v5224, %v5224
        %v5491 = vmul.f32 %v5225, %v5225
        %v5492 = vmul.f32 %v5226, %v5226
        %v5493 = vmul.f32 %v5227, %v5227
        %v5494 = vmul.f32 %v5228, %v5228
        %v5495 = vmul.f32 %v5229, %v5229
        %v5496 = vmul.f32 %v5230, %v5230
        %v5497 = vmul.f32 %v5231, %v5231
        %v5498 = vmul.f32 %v5232, %v5232
        %v5499 = vsel %vm2653, %v5467, 0.0
        %v5500 = vsel %vm2653, %v5468, 0.0
        %v5501 = vadd.f32 %v5499, %v5500
        %v5502 = vsel %vm2653, %v5469, 0.0
        %v5503 = vadd.f32 %v5501, %v5502
        %v5504 = vsel %vm2653, %v5470, 0.0
        %v5505 = vadd.f32 %v5503, %v5504
        %v5506 = vsel %vm2653, %v5471, 0.0
        %v5507 = vadd.f32 %v5505, %v5506
        %v5508 = vsel %vm2653, %v5472, 0.0
        %v5509 = vadd.f32 %v5507, %v5508
        %v5510 = vsel %vm2653, %v5473, 0.0
        %v5511 = vadd.f32 %v5509, %v5510
        %v5512 = vsel %vm2653, %v5474, 0.0
        %v5513 = vadd.f32 %v5511, %v5512
        %v5514 = vsel %vm2653, %v5475, 0.0
        %v5515 = vadd.f32 %v5513, %v5514
        %v5516 = vsel %vm2653, %v5476, 0.0
        %v5517 = vadd.f32 %v5515, %v5516
        %v5518 = vsel %vm2653, %v5477, 0.0
        %v5519 = vadd.f32 %v5517, %v5518
        %v5520 = vsel %vm2653, %v5478, 0.0
        %v5521 = vadd.f32 %v5519, %v5520
        %v5522 = vsel %vm2653, %v5479, 0.0
        %v5523 = vadd.f32 %v5521, %v5522
        %v5524 = vsel %vm2653, %v5480, 0.0
        %v5525 = vadd.f32 %v5523, %v5524
        %v5526 = vsel %vm2653, %v5481, 0.0
        %v5527 = vadd.f32 %v5525, %v5526
        %v5528 = vsel %vm2653, %v5482, 0.0
        %v5529 = vadd.f32 %v5527, %v5528
        %v5530 = vsel %vm2653, %v5483, 0.0
        %v5531 = vadd.f32 %v5529, %v5530
        %v5532 = vsel %vm2653, %v5484, 0.0
        %v5533 = vadd.f32 %v5531, %v5532
        %v5534 = vsel %vm2653, %v5485, 0.0
        %v5535 = vadd.f32 %v5533, %v5534
        %v5536 = vsel %vm2653, %v5486, 0.0
        %v5537 = vadd.f32 %v5535, %v5536
        %v5538 = vsel %vm2653, %v5487, 0.0
        %v5539 = vadd.f32 %v5537, %v5538
        %v5540 = vsel %vm2653, %v5488, 0.0
        %v5541 = vadd.f32 %v5539, %v5540
        %v5542 = vsel %vm2653, %v5489, 0.0
        %v5543 = vadd.f32 %v5541, %v5542
        %v5544 = vsel %vm2653, %v5490, 0.0
        %v5545 = vadd.f32 %v5543, %v5544
        %v5546 = vsel %vm2653, %v5491, 0.0
        %v5547 = vadd.f32 %v5545, %v5546
        %v5548 = vsel %vm2653, %v5492, 0.0
        %v5549 = vadd.f32 %v5547, %v5548
        %v5550 = vsel %vm2653, %v5493, 0.0
        %v5551 = vadd.f32 %v5549, %v5550
        %v5552 = vsel %vm2653, %v5494, 0.0
        %v5553 = vadd.f32 %v5551, %v5552
        %v5554 = vsel %vm2653, %v5495, 0.0
        %v5555 = vadd.f32 %v5553, %v5554
        %v5556 = vsel %vm2653, %v5496, 0.0
        %v5557 = vadd.f32 %v5555, %v5556
        %v5558 = vsel %vm2653, %v5497, 0.0
        %v5559 = vadd.f32 %v5557, %v5558
        %v5560 = vsel %vm2653, %v5498, 0.0
        %v5561 = vadd.f32 %v5559, %v5560
        %v5562 = vrot.slane %v5561, 4
        %v5563 = vadd.f32 %v5561, %v5562
        %v5564 = vrot.slane %v5563, 2
        %v5565 = vadd.f32 %v5563, %v5564
        %v5566 = vrot.slane %v5565, 1
        %v5567 = vadd.f32 %v5565, %v5566
        %v5568 = vadd.f32 %v5466, %v5567
        %5569 = vst.msk [vmem:[%s231 + $0x1] sm:$0x1] %vm5464, %v5568
        %s5570 = sand.u32 %s96, 1
        %s5571 = scalar_lea.sflag [#allocation5], %s5570
        %s5572 = sand.u32 %s96, 1
        %s5573 = smul.addr %s5572, 128
        %s5574 = scalar_lea.vmem [#allocation8], %s5573
        %s5575 = sand.u32 %s122, 1
        %s5576 = scalar_lea.sflag [#allocation10], %s5575
        %s5577 = sand.u32 %s122, 1
        %s5578 = smul.addr %s5577, 2
        %s5579 = scalar_lea.vmem [#allocation9], %s5578
        // Predicated region
        $region41: #{basic_block_forward.3} parent=27 // pred_check
          %p5580 = pneg %p106
        $region42: #{basic_block_forward.3} parent=27 // pred_check_branch
          %5582 = sbr.rel (%p5580) target = $region44
        $region43: #{basic_block_forward.3} parent=27 // pred_region
          %s5583 = sadd.s32 %s29, %s30
          %s5585 = ssub.s32 2048, 2048
          %5586 = vsyncadd %s5571, %s5585
          %s5587 = smul.addr %s5583, 32
          %s5588 = smul.addr %s5587, 64
          %s5589 = scalar_lea.hbm %s2, %s5588
          %s5590 = sshll.u32 %s5574, 4
          %s5591 = int_to_ptr.vmem [resolvable:$true] %s5590
          %5596 = dma.vmem_to_hbm [thread:$0]  %s5591, 2048, %s5589, %s5571, 64, 64, 4
        $region44: #{basic_block_forward.3} parent=27 // pred_fallthru
          _
        // Predicated region
        $region45: #{basic_block_forward.3} parent=27 // pred_check
          %p5597 = pneg %p132
        $region46: #{basic_block_forward.3} parent=27 // pred_check_branch
          %5599 = sbr.rel (%p5597) target = $region48
        $region47: #{basic_block_forward.3} parent=27 // pred_region
          %s5601 = ssub.s32 32, 32
          %5602 = vsyncadd %s5576, %s5601
          %s5603 = smul.addr %s29, 32
          %s5604 = scalar_lea.hbm %s3, %s5603
          %s5606 = sshll.u32 %s5579, 4
          %s5607 = int_to_ptr.vmem [resolvable:$true] %s5606
          %5609 = dma.vmem_to_hbm [thread:$0]  %s5607, 32, %s5604, %s5576
        $region48: #{basic_block_forward.3} parent=27 // pred_fallthru
          _
      $region28: #{basic_block_forward.3} parent=5 // pred_fallthru
        _
      %p5610 = scmp.le.s32.totalorder 2, %s20
      // Predicated region
      $region49: #{basic_block_forward.3} parent=5 // pred_check
        %p5611 = pneg %p5610
      $region50: #{basic_block_forward.3} parent=5 // pred_check_branch
        %5613 = sbr.rel (%p5611) target = $region52
      $region51: #{basic_block_forward.3} parent=5 // pred_region
        %s5614 = ssub.s32 %s20, 2
        // Predicated region
        $region53: #{basic_block_forward.3} parent=51 // pred_check
          %p5615 = pneg %p112
        $region54: #{basic_block_forward.3} parent=51 // pred_check_branch
          %5617 = sbr.rel (%p5615) target = $region56
        $region55: #{basic_block_forward.3} parent=51 // pred_region
          %s5618 = sand.u32 %s97, 1
          %s5619 = scalar_lea.sflag [#allocation5], %s5618
          %s5620 = sand.u32 %s97, 1
          %s5621 = smul.addr %s5620, 128
          %s5622 = scalar_lea.vmem [#allocation8], %s5621
          %5623 = dma.done %s5619, 2048
        $region56: #{basic_block_forward.3} parent=51 // pred_fallthru
          _
        // Predicated region
        $region57: #{basic_block_forward.3} parent=51 // pred_check
          %p5624 = pneg %p138
        $region58: #{basic_block_forward.3} parent=51 // pred_check_branch
          %5626 = sbr.rel (%p5624) target = $region60
        $region59: #{basic_block_forward.3} parent=51 // pred_region
          %s5627 = sand.u32 %s123, 1
          %s5628 = scalar_lea.sflag [#allocation10], %s5627
          %s5629 = sand.u32 %s123, 1
          %s5630 = smul.addr %s5629, 2
          %s5631 = scalar_lea.vmem [#allocation9], %s5630
          %5632 = dma.done %s5628, 32
        $region60: #{basic_block_forward.3} parent=51 // pred_fallthru
          _
      $region52: #{basic_block_forward.3} parent=5 // pred_fallthru
        _
    $region6: #{basic_block_forward.3} parent=1 // loop_footer
      %s24 = sadd.s32 1, %s20
    $region7: #{basic_block_forward.3} parent=1 // loop_footer_branch
      %19 = sbr.rel target = $region3
    $region8: #{basic_block_forward.3} parent=1 // loop_exit
      _
    %5633 = vsyncpa [#allocation4], 1
    %s5634 = scalar_lea.sflag [#allocation4], 1
    %5635 = vsyncpa %s5634, 1
    %5636 = vsyncpa [#allocation7], 1
    %5637 = vsyncpa [#allocation5], 1
    %s5638 = scalar_lea.sflag [#allocation5], 1
    %5639 = vsyncpa %s5638, 1
    %5640 = vsyncpa [#allocation10], 1
    %s5641 = scalar_lea.sflag [#allocation10], 1
    %5642 = vsyncpa %s5641, 1

</llo_original>
